<compile_context>
chip_gen: v5e
topology: v5e:2x2
jax: 0.10.0
libtpu: 0.0.40
codegen_flags: <defaults>
</compile_context>

<pallas_src>
import functools

import jax
import jax.numpy as jnp
from jax.experimental import pallas as pl
from jax.experimental.pallas import tpu as pltpu

EPS = 1e-3


def add_conv1x1_bn_kernel(xa_ref, xb_ref, w_ref, gamma_ref, beta_ref, o_ref,
                          *, p_true):
    # residual add in f32 (inputs arrive in f32 straight from HBM); round to
    # bf16 only for the MXU operands.
    x = (xa_ref[...] + xb_ref[...]).astype(jnp.bfloat16)          # (Cin, P)
    w = w_ref[...].astype(jnp.bfloat16)                           # (Tco, Cin)

    # 1x1 conv == MXU matmul with f32 accumulation
    y = jnp.dot(w, x, preferred_element_type=jnp.float32)         # (Tco, P)

    # single-pass batch statistics over the (unpadded, true) P columns
    inv_p = 1.0 / p_true
    mean = jnp.sum(y, axis=1, keepdims=True) * inv_p              # (Tco, 1)
    ex2 = jnp.sum(y * y, axis=1, keepdims=True) * inv_p           # (Tco, 1)
    var = jnp.maximum(ex2 - mean * mean, 0.0)

    # fold the BN affine into a per-channel scale/shift -> one FMA per element
    scale = gamma_ref[...] * jax.lax.rsqrt(var + EPS)             # (Tco, 1)
    shift = beta_ref[...] - mean * scale                          # (Tco, 1)
    o_ref[...] = (y * scale + shift).astype(o_ref.dtype)


def _num_tensorcores_per_chip():
    """2 TensorCores per chip on v7x; 1 on v5e/v6e (grid is a serial loop)."""
    try:
        kind = jax.devices()[0].device_kind.lower()
    except Exception:
        return 1
    return 2 if "v7" in kind else 1


def _select_tiling(cout):
    """One grid step per TensorCore; whole-Cout tile on single-core chips."""
    if _num_tensorcores_per_chip() >= 2 and cout % 16 == 0:
        return cout // 2, 2
    return cout, 1


def m_forward(x447, x432, conv_w, bn_gamma, bn_beta, out_dtype=jnp.float32):
    N, Cin, H, W = x447.shape
    Cout = conv_w.shape[0]
    P = N * H * W

    # NCHW -> (Cin, N*H*W).  For N == 1 this is a pure reshape (no copy).
    # TODO(synk): for N > 1 fold the NCHW permutation into the BlockSpec
    # index_map instead of materializing a transpose in HBM.
    if N == 1:
        xa = x447.reshape(Cin, P)
        xb = x432.reshape(Cin, P)
    else:
        xa = jnp.transpose(x447, (1, 0, 2, 3)).reshape(Cin, P)
        xb = jnp.transpose(x432, (1, 0, 2, 3)).reshape(Cin, P)

    w2 = conv_w.reshape(Cout, Cin)                     # f32, cast in-kernel
    g = bn_gamma.reshape(Cout, 1).astype(jnp.float32)
    b = bn_beta.reshape(Cout, 1).astype(jnp.float32)

    tile_co, n_tiles = _select_tiling(Cout)            # 1200x1 or 600x2 (v7x)

    kernel = functools.partial(add_conv1x1_bn_kernel, p_true=float(P))

    itemsize = jnp.dtype(x447.dtype).itemsize
    cost = pl.CostEstimate(
        flops=2 * Cout * Cin * P + 6 * Cout * P + Cin * P,
        transcendentals=Cout,
        bytes_accessed=(2 * Cin * P * itemsize         # xa, xb (f32)
                        + Cout * Cin * 4               # weights (f32)
                        + 2 * Cout * 4                 # gamma, beta (f32)
                        + Cout * P * jnp.dtype(out_dtype).itemsize),
    )

    out = pl.pallas_call(
        kernel,
        out_shape=jax.ShapeDtypeStruct((Cout, P), out_dtype),
        grid_spec=pltpu.PrefetchScalarGridSpec(
            num_scalar_prefetch=0,
            grid=(n_tiles,),
            in_specs=[
                pl.BlockSpec((Cin, P), lambda i: (0, 0)),        # xa (grid-invariant)
                pl.BlockSpec((Cin, P), lambda i: (0, 0)),        # xb (grid-invariant)
                pl.BlockSpec((tile_co, Cin), lambda i: (i, 0)),  # W tile
                pl.BlockSpec((tile_co, 1), lambda i: (i, 0)),    # gamma tile
                pl.BlockSpec((tile_co, 1), lambda i: (i, 0)),    # beta tile
            ],
            out_specs=pl.BlockSpec((tile_co, P), lambda i: (i, 0)),
        ),
        compiler_params=pltpu.CompilerParams(
            dimension_semantics=("parallel",)),
        cost_estimate=cost,
    )(xa, xb, w2, g, b)

    # (Cout, P) -> NCHW (pure reshape for N == 1; no padded columns to strip)
    if N == 1:
        return out.reshape(1, Cout, H, W)
    return jnp.transpose(out.reshape(Cout, N, H, W), (1, 0, 2, 3))


def reference_forward(x447, x432, conv_w, bn_gamma, bn_beta, *,
                      bf16_matmul=False):
    """Pure-JAX reference (PyTorch module semantics in train mode)."""
    N, Cin, H, W = x447.shape
    Cout = conv_w.shape[0]
    x = x447.astype(jnp.float32) + x432.astype(jnp.float32)
    w = conv_w.astype(jnp.float32)
    if bf16_matmul:
        # mirror the kernel's rounding: (f32 add) -> bf16, weights -> bf16
        x = x.astype(jnp.bfloat16).astype(jnp.float32)
        w = w.astype(jnp.bfloat16).astype(jnp.float32)
    y = jnp.einsum('oc,nchw->nohw', w.reshape(Cout, Cin), x,
                   precision=jax.lax.Precision.HIGHEST)
    mean = jnp.mean(y, axis=(0, 2, 3), keepdims=True)
    var = jnp.mean((y - mean) ** 2, axis=(0, 2, 3), keepdims=True)
    return (bn_gamma.reshape(1, Cout, 1, 1) * (y - mean) / jnp.sqrt(var + EPS)
            + bn_beta.reshape(1, Cout, 1, 1))


if __name__ == "__main__":
    key = jax.random.PRNGKey(0)
    k1, k2, k3 = jax.random.split(key, 3)

    N, Cin, Cout, H, W = 1, 200, 1200, 14, 14

    x447 = jax.random.normal(k1, (N, Cin, H, W), dtype=jnp.float32)
    x432 = jax.random.normal(k2, (N, Cin, H, W), dtype=jnp.float32)

    # Conv2d(200, 1200, 1, bias=False): kaiming-uniform-like init
    bound = 1.0 / (Cin ** 0.5)
    conv_w = jax.random.uniform(k3, (Cout, Cin, 1, 1), dtype=jnp.float32,
                                minval=-bound, maxval=bound)
    # BatchNorm2d default init: weight=1, bias=0
    bn_gamma = jnp.ones((Cout,), dtype=jnp.float32)
    bn_beta = jnp.zeros((Cout,), dtype=jnp.float32)

    # TODO(synk): running-stats update (momentum=0.01) is a training-time side
    # effect and does not affect the forward output; it is not emitted here.
    out = m_forward(x447, x432, conv_w, bn_gamma, bn_beta)
    jax.block_until_ready(out)
    assert out.shape == (N, Cout, H, W)

    # Kernel-correctness check: reference with the SAME bf16 rounding of the
    # matmul operands (isolates kernel bugs from quantization) -> tight tol.
    ref_bf16 = reference_forward(x447, x432, conv_w, bn_gamma, bn_beta,
                                 bf16_matmul=True)
    assert jnp.allclose(out, ref_bf16, atol=2e-3, rtol=2e-3), \
        float(jnp.max(jnp.abs(out - ref_bf16)))

    # End-to-end check vs the pure-f32 module semantics; tolerance reflects
    # the bf16 MXU-operand rounding adopted for matmul rate.
    ref_f32 = reference_forward(x447, x432, conv_w, bn_gamma, bn_beta)
    assert jnp.allclose(out, ref_f32, atol=3e-2, rtol=3e-2), \
        float(jnp.max(jnp.abs(out - ref_f32)))

    print("KERNEL_OK")
</pallas_src>

<mosaic_0001>
module attributes {stable_mosaic.version = 11 : i64} {
  func.func @add_conv1x1_bn_kernel(%arg0: i32, %arg1: memref<200x196xf32, #tpu.memory_space<vmem>>, %arg2: memref<200x196xf32, #tpu.memory_space<vmem>>, %arg3: memref<1200x200xf32, #tpu.memory_space<vmem>>, %arg4: memref<1200x1xf32, #tpu.memory_space<vmem>>, %arg5: memref<1200x1xf32, #tpu.memory_space<vmem>>, %arg6: memref<1200x196xf32, #tpu.memory_space<vmem>>) attributes {dimension_semantics = [#tpu.dimension_semantics<parallel>], iteration_bounds = array<i64: 1>, scalar_prefetch = 0 : i64, scratch_operands = 0 : i64, tpu.core_type = #tpu.core_type<tc>, window_params = [{pipeline_mode = #tpu.pipeline_mode<synchronous>, transform_indices = @transform_0, window_bounds = array<i64: 200, 196>}, {pipeline_mode = #tpu.pipeline_mode<synchronous>, transform_indices = @transform_1, window_bounds = array<i64: 200, 196>}, {transform_indices = @transform_2, window_bounds = array<i64: 1200, 200>}, {transform_indices = @transform_3, window_bounds = array<i64: 1200, 1>}, {transform_indices = @transform_4, window_bounds = array<i64: 1200, 1>}, {transform_indices = @transform_5, window_bounds = array<i64: 1200, 196>}]} {
    %c0 = arith.constant 0 : index
    %c0_0 = arith.constant 0 : index
    %0 = vector.load %arg1[%c0, %c0_0] : memref<200x196xf32, #tpu.memory_space<vmem>>, vector<200x196xf32>
    %c0_1 = arith.constant 0 : index
    %c0_2 = arith.constant 0 : index
    %1 = vector.load %arg2[%c0_1, %c0_2] : memref<200x196xf32, #tpu.memory_space<vmem>>, vector<200x196xf32>
    %2 = arith.addf %0, %1 : vector<200x196xf32>
    %3 = arith.truncf %2 : vector<200x196xf32> to vector<200x196xbf16>
    %c0_3 = arith.constant 0 : index
    %c0_4 = arith.constant 0 : index
    %4 = vector.load %arg3[%c0_3, %c0_4] : memref<1200x200xf32, #tpu.memory_space<vmem>>, vector<1200x200xf32>
    %5 = arith.truncf %4 : vector<1200x200xf32> to vector<1200x200xbf16>
    %cst = arith.constant dense<0.000000e+00> : vector<1200x196xf32>
    %6 = tpu.matmul %5, %3, %cst {dimension_numbers = #tpu.dot_dimension_numbers<[1], [0], [0], [1], [0, 0, 1, 1], [], []>} : vector<1200x200xbf16>, vector<200x196xbf16>, vector<1200x196xf32> -> vector<1200x196xf32>
    %cst_5 = arith.constant dense<0.000000e+00> : vector<1200xf32>
    %7 = vector.multi_reduction <add>, %6, %cst_5 [1] : vector<1200x196xf32> to vector<1200xf32>
    %8 = vector.shape_cast %7 : vector<1200xf32> to vector<1200x1xf32>
    %cst_6 = arith.constant 0.00510204071 : f32
    %9 = vector.broadcast %cst_6 : f32 to vector<1200x1xf32>
    %10 = arith.mulf %8, %9 : vector<1200x1xf32>
    %11 = arith.mulf %6, %6 : vector<1200x196xf32>
    %cst_7 = arith.constant dense<0.000000e+00> : vector<1200xf32>
    %12 = vector.multi_reduction <add>, %11, %cst_7 [1] : vector<1200x196xf32> to vector<1200xf32>
    %13 = vector.shape_cast %12 : vector<1200xf32> to vector<1200x1xf32>
    %cst_8 = arith.constant 0.00510204071 : f32
    %14 = vector.broadcast %cst_8 : f32 to vector<1200x1xf32>
    %15 = arith.mulf %13, %14 : vector<1200x1xf32>
    %16 = arith.mulf %10, %10 : vector<1200x1xf32>
    %17 = arith.subf %15, %16 : vector<1200x1xf32>
    %cst_9 = arith.constant 0.000000e+00 : f32
    %18 = vector.broadcast %cst_9 : f32 to vector<1200x1xf32>
    %19 = arith.maximumf %17, %18 : vector<1200x1xf32>
    %c0_10 = arith.constant 0 : index
    %c0_11 = arith.constant 0 : index
    %20 = vector.load %arg4[%c0_10, %c0_11] : memref<1200x1xf32, #tpu.memory_space<vmem>>, vector<1200x1xf32>
    %cst_12 = arith.constant 1.000000e-03 : f32
    %21 = vector.broadcast %cst_12 : f32 to vector<1200x1xf32>
    %22 = arith.addf %19, %21 : vector<1200x1xf32>
    %23 = math.rsqrt %22 : vector<1200x1xf32>
    %24 = arith.mulf %20, %23 : vector<1200x1xf32>
    %c0_13 = arith.constant 0 : index
    %c0_14 = arith.constant 0 : index
    %25 = vector.load %arg5[%c0_13, %c0_14] : memref<1200x1xf32, #tpu.memory_space<vmem>>, vector<1200x1xf32>
    %26 = arith.mulf %10, %24 : vector<1200x1xf32>
    %27 = arith.subf %25, %26 : vector<1200x1xf32>
    %28 = vector.broadcast %24 : vector<1200x1xf32> to vector<1200x196xf32>
    %29 = arith.mulf %6, %28 : vector<1200x196xf32>
    %30 = vector.broadcast %27 : vector<1200x1xf32> to vector<1200x196xf32>
    %31 = arith.addf %29, %30 : vector<1200x196xf32>
    %c0_15 = arith.constant 0 : index
    %c0_16 = arith.constant 0 : index
    %32 = vector.load %arg6[%c0_15, %c0_16] : memref<1200x196xf32, #tpu.memory_space<vmem>>, vector<1200x196xf32>
    tpu.vector_store %arg6[%c0_15, %c0_16], %31 {strides = array<i32>} : memref<1200x196xf32, #tpu.memory_space<vmem>>, vector<1200x196xf32>,
    return
  }
  func.func @transform_0(%arg0: i32) -> (i32, i32) {
    %c0_i32 = arith.constant 0 : i32
    %c0_i32_0 = arith.constant 0 : i32
    %c0_i32_1 = arith.constant 0 : i32
    return %c0_i32, %c0_i32_0 : i32, i32
  }
  func.func @transform_1(%arg0: i32) -> (i32, i32) {
    %c0_i32 = arith.constant 0 : i32
    %c0_i32_0 = arith.constant 0 : i32
    %c0_i32_1 = arith.constant 0 : i32
    return %c0_i32, %c0_i32_0 : i32, i32
  }
  func.func @transform_2(%arg0: i32) -> (i32, i32) {
    %c0_i32 = arith.constant 0 : i32
    %c0_i32_0 = arith.constant 0 : i32
    return %arg0, %c0_i32 : i32, i32
  }
  func.func @transform_3(%arg0: i32) -> (i32, i32) {
    %c0_i32 = arith.constant 0 : i32
    %c0_i32_0 = arith.constant 0 : i32
    return %arg0, %c0_i32 : i32, i32
  }
  func.func @transform_4(%arg0: i32) -> (i32, i32) {
    %c0_i32 = arith.constant 0 : i32
    %c0_i32_0 = arith.constant 0 : i32
    return %arg0, %c0_i32 : i32, i32
  }
  func.func @transform_5(%arg0: i32) -> (i32, i32) {
    %c0_i32 = arith.constant 0 : i32
    %c0_i32_0 = arith.constant 0 : i32
    return %arg0, %c0_i32 : i32, i32
  }
}

</mosaic_0001>

<llo_original>
// kernel: tpu_custom_call.1
$region0: #{tpu_custom_call.1}
  #allocation0 [shape = 'u32[]', space=smem, size = 0x4, offset = 0x4, fixed_abs, tag = 'smem constant byte address 0x4 - core index']
  #allocation1 [shape = 'u32[72,128]{1,0:T(1,128)}', space=vmem, size = 0x9000, scoped, tag = 'internal scratch']
  %s0 = inlined_call_operand.vmem [shape: f32[200,196], index: 0, kind: input, shape index: {}]
  %s1 = inlined_call_operand.vmem [shape: f32[200,196], index: 1, kind: input, shape index: {}]
  %s2 = inlined_call_operand.vmem [shape: f32[1200,200], index: 2, kind: input, shape index: {}]
  %s3 = inlined_call_operand.vmem [shape: f32[1200,1], index: 3, kind: input, shape index: {}]
  %s4 = inlined_call_operand.vmem [shape: f32[1200,1], index: 4, kind: input, shape index: {}]
  %s5 = inlined_call_operand.vmem [shape: f32[1200,196], index: 5, kind: output, shape index: {}]
  %s6 = sld [smem:[#allocation0]]
  $region30: #{tpu_custom_call.1} parent=0
    _
  %s8 = ssub.s32 1, %s6
  %s9 = scalar_select 0, %s8, %s6
  // Predicated region
  $region2: #{tpu_custom_call.1} parent=0 // pred_check
    _
  $region3: #{tpu_custom_call.1} parent=0 // pred_check_branch
    %11 = sbr.rel (0) target = $region5
  $region4: #{tpu_custom_call.1} parent=0 // pred_region
    _
  $region5: #{tpu_custom_call.1} parent=0 // pred_fallthru
    _
  // Predicated region
  $region6: #{tpu_custom_call.1} parent=0 // pred_check
    _
  $region7: #{tpu_custom_call.1} parent=0 // pred_check_branch
    %13 = sbr.rel (0) target = $region9
  $region8: #{tpu_custom_call.1} parent=0 // pred_region
    _
  $region9: #{tpu_custom_call.1} parent=0 // pred_fallthru
    _
  // Predicated region
  $region10: #{tpu_custom_call.1} parent=0 // pred_check
    _
  $region11: #{tpu_custom_call.1} parent=0 // pred_check_branch
    %15 = sbr.rel (0) target = $region13
  $region12: #{tpu_custom_call.1} parent=0 // pred_region
    _
  $region13: #{tpu_custom_call.1} parent=0 // pred_fallthru
    _
  // Predicated region
  $region14: #{tpu_custom_call.1} parent=0 // pred_check
    _
  $region15: #{tpu_custom_call.1} parent=0 // pred_check_branch
    %17 = sbr.rel (0) target = $region17
  $region16: #{tpu_custom_call.1} parent=0 // pred_region
    _
  $region17: #{tpu_custom_call.1} parent=0 // pred_fallthru
    _
  // Predicated region
  $region18: #{tpu_custom_call.1} parent=0 // pred_check
    _
  $region19: #{tpu_custom_call.1} parent=0 // pred_check_branch
    %19 = sbr.rel (0) target = $region21
  $region20: #{tpu_custom_call.1} parent=0 // pred_region
    _
  $region21: #{tpu_custom_call.1} parent=0 // pred_fallthru
    _
  %v21 = vld [vmem:[%s0] sm:$0xff]
  %v22 = vld [vmem:[%s0 + $0x8] sm:$0xff]
  %v23 = vld [vmem:[%s0 + $0x10] sm:$0xff]
  %v24 = vld [vmem:[%s0 + $0x18] sm:$0xff]
  %v25 = vld [vmem:[%s0 + $0x20] sm:$0xff]
  %v26 = vld [vmem:[%s0 + $0x28] sm:$0xff]
  %v27 = vld [vmem:[%s0 + $0x30] sm:$0xff]
  %v28 = vld [vmem:[%s0 + $0x38] sm:$0xff]
  %v29 = vld [vmem:[%s0 + $0x40] sm:$0xff]
  %v30 = vld [vmem:[%s0 + $0x48] sm:$0xff]
  %v31 = vld [vmem:[%s0 + $0x50] sm:$0xff]
  %v32 = vld [vmem:[%s0 + $0x58] sm:$0xff]
  %v33 = vld [vmem:[%s0 + $0x60] sm:$0xff]
  %v34 = vld [vmem:[%s0 + $0x68] sm:$0xff]
  %v35 = vld [vmem:[%s0 + $0x70] sm:$0xff]
  %v36 = vld [vmem:[%s0 + $0x78] sm:$0xff]
  %v37 = vld [vmem:[%s0 + $0x80] sm:$0xff]
  %v38 = vld [vmem:[%s0 + $0x88] sm:$0xff]
  %v39 = vld [vmem:[%s0 + $0x90] sm:$0xff]
  %v40 = vld [vmem:[%s0 + $0x98] sm:$0xff]
  %v41 = vld [vmem:[%s0 + $0xa0] sm:$0xff]
  %v42 = vld [vmem:[%s0 + $0xa8] sm:$0xff]
  %v43 = vld [vmem:[%s0 + $0xb0] sm:$0xff]
  %v44 = vld [vmem:[%s0 + $0xb8] sm:$0xff]
  %v45 = vld [vmem:[%s0 + $0xc0] sm:$0xff]
  %v46 = vld [vmem:[%s0 + $0xc8] sm:$0xff]
  %v47 = vld [vmem:[%s0 + $0xd0] sm:$0xff]
  %v48 = vld [vmem:[%s0 + $0xd8] sm:$0xff]
  %v49 = vld [vmem:[%s0 + $0xe0] sm:$0xff]
  %v50 = vld [vmem:[%s0 + $0xe8] sm:$0xff]
  %v51 = vld [vmem:[%s0 + $0xf0] sm:$0xff]
  %v52 = vld [vmem:[%s0 + $0xf8] sm:$0xff]
  %v53 = vld [vmem:[%s0 + $0x100] sm:$0xff]
  %v54 = vld [vmem:[%s0 + $0x108] sm:$0xff]
  %v55 = vld [vmem:[%s0 + $0x110] sm:$0xff]
  %v56 = vld [vmem:[%s0 + $0x118] sm:$0xff]
  %v57 = vld [vmem:[%s0 + $0x120] sm:$0xff]
  %v58 = vld [vmem:[%s0 + $0x128] sm:$0xff]
  %v59 = vld [vmem:[%s0 + $0x130] sm:$0xff]
  %v60 = vld [vmem:[%s0 + $0x138] sm:$0xff]
  %v61 = vld [vmem:[%s0 + $0x140] sm:$0xff]
  %v62 = vld [vmem:[%s0 + $0x148] sm:$0xff]
  %v63 = vld [vmem:[%s0 + $0x150] sm:$0xff]
  %v64 = vld [vmem:[%s0 + $0x158] sm:$0xff]
  %v65 = vld [vmem:[%s0 + $0x160] sm:$0xff]
  %v66 = vld [vmem:[%s0 + $0x168] sm:$0xff]
  %v67 = vld [vmem:[%s0 + $0x170] sm:$0xff]
  %v68 = vld [vmem:[%s0 + $0x178] sm:$0xff]
  %v69 = vld [vmem:[%s0 + $0x180] sm:$0xff]
  %v70 = vld [vmem:[%s0 + $0x188] sm:$0xff]
  %v71 = vld [vmem:[%s1] sm:$0xff]
  %v72 = vld [vmem:[%s1 + $0x8] sm:$0xff]
  %v73 = vld [vmem:[%s1 + $0x10] sm:$0xff]
  %v74 = vld [vmem:[%s1 + $0x18] sm:$0xff]
  %v75 = vld [vmem:[%s1 + $0x20] sm:$0xff]
  %v76 = vld [vmem:[%s1 + $0x28] sm:$0xff]
  %v77 = vld [vmem:[%s1 + $0x30] sm:$0xff]
  %v78 = vld [vmem:[%s1 + $0x38] sm:$0xff]
  %v79 = vld [vmem:[%s1 + $0x40] sm:$0xff]
  %v80 = vld [vmem:[%s1 + $0x48] sm:$0xff]
  %v81 = vld [vmem:[%s1 + $0x50] sm:$0xff]
  %v82 = vld [vmem:[%s1 + $0x58] sm:$0xff]
  %v83 = vld [vmem:[%s1 + $0x60] sm:$0xff]
  %v84 = vld [vmem:[%s1 + $0x68] sm:$0xff]
  %v85 = vld [vmem:[%s1 + $0x70] sm:$0xff]
  %v86 = vld [vmem:[%s1 + $0x78] sm:$0xff]
  %v87 = vld [vmem:[%s1 + $0x80] sm:$0xff]
  %v88 = vld [vmem:[%s1 + $0x88] sm:$0xff]
  %v89 = vld [vmem:[%s1 + $0x90] sm:$0xff]
  %v90 = vld [vmem:[%s1 + $0x98] sm:$0xff]
  %v91 = vld [vmem:[%s1 + $0xa0] sm:$0xff]
  %v92 = vld [vmem:[%s1 + $0xa8] sm:$0xff]
  %v93 = vld [vmem:[%s1 + $0xb0] sm:$0xff]
  %v94 = vld [vmem:[%s1 + $0xb8] sm:$0xff]
  %v95 = vld [vmem:[%s1 + $0xc0] sm:$0xff]
  %v96 = vld [vmem:[%s1 + $0xc8] sm:$0xff]
  %v97 = vld [vmem:[%s1 + $0xd0] sm:$0xff]
  %v98 = vld [vmem:[%s1 + $0xd8] sm:$0xff]
  %v99 = vld [vmem:[%s1 + $0xe0] sm:$0xff]
  %v100 = vld [vmem:[%s1 + $0xe8] sm:$0xff]
  %v101 = vld [vmem:[%s1 + $0xf0] sm:$0xff]
  %v102 = vld [vmem:[%s1 + $0xf8] sm:$0xff]
  %v103 = vld [vmem:[%s1 + $0x100] sm:$0xff]
  %v104 = vld [vmem:[%s1 + $0x108] sm:$0xff]
  %v105 = vld [vmem:[%s1 + $0x110] sm:$0xff]
  %v106 = vld [vmem:[%s1 + $0x118] sm:$0xff]
  %v107 = vld [vmem:[%s1 + $0x120] sm:$0xff]
  %v108 = vld [vmem:[%s1 + $0x128] sm:$0xff]
  %v109 = vld [vmem:[%s1 + $0x130] sm:$0xff]
  %v110 = vld [vmem:[%s1 + $0x138] sm:$0xff]
  %v111 = vld [vmem:[%s1 + $0x140] sm:$0xff]
  %v112 = vld [vmem:[%s1 + $0x148] sm:$0xff]
  %v113 = vld [vmem:[%s1 + $0x150] sm:$0xff]
  %v114 = vld [vmem:[%s1 + $0x158] sm:$0xff]
  %v115 = vld [vmem:[%s1 + $0x160] sm:$0xff]
  %v116 = vld [vmem:[%s1 + $0x168] sm:$0xff]
  %v117 = vld [vmem:[%s1 + $0x170] sm:$0xff]
  %v118 = vld [vmem:[%s1 + $0x178] sm:$0xff]
  %v119 = vld [vmem:[%s1 + $0x180] sm:$0xff]
  %v120 = vld [vmem:[%s1 + $0x188] sm:$0xff]
  %v121 = vadd.f32 %v21, %v71
  %v122 = vadd.f32 %v22, %v72
  %v123 = vadd.f32 %v23, %v73
  %v124 = vadd.f32 %v24, %v74
  %v125 = vadd.f32 %v25, %v75
  %v126 = vadd.f32 %v26, %v76
  %v127 = vadd.f32 %v27, %v77
  %v128 = vadd.f32 %v28, %v78
  %v129 = vadd.f32 %v29, %v79
  %v130 = vadd.f32 %v30, %v80
  %v131 = vadd.f32 %v31, %v81
  %v132 = vadd.f32 %v32, %v82
  %v133 = vadd.f32 %v33, %v83
  %v134 = vadd.f32 %v34, %v84
  %v135 = vadd.f32 %v35, %v85
  %v136 = vadd.f32 %v36, %v86
  %v137 = vadd.f32 %v37, %v87
  %v138 = vadd.f32 %v38, %v88
  %v139 = vadd.f32 %v39, %v89
  %v140 = vadd.f32 %v40, %v90
  %v141 = vadd.f32 %v41, %v91
  %v142 = vadd.f32 %v42, %v92
  %v143 = vadd.f32 %v43, %v93
  %v144 = vadd.f32 %v44, %v94
  %v145 = vadd.f32 %v45, %v95
  %v146 = vadd.f32 %v46, %v96
  %v147 = vadd.f32 %v47, %v97
  %v148 = vadd.f32 %v48, %v98
  %v149 = vadd.f32 %v49, %v99
  %v150 = vadd.f32 %v50, %v100
  %v151 = vadd.f32 %v51, %v101
  %v152 = vadd.f32 %v52, %v102
  %v153 = vadd.f32 %v53, %v103
  %v154 = vadd.f32 %v54, %v104
  %v155 = vadd.f32 %v55, %v105
  %v156 = vadd.f32 %v56, %v106
  %v157 = vadd.f32 %v57, %v107
  %v158 = vadd.f32 %v58, %v108
  %v159 = vadd.f32 %v59, %v109
  %v160 = vadd.f32 %v60, %v110
  %v161 = vadd.f32 %v61, %v111
  %v162 = vadd.f32 %v62, %v112
  %v163 = vadd.f32 %v63, %v113
  %v164 = vadd.f32 %v64, %v114
  %v165 = vadd.f32 %v65, %v115
  %v166 = vadd.f32 %v66, %v116
  %v167 = vadd.f32 %v67, %v117
  %v168 = vadd.f32 %v68, %v118
  %v169 = vadd.f32 %v69, %v119
  %v170 = vadd.f32 %v70, %v120
  %v171 = vpack.c.bf16 %v123, %v121
  %v172 = vpack.c.bf16 %v124, %v122
  %v173 = vpack.c.bf16 %v127, %v125
  %v174 = vpack.c.bf16 %v128, %v126
  %v175 = vpack.c.bf16 %v131, %v129
  %v176 = vpack.c.bf16 %v132, %v130
  %v177 = vpack.c.bf16 %v135, %v133
  %v178 = vpack.c.bf16 %v136, %v134
  %v179 = vpack.c.bf16 %v139, %v137
  %v180 = vpack.c.bf16 %v140, %v138
  %v181 = vpack.c.bf16 %v143, %v141
  %v182 = vpack.c.bf16 %v144, %v142
  %v183 = vpack.c.bf16 %v147, %v145
  %v184 = vpack.c.bf16 %v148, %v146
  %v185 = vpack.c.bf16 %v151, %v149
  %v186 = vpack.c.bf16 %v152, %v150
  %v187 = vpack.c.bf16 %v155, %v153
  %v188 = vpack.c.bf16 %v156, %v154
  %v189 = vpack.c.bf16 %v159, %v157
  %v190 = vpack.c.bf16 %v160, %v158
  %v191 = vpack.c.bf16 %v163, %v161
  %v192 = vpack.c.bf16 %v164, %v162
  %v193 = vpack.c.bf16 %v167, %v165
  %v194 = vpack.c.bf16 %v168, %v166
  %v195 = vpack.c.bf16 %v169, %v169
  %v196 = vpack.c.bf16 %v170, %v170
  %v197 = vld [vmem:[%s2] sm:$0xff]
  %v198 = vld [vmem:[%s2 + $0x8] sm:$0xff]
  %v199 = vld [vmem:[%s2 + $0x10] sm:$0xff]
  %v200 = vld [vmem:[%s2 + $0x18] sm:$0xff]
  %v201 = vld [vmem:[%s2 + $0x20] sm:$0xff]
  %v202 = vld [vmem:[%s2 + $0x28] sm:$0xff]
  %v203 = vld [vmem:[%s2 + $0x30] sm:$0xff]
  %v204 = vld [vmem:[%s2 + $0x38] sm:$0xff]
  %v205 = vld [vmem:[%s2 + $0x40] sm:$0xff]
  %v206 = vld [vmem:[%s2 + $0x48] sm:$0xff]
  %v207 = vld [vmem:[%s2 + $0x50] sm:$0xff]
  %v208 = vld [vmem:[%s2 + $0x58] sm:$0xff]
  %v209 = vld [vmem:[%s2 + $0x60] sm:$0xff]
  %v210 = vld [vmem:[%s2 + $0x68] sm:$0xff]
  %v211 = vld [vmem:[%s2 + $0x70] sm:$0xff]
  %v212 = vld [vmem:[%s2 + $0x78] sm:$0xff]
  %v213 = vld [vmem:[%s2 + $0x80] sm:$0xff]
  %v214 = vld [vmem:[%s2 + $0x88] sm:$0xff]
  %v215 = vld [vmem:[%s2 + $0x90] sm:$0xff]
  %v216 = vld [vmem:[%s2 + $0x98] sm:$0xff]
  %v217 = vld [vmem:[%s2 + $0xa0] sm:$0xff]
  %v218 = vld [vmem:[%s2 + $0xa8] sm:$0xff]
  %v219 = vld [vmem:[%s2 + $0xb0] sm:$0xff]
  %v220 = vld [vmem:[%s2 + $0xb8] sm:$0xff]
  %v221 = vld [vmem:[%s2 + $0xc0] sm:$0xff]
  %v222 = vld [vmem:[%s2 + $0xc8] sm:$0xff]
  %v223 = vld [vmem:[%s2 + $0xd0] sm:$0xff]
  %v224 = vld [vmem:[%s2 + $0xd8] sm:$0xff]
  %v225 = vld [vmem:[%s2 + $0xe0] sm:$0xff]
  %v226 = vld [vmem:[%s2 + $0xe8] sm:$0xff]
  %v227 = vld [vmem:[%s2 + $0xf0] sm:$0xff]
  %v228 = vld [vmem:[%s2 + $0xf8] sm:$0xff]
  %v229 = vld [vmem:[%s2 + $0x100] sm:$0xff]
  %v230 = vld [vmem:[%s2 + $0x108] sm:$0xff]
  %v231 = vld [vmem:[%s2 + $0x110] sm:$0xff]
  %v232 = vld [vmem:[%s2 + $0x118] sm:$0xff]
  %v233 = vld [vmem:[%s2 + $0x120] sm:$0xff]
  %v234 = vld [vmem:[%s2 + $0x128] sm:$0xff]
  %v235 = vld [vmem:[%s2 + $0x130] sm:$0xff]
  %v236 = vld [vmem:[%s2 + $0x138] sm:$0xff]
  %v237 = vld [vmem:[%s2 + $0x140] sm:$0xff]
  %v238 = vld [vmem:[%s2 + $0x148] sm:$0xff]
  %v239 = vld [vmem:[%s2 + $0x150] sm:$0xff]
  %v240 = vld [vmem:[%s2 + $0x158] sm:$0xff]
  %v241 = vld [vmem:[%s2 + $0x160] sm:$0xff]
  %v242 = vld [vmem:[%s2 + $0x168] sm:$0xff]
  %v243 = vld [vmem:[%s2 + $0x170] sm:$0xff]
  %v244 = vld [vmem:[%s2 + $0x178] sm:$0xff]
  %v245 = vld [vmem:[%s2 + $0x180] sm:$0xff]
  %v246 = vld [vmem:[%s2 + $0x188] sm:$0xff]
  %v247 = vld [vmem:[%s2 + $0x190] sm:$0xff]
  %v248 = vld [vmem:[%s2 + $0x198] sm:$0xff]
  %v249 = vld [vmem:[%s2 + $0x1a0] sm:$0xff]
  %v250 = vld [vmem:[%s2 + $0x1a8] sm:$0xff]
  %v251 = vld [vmem:[%s2 + $0x1b0] sm:$0xff]
  %v252 = vld [vmem:[%s2 + $0x1b8] sm:$0xff]
  %v253 = vld [vmem:[%s2 + $0x1c0] sm:$0xff]
  %v254 = vld [vmem:[%s2 + $0x1c8] sm:$0xff]
  %v255 = vld [vmem:[%s2 + $0x1d0] sm:$0xff]
  %v256 = vld [vmem:[%s2 + $0x1d8] sm:$0xff]
  %v257 = vld [vmem:[%s2 + $0x1e0] sm:$0xff]
  %v258 = vld [vmem:[%s2 + $0x1e8] sm:$0xff]
  %v259 = vld [vmem:[%s2 + $0x1f0] sm:$0xff]
  %v260 = vld [vmem:[%s2 + $0x1f8] sm:$0xff]
  %v261 = vld [vmem:[%s2 + $0x200] sm:$0xff]
  %v262 = vld [vmem:[%s2 + $0x208] sm:$0xff]
  %v263 = vld [vmem:[%s2 + $0x210] sm:$0xff]
  %v264 = vld [vmem:[%s2 + $0x218] sm:$0xff]
  %v265 = vld [vmem:[%s2 + $0x220] sm:$0xff]
  %v266 = vld [vmem:[%s2 + $0x228] sm:$0xff]
  %v267 = vld [vmem:[%s2 + $0x230] sm:$0xff]
  %v268 = vld [vmem:[%s2 + $0x238] sm:$0xff]
  %v269 = vld [vmem:[%s2 + $0x240] sm:$0xff]
  %v270 = vld [vmem:[%s2 + $0x248] sm:$0xff]
  %v271 = vld [vmem:[%s2 + $0x250] sm:$0xff]
  %v272 = vld [vmem:[%s2 + $0x258] sm:$0xff]
  %v273 = vld [vmem:[%s2 + $0x260] sm:$0xff]
  %v274 = vld [vmem:[%s2 + $0x268] sm:$0xff]
  %v275 = vld [vmem:[%s2 + $0x270] sm:$0xff]
  %v276 = vld [vmem:[%s2 + $0x278] sm:$0xff]
  %v277 = vld [vmem:[%s2 + $0x280] sm:$0xff]
  %v278 = vld [vmem:[%s2 + $0x288] sm:$0xff]
  %v279 = vld [vmem:[%s2 + $0x290] sm:$0xff]
  %v280 = vld [vmem:[%s2 + $0x298] sm:$0xff]
  %v281 = vld [vmem:[%s2 + $0x2a0] sm:$0xff]
  %v282 = vld [vmem:[%s2 + $0x2a8] sm:$0xff]
  %v283 = vld [vmem:[%s2 + $0x2b0] sm:$0xff]
  %v284 = vld [vmem:[%s2 + $0x2b8] sm:$0xff]
  %v285 = vld [vmem:[%s2 + $0x2c0] sm:$0xff]
  %v286 = vld [vmem:[%s2 + $0x2c8] sm:$0xff]
  %v287 = vld [vmem:[%s2 + $0x2d0] sm:$0xff]
  %v288 = vld [vmem:[%s2 + $0x2d8] sm:$0xff]
  %v289 = vld [vmem:[%s2 + $0x2e0] sm:$0xff]
  %v290 = vld [vmem:[%s2 + $0x2e8] sm:$0xff]
  %v291 = vld [vmem:[%s2 + $0x2f0] sm:$0xff]
  %v292 = vld [vmem:[%s2 + $0x2f8] sm:$0xff]
  %v293 = vld [vmem:[%s2 + $0x300] sm:$0xff]
  %v294 = vld [vmem:[%s2 + $0x308] sm:$0xff]
  %v295 = vld [vmem:[%s2 + $0x310] sm:$0xff]
  %v296 = vld [vmem:[%s2 + $0x318] sm:$0xff]
  %v297 = vld [vmem:[%s2 + $0x320] sm:$0xff]
  %v298 = vld [vmem:[%s2 + $0x328] sm:$0xff]
  %v299 = vld [vmem:[%s2 + $0x330] sm:$0xff]
  %v300 = vld [vmem:[%s2 + $0x338] sm:$0xff]
  %v301 = vld [vmem:[%s2 + $0x340] sm:$0xff]
  %v302 = vld [vmem:[%s2 + $0x348] sm:$0xff]
  %v303 = vld [vmem:[%s2 + $0x350] sm:$0xff]
  %v304 = vld [vmem:[%s2 + $0x358] sm:$0xff]
  %v305 = vld [vmem:[%s2 + $0x360] sm:$0xff]
  %v306 = vld [vmem:[%s2 + $0x368] sm:$0xff]
  %v307 = vld [vmem:[%s2 + $0x370] sm:$0xff]
  %v308 = vld [vmem:[%s2 + $0x378] sm:$0xff]
  %v309 = vld [vmem:[%s2 + $0x380] sm:$0xff]
  %v310 = vld [vmem:[%s2 + $0x388] sm:$0xff]
  %v311 = vld [vmem:[%s2 + $0x390] sm:$0xff]
  %v312 = vld [vmem:[%s2 + $0x398] sm:$0xff]
  %v313 = vld [vmem:[%s2 + $0x3a0] sm:$0xff]
  %v314 = vld [vmem:[%s2 + $0x3a8] sm:$0xff]
  %v315 = vld [vmem:[%s2 + $0x3b0] sm:$0xff]
  %v316 = vld [vmem:[%s2 + $0x3b8] sm:$0xff]
  %v317 = vld [vmem:[%s2 + $0x3c0] sm:$0xff]
  %v318 = vld [vmem:[%s2 + $0x3c8] sm:$0xff]
  %v319 = vld [vmem:[%s2 + $0x3d0] sm:$0xff]
  %v320 = vld [vmem:[%s2 + $0x3d8] sm:$0xff]
  %v321 = vld [vmem:[%s2 + $0x3e0] sm:$0xff]
  %v322 = vld [vmem:[%s2 + $0x3e8] sm:$0xff]
  %v323 = vld [vmem:[%s2 + $0x3f0] sm:$0xff]
  %v324 = vld [vmem:[%s2 + $0x3f8] sm:$0xff]
  %v325 = vld [vmem:[%s2 + $0x400] sm:$0xff]
  %v326 = vld [vmem:[%s2 + $0x408] sm:$0xff]
  %v327 = vld [vmem:[%s2 + $0x410] sm:$0xff]
  %v328 = vld [vmem:[%s2 + $0x418] sm:$0xff]
  %v329 = vld [vmem:[%s2 + $0x420] sm:$0xff]
  %v330 = vld [vmem:[%s2 + $0x428] sm:$0xff]
  %v331 = vld [vmem:[%s2 + $0x430] sm:$0xff]
  %v332 = vld [vmem:[%s2 + $0x438] sm:$0xff]
  %v333 = vld [vmem:[%s2 + $0x440] sm:$0xff]
  %v334 = vld [vmem:[%s2 + $0x448] sm:$0xff]
  %v335 = vld [vmem:[%s2 + $0x450] sm:$0xff]
  %v336 = vld [vmem:[%s2 + $0x458] sm:$0xff]
  %v337 = vld [vmem:[%s2 + $0x460] sm:$0xff]
  %v338 = vld [vmem:[%s2 + $0x468] sm:$0xff]
  %v339 = vld [vmem:[%s2 + $0x470] sm:$0xff]
  %v340 = vld [vmem:[%s2 + $0x478] sm:$0xff]
  %v341 = vld [vmem:[%s2 + $0x480] sm:$0xff]
  %v342 = vld [vmem:[%s2 + $0x488] sm:$0xff]
  %v343 = vld [vmem:[%s2 + $0x490] sm:$0xff]
  %v344 = vld [vmem:[%s2 + $0x498] sm:$0xff]
  %v345 = vld [vmem:[%s2 + $0x4a0] sm:$0xff]
  %v346 = vld [vmem:[%s2 + $0x4a8] sm:$0xff]
  %v347 = vld [vmem:[%s2 + $0x4b0] sm:$0xff]
  %v348 = vld [vmem:[%s2 + $0x4b8] sm:$0xff]
  %v349 = vld [vmem:[%s2 + $0x4c0] sm:$0xff]
  %v350 = vld [vmem:[%s2 + $0x4c8] sm:$0xff]
  %v351 = vld [vmem:[%s2 + $0x4d0] sm:$0xff]
  %v352 = vld [vmem:[%s2 + $0x4d8] sm:$0xff]
  %v353 = vld [vmem:[%s2 + $0x4e0] sm:$0xff]
  %v354 = vld [vmem:[%s2 + $0x4e8] sm:$0xff]
  %v355 = vld [vmem:[%s2 + $0x4f0] sm:$0xff]
  %v356 = vld [vmem:[%s2 + $0x4f8] sm:$0xff]
  %v357 = vld [vmem:[%s2 + $0x500] sm:$0xff]
  %v358 = vld [vmem:[%s2 + $0x508] sm:$0xff]
  %v359 = vld [vmem:[%s2 + $0x510] sm:$0xff]
  %v360 = vld [vmem:[%s2 + $0x518] sm:$0xff]
  %v361 = vld [vmem:[%s2 + $0x520] sm:$0xff]
  %v362 = vld [vmem:[%s2 + $0x528] sm:$0xff]
  %v363 = vld [vmem:[%s2 + $0x530] sm:$0xff]
  %v364 = vld [vmem:[%s2 + $0x538] sm:$0xff]
  %v365 = vld [vmem:[%s2 + $0x540] sm:$0xff]
  %v366 = vld [vmem:[%s2 + $0x548] sm:$0xff]
  %v367 = vld [vmem:[%s2 + $0x550] sm:$0xff]
  %v368 = vld [vmem:[%s2 + $0x558] sm:$0xff]
  %v369 = vld [vmem:[%s2 + $0x560] sm:$0xff]
  %v370 = vld [vmem:[%s2 + $0x568] sm:$0xff]
  %v371 = vld [vmem:[%s2 + $0x570] sm:$0xff]
  %v372 = vld [vmem:[%s2 + $0x578] sm:$0xff]
  %v373 = vld [vmem:[%s2 + $0x580] sm:$0xff]
  %v374 = vld [vmem:[%s2 + $0x588] sm:$0xff]
  %v375 = vld [vmem:[%s2 + $0x590] sm:$0xff]
  %v376 = vld [vmem:[%s2 + $0x598] sm:$0xff]
  %v377 = vld [vmem:[%s2 + $0x5a0] sm:$0xff]
  %v378 = vld [vmem:[%s2 + $0x5a8] sm:$0xff]
  %v379 = vld [vmem:[%s2 + $0x5b0] sm:$0xff]
  %v380 = vld [vmem:[%s2 + $0x5b8] sm:$0xff]
  %v381 = vld [vmem:[%s2 + $0x5c0] sm:$0xff]
  %v382 = vld [vmem:[%s2 + $0x5c8] sm:$0xff]
  %v383 = vld [vmem:[%s2 + $0x5d0] sm:$0xff]
  %v384 = vld [vmem:[%s2 + $0x5d8] sm:$0xff]
  %v385 = vld [vmem:[%s2 + $0x5e0] sm:$0xff]
  %v386 = vld [vmem:[%s2 + $0x5e8] sm:$0xff]
  %v387 = vld [vmem:[%s2 + $0x5f0] sm:$0xff]
  %v388 = vld [vmem:[%s2 + $0x5f8] sm:$0xff]
  %v389 = vld [vmem:[%s2 + $0x600] sm:$0xff]
  %v390 = vld [vmem:[%s2 + $0x608] sm:$0xff]
  %v391 = vld [vmem:[%s2 + $0x610] sm:$0xff]
  %v392 = vld [vmem:[%s2 + $0x618] sm:$0xff]
  %v393 = vld [vmem:[%s2 + $0x620] sm:$0xff]
  %v394 = vld [vmem:[%s2 + $0x628] sm:$0xff]
  %v395 = vld [vmem:[%s2 + $0x630] sm:$0xff]
  %v396 = vld [vmem:[%s2 + $0x638] sm:$0xff]
  %v397 = vld [vmem:[%s2 + $0x640] sm:$0xff]
  %v398 = vld [vmem:[%s2 + $0x648] sm:$0xff]
  %v399 = vld [vmem:[%s2 + $0x650] sm:$0xff]
  %v400 = vld [vmem:[%s2 + $0x658] sm:$0xff]
  %v401 = vld [vmem:[%s2 + $0x660] sm:$0xff]
  %v402 = vld [vmem:[%s2 + $0x668] sm:$0xff]
  %v403 = vld [vmem:[%s2 + $0x670] sm:$0xff]
  %v404 = vld [vmem:[%s2 + $0x678] sm:$0xff]
  %v405 = vld [vmem:[%s2 + $0x680] sm:$0xff]
  %v406 = vld [vmem:[%s2 + $0x688] sm:$0xff]
  %v407 = vld [vmem:[%s2 + $0x690] sm:$0xff]
  %v408 = vld [vmem:[%s2 + $0x698] sm:$0xff]
  %v409 = vld [vmem:[%s2 + $0x6a0] sm:$0xff]
  %v410 = vld [vmem:[%s2 + $0x6a8] sm:$0xff]
  %v411 = vld [vmem:[%s2 + $0x6b0] sm:$0xff]
  %v412 = vld [vmem:[%s2 + $0x6b8] sm:$0xff]
  %v413 = vld [vmem:[%s2 + $0x6c0] sm:$0xff]
  %v414 = vld [vmem:[%s2 + $0x6c8] sm:$0xff]
  %v415 = vld [vmem:[%s2 + $0x6d0] sm:$0xff]
  %v416 = vld [vmem:[%s2 + $0x6d8] sm:$0xff]
  %v417 = vld [vmem:[%s2 + $0x6e0] sm:$0xff]
  %v418 = vld [vmem:[%s2 + $0x6e8] sm:$0xff]
  %v419 = vld [vmem:[%s2 + $0x6f0] sm:$0xff]
  %v420 = vld [vmem:[%s2 + $0x6f8] sm:$0xff]
  %v421 = vld [vmem:[%s2 + $0x700] sm:$0xff]
  %v422 = vld [vmem:[%s2 + $0x708] sm:$0xff]
  %v423 = vld [vmem:[%s2 + $0x710] sm:$0xff]
  %v424 = vld [vmem:[%s2 + $0x718] sm:$0xff]
  %v425 = vld [vmem:[%s2 + $0x720] sm:$0xff]
  %v426 = vld [vmem:[%s2 + $0x728] sm:$0xff]
  %v427 = vld [vmem:[%s2 + $0x730] sm:$0xff]
  %v428 = vld [vmem:[%s2 + $0x738] sm:$0xff]
  %v429 = vld [vmem:[%s2 + $0x740] sm:$0xff]
  %v430 = vld [vmem:[%s2 + $0x748] sm:$0xff]
  %v431 = vld [vmem:[%s2 + $0x750] sm:$0xff]
  %v432 = vld [vmem:[%s2 + $0x758] sm:$0xff]
  %v433 = vld [vmem:[%s2 + $0x760] sm:$0xff]
  %v434 = vld [vmem:[%s2 + $0x768] sm:$0xff]
  %v435 = vld [vmem:[%s2 + $0x770] sm:$0xff]
  %v436 = vld [vmem:[%s2 + $0x778] sm:$0xff]
  %v437 = vld [vmem:[%s2 + $0x780] sm:$0xff]
  %v438 = vld [vmem:[%s2 + $0x788] sm:$0xff]
  %v439 = vld [vmem:[%s2 + $0x790] sm:$0xff]
  %v440 = vld [vmem:[%s2 + $0x798] sm:$0xff]
  %v441 = vld [vmem:[%s2 + $0x7a0] sm:$0xff]
  %v442 = vld [vmem:[%s2 + $0x7a8] sm:$0xff]
  %v443 = vld [vmem:[%s2 + $0x7b0] sm:$0xff]
  %v444 = vld [vmem:[%s2 + $0x7b8] sm:$0xff]
  %v445 = vld [vmem:[%s2 + $0x7c0] sm:$0xff]
  %v446 = vld [vmem:[%s2 + $0x7c8] sm:$0xff]
  %v447 = vld [vmem:[%s2 + $0x7d0] sm:$0xff]
  %v448 = vld [vmem:[%s2 + $0x7d8] sm:$0xff]
  %v449 = vld [vmem:[%s2 + $0x7e0] sm:$0xff]
  %v450 = vld [vmem:[%s2 + $0x7e8] sm:$0xff]
  %v451 = vld [vmem:[%s2 + $0x7f0] sm:$0xff]
  %v452 = vld [vmem:[%s2 + $0x7f8] sm:$0xff]
  %v453 = vld [vmem:[%s2 + $0x800] sm:$0xff]
  %v454 = vld [vmem:[%s2 + $0x808] sm:$0xff]
  %v455 = vld [vmem:[%s2 + $0x810] sm:$0xff]
  %v456 = vld [vmem:[%s2 + $0x818] sm:$0xff]
  %v457 = vld [vmem:[%s2 + $0x820] sm:$0xff]
  %v458 = vld [vmem:[%s2 + $0x828] sm:$0xff]
  %v459 = vld [vmem:[%s2 + $0x830] sm:$0xff]
  %v460 = vld [vmem:[%s2 + $0x838] sm:$0xff]
  %v461 = vld [vmem:[%s2 + $0x840] sm:$0xff]
  %v462 = vld [vmem:[%s2 + $0x848] sm:$0xff]
  %v463 = vld [vmem:[%s2 + $0x850] sm:$0xff]
  %v464 = vld [vmem:[%s2 + $0x858] sm:$0xff]
  %v465 = vld [vmem:[%s2 + $0x860] sm:$0xff]
  %v466 = vld [vmem:[%s2 + $0x868] sm:$0xff]
  %v467 = vld [vmem:[%s2 + $0x870] sm:$0xff]
  %v468 = vld [vmem:[%s2 + $0x878] sm:$0xff]
  %v469 = vld [vmem:[%s2 + $0x880] sm:$0xff]
  %v470 = vld [vmem:[%s2 + $0x888] sm:$0xff]
  %v471 = vld [vmem:[%s2 + $0x890] sm:$0xff]
  %v472 = vld [vmem:[%s2 + $0x898] sm:$0xff]
  %v473 = vld [vmem:[%s2 + $0x8a0] sm:$0xff]
  %v474 = vld [vmem:[%s2 + $0x8a8] sm:$0xff]
  %v475 = vld [vmem:[%s2 + $0x8b0] sm:$0xff]
  %v476 = vld [vmem:[%s2 + $0x8b8] sm:$0xff]
  %v477 = vld [vmem:[%s2 + $0x8c0] sm:$0xff]
  %v478 = vld [vmem:[%s2 + $0x8c8] sm:$0xff]
  %v479 = vld [vmem:[%s2 + $0x8d0] sm:$0xff]
  %v480 = vld [vmem:[%s2 + $0x8d8] sm:$0xff]
  %v481 = vld [vmem:[%s2 + $0x8e0] sm:$0xff]
  %v482 = vld [vmem:[%s2 + $0x8e8] sm:$0xff]
  %v483 = vld [vmem:[%s2 + $0x8f0] sm:$0xff]
  %v484 = vld [vmem:[%s2 + $0x8f8] sm:$0xff]
  %v485 = vld [vmem:[%s2 + $0x900] sm:$0xff]
  %v486 = vld [vmem:[%s2 + $0x908] sm:$0xff]
  %v487 = vld [vmem:[%s2 + $0x910] sm:$0xff]
  %v488 = vld [vmem:[%s2 + $0x918] sm:$0xff]
  %v489 = vld [vmem:[%s2 + $0x920] sm:$0xff]
  %v490 = vld [vmem:[%s2 + $0x928] sm:$0xff]
  %v491 = vld [vmem:[%s2 + $0x930] sm:$0xff]
  %v492 = vld [vmem:[%s2 + $0x938] sm:$0xff]
  %v493 = vld [vmem:[%s2 + $0x940] sm:$0xff]
  %v494 = vld [vmem:[%s2 + $0x948] sm:$0xff]
  %v495 = vld [vmem:[%s2 + $0x950] sm:$0xff]
  %v496 = vld [vmem:[%s2 + $0x958] sm:$0xff]
  %v497 = vpack.c.bf16 %v199, %v197
  %v498 = vpack.c.bf16 %v200, %v198
  %v499 = vpack.c.bf16 %v203, %v201
  %v500 = vpack.c.bf16 %v204, %v202
  %v501 = vpack.c.bf16 %v207, %v205
  %v502 = vpack.c.bf16 %v208, %v206
  %v503 = vpack.c.bf16 %v211, %v209
  %v504 = vpack.c.bf16 %v212, %v210
  %v505 = vpack.c.bf16 %v215, %v213
  %v506 = vpack.c.bf16 %v216, %v214
  %v507 = vpack.c.bf16 %v219, %v217
  %v508 = vpack.c.bf16 %v220, %v218
  %v509 = vpack.c.bf16 %v223, %v221
  %v510 = vpack.c.bf16 %v224, %v222
  %v511 = vpack.c.bf16 %v227, %v225
  %v512 = vpack.c.bf16 %v228, %v226
  %v513 = vpack.c.bf16 %v231, %v229
  %v514 = vpack.c.bf16 %v232, %v230
  %v515 = vpack.c.bf16 %v235, %v233
  %v516 = vpack.c.bf16 %v236, %v234
  %v517 = vpack.c.bf16 %v239, %v237
  %v518 = vpack.c.bf16 %v240, %v238
  %v519 = vpack.c.bf16 %v243, %v241
  %v520 = vpack.c.bf16 %v244, %v242
  %v521 = vpack.c.bf16 %v247, %v245
  %v522 = vpack.c.bf16 %v248, %v246
  %v523 = vpack.c.bf16 %v251, %v249
  %v524 = vpack.c.bf16 %v252, %v250
  %v525 = vpack.c.bf16 %v255, %v253
  %v526 = vpack.c.bf16 %v256, %v254
  %v527 = vpack.c.bf16 %v259, %v257
  %v528 = vpack.c.bf16 %v260, %v258
  %v529 = vpack.c.bf16 %v263, %v261
  %v530 = vpack.c.bf16 %v264, %v262
  %v531 = vpack.c.bf16 %v267, %v265
  %v532 = vpack.c.bf16 %v268, %v266
  %v533 = vpack.c.bf16 %v271, %v269
  %v534 = vpack.c.bf16 %v272, %v270
  %v535 = vpack.c.bf16 %v275, %v273
  %v536 = vpack.c.bf16 %v276, %v274
  %v537 = vpack.c.bf16 %v279, %v277
  %v538 = vpack.c.bf16 %v280, %v278
  %v539 = vpack.c.bf16 %v283, %v281
  %v540 = vpack.c.bf16 %v284, %v282
  %v541 = vpack.c.bf16 %v287, %v285
  %v542 = vpack.c.bf16 %v288, %v286
  %v543 = vpack.c.bf16 %v291, %v289
  %v544 = vpack.c.bf16 %v292, %v290
  %v545 = vpack.c.bf16 %v295, %v293
  %v546 = vpack.c.bf16 %v296, %v294
  %v547 = vpack.c.bf16 %v299, %v297
  %v548 = vpack.c.bf16 %v300, %v298
  %v549 = vpack.c.bf16 %v303, %v301
  %v550 = vpack.c.bf16 %v304, %v302
  %v551 = vpack.c.bf16 %v307, %v305
  %v552 = vpack.c.bf16 %v308, %v306
  %v553 = vpack.c.bf16 %v311, %v309
  %v554 = vpack.c.bf16 %v312, %v310
  %v555 = vpack.c.bf16 %v315, %v313
  %v556 = vpack.c.bf16 %v316, %v314
  %v557 = vpack.c.bf16 %v319, %v317
  %v558 = vpack.c.bf16 %v320, %v318
  %v559 = vpack.c.bf16 %v323, %v321
  %v560 = vpack.c.bf16 %v324, %v322
  %v561 = vpack.c.bf16 %v327, %v325
  %v562 = vpack.c.bf16 %v328, %v326
  %v563 = vpack.c.bf16 %v331, %v329
  %v564 = vpack.c.bf16 %v332, %v330
  %v565 = vpack.c.bf16 %v335, %v333
  %v566 = vpack.c.bf16 %v336, %v334
  %v567 = vpack.c.bf16 %v339, %v337
  %v568 = vpack.c.bf16 %v340, %v338
  %v569 = vpack.c.bf16 %v343, %v341
  %v570 = vpack.c.bf16 %v344, %v342
  %v571 = vpack.c.bf16 %v347, %v345
  %v572 = vpack.c.bf16 %v348, %v346
  %v573 = vpack.c.bf16 %v351, %v349
  %v574 = vpack.c.bf16 %v352, %v350
  %v575 = vpack.c.bf16 %v355, %v353
  %v576 = vpack.c.bf16 %v356, %v354
  %v577 = vpack.c.bf16 %v359, %v357
  %v578 = vpack.c.bf16 %v360, %v358
  %v579 = vpack.c.bf16 %v363, %v361
  %v580 = vpack.c.bf16 %v364, %v362
  %v581 = vpack.c.bf16 %v367, %v365
  %v582 = vpack.c.bf16 %v368, %v366
  %v583 = vpack.c.bf16 %v371, %v369
  %v584 = vpack.c.bf16 %v372, %v370
  %v585 = vpack.c.bf16 %v375, %v373
  %v586 = vpack.c.bf16 %v376, %v374
  %v587 = vpack.c.bf16 %v379, %v377
  %v588 = vpack.c.bf16 %v380, %v378
  %v589 = vpack.c.bf16 %v383, %v381
  %v590 = vpack.c.bf16 %v384, %v382
  %v591 = vpack.c.bf16 %v387, %v385
  %v592 = vpack.c.bf16 %v388, %v386
  %v593 = vpack.c.bf16 %v391, %v389
  %v594 = vpack.c.bf16 %v392, %v390
  %v595 = vpack.c.bf16 %v395, %v393
  %v596 = vpack.c.bf16 %v396, %v394
  %v597 = vpack.c.bf16 %v399, %v397
  %v598 = vpack.c.bf16 %v400, %v398
  %v599 = vpack.c.bf16 %v403, %v401
  %v600 = vpack.c.bf16 %v404, %v402
  %v601 = vpack.c.bf16 %v407, %v405
  %v602 = vpack.c.bf16 %v408, %v406
  %v603 = vpack.c.bf16 %v411, %v409
  %v604 = vpack.c.bf16 %v412, %v410
  %v605 = vpack.c.bf16 %v415, %v413
  %v606 = vpack.c.bf16 %v416, %v414
  %v607 = vpack.c.bf16 %v419, %v417
  %v608 = vpack.c.bf16 %v420, %v418
  %v609 = vpack.c.bf16 %v423, %v421
  %v610 = vpack.c.bf16 %v424, %v422
  %v611 = vpack.c.bf16 %v427, %v425
  %v612 = vpack.c.bf16 %v428, %v426
  %v613 = vpack.c.bf16 %v431, %v429
  %v614 = vpack.c.bf16 %v432, %v430
  %v615 = vpack.c.bf16 %v435, %v433
  %v616 = vpack.c.bf16 %v436, %v434
  %v617 = vpack.c.bf16 %v439, %v437
  %v618 = vpack.c.bf16 %v440, %v438
  %v619 = vpack.c.bf16 %v443, %v441
  %v620 = vpack.c.bf16 %v444, %v442
  %v621 = vpack.c.bf16 %v447, %v445
  %v622 = vpack.c.bf16 %v448, %v446
  %v623 = vpack.c.bf16 %v451, %v449
  %v624 = vpack.c.bf16 %v452, %v450
  %v625 = vpack.c.bf16 %v455, %v453
  %v626 = vpack.c.bf16 %v456, %v454
  %v627 = vpack.c.bf16 %v459, %v457
  %v628 = vpack.c.bf16 %v460, %v458
  %v629 = vpack.c.bf16 %v463, %v461
  %v630 = vpack.c.bf16 %v464, %v462
  %v631 = vpack.c.bf16 %v467, %v465
  %v632 = vpack.c.bf16 %v468, %v466
  %v633 = vpack.c.bf16 %v471, %v469
  %v634 = vpack.c.bf16 %v472, %v470
  %v635 = vpack.c.bf16 %v475, %v473
  %v636 = vpack.c.bf16 %v476, %v474
  %v637 = vpack.c.bf16 %v479, %v477
  %v638 = vpack.c.bf16 %v480, %v478
  %v639 = vpack.c.bf16 %v483, %v481
  %v640 = vpack.c.bf16 %v484, %v482
  %v641 = vpack.c.bf16 %v487, %v485
  %v642 = vpack.c.bf16 %v488, %v486
  %v643 = vpack.c.bf16 %v491, %v489
  %v644 = vpack.c.bf16 %v492, %v490
  %v645 = vpack.c.bf16 %v495, %v493
  %v646 = vpack.c.bf16 %v496, %v494
  %vm647 = vcmask 588800
  %v649 = vsel %vm647, %v498, 0
  %v652 = vsel %vm647, %v500, 0
  %v655 = vsel %vm647, %v502, 0
  %v658 = vsel %vm647, %v504, 0
  %v661 = vsel %vm647, %v506, 0
  %v664 = vsel %vm647, %v508, 0
  %v667 = vsel %vm647, %v510, 0
  %v670 = vsel %vm647, %v512, 0
  %v673 = vsel %vm647, %v514, 0
  %v676 = vsel %vm647, %v516, 0
  %v679 = vsel %vm647, %v518, 0
  %v682 = vsel %vm647, %v520, 0
  %v685 = vsel %vm647, %v522, 0
  %v688 = vsel %vm647, %v524, 0
  %v691 = vsel %vm647, %v526, 0
  %v694 = vsel %vm647, %v528, 0
  %v697 = vsel %vm647, %v530, 0
  %v700 = vsel %vm647, %v532, 0
  %v703 = vsel %vm647, %v534, 0
  %v706 = vsel %vm647, %v536, 0
  %v709 = vsel %vm647, %v538, 0
  %v712 = vsel %vm647, %v540, 0
  %v715 = vsel %vm647, %v542, 0
  %v718 = vsel %vm647, %v544, 0
  %v721 = vsel %vm647, %v546, 0
  %v724 = vsel %vm647, %v548, 0
  %v727 = vsel %vm647, %v550, 0
  %v730 = vsel %vm647, %v552, 0
  %v733 = vsel %vm647, %v554, 0
  %v736 = vsel %vm647, %v556, 0
  %v739 = vsel %vm647, %v558, 0
  %v742 = vsel %vm647, %v560, 0
  %v745 = vsel %vm647, %v562, 0
  %v748 = vsel %vm647, %v564, 0
  %v751 = vsel %vm647, %v566, 0
  %v754 = vsel %vm647, %v568, 0
  %v757 = vsel %vm647, %v570, 0
  %v760 = vsel %vm647, %v572, 0
  %v763 = vsel %vm647, %v574, 0
  %v766 = vsel %vm647, %v576, 0
  %v769 = vsel %vm647, %v578, 0
  %v772 = vsel %vm647, %v580, 0
  %v775 = vsel %vm647, %v582, 0
  %v778 = vsel %vm647, %v584, 0
  %v781 = vsel %vm647, %v586, 0
  %v784 = vsel %vm647, %v588, 0
  %v787 = vsel %vm647, %v590, 0
  %v790 = vsel %vm647, %v592, 0
  %v793 = vsel %vm647, %v594, 0
  %v796 = vsel %vm647, %v596, 0
  %v799 = vsel %vm647, %v598, 0
  %v802 = vsel %vm647, %v600, 0
  %v805 = vsel %vm647, %v602, 0
  %v808 = vsel %vm647, %v604, 0
  %v811 = vsel %vm647, %v606, 0
  %v814 = vsel %vm647, %v608, 0
  %v817 = vsel %vm647, %v610, 0
  %v820 = vsel %vm647, %v612, 0
  %v823 = vsel %vm647, %v614, 0
  %v826 = vsel %vm647, %v616, 0
  %v829 = vsel %vm647, %v618, 0
  %v832 = vsel %vm647, %v620, 0
  %v835 = vsel %vm647, %v622, 0
  %v838 = vsel %vm647, %v624, 0
  %v841 = vsel %vm647, %v626, 0
  %v844 = vsel %vm647, %v628, 0
  %v847 = vsel %vm647, %v630, 0
  %v850 = vsel %vm647, %v632, 0
  %v853 = vsel %vm647, %v634, 0
  %v856 = vsel %vm647, %v636, 0
  %v859 = vsel %vm647, %v638, 0
  %v862 = vsel %vm647, %v640, 0
  %v865 = vsel %vm647, %v642, 0
  %v868 = vsel %vm647, %v644, 0
  %v871 = vsel %vm647, %v646, 0
  %vm873 = vcmask 1043456
  %v875 = vsel %vm873, %v195, 0
  %v878 = vsel %vm873, %v196, 0
  %880 = vmatpush.bf16.msra.mxu0 %v185
  %881 = vmatpush.bf16.msra.mxu0 %v183
  %882 = vmatpush.bf16.msra.mxu0 %v181
  %883 = vmatpush.bf16.msra.mxu0 %v179
  %884 = vmatpush.bf16.msra.mxu0 %v177
  %885 = vmatpush.bf16.msra.mxu0 %v175
  %886 = vmatpush.bf16.msra.mxu0 %v173
  %887 = vmatpush.bf16.msra.mxu0 %v171
  %888 = vmatmul.bf16.gmra.mxu0 %v497
  %v889 = vpop.f32.mrf.mxu0
  %v890 = vadd.f32 0.0, %v889
  %v891 = vpop.f32.mrf.mxu0
  %v892 = vadd.f32 0.0, %v891
  %893 = vmatmul.bf16.gmra.mxu0 %v499
  %v894 = vpop.f32.mrf.mxu0
  %v895 = vadd.f32 0.0, %v894
  %v896 = vpop.f32.mrf.mxu0
  %v897 = vadd.f32 0.0, %v896
  %898 = vmatmul.bf16.gmra.mxu0 %v501
  %v899 = vpop.f32.mrf.mxu0
  %v900 = vadd.f32 0.0, %v899
  %v901 = vpop.f32.mrf.mxu0
  %v902 = vadd.f32 0.0, %v901
  %903 = vmatmul.bf16.gmra.mxu0 %v503
  %v904 = vpop.f32.mrf.mxu0
  %v905 = vadd.f32 0.0, %v904
  %v906 = vpop.f32.mrf.mxu0
  %v907 = vadd.f32 0.0, %v906
  %908 = vmatmul.bf16.gmra.mxu0 %v505
  %v909 = vpop.f32.mrf.mxu0
  %v910 = vadd.f32 0.0, %v909
  %v911 = vpop.f32.mrf.mxu0
  %v912 = vadd.f32 0.0, %v911
  %913 = vmatmul.bf16.gmra.mxu0 %v507
  %v914 = vpop.f32.mrf.mxu0
  %v915 = vadd.f32 0.0, %v914
  %v916 = vpop.f32.mrf.mxu0
  %v917 = vadd.f32 0.0, %v916
  %918 = vmatmul.bf16.gmra.mxu0 %v509
  %v919 = vpop.f32.mrf.mxu0
  %v920 = vadd.f32 0.0, %v919
  %v921 = vpop.f32.mrf.mxu0
  %v922 = vadd.f32 0.0, %v921
  %923 = vmatmul.bf16.gmra.mxu0 %v511
  %v924 = vpop.f32.mrf.mxu0
  %v925 = vadd.f32 0.0, %v924
  %v926 = vpop.f32.mrf.mxu0
  %v927 = vadd.f32 0.0, %v926
  %928 = vmatmul.bf16.gmra.mxu0 %v513
  %v929 = vpop.f32.mrf.mxu0
  %v930 = vadd.f32 0.0, %v929
  %v931 = vpop.f32.mrf.mxu0
  %v932 = vadd.f32 0.0, %v931
  %933 = vmatmul.bf16.gmra.mxu0 %v515
  %v934 = vpop.f32.mrf.mxu0
  %v935 = vadd.f32 0.0, %v934
  %v936 = vpop.f32.mrf.mxu0
  %v937 = vadd.f32 0.0, %v936
  %938 = vmatmul.bf16.gmra.mxu0 %v517
  %v939 = vpop.f32.mrf.mxu0
  %v940 = vadd.f32 0.0, %v939
  %v941 = vpop.f32.mrf.mxu0
  %v942 = vadd.f32 0.0, %v941
  %943 = vmatmul.bf16.gmra.mxu0 %v519
  %v944 = vpop.f32.mrf.mxu0
  %v945 = vadd.f32 0.0, %v944
  %v946 = vpop.f32.mrf.mxu0
  %v947 = vadd.f32 0.0, %v946
  %948 = vmatmul.bf16.gmra.mxu0 %v521
  %v949 = vpop.f32.mrf.mxu0
  %v950 = vadd.f32 0.0, %v949
  %v951 = vpop.f32.mrf.mxu0
  %v952 = vadd.f32 0.0, %v951
  %953 = vmatmul.bf16.gmra.mxu0 %v523
  %v954 = vpop.f32.mrf.mxu0
  %v955 = vadd.f32 0.0, %v954
  %v956 = vpop.f32.mrf.mxu0
  %v957 = vadd.f32 0.0, %v956
  %958 = vmatmul.bf16.gmra.mxu0 %v525
  %v959 = vpop.f32.mrf.mxu0
  %v960 = vadd.f32 0.0, %v959
  %v961 = vpop.f32.mrf.mxu0
  %v962 = vadd.f32 0.0, %v961
  %963 = vmatmul.bf16.gmra.mxu0 %v527
  %v964 = vpop.f32.mrf.mxu0
  %v965 = vadd.f32 0.0, %v964
  %v966 = vpop.f32.mrf.mxu0
  %v967 = vadd.f32 0.0, %v966
  %968 = vmatmul.bf16.gmra.mxu0 %v529
  %v969 = vpop.f32.mrf.mxu0
  %v970 = vadd.f32 0.0, %v969
  %v971 = vpop.f32.mrf.mxu0
  %v972 = vadd.f32 0.0, %v971
  %973 = vmatmul.bf16.gmra.mxu0 %v531
  %v974 = vpop.f32.mrf.mxu0
  %v975 = vadd.f32 0.0, %v974
  %v976 = vpop.f32.mrf.mxu0
  %v977 = vadd.f32 0.0, %v976
  %978 = vmatmul.bf16.gmra.mxu0 %v533
  %v979 = vpop.f32.mrf.mxu0
  %v980 = vadd.f32 0.0, %v979
  %v981 = vpop.f32.mrf.mxu0
  %v982 = vadd.f32 0.0, %v981
  %983 = vmatmul.bf16.gmra.mxu0 %v535
  %v984 = vpop.f32.mrf.mxu0
  %v985 = vadd.f32 0.0, %v984
  %v986 = vpop.f32.mrf.mxu0
  %v987 = vadd.f32 0.0, %v986
  %988 = vmatmul.bf16.gmra.mxu0 %v537
  %v989 = vpop.f32.mrf.mxu0
  %v990 = vadd.f32 0.0, %v989
  %v991 = vpop.f32.mrf.mxu0
  %v992 = vadd.f32 0.0, %v991
  %993 = vmatmul.bf16.gmra.mxu0 %v539
  %v994 = vpop.f32.mrf.mxu0
  %v995 = vadd.f32 0.0, %v994
  %v996 = vpop.f32.mrf.mxu0
  %v997 = vadd.f32 0.0, %v996
  %998 = vmatmul.bf16.gmra.mxu0 %v541
  %v999 = vpop.f32.mrf.mxu0
  %v1000 = vadd.f32 0.0, %v999
  %v1001 = vpop.f32.mrf.mxu0
  %v1002 = vadd.f32 0.0, %v1001
  %1003 = vmatmul.bf16.gmra.mxu0 %v543
  %v1004 = vpop.f32.mrf.mxu0
  %v1005 = vadd.f32 0.0, %v1004
  %v1006 = vpop.f32.mrf.mxu0
  %v1007 = vadd.f32 0.0, %v1006
  %1008 = vmatmul.bf16.gmra.mxu0 %v545
  %v1009 = vpop.f32.mrf.mxu0
  %v1010 = vadd.f32 0.0, %v1009
  %v1011 = vpop.f32.mrf.mxu0
  %v1012 = vadd.f32 0.0, %v1011
  %1013 = vmatmul.bf16.gmra.mxu0 %v547
  %v1014 = vpop.f32.mrf.mxu0
  %v1015 = vadd.f32 0.0, %v1014
  %v1016 = vpop.f32.mrf.mxu0
  %v1017 = vadd.f32 0.0, %v1016
  %1018 = vmatmul.bf16.gmra.mxu0 %v549
  %v1019 = vpop.f32.mrf.mxu0
  %v1020 = vadd.f32 0.0, %v1019
  %v1021 = vpop.f32.mrf.mxu0
  %v1022 = vadd.f32 0.0, %v1021
  %1023 = vmatmul.bf16.gmra.mxu0 %v551
  %v1024 = vpop.f32.mrf.mxu0
  %v1025 = vadd.f32 0.0, %v1024
  %v1026 = vpop.f32.mrf.mxu0
  %v1027 = vadd.f32 0.0, %v1026
  %1028 = vmatmul.bf16.gmra.mxu0 %v553
  %v1029 = vpop.f32.mrf.mxu0
  %v1030 = vadd.f32 0.0, %v1029
  %v1031 = vpop.f32.mrf.mxu0
  %v1032 = vadd.f32 0.0, %v1031
  %1033 = vmatmul.bf16.gmra.mxu0 %v555
  %v1034 = vpop.f32.mrf.mxu0
  %v1035 = vadd.f32 0.0, %v1034
  %v1036 = vpop.f32.mrf.mxu0
  %v1037 = vadd.f32 0.0, %v1036
  %1038 = vmatmul.bf16.gmra.mxu0 %v557
  %v1039 = vpop.f32.mrf.mxu0
  %v1040 = vadd.f32 0.0, %v1039
  %v1041 = vpop.f32.mrf.mxu0
  %v1042 = vadd.f32 0.0, %v1041
  %1043 = vmatmul.bf16.gmra.mxu0 %v559
  %v1044 = vpop.f32.mrf.mxu0
  %v1045 = vadd.f32 0.0, %v1044
  %v1046 = vpop.f32.mrf.mxu0
  %v1047 = vadd.f32 0.0, %v1046
  %1048 = vmatmul.bf16.gmra.mxu0 %v561
  %v1049 = vpop.f32.mrf.mxu0
  %v1050 = vadd.f32 0.0, %v1049
  %v1051 = vpop.f32.mrf.mxu0
  %v1052 = vadd.f32 0.0, %v1051
  %1053 = vmatmul.bf16.gmra.mxu0 %v563
  %v1054 = vpop.f32.mrf.mxu0
  %v1055 = vadd.f32 0.0, %v1054
  %v1056 = vpop.f32.mrf.mxu0
  %v1057 = vadd.f32 0.0, %v1056
  %1058 = vmatmul.bf16.gmra.mxu0 %v565
  %v1059 = vpop.f32.mrf.mxu0
  %v1060 = vadd.f32 0.0, %v1059
  %v1061 = vpop.f32.mrf.mxu0
  %v1062 = vadd.f32 0.0, %v1061
  %1063 = vmatmul.bf16.gmra.mxu0 %v567
  %v1064 = vpop.f32.mrf.mxu0
  %v1065 = vadd.f32 0.0, %v1064
  %v1066 = vpop.f32.mrf.mxu0
  %v1067 = vadd.f32 0.0, %v1066
  %1068 = vmatmul.bf16.gmra.mxu0 %v569
  %v1069 = vpop.f32.mrf.mxu0
  %v1070 = vadd.f32 0.0, %v1069
  %v1071 = vpop.f32.mrf.mxu0
  %v1072 = vadd.f32 0.0, %v1071
  %1073 = vmatmul.bf16.gmra.mxu0 %v571
  %v1074 = vpop.f32.mrf.mxu0
  %v1075 = vadd.f32 0.0, %v1074
  %v1076 = vpop.f32.mrf.mxu0
  %v1077 = vadd.f32 0.0, %v1076
  %1078 = vmatmul.bf16.gmra.mxu0 %v573
  %v1079 = vpop.f32.mrf.mxu0
  %v1080 = vadd.f32 0.0, %v1079
  %v1081 = vpop.f32.mrf.mxu0
  %v1082 = vadd.f32 0.0, %v1081
  %1083 = vmatmul.bf16.gmra.mxu0 %v575
  %v1084 = vpop.f32.mrf.mxu0
  %v1085 = vadd.f32 0.0, %v1084
  %v1086 = vpop.f32.mrf.mxu0
  %v1087 = vadd.f32 0.0, %v1086
  %1088 = vmatmul.bf16.gmra.mxu0 %v577
  %v1089 = vpop.f32.mrf.mxu0
  %v1090 = vadd.f32 0.0, %v1089
  %v1091 = vpop.f32.mrf.mxu0
  %v1092 = vadd.f32 0.0, %v1091
  %1093 = vmatmul.bf16.gmra.mxu0 %v579
  %v1094 = vpop.f32.mrf.mxu0
  %v1095 = vadd.f32 0.0, %v1094
  %v1096 = vpop.f32.mrf.mxu0
  %v1097 = vadd.f32 0.0, %v1096
  %1098 = vmatmul.bf16.gmra.mxu0 %v581
  %v1099 = vpop.f32.mrf.mxu0
  %v1100 = vadd.f32 0.0, %v1099
  %v1101 = vpop.f32.mrf.mxu0
  %v1102 = vadd.f32 0.0, %v1101
  %1103 = vmatmul.bf16.gmra.mxu0 %v583
  %v1104 = vpop.f32.mrf.mxu0
  %v1105 = vadd.f32 0.0, %v1104
  %v1106 = vpop.f32.mrf.mxu0
  %v1107 = vadd.f32 0.0, %v1106
  %1108 = vmatmul.bf16.gmra.mxu0 %v585
  %v1109 = vpop.f32.mrf.mxu0
  %v1110 = vadd.f32 0.0, %v1109
  %v1111 = vpop.f32.mrf.mxu0
  %v1112 = vadd.f32 0.0, %v1111
  %1113 = vmatmul.bf16.gmra.mxu0 %v587
  %v1114 = vpop.f32.mrf.mxu0
  %v1115 = vadd.f32 0.0, %v1114
  %v1116 = vpop.f32.mrf.mxu0
  %v1117 = vadd.f32 0.0, %v1116
  %1118 = vmatmul.bf16.gmra.mxu0 %v589
  %v1119 = vpop.f32.mrf.mxu0
  %v1120 = vadd.f32 0.0, %v1119
  %v1121 = vpop.f32.mrf.mxu0
  %v1122 = vadd.f32 0.0, %v1121
  %1123 = vmatmul.bf16.gmra.mxu0 %v591
  %v1124 = vpop.f32.mrf.mxu0
  %v1125 = vadd.f32 0.0, %v1124
  %v1126 = vpop.f32.mrf.mxu0
  %v1127 = vadd.f32 0.0, %v1126
  %1128 = vmatmul.bf16.gmra.mxu0 %v593
  %v1129 = vpop.f32.mrf.mxu0
  %v1130 = vadd.f32 0.0, %v1129
  %v1131 = vpop.f32.mrf.mxu0
  %v1132 = vadd.f32 0.0, %v1131
  %1133 = vmatmul.bf16.gmra.mxu0 %v595
  %v1134 = vpop.f32.mrf.mxu0
  %v1135 = vadd.f32 0.0, %v1134
  %v1136 = vpop.f32.mrf.mxu0
  %v1137 = vadd.f32 0.0, %v1136
  %1138 = vmatmul.bf16.gmra.mxu0 %v597
  %v1139 = vpop.f32.mrf.mxu0
  %v1140 = vadd.f32 0.0, %v1139
  %v1141 = vpop.f32.mrf.mxu0
  %v1142 = vadd.f32 0.0, %v1141
  %1143 = vmatmul.bf16.gmra.mxu0 %v599
  %v1144 = vpop.f32.mrf.mxu0
  %v1145 = vadd.f32 0.0, %v1144
  %v1146 = vpop.f32.mrf.mxu0
  %v1147 = vadd.f32 0.0, %v1146
  %1148 = vmatmul.bf16.gmra.mxu0 %v601
  %v1149 = vpop.f32.mrf.mxu0
  %v1150 = vadd.f32 0.0, %v1149
  %v1151 = vpop.f32.mrf.mxu0
  %v1152 = vadd.f32 0.0, %v1151
  %1153 = vmatmul.bf16.gmra.mxu0 %v603
  %v1154 = vpop.f32.mrf.mxu0
  %v1155 = vadd.f32 0.0, %v1154
  %v1156 = vpop.f32.mrf.mxu0
  %v1157 = vadd.f32 0.0, %v1156
  %1158 = vmatmul.bf16.gmra.mxu0 %v605
  %v1159 = vpop.f32.mrf.mxu0
  %v1160 = vadd.f32 0.0, %v1159
  %v1161 = vpop.f32.mrf.mxu0
  %v1162 = vadd.f32 0.0, %v1161
  %1163 = vmatmul.bf16.gmra.mxu0 %v607
  %v1164 = vpop.f32.mrf.mxu0
  %v1165 = vadd.f32 0.0, %v1164
  %v1166 = vpop.f32.mrf.mxu0
  %v1167 = vadd.f32 0.0, %v1166
  %1168 = vmatmul.bf16.gmra.mxu0 %v609
  %v1169 = vpop.f32.mrf.mxu0
  %v1170 = vadd.f32 0.0, %v1169
  %v1171 = vpop.f32.mrf.mxu0
  %v1172 = vadd.f32 0.0, %v1171
  %1173 = vmatmul.bf16.gmra.mxu0 %v611
  %v1174 = vpop.f32.mrf.mxu0
  %v1175 = vadd.f32 0.0, %v1174
  %v1176 = vpop.f32.mrf.mxu0
  %v1177 = vadd.f32 0.0, %v1176
  %1178 = vmatmul.bf16.gmra.mxu0 %v613
  %v1179 = vpop.f32.mrf.mxu0
  %v1180 = vadd.f32 0.0, %v1179
  %v1181 = vpop.f32.mrf.mxu0
  %v1182 = vadd.f32 0.0, %v1181
  %1183 = vmatmul.bf16.gmra.mxu0 %v615
  %v1184 = vpop.f32.mrf.mxu0
  %v1185 = vadd.f32 0.0, %v1184
  %v1186 = vpop.f32.mrf.mxu0
  %v1187 = vadd.f32 0.0, %v1186
  %1188 = vmatmul.bf16.gmra.mxu0 %v617
  %v1189 = vpop.f32.mrf.mxu0
  %v1190 = vadd.f32 0.0, %v1189
  %v1191 = vpop.f32.mrf.mxu0
  %v1192 = vadd.f32 0.0, %v1191
  %1193 = vmatmul.bf16.gmra.mxu0 %v619
  %v1194 = vpop.f32.mrf.mxu0
  %v1195 = vadd.f32 0.0, %v1194
  %v1196 = vpop.f32.mrf.mxu0
  %v1197 = vadd.f32 0.0, %v1196
  %1198 = vmatmul.bf16.gmra.mxu0 %v621
  %v1199 = vpop.f32.mrf.mxu0
  %v1200 = vadd.f32 0.0, %v1199
  %v1201 = vpop.f32.mrf.mxu0
  %v1202 = vadd.f32 0.0, %v1201
  %1203 = vmatmul.bf16.gmra.mxu0 %v623
  %v1204 = vpop.f32.mrf.mxu0
  %v1205 = vadd.f32 0.0, %v1204
  %v1206 = vpop.f32.mrf.mxu0
  %v1207 = vadd.f32 0.0, %v1206
  %1208 = vmatmul.bf16.gmra.mxu0 %v625
  %v1209 = vpop.f32.mrf.mxu0
  %v1210 = vadd.f32 0.0, %v1209
  %v1211 = vpop.f32.mrf.mxu0
  %v1212 = vadd.f32 0.0, %v1211
  %1213 = vmatmul.bf16.gmra.mxu0 %v627
  %v1214 = vpop.f32.mrf.mxu0
  %v1215 = vadd.f32 0.0, %v1214
  %v1216 = vpop.f32.mrf.mxu0
  %v1217 = vadd.f32 0.0, %v1216
  %1218 = vmatmul.bf16.gmra.mxu0 %v629
  %v1219 = vpop.f32.mrf.mxu0
  %v1220 = vadd.f32 0.0, %v1219
  %v1221 = vpop.f32.mrf.mxu0
  %v1222 = vadd.f32 0.0, %v1221
  %1223 = vmatmul.bf16.gmra.mxu0 %v631
  %v1224 = vpop.f32.mrf.mxu0
  %v1225 = vadd.f32 0.0, %v1224
  %v1226 = vpop.f32.mrf.mxu0
  %v1227 = vadd.f32 0.0, %v1226
  %1228 = vmatmul.bf16.gmra.mxu0 %v633
  %v1229 = vpop.f32.mrf.mxu0
  %v1230 = vadd.f32 0.0, %v1229
  %v1231 = vpop.f32.mrf.mxu0
  %v1232 = vadd.f32 0.0, %v1231
  %1233 = vmatmul.bf16.gmra.mxu0 %v635
  %v1234 = vpop.f32.mrf.mxu0
  %v1235 = vadd.f32 0.0, %v1234
  %v1236 = vpop.f32.mrf.mxu0
  %v1237 = vadd.f32 0.0, %v1236
  %1238 = vmatmul.bf16.gmra.mxu0 %v637
  %v1239 = vpop.f32.mrf.mxu0
  %v1240 = vadd.f32 0.0, %v1239
  %v1241 = vpop.f32.mrf.mxu0
  %v1242 = vadd.f32 0.0, %v1241
  %1243 = vmatmul.bf16.gmra.mxu0 %v639
  %v1244 = vpop.f32.mrf.mxu0
  %v1245 = vadd.f32 0.0, %v1244
  %v1246 = vpop.f32.mrf.mxu0
  %v1247 = vadd.f32 0.0, %v1246
  %1248 = vmatmul.bf16.gmra.mxu0 %v641
  %v1249 = vpop.f32.mrf.mxu0
  %v1250 = vadd.f32 0.0, %v1249
  %v1251 = vpop.f32.mrf.mxu0
  %v1252 = vadd.f32 0.0, %v1251
  %1253 = vmatmul.bf16.gmra.mxu0 %v643
  %v1254 = vpop.f32.mrf.mxu0
  %v1255 = vadd.f32 0.0, %v1254
  %v1256 = vpop.f32.mrf.mxu0
  %v1257 = vadd.f32 0.0, %v1256
  %1258 = vmatmul.bf16.gmra.mxu0 %v645
  %v1259 = vpop.f32.mrf.mxu0
  %v1260 = vadd.f32 0.0, %v1259
  %v1261 = vpop.f32.mrf.mxu0
  %v1262 = vadd.f32 0.0, %v1261
  %1263 = vdwg.mxu0
  %1264 = vmatpush.bf16.msra.mxu0 0
  %1265 = vmatpush.bf16.msra.mxu0 0
  %1266 = vmatpush.bf16.msra.mxu0 0
  %1267 = vmatpush.bf16.msra.mxu0 %v875
  %1268 = vmatpush.bf16.msra.mxu0 %v193
  %1269 = vmatpush.bf16.msra.mxu0 %v191
  %1270 = vmatpush.bf16.msra.mxu0 %v189
  %1271 = vmatpush.bf16.msra.mxu0 %v187
  %1272 = vmatmul.bf16.gmra.mxu0 %v649
  %v1273 = vpop.f32.mrf.mxu0
  %v1274 = vadd.f32 %v890, %v1273
  %v1275 = vpop.f32.mrf.mxu0
  %v1276 = vadd.f32 %v892, %v1275
  %1277 = vmatmul.bf16.gmra.mxu0 %v652
  %v1278 = vpop.f32.mrf.mxu0
  %v1279 = vadd.f32 %v895, %v1278
  %v1280 = vpop.f32.mrf.mxu0
  %v1281 = vadd.f32 %v897, %v1280
  %1282 = vmatmul.bf16.gmra.mxu0 %v655
  %v1283 = vpop.f32.mrf.mxu0
  %v1284 = vadd.f32 %v900, %v1283
  %v1285 = vpop.f32.mrf.mxu0
  %v1286 = vadd.f32 %v902, %v1285
  %1287 = vmatmul.bf16.gmra.mxu0 %v658
  %v1288 = vpop.f32.mrf.mxu0
  %v1289 = vadd.f32 %v905, %v1288
  %v1290 = vpop.f32.mrf.mxu0
  %v1291 = vadd.f32 %v907, %v1290
  %1292 = vmatmul.bf16.gmra.mxu0 %v661
  %v1293 = vpop.f32.mrf.mxu0
  %v1294 = vadd.f32 %v910, %v1293
  %v1295 = vpop.f32.mrf.mxu0
  %v1296 = vadd.f32 %v912, %v1295
  %1297 = vmatmul.bf16.gmra.mxu0 %v664
  %v1298 = vpop.f32.mrf.mxu0
  %v1299 = vadd.f32 %v915, %v1298
  %v1300 = vpop.f32.mrf.mxu0
  %v1301 = vadd.f32 %v917, %v1300
  %1302 = vmatmul.bf16.gmra.mxu0 %v667
  %v1303 = vpop.f32.mrf.mxu0
  %v1304 = vadd.f32 %v920, %v1303
  %v1305 = vpop.f32.mrf.mxu0
  %v1306 = vadd.f32 %v922, %v1305
  %1307 = vmatmul.bf16.gmra.mxu0 %v670
  %v1308 = vpop.f32.mrf.mxu0
  %v1309 = vadd.f32 %v925, %v1308
  %v1310 = vpop.f32.mrf.mxu0
  %v1311 = vadd.f32 %v927, %v1310
  %1312 = vmatmul.bf16.gmra.mxu0 %v673
  %v1313 = vpop.f32.mrf.mxu0
  %v1314 = vadd.f32 %v930, %v1313
  %v1315 = vpop.f32.mrf.mxu0
  %v1316 = vadd.f32 %v932, %v1315
  %1317 = vmatmul.bf16.gmra.mxu0 %v676
  %v1318 = vpop.f32.mrf.mxu0
  %v1319 = vadd.f32 %v935, %v1318
  %v1320 = vpop.f32.mrf.mxu0
  %v1321 = vadd.f32 %v937, %v1320
  %1322 = vmatmul.bf16.gmra.mxu0 %v679
  %v1323 = vpop.f32.mrf.mxu0
  %v1324 = vadd.f32 %v940, %v1323
  %v1325 = vpop.f32.mrf.mxu0
  %v1326 = vadd.f32 %v942, %v1325
  %1327 = vmatmul.bf16.gmra.mxu0 %v682
  %v1328 = vpop.f32.mrf.mxu0
  %v1329 = vadd.f32 %v945, %v1328
  %v1330 = vpop.f32.mrf.mxu0
  %v1331 = vadd.f32 %v947, %v1330
  %1332 = vmatmul.bf16.gmra.mxu0 %v685
  %v1333 = vpop.f32.mrf.mxu0
  %v1334 = vadd.f32 %v950, %v1333
  %v1335 = vpop.f32.mrf.mxu0
  %v1336 = vadd.f32 %v952, %v1335
  %1337 = vmatmul.bf16.gmra.mxu0 %v688
  %v1338 = vpop.f32.mrf.mxu0
  %v1339 = vadd.f32 %v955, %v1338
  %v1340 = vpop.f32.mrf.mxu0
  %v1341 = vadd.f32 %v957, %v1340
  %1342 = vmatmul.bf16.gmra.mxu0 %v691
  %v1343 = vpop.f32.mrf.mxu0
  %v1344 = vadd.f32 %v960, %v1343
  %v1345 = vpop.f32.mrf.mxu0
  %v1346 = vadd.f32 %v962, %v1345
  %1347 = vmatmul.bf16.gmra.mxu0 %v694
  %v1348 = vpop.f32.mrf.mxu0
  %v1349 = vadd.f32 %v965, %v1348
  %v1350 = vpop.f32.mrf.mxu0
  %v1351 = vadd.f32 %v967, %v1350
  %1352 = vmatmul.bf16.gmra.mxu0 %v697
  %v1353 = vpop.f32.mrf.mxu0
  %v1354 = vadd.f32 %v970, %v1353
  %v1355 = vpop.f32.mrf.mxu0
  %v1356 = vadd.f32 %v972, %v1355
  %1357 = vmatmul.bf16.gmra.mxu0 %v700
  %v1358 = vpop.f32.mrf.mxu0
  %v1359 = vadd.f32 %v975, %v1358
  %v1360 = vpop.f32.mrf.mxu0
  %v1361 = vadd.f32 %v977, %v1360
  %1362 = vmatmul.bf16.gmra.mxu0 %v703
  %v1363 = vpop.f32.mrf.mxu0
  %v1364 = vadd.f32 %v980, %v1363
  %v1365 = vpop.f32.mrf.mxu0
  %v1366 = vadd.f32 %v982, %v1365
  %1367 = vmatmul.bf16.gmra.mxu0 %v706
  %v1368 = vpop.f32.mrf.mxu0
  %v1369 = vadd.f32 %v985, %v1368
  %v1370 = vpop.f32.mrf.mxu0
  %v1371 = vadd.f32 %v987, %v1370
  %1372 = vmatmul.bf16.gmra.mxu0 %v709
  %v1373 = vpop.f32.mrf.mxu0
  %v1374 = vadd.f32 %v990, %v1373
  %v1375 = vpop.f32.mrf.mxu0
  %v1376 = vadd.f32 %v992, %v1375
  %1377 = vmatmul.bf16.gmra.mxu0 %v712
  %v1378 = vpop.f32.mrf.mxu0
  %v1379 = vadd.f32 %v995, %v1378
  %v1380 = vpop.f32.mrf.mxu0
  %v1381 = vadd.f32 %v997, %v1380
  %1382 = vmatmul.bf16.gmra.mxu0 %v715
  %v1383 = vpop.f32.mrf.mxu0
  %v1384 = vadd.f32 %v1000, %v1383
  %v1385 = vpop.f32.mrf.mxu0
  %v1386 = vadd.f32 %v1002, %v1385
  %1387 = vmatmul.bf16.gmra.mxu0 %v718
  %v1388 = vpop.f32.mrf.mxu0
  %v1389 = vadd.f32 %v1005, %v1388
  %v1390 = vpop.f32.mrf.mxu0
  %v1391 = vadd.f32 %v1007, %v1390
  %1392 = vmatmul.bf16.gmra.mxu0 %v721
  %v1393 = vpop.f32.mrf.mxu0
  %v1394 = vadd.f32 %v1010, %v1393
  %v1395 = vpop.f32.mrf.mxu0
  %v1396 = vadd.f32 %v1012, %v1395
  %1397 = vmatmul.bf16.gmra.mxu0 %v724
  %v1398 = vpop.f32.mrf.mxu0
  %v1399 = vadd.f32 %v1015, %v1398
  %v1400 = vpop.f32.mrf.mxu0
  %v1401 = vadd.f32 %v1017, %v1400
  %1402 = vmatmul.bf16.gmra.mxu0 %v727
  %v1403 = vpop.f32.mrf.mxu0
  %v1404 = vadd.f32 %v1020, %v1403
  %v1405 = vpop.f32.mrf.mxu0
  %v1406 = vadd.f32 %v1022, %v1405
  %1407 = vmatmul.bf16.gmra.mxu0 %v730
  %v1408 = vpop.f32.mrf.mxu0
  %v1409 = vadd.f32 %v1025, %v1408
  %v1410 = vpop.f32.mrf.mxu0
  %v1411 = vadd.f32 %v1027, %v1410
  %1412 = vmatmul.bf16.gmra.mxu0 %v733
  %v1413 = vpop.f32.mrf.mxu0
  %v1414 = vadd.f32 %v1030, %v1413
  %v1415 = vpop.f32.mrf.mxu0
  %v1416 = vadd.f32 %v1032, %v1415
  %1417 = vmatmul.bf16.gmra.mxu0 %v736
  %v1418 = vpop.f32.mrf.mxu0
  %v1419 = vadd.f32 %v1035, %v1418
  %v1420 = vpop.f32.mrf.mxu0
  %v1421 = vadd.f32 %v1037, %v1420
  %1422 = vmatmul.bf16.gmra.mxu0 %v739
  %v1423 = vpop.f32.mrf.mxu0
  %v1424 = vadd.f32 %v1040, %v1423
  %v1425 = vpop.f32.mrf.mxu0
  %v1426 = vadd.f32 %v1042, %v1425
  %1427 = vmatmul.bf16.gmra.mxu0 %v742
  %v1428 = vpop.f32.mrf.mxu0
  %v1429 = vadd.f32 %v1045, %v1428
  %v1430 = vpop.f32.mrf.mxu0
  %v1431 = vadd.f32 %v1047, %v1430
  %1432 = vmatmul.bf16.gmra.mxu0 %v745
  %v1433 = vpop.f32.mrf.mxu0
  %v1434 = vadd.f32 %v1050, %v1433
  %v1435 = vpop.f32.mrf.mxu0
  %v1436 = vadd.f32 %v1052, %v1435
  %1437 = vmatmul.bf16.gmra.mxu0 %v748
  %v1438 = vpop.f32.mrf.mxu0
  %v1439 = vadd.f32 %v1055, %v1438
  %v1440 = vpop.f32.mrf.mxu0
  %v1441 = vadd.f32 %v1057, %v1440
  %1442 = vmatmul.bf16.gmra.mxu0 %v751
  %v1443 = vpop.f32.mrf.mxu0
  %v1444 = vadd.f32 %v1060, %v1443
  %v1445 = vpop.f32.mrf.mxu0
  %v1446 = vadd.f32 %v1062, %v1445
  %1447 = vmatmul.bf16.gmra.mxu0 %v754
  %v1448 = vpop.f32.mrf.mxu0
  %v1449 = vadd.f32 %v1065, %v1448
  %v1450 = vpop.f32.mrf.mxu0
  %v1451 = vadd.f32 %v1067, %v1450
  %1452 = vmatmul.bf16.gmra.mxu0 %v757
  %v1453 = vpop.f32.mrf.mxu0
  %v1454 = vadd.f32 %v1070, %v1453
  %v1455 = vpop.f32.mrf.mxu0
  %v1456 = vadd.f32 %v1072, %v1455
  %1457 = vmatmul.bf16.gmra.mxu0 %v760
  %v1458 = vpop.f32.mrf.mxu0
  %v1459 = vadd.f32 %v1075, %v1458
  %v1460 = vpop.f32.mrf.mxu0
  %v1461 = vadd.f32 %v1077, %v1460
  %1462 = vmatmul.bf16.gmra.mxu0 %v763
  %v1463 = vpop.f32.mrf.mxu0
  %v1464 = vadd.f32 %v1080, %v1463
  %v1465 = vpop.f32.mrf.mxu0
  %v1466 = vadd.f32 %v1082, %v1465
  %1467 = vmatmul.bf16.gmra.mxu0 %v766
  %v1468 = vpop.f32.mrf.mxu0
  %v1469 = vadd.f32 %v1085, %v1468
  %v1470 = vpop.f32.mrf.mxu0
  %v1471 = vadd.f32 %v1087, %v1470
  %1472 = vmatmul.bf16.gmra.mxu0 %v769
  %v1473 = vpop.f32.mrf.mxu0
  %v1474 = vadd.f32 %v1090, %v1473
  %v1475 = vpop.f32.mrf.mxu0
  %v1476 = vadd.f32 %v1092, %v1475
  %1477 = vmatmul.bf16.gmra.mxu0 %v772
  %v1478 = vpop.f32.mrf.mxu0
  %v1479 = vadd.f32 %v1095, %v1478
  %v1480 = vpop.f32.mrf.mxu0
  %v1481 = vadd.f32 %v1097, %v1480
  %1482 = vmatmul.bf16.gmra.mxu0 %v775
  %v1483 = vpop.f32.mrf.mxu0
  %v1484 = vadd.f32 %v1100, %v1483
  %v1485 = vpop.f32.mrf.mxu0
  %v1486 = vadd.f32 %v1102, %v1485
  %1487 = vmatmul.bf16.gmra.mxu0 %v778
  %v1488 = vpop.f32.mrf.mxu0
  %v1489 = vadd.f32 %v1105, %v1488
  %v1490 = vpop.f32.mrf.mxu0
  %v1491 = vadd.f32 %v1107, %v1490
  %1492 = vmatmul.bf16.gmra.mxu0 %v781
  %v1493 = vpop.f32.mrf.mxu0
  %v1494 = vadd.f32 %v1110, %v1493
  %v1495 = vpop.f32.mrf.mxu0
  %v1496 = vadd.f32 %v1112, %v1495
  %1497 = vmatmul.bf16.gmra.mxu0 %v784
  %v1498 = vpop.f32.mrf.mxu0
  %v1499 = vadd.f32 %v1115, %v1498
  %v1500 = vpop.f32.mrf.mxu0
  %v1501 = vadd.f32 %v1117, %v1500
  %1502 = vmatmul.bf16.gmra.mxu0 %v787
  %v1503 = vpop.f32.mrf.mxu0
  %v1504 = vadd.f32 %v1120, %v1503
  %v1505 = vpop.f32.mrf.mxu0
  %v1506 = vadd.f32 %v1122, %v1505
  %1507 = vmatmul.bf16.gmra.mxu0 %v790
  %v1508 = vpop.f32.mrf.mxu0
  %v1509 = vadd.f32 %v1125, %v1508
  %v1510 = vpop.f32.mrf.mxu0
  %v1511 = vadd.f32 %v1127, %v1510
  %1512 = vmatmul.bf16.gmra.mxu0 %v793
  %v1513 = vpop.f32.mrf.mxu0
  %v1514 = vadd.f32 %v1130, %v1513
  %v1515 = vpop.f32.mrf.mxu0
  %v1516 = vadd.f32 %v1132, %v1515
  %1517 = vmatmul.bf16.gmra.mxu0 %v796
  %v1518 = vpop.f32.mrf.mxu0
  %v1519 = vadd.f32 %v1135, %v1518
  %v1520 = vpop.f32.mrf.mxu0
  %v1521 = vadd.f32 %v1137, %v1520
  %1522 = vmatmul.bf16.gmra.mxu0 %v799
  %v1523 = vpop.f32.mrf.mxu0
  %v1524 = vadd.f32 %v1140, %v1523
  %v1525 = vpop.f32.mrf.mxu0
  %v1526 = vadd.f32 %v1142, %v1525
  %1527 = vmatmul.bf16.gmra.mxu0 %v802
  %v1528 = vpop.f32.mrf.mxu0
  %v1529 = vadd.f32 %v1145, %v1528
  %v1530 = vpop.f32.mrf.mxu0
  %v1531 = vadd.f32 %v1147, %v1530
  %1532 = vmatmul.bf16.gmra.mxu0 %v805
  %v1533 = vpop.f32.mrf.mxu0
  %v1534 = vadd.f32 %v1150, %v1533
  %v1535 = vpop.f32.mrf.mxu0
  %v1536 = vadd.f32 %v1152, %v1535
  %1537 = vmatmul.bf16.gmra.mxu0 %v808
  %v1538 = vpop.f32.mrf.mxu0
  %v1539 = vadd.f32 %v1155, %v1538
  %v1540 = vpop.f32.mrf.mxu0
  %v1541 = vadd.f32 %v1157, %v1540
  %1542 = vmatmul.bf16.gmra.mxu0 %v811
  %v1543 = vpop.f32.mrf.mxu0
  %v1544 = vadd.f32 %v1160, %v1543
  %v1545 = vpop.f32.mrf.mxu0
  %v1546 = vadd.f32 %v1162, %v1545
  %1547 = vmatmul.bf16.gmra.mxu0 %v814
  %v1548 = vpop.f32.mrf.mxu0
  %v1549 = vadd.f32 %v1165, %v1548
  %v1550 = vpop.f32.mrf.mxu0
  %v1551 = vadd.f32 %v1167, %v1550
  %1552 = vmatmul.bf16.gmra.mxu0 %v817
  %v1553 = vpop.f32.mrf.mxu0
  %v1554 = vadd.f32 %v1170, %v1553
  %v1555 = vpop.f32.mrf.mxu0
  %v1556 = vadd.f32 %v1172, %v1555
  %1557 = vmatmul.bf16.gmra.mxu0 %v820
  %v1558 = vpop.f32.mrf.mxu0
  %v1559 = vadd.f32 %v1175, %v1558
  %v1560 = vpop.f32.mrf.mxu0
  %v1561 = vadd.f32 %v1177, %v1560
  %1562 = vmatmul.bf16.gmra.mxu0 %v823
  %v1563 = vpop.f32.mrf.mxu0
  %v1564 = vadd.f32 %v1180, %v1563
  %v1565 = vpop.f32.mrf.mxu0
  %v1566 = vadd.f32 %v1182, %v1565
  %1567 = vmatmul.bf16.gmra.mxu0 %v826
  %v1568 = vpop.f32.mrf.mxu0
  %v1569 = vadd.f32 %v1185, %v1568
  %v1570 = vpop.f32.mrf.mxu0
  %v1571 = vadd.f32 %v1187, %v1570
  %1572 = vmatmul.bf16.gmra.mxu0 %v829
  %v1573 = vpop.f32.mrf.mxu0
  %v1574 = vadd.f32 %v1190, %v1573
  %v1575 = vpop.f32.mrf.mxu0
  %v1576 = vadd.f32 %v1192, %v1575
  %1577 = vmatmul.bf16.gmra.mxu0 %v832
  %v1578 = vpop.f32.mrf.mxu0
  %v1579 = vadd.f32 %v1195, %v1578
  %v1580 = vpop.f32.mrf.mxu0
  %v1581 = vadd.f32 %v1197, %v1580
  %1582 = vmatmul.bf16.gmra.mxu0 %v835
  %v1583 = vpop.f32.mrf.mxu0
  %v1584 = vadd.f32 %v1200, %v1583
  %v1585 = vpop.f32.mrf.mxu0
  %v1586 = vadd.f32 %v1202, %v1585
  %1587 = vmatmul.bf16.gmra.mxu0 %v838
  %v1588 = vpop.f32.mrf.mxu0
  %v1589 = vadd.f32 %v1205, %v1588
  %v1590 = vpop.f32.mrf.mxu0
  %v1591 = vadd.f32 %v1207, %v1590
  %1592 = vmatmul.bf16.gmra.mxu0 %v841
  %v1593 = vpop.f32.mrf.mxu0
  %v1594 = vadd.f32 %v1210, %v1593
  %v1595 = vpop.f32.mrf.mxu0
  %v1596 = vadd.f32 %v1212, %v1595
  %1597 = vmatmul.bf16.gmra.mxu0 %v844
  %v1598 = vpop.f32.mrf.mxu0
  %v1599 = vadd.f32 %v1215, %v1598
  %v1600 = vpop.f32.mrf.mxu0
  %v1601 = vadd.f32 %v1217, %v1600
  %1602 = vmatmul.bf16.gmra.mxu0 %v847
  %v1603 = vpop.f32.mrf.mxu0
  %v1604 = vadd.f32 %v1220, %v1603
  %v1605 = vpop.f32.mrf.mxu0
  %v1606 = vadd.f32 %v1222, %v1605
  %1607 = vmatmul.bf16.gmra.mxu0 %v850
  %v1608 = vpop.f32.mrf.mxu0
  %v1609 = vadd.f32 %v1225, %v1608
  %v1610 = vpop.f32.mrf.mxu0
  %v1611 = vadd.f32 %v1227, %v1610
  %1612 = vmatmul.bf16.gmra.mxu0 %v853
  %v1613 = vpop.f32.mrf.mxu0
  %v1614 = vadd.f32 %v1230, %v1613
  %v1615 = vpop.f32.mrf.mxu0
  %v1616 = vadd.f32 %v1232, %v1615
  %1617 = vmatmul.bf16.gmra.mxu0 %v856
  %v1618 = vpop.f32.mrf.mxu0
  %v1619 = vadd.f32 %v1235, %v1618
  %v1620 = vpop.f32.mrf.mxu0
  %v1621 = vadd.f32 %v1237, %v1620
  %1622 = vmatmul.bf16.gmra.mxu0 %v859
  %v1623 = vpop.f32.mrf.mxu0
  %v1624 = vadd.f32 %v1240, %v1623
  %v1625 = vpop.f32.mrf.mxu0
  %v1626 = vadd.f32 %v1242, %v1625
  %1627 = vmatmul.bf16.gmra.mxu0 %v862
  %v1628 = vpop.f32.mrf.mxu0
  %v1629 = vadd.f32 %v1245, %v1628
  %v1630 = vpop.f32.mrf.mxu0
  %v1631 = vadd.f32 %v1247, %v1630
  %1632 = vmatmul.bf16.gmra.mxu0 %v865
  %v1633 = vpop.f32.mrf.mxu0
  %v1634 = vadd.f32 %v1250, %v1633
  %v1635 = vpop.f32.mrf.mxu0
  %v1636 = vadd.f32 %v1252, %v1635
  %1637 = vmatmul.bf16.gmra.mxu0 %v868
  %v1638 = vpop.f32.mrf.mxu0
  %v1639 = vadd.f32 %v1255, %v1638
  %v1640 = vpop.f32.mrf.mxu0
  %v1641 = vadd.f32 %v1257, %v1640
  %1642 = vmatmul.bf16.gmra.mxu0 %v871
  %v1643 = vpop.f32.mrf.mxu0
  %v1644 = vadd.f32 %v1260, %v1643
  %v1645 = vpop.f32.mrf.mxu0
  %v1646 = vadd.f32 %v1262, %v1645
  %1647 = vdwg.mxu0
  %1648 = vmatpush.bf16.msra.mxu0 %v186
  %1649 = vmatpush.bf16.msra.mxu0 %v184
  %1650 = vmatpush.bf16.msra.mxu0 %v182
  %1651 = vmatpush.bf16.msra.mxu0 %v180
  %1652 = vmatpush.bf16.msra.mxu0 %v178
  %1653 = vmatpush.bf16.msra.mxu0 %v176
  %1654 = vmatpush.bf16.msra.mxu0 %v174
  %1655 = vmatpush.bf16.msra.mxu0 %v172
  %1656 = vmatmul.bf16.gmra.mxu0 %v497
  %v1657 = vpop.f32.mrf.mxu0
  %v1658 = vadd.f32 0.0, %v1657
  %v1659 = vpop.f32.mrf.mxu0
  %v1660 = vadd.f32 0.0, %v1659
  %1661 = vmatmul.bf16.gmra.mxu0 %v499
  %v1662 = vpop.f32.mrf.mxu0
  %v1663 = vadd.f32 0.0, %v1662
  %v1664 = vpop.f32.mrf.mxu0
  %v1665 = vadd.f32 0.0, %v1664
  %1666 = vmatmul.bf16.gmra.mxu0 %v501
  %v1667 = vpop.f32.mrf.mxu0
  %v1668 = vadd.f32 0.0, %v1667
  %v1669 = vpop.f32.mrf.mxu0
  %v1670 = vadd.f32 0.0, %v1669
  %1671 = vmatmul.bf16.gmra.mxu0 %v503
  %v1672 = vpop.f32.mrf.mxu0
  %v1673 = vadd.f32 0.0, %v1672
  %v1674 = vpop.f32.mrf.mxu0
  %v1675 = vadd.f32 0.0, %v1674
  %1676 = vmatmul.bf16.gmra.mxu0 %v505
  %v1677 = vpop.f32.mrf.mxu0
  %v1678 = vadd.f32 0.0, %v1677
  %v1679 = vpop.f32.mrf.mxu0
  %v1680 = vadd.f32 0.0, %v1679
  %1681 = vmatmul.bf16.gmra.mxu0 %v507
  %v1682 = vpop.f32.mrf.mxu0
  %v1683 = vadd.f32 0.0, %v1682
  %v1684 = vpop.f32.mrf.mxu0
  %v1685 = vadd.f32 0.0, %v1684
  %1686 = vmatmul.bf16.gmra.mxu0 %v509
  %v1687 = vpop.f32.mrf.mxu0
  %v1688 = vadd.f32 0.0, %v1687
  %v1689 = vpop.f32.mrf.mxu0
  %v1690 = vadd.f32 0.0, %v1689
  %1691 = vmatmul.bf16.gmra.mxu0 %v511
  %v1692 = vpop.f32.mrf.mxu0
  %v1693 = vadd.f32 0.0, %v1692
  %v1694 = vpop.f32.mrf.mxu0
  %v1695 = vadd.f32 0.0, %v1694
  %1696 = vmatmul.bf16.gmra.mxu0 %v513
  %v1697 = vpop.f32.mrf.mxu0
  %v1698 = vadd.f32 0.0, %v1697
  %v1699 = vpop.f32.mrf.mxu0
  %v1700 = vadd.f32 0.0, %v1699
  %1701 = vmatmul.bf16.gmra.mxu0 %v515
  %v1702 = vpop.f32.mrf.mxu0
  %v1703 = vadd.f32 0.0, %v1702
  %v1704 = vpop.f32.mrf.mxu0
  %v1705 = vadd.f32 0.0, %v1704
  %1706 = vmatmul.bf16.gmra.mxu0 %v517
  %v1707 = vpop.f32.mrf.mxu0
  %v1708 = vadd.f32 0.0, %v1707
  %v1709 = vpop.f32.mrf.mxu0
  %v1710 = vadd.f32 0.0, %v1709
  %1711 = vmatmul.bf16.gmra.mxu0 %v519
  %v1712 = vpop.f32.mrf.mxu0
  %v1713 = vadd.f32 0.0, %v1712
  %v1714 = vpop.f32.mrf.mxu0
  %v1715 = vadd.f32 0.0, %v1714
  %1716 = vmatmul.bf16.gmra.mxu0 %v521
  %v1717 = vpop.f32.mrf.mxu0
  %v1718 = vadd.f32 0.0, %v1717
  %v1719 = vpop.f32.mrf.mxu0
  %v1720 = vadd.f32 0.0, %v1719
  %1721 = vmatmul.bf16.gmra.mxu0 %v523
  %v1722 = vpop.f32.mrf.mxu0
  %v1723 = vadd.f32 0.0, %v1722
  %v1724 = vpop.f32.mrf.mxu0
  %v1725 = vadd.f32 0.0, %v1724
  %1726 = vmatmul.bf16.gmra.mxu0 %v525
  %v1727 = vpop.f32.mrf.mxu0
  %v1728 = vadd.f32 0.0, %v1727
  %v1729 = vpop.f32.mrf.mxu0
  %v1730 = vadd.f32 0.0, %v1729
  %1731 = vmatmul.bf16.gmra.mxu0 %v527
  %v1732 = vpop.f32.mrf.mxu0
  %v1733 = vadd.f32 0.0, %v1732
  %v1734 = vpop.f32.mrf.mxu0
  %v1735 = vadd.f32 0.0, %v1734
  %1736 = vmatmul.bf16.gmra.mxu0 %v529
  %v1737 = vpop.f32.mrf.mxu0
  %v1738 = vadd.f32 0.0, %v1737
  %v1739 = vpop.f32.mrf.mxu0
  %v1740 = vadd.f32 0.0, %v1739
  %1741 = vmatmul.bf16.gmra.mxu0 %v531
  %v1742 = vpop.f32.mrf.mxu0
  %v1743 = vadd.f32 0.0, %v1742
  %v1744 = vpop.f32.mrf.mxu0
  %v1745 = vadd.f32 0.0, %v1744
  %1746 = vmatmul.bf16.gmra.mxu0 %v533
  %v1747 = vpop.f32.mrf.mxu0
  %v1748 = vadd.f32 0.0, %v1747
  %v1749 = vpop.f32.mrf.mxu0
  %v1750 = vadd.f32 0.0, %v1749
  %1751 = vmatmul.bf16.gmra.mxu0 %v535
  %v1752 = vpop.f32.mrf.mxu0
  %v1753 = vadd.f32 0.0, %v1752
  %v1754 = vpop.f32.mrf.mxu0
  %v1755 = vadd.f32 0.0, %v1754
  %1756 = vmatmul.bf16.gmra.mxu0 %v537
  %v1757 = vpop.f32.mrf.mxu0
  %v1758 = vadd.f32 0.0, %v1757
  %v1759 = vpop.f32.mrf.mxu0
  %v1760 = vadd.f32 0.0, %v1759
  %1761 = vmatmul.bf16.gmra.mxu0 %v539
  %v1762 = vpop.f32.mrf.mxu0
  %v1763 = vadd.f32 0.0, %v1762
  %v1764 = vpop.f32.mrf.mxu0
  %v1765 = vadd.f32 0.0, %v1764
  %1766 = vmatmul.bf16.gmra.mxu0 %v541
  %v1767 = vpop.f32.mrf.mxu0
  %v1768 = vadd.f32 0.0, %v1767
  %v1769 = vpop.f32.mrf.mxu0
  %v1770 = vadd.f32 0.0, %v1769
  %1771 = vmatmul.bf16.gmra.mxu0 %v543
  %v1772 = vpop.f32.mrf.mxu0
  %v1773 = vadd.f32 0.0, %v1772
  %v1774 = vpop.f32.mrf.mxu0
  %v1775 = vadd.f32 0.0, %v1774
  %1776 = vmatmul.bf16.gmra.mxu0 %v545
  %v1777 = vpop.f32.mrf.mxu0
  %v1778 = vadd.f32 0.0, %v1777
  %v1779 = vpop.f32.mrf.mxu0
  %v1780 = vadd.f32 0.0, %v1779
  %1781 = vmatmul.bf16.gmra.mxu0 %v547
  %v1782 = vpop.f32.mrf.mxu0
  %v1783 = vadd.f32 0.0, %v1782
  %v1784 = vpop.f32.mrf.mxu0
  %v1785 = vadd.f32 0.0, %v1784
  %1786 = vmatmul.bf16.gmra.mxu0 %v549
  %v1787 = vpop.f32.mrf.mxu0
  %v1788 = vadd.f32 0.0, %v1787
  %v1789 = vpop.f32.mrf.mxu0
  %v1790 = vadd.f32 0.0, %v1789
  %1791 = vmatmul.bf16.gmra.mxu0 %v551
  %v1792 = vpop.f32.mrf.mxu0
  %v1793 = vadd.f32 0.0, %v1792
  %v1794 = vpop.f32.mrf.mxu0
  %v1795 = vadd.f32 0.0, %v1794
  %1796 = vmatmul.bf16.gmra.mxu0 %v553
  %v1797 = vpop.f32.mrf.mxu0
  %v1798 = vadd.f32 0.0, %v1797
  %v1799 = vpop.f32.mrf.mxu0
  %v1800 = vadd.f32 0.0, %v1799
  %1801 = vmatmul.bf16.gmra.mxu0 %v555
  %v1802 = vpop.f32.mrf.mxu0
  %v1803 = vadd.f32 0.0, %v1802
  %v1804 = vpop.f32.mrf.mxu0
  %v1805 = vadd.f32 0.0, %v1804
  %1806 = vmatmul.bf16.gmra.mxu0 %v557
  %v1807 = vpop.f32.mrf.mxu0
  %v1808 = vadd.f32 0.0, %v1807
  %v1809 = vpop.f32.mrf.mxu0
  %v1810 = vadd.f32 0.0, %v1809
  %1811 = vmatmul.bf16.gmra.mxu0 %v559
  %v1812 = vpop.f32.mrf.mxu0
  %v1813 = vadd.f32 0.0, %v1812
  %v1814 = vpop.f32.mrf.mxu0
  %v1815 = vadd.f32 0.0, %v1814
  %1816 = vmatmul.bf16.gmra.mxu0 %v561
  %v1817 = vpop.f32.mrf.mxu0
  %v1818 = vadd.f32 0.0, %v1817
  %v1819 = vpop.f32.mrf.mxu0
  %v1820 = vadd.f32 0.0, %v1819
  %1821 = vmatmul.bf16.gmra.mxu0 %v563
  %v1822 = vpop.f32.mrf.mxu0
  %v1823 = vadd.f32 0.0, %v1822
  %v1824 = vpop.f32.mrf.mxu0
  %v1825 = vadd.f32 0.0, %v1824
  %1826 = vmatmul.bf16.gmra.mxu0 %v565
  %v1827 = vpop.f32.mrf.mxu0
  %v1828 = vadd.f32 0.0, %v1827
  %v1829 = vpop.f32.mrf.mxu0
  %v1830 = vadd.f32 0.0, %v1829
  %1831 = vmatmul.bf16.gmra.mxu0 %v567
  %v1832 = vpop.f32.mrf.mxu0
  %v1833 = vadd.f32 0.0, %v1832
  %v1834 = vpop.f32.mrf.mxu0
  %v1835 = vadd.f32 0.0, %v1834
  %1836 = vmatmul.bf16.gmra.mxu0 %v569
  %v1837 = vpop.f32.mrf.mxu0
  %v1838 = vadd.f32 0.0, %v1837
  %v1839 = vpop.f32.mrf.mxu0
  %v1840 = vadd.f32 0.0, %v1839
  %1841 = vmatmul.bf16.gmra.mxu0 %v571
  %v1842 = vpop.f32.mrf.mxu0
  %v1843 = vadd.f32 0.0, %v1842
  %v1844 = vpop.f32.mrf.mxu0
  %v1845 = vadd.f32 0.0, %v1844
  %1846 = vmatmul.bf16.gmra.mxu0 %v573
  %v1847 = vpop.f32.mrf.mxu0
  %v1848 = vadd.f32 0.0, %v1847
  %v1849 = vpop.f32.mrf.mxu0
  %v1850 = vadd.f32 0.0, %v1849
  %1851 = vmatmul.bf16.gmra.mxu0 %v575
  %v1852 = vpop.f32.mrf.mxu0
  %v1853 = vadd.f32 0.0, %v1852
  %v1854 = vpop.f32.mrf.mxu0
  %v1855 = vadd.f32 0.0, %v1854
  %1856 = vmatmul.bf16.gmra.mxu0 %v577
  %v1857 = vpop.f32.mrf.mxu0
  %v1858 = vadd.f32 0.0, %v1857
  %v1859 = vpop.f32.mrf.mxu0
  %v1860 = vadd.f32 0.0, %v1859
  %1861 = vmatmul.bf16.gmra.mxu0 %v579
  %v1862 = vpop.f32.mrf.mxu0
  %v1863 = vadd.f32 0.0, %v1862
  %v1864 = vpop.f32.mrf.mxu0
  %v1865 = vadd.f32 0.0, %v1864
  %1866 = vmatmul.bf16.gmra.mxu0 %v581
  %v1867 = vpop.f32.mrf.mxu0
  %v1868 = vadd.f32 0.0, %v1867
  %v1869 = vpop.f32.mrf.mxu0
  %v1870 = vadd.f32 0.0, %v1869
  %1871 = vmatmul.bf16.gmra.mxu0 %v583
  %v1872 = vpop.f32.mrf.mxu0
  %v1873 = vadd.f32 0.0, %v1872
  %v1874 = vpop.f32.mrf.mxu0
  %v1875 = vadd.f32 0.0, %v1874
  %1876 = vmatmul.bf16.gmra.mxu0 %v585
  %v1877 = vpop.f32.mrf.mxu0
  %v1878 = vadd.f32 0.0, %v1877
  %v1879 = vpop.f32.mrf.mxu0
  %v1880 = vadd.f32 0.0, %v1879
  %1881 = vmatmul.bf16.gmra.mxu0 %v587
  %v1882 = vpop.f32.mrf.mxu0
  %v1883 = vadd.f32 0.0, %v1882
  %v1884 = vpop.f32.mrf.mxu0
  %v1885 = vadd.f32 0.0, %v1884
  %1886 = vmatmul.bf16.gmra.mxu0 %v589
  %v1887 = vpop.f32.mrf.mxu0
  %v1888 = vadd.f32 0.0, %v1887
  %v1889 = vpop.f32.mrf.mxu0
  %v1890 = vadd.f32 0.0, %v1889
  %1891 = vmatmul.bf16.gmra.mxu0 %v591
  %v1892 = vpop.f32.mrf.mxu0
  %v1893 = vadd.f32 0.0, %v1892
  %v1894 = vpop.f32.mrf.mxu0
  %v1895 = vadd.f32 0.0, %v1894
  %1896 = vmatmul.bf16.gmra.mxu0 %v593
  %v1897 = vpop.f32.mrf.mxu0
  %v1898 = vadd.f32 0.0, %v1897
  %v1899 = vpop.f32.mrf.mxu0
  %v1900 = vadd.f32 0.0, %v1899
  %1901 = vmatmul.bf16.gmra.mxu0 %v595
  %v1902 = vpop.f32.mrf.mxu0
  %v1903 = vadd.f32 0.0, %v1902
  %v1904 = vpop.f32.mrf.mxu0
  %v1905 = vadd.f32 0.0, %v1904
  %1906 = vmatmul.bf16.gmra.mxu0 %v597
  %v1907 = vpop.f32.mrf.mxu0
  %v1908 = vadd.f32 0.0, %v1907
  %v1909 = vpop.f32.mrf.mxu0
  %v1910 = vadd.f32 0.0, %v1909
  %1911 = vmatmul.bf16.gmra.mxu0 %v599
  %v1912 = vpop.f32.mrf.mxu0
  %v1913 = vadd.f32 0.0, %v1912
  %v1914 = vpop.f32.mrf.mxu0
  %v1915 = vadd.f32 0.0, %v1914
  %1916 = vmatmul.bf16.gmra.mxu0 %v601
  %v1917 = vpop.f32.mrf.mxu0
  %v1918 = vadd.f32 0.0, %v1917
  %v1919 = vpop.f32.mrf.mxu0
  %v1920 = vadd.f32 0.0, %v1919
  %1921 = vmatmul.bf16.gmra.mxu0 %v603
  %v1922 = vpop.f32.mrf.mxu0
  %v1923 = vadd.f32 0.0, %v1922
  %v1924 = vpop.f32.mrf.mxu0
  %v1925 = vadd.f32 0.0, %v1924
  %1926 = vmatmul.bf16.gmra.mxu0 %v605
  %v1927 = vpop.f32.mrf.mxu0
  %v1928 = vadd.f32 0.0, %v1927
  %v1929 = vpop.f32.mrf.mxu0
  %v1930 = vadd.f32 0.0, %v1929
  %1931 = vmatmul.bf16.gmra.mxu0 %v607
  %v1932 = vpop.f32.mrf.mxu0
  %v1933 = vadd.f32 0.0, %v1932
  %v1934 = vpop.f32.mrf.mxu0
  %v1935 = vadd.f32 0.0, %v1934
  %1936 = vmatmul.bf16.gmra.mxu0 %v609
  %v1937 = vpop.f32.mrf.mxu0
  %v1938 = vadd.f32 0.0, %v1937
  %v1939 = vpop.f32.mrf.mxu0
  %v1940 = vadd.f32 0.0, %v1939
  %1941 = vmatmul.bf16.gmra.mxu0 %v611
  %v1942 = vpop.f32.mrf.mxu0
  %v1943 = vadd.f32 0.0, %v1942
  %v1944 = vpop.f32.mrf.mxu0
  %v1945 = vadd.f32 0.0, %v1944
  %1946 = vmatmul.bf16.gmra.mxu0 %v613
  %v1947 = vpop.f32.mrf.mxu0
  %v1948 = vadd.f32 0.0, %v1947
  %v1949 = vpop.f32.mrf.mxu0
  %v1950 = vadd.f32 0.0, %v1949
  %1951 = vmatmul.bf16.gmra.mxu0 %v615
  %v1952 = vpop.f32.mrf.mxu0
  %v1953 = vadd.f32 0.0, %v1952
  %v1954 = vpop.f32.mrf.mxu0
  %v1955 = vadd.f32 0.0, %v1954
  %1956 = vmatmul.bf16.gmra.mxu0 %v617
  %v1957 = vpop.f32.mrf.mxu0
  %v1958 = vadd.f32 0.0, %v1957
  %v1959 = vpop.f32.mrf.mxu0
  %v1960 = vadd.f32 0.0, %v1959
  %1961 = vmatmul.bf16.gmra.mxu0 %v619
  %v1962 = vpop.f32.mrf.mxu0
  %v1963 = vadd.f32 0.0, %v1962
  %v1964 = vpop.f32.mrf.mxu0
  %v1965 = vadd.f32 0.0, %v1964
  %1966 = vmatmul.bf16.gmra.mxu0 %v621
  %v1967 = vpop.f32.mrf.mxu0
  %v1968 = vadd.f32 0.0, %v1967
  %v1969 = vpop.f32.mrf.mxu0
  %v1970 = vadd.f32 0.0, %v1969
  %1971 = vmatmul.bf16.gmra.mxu0 %v623
  %v1972 = vpop.f32.mrf.mxu0
  %v1973 = vadd.f32 0.0, %v1972
  %v1974 = vpop.f32.mrf.mxu0
  %v1975 = vadd.f32 0.0, %v1974
  %1976 = vmatmul.bf16.gmra.mxu0 %v625
  %v1977 = vpop.f32.mrf.mxu0
  %v1978 = vadd.f32 0.0, %v1977
  %v1979 = vpop.f32.mrf.mxu0
  %v1980 = vadd.f32 0.0, %v1979
  %1981 = vmatmul.bf16.gmra.mxu0 %v627
  %v1982 = vpop.f32.mrf.mxu0
  %v1983 = vadd.f32 0.0, %v1982
  %v1984 = vpop.f32.mrf.mxu0
  %v1985 = vadd.f32 0.0, %v1984
  %1986 = vmatmul.bf16.gmra.mxu0 %v629
  %v1987 = vpop.f32.mrf.mxu0
  %v1988 = vadd.f32 0.0, %v1987
  %v1989 = vpop.f32.mrf.mxu0
  %v1990 = vadd.f32 0.0, %v1989
  %1991 = vmatmul.bf16.gmra.mxu0 %v631
  %v1992 = vpop.f32.mrf.mxu0
  %v1993 = vadd.f32 0.0, %v1992
  %v1994 = vpop.f32.mrf.mxu0
  %v1995 = vadd.f32 0.0, %v1994
  %1996 = vmatmul.bf16.gmra.mxu0 %v633
  %v1997 = vpop.f32.mrf.mxu0
  %v1998 = vadd.f32 0.0, %v1997
  %v1999 = vpop.f32.mrf.mxu0
  %v2000 = vadd.f32 0.0, %v1999
  %2001 = vmatmul.bf16.gmra.mxu0 %v635
  %v2002 = vpop.f32.mrf.mxu0
  %v2003 = vadd.f32 0.0, %v2002
  %v2004 = vpop.f32.mrf.mxu0
  %v2005 = vadd.f32 0.0, %v2004
  %2006 = vmatmul.bf16.gmra.mxu0 %v637
  %v2007 = vpop.f32.mrf.mxu0
  %v2008 = vadd.f32 0.0, %v2007
  %v2009 = vpop.f32.mrf.mxu0
  %v2010 = vadd.f32 0.0, %v2009
  %2011 = vmatmul.bf16.gmra.mxu0 %v639
  %v2012 = vpop.f32.mrf.mxu0
  %v2013 = vadd.f32 0.0, %v2012
  %v2014 = vpop.f32.mrf.mxu0
  %v2015 = vadd.f32 0.0, %v2014
  %2016 = vmatmul.bf16.gmra.mxu0 %v641
  %v2017 = vpop.f32.mrf.mxu0
  %v2018 = vadd.f32 0.0, %v2017
  %v2019 = vpop.f32.mrf.mxu0
  %v2020 = vadd.f32 0.0, %v2019
  %2021 = vmatmul.bf16.gmra.mxu0 %v643
  %v2022 = vpop.f32.mrf.mxu0
  %v2023 = vadd.f32 0.0, %v2022
  %v2024 = vpop.f32.mrf.mxu0
  %v2025 = vadd.f32 0.0, %v2024
  %2026 = vmatmul.bf16.gmra.mxu0 %v645
  %v2027 = vpop.f32.mrf.mxu0
  %v2028 = vadd.f32 0.0, %v2027
  %v2029 = vpop.f32.mrf.mxu0
  %v2030 = vadd.f32 0.0, %v2029
  %2031 = vdwg.mxu0
  %2032 = vmatpush.bf16.msra.mxu0 0
  %2033 = vmatpush.bf16.msra.mxu0 0
  %2034 = vmatpush.bf16.msra.mxu0 0
  %2035 = vmatpush.bf16.msra.mxu0 %v878
  %2036 = vmatpush.bf16.msra.mxu0 %v194
  %2037 = vmatpush.bf16.msra.mxu0 %v192
  %2038 = vmatpush.bf16.msra.mxu0 %v190
  %2039 = vmatpush.bf16.msra.mxu0 %v188
  %2040 = vmatmul.bf16.gmra.mxu0 %v649
  %v2041 = vpop.f32.mrf.mxu0
  %v2042 = vadd.f32 %v1658, %v2041
  %v2043 = vpop.f32.mrf.mxu0
  %v2044 = vadd.f32 %v1660, %v2043
  %2045 = vmatmul.bf16.gmra.mxu0 %v652
  %v2046 = vpop.f32.mrf.mxu0
  %v2047 = vadd.f32 %v1663, %v2046
  %v2048 = vpop.f32.mrf.mxu0
  %v2049 = vadd.f32 %v1665, %v2048
  %2050 = vmatmul.bf16.gmra.mxu0 %v655
  %v2051 = vpop.f32.mrf.mxu0
  %v2052 = vadd.f32 %v1668, %v2051
  %v2053 = vpop.f32.mrf.mxu0
  %v2054 = vadd.f32 %v1670, %v2053
  %2055 = vmatmul.bf16.gmra.mxu0 %v658
  %v2056 = vpop.f32.mrf.mxu0
  %v2057 = vadd.f32 %v1673, %v2056
  %v2058 = vpop.f32.mrf.mxu0
  %v2059 = vadd.f32 %v1675, %v2058
  %2060 = vmatmul.bf16.gmra.mxu0 %v661
  %v2061 = vpop.f32.mrf.mxu0
  %v2062 = vadd.f32 %v1678, %v2061
  %v2063 = vpop.f32.mrf.mxu0
  %v2064 = vadd.f32 %v1680, %v2063
  %2065 = vmatmul.bf16.gmra.mxu0 %v664
  %v2066 = vpop.f32.mrf.mxu0
  %v2067 = vadd.f32 %v1683, %v2066
  %v2068 = vpop.f32.mrf.mxu0
  %v2069 = vadd.f32 %v1685, %v2068
  %2070 = vmatmul.bf16.gmra.mxu0 %v667
  %v2071 = vpop.f32.mrf.mxu0
  %v2072 = vadd.f32 %v1688, %v2071
  %v2073 = vpop.f32.mrf.mxu0
  %v2074 = vadd.f32 %v1690, %v2073
  %2075 = vmatmul.bf16.gmra.mxu0 %v670
  %v2076 = vpop.f32.mrf.mxu0
  %v2077 = vadd.f32 %v1693, %v2076
  %v2078 = vpop.f32.mrf.mxu0
  %v2079 = vadd.f32 %v1695, %v2078
  %2080 = vmatmul.bf16.gmra.mxu0 %v673
  %v2081 = vpop.f32.mrf.mxu0
  %v2082 = vadd.f32 %v1698, %v2081
  %v2083 = vpop.f32.mrf.mxu0
  %v2084 = vadd.f32 %v1700, %v2083
  %2085 = vmatmul.bf16.gmra.mxu0 %v676
  %v2086 = vpop.f32.mrf.mxu0
  %v2087 = vadd.f32 %v1703, %v2086
  %v2088 = vpop.f32.mrf.mxu0
  %v2089 = vadd.f32 %v1705, %v2088
  %2090 = vmatmul.bf16.gmra.mxu0 %v679
  %v2091 = vpop.f32.mrf.mxu0
  %v2092 = vadd.f32 %v1708, %v2091
  %v2093 = vpop.f32.mrf.mxu0
  %v2094 = vadd.f32 %v1710, %v2093
  %2095 = vmatmul.bf16.gmra.mxu0 %v682
  %v2096 = vpop.f32.mrf.mxu0
  %v2097 = vadd.f32 %v1713, %v2096
  %v2098 = vpop.f32.mrf.mxu0
  %v2099 = vadd.f32 %v1715, %v2098
  %2100 = vmatmul.bf16.gmra.mxu0 %v685
  %v2101 = vpop.f32.mrf.mxu0
  %v2102 = vadd.f32 %v1718, %v2101
  %v2103 = vpop.f32.mrf.mxu0
  %v2104 = vadd.f32 %v1720, %v2103
  %2105 = vmatmul.bf16.gmra.mxu0 %v688
  %v2106 = vpop.f32.mrf.mxu0
  %v2107 = vadd.f32 %v1723, %v2106
  %v2108 = vpop.f32.mrf.mxu0
  %v2109 = vadd.f32 %v1725, %v2108
  %2110 = vmatmul.bf16.gmra.mxu0 %v691
  %v2111 = vpop.f32.mrf.mxu0
  %v2112 = vadd.f32 %v1728, %v2111
  %v2113 = vpop.f32.mrf.mxu0
  %v2114 = vadd.f32 %v1730, %v2113
  %2115 = vmatmul.bf16.gmra.mxu0 %v694
  %v2116 = vpop.f32.mrf.mxu0
  %v2117 = vadd.f32 %v1733, %v2116
  %v2118 = vpop.f32.mrf.mxu0
  %v2119 = vadd.f32 %v1735, %v2118
  %2120 = vmatmul.bf16.gmra.mxu0 %v697
  %v2121 = vpop.f32.mrf.mxu0
  %v2122 = vadd.f32 %v1738, %v2121
  %v2123 = vpop.f32.mrf.mxu0
  %v2124 = vadd.f32 %v1740, %v2123
  %2125 = vmatmul.bf16.gmra.mxu0 %v700
  %v2126 = vpop.f32.mrf.mxu0
  %v2127 = vadd.f32 %v1743, %v2126
  %v2128 = vpop.f32.mrf.mxu0
  %v2129 = vadd.f32 %v1745, %v2128
  %2130 = vmatmul.bf16.gmra.mxu0 %v703
  %v2131 = vpop.f32.mrf.mxu0
  %v2132 = vadd.f32 %v1748, %v2131
  %v2133 = vpop.f32.mrf.mxu0
  %v2134 = vadd.f32 %v1750, %v2133
  %2135 = vmatmul.bf16.gmra.mxu0 %v706
  %v2136 = vpop.f32.mrf.mxu0
  %v2137 = vadd.f32 %v1753, %v2136
  %v2138 = vpop.f32.mrf.mxu0
  %v2139 = vadd.f32 %v1755, %v2138
  %2140 = vmatmul.bf16.gmra.mxu0 %v709
  %v2141 = vpop.f32.mrf.mxu0
  %v2142 = vadd.f32 %v1758, %v2141
  %v2143 = vpop.f32.mrf.mxu0
  %v2144 = vadd.f32 %v1760, %v2143
  %2145 = vmatmul.bf16.gmra.mxu0 %v712
  %v2146 = vpop.f32.mrf.mxu0
  %v2147 = vadd.f32 %v1763, %v2146
  %v2148 = vpop.f32.mrf.mxu0
  %v2149 = vadd.f32 %v1765, %v2148
  %2150 = vmatmul.bf16.gmra.mxu0 %v715
  %v2151 = vpop.f32.mrf.mxu0
  %v2152 = vadd.f32 %v1768, %v2151
  %v2153 = vpop.f32.mrf.mxu0
  %v2154 = vadd.f32 %v1770, %v2153
  %2155 = vmatmul.bf16.gmra.mxu0 %v718
  %v2156 = vpop.f32.mrf.mxu0
  %v2157 = vadd.f32 %v1773, %v2156
  %v2158 = vpop.f32.mrf.mxu0
  %v2159 = vadd.f32 %v1775, %v2158
  %2160 = vmatmul.bf16.gmra.mxu0 %v721
  %v2161 = vpop.f32.mrf.mxu0
  %v2162 = vadd.f32 %v1778, %v2161
  %v2163 = vpop.f32.mrf.mxu0
  %v2164 = vadd.f32 %v1780, %v2163
  %2165 = vmatmul.bf16.gmra.mxu0 %v724
  %v2166 = vpop.f32.mrf.mxu0
  %v2167 = vadd.f32 %v1783, %v2166
  %v2168 = vpop.f32.mrf.mxu0
  %v2169 = vadd.f32 %v1785, %v2168
  %2170 = vmatmul.bf16.gmra.mxu0 %v727
  %v2171 = vpop.f32.mrf.mxu0
  %v2172 = vadd.f32 %v1788, %v2171
  %v2173 = vpop.f32.mrf.mxu0
  %v2174 = vadd.f32 %v1790, %v2173
  %2175 = vmatmul.bf16.gmra.mxu0 %v730
  %v2176 = vpop.f32.mrf.mxu0
  %v2177 = vadd.f32 %v1793, %v2176
  %v2178 = vpop.f32.mrf.mxu0
  %v2179 = vadd.f32 %v1795, %v2178
  %2180 = vmatmul.bf16.gmra.mxu0 %v733
  %v2181 = vpop.f32.mrf.mxu0
  %v2182 = vadd.f32 %v1798, %v2181
  %v2183 = vpop.f32.mrf.mxu0
  %v2184 = vadd.f32 %v1800, %v2183
  %2185 = vmatmul.bf16.gmra.mxu0 %v736
  %v2186 = vpop.f32.mrf.mxu0
  %v2187 = vadd.f32 %v1803, %v2186
  %v2188 = vpop.f32.mrf.mxu0
  %v2189 = vadd.f32 %v1805, %v2188
  %2190 = vmatmul.bf16.gmra.mxu0 %v739
  %v2191 = vpop.f32.mrf.mxu0
  %v2192 = vadd.f32 %v1808, %v2191
  %v2193 = vpop.f32.mrf.mxu0
  %v2194 = vadd.f32 %v1810, %v2193
  %2195 = vmatmul.bf16.gmra.mxu0 %v742
  %v2196 = vpop.f32.mrf.mxu0
  %v2197 = vadd.f32 %v1813, %v2196
  %v2198 = vpop.f32.mrf.mxu0
  %v2199 = vadd.f32 %v1815, %v2198
  %2200 = vmatmul.bf16.gmra.mxu0 %v745
  %v2201 = vpop.f32.mrf.mxu0
  %v2202 = vadd.f32 %v1818, %v2201
  %v2203 = vpop.f32.mrf.mxu0
  %v2204 = vadd.f32 %v1820, %v2203
  %2205 = vmatmul.bf16.gmra.mxu0 %v748
  %v2206 = vpop.f32.mrf.mxu0
  %v2207 = vadd.f32 %v1823, %v2206
  %v2208 = vpop.f32.mrf.mxu0
  %v2209 = vadd.f32 %v1825, %v2208
  %2210 = vmatmul.bf16.gmra.mxu0 %v751
  %v2211 = vpop.f32.mrf.mxu0
  %v2212 = vadd.f32 %v1828, %v2211
  %v2213 = vpop.f32.mrf.mxu0
  %v2214 = vadd.f32 %v1830, %v2213
  %2215 = vmatmul.bf16.gmra.mxu0 %v754
  %v2216 = vpop.f32.mrf.mxu0
  %v2217 = vadd.f32 %v1833, %v2216
  %v2218 = vpop.f32.mrf.mxu0
  %v2219 = vadd.f32 %v1835, %v2218
  %2220 = vmatmul.bf16.gmra.mxu0 %v757
  %v2221 = vpop.f32.mrf.mxu0
  %v2222 = vadd.f32 %v1838, %v2221
  %v2223 = vpop.f32.mrf.mxu0
  %v2224 = vadd.f32 %v1840, %v2223
  %2225 = vmatmul.bf16.gmra.mxu0 %v760
  %v2226 = vpop.f32.mrf.mxu0
  %v2227 = vadd.f32 %v1843, %v2226
  %v2228 = vpop.f32.mrf.mxu0
  %v2229 = vadd.f32 %v1845, %v2228
  %2230 = vmatmul.bf16.gmra.mxu0 %v763
  %v2231 = vpop.f32.mrf.mxu0
  %v2232 = vadd.f32 %v1848, %v2231
  %v2233 = vpop.f32.mrf.mxu0
  %v2234 = vadd.f32 %v1850, %v2233
  %2235 = vmatmul.bf16.gmra.mxu0 %v766
  %v2236 = vpop.f32.mrf.mxu0
  %v2237 = vadd.f32 %v1853, %v2236
  %v2238 = vpop.f32.mrf.mxu0
  %v2239 = vadd.f32 %v1855, %v2238
  %2240 = vmatmul.bf16.gmra.mxu0 %v769
  %v2241 = vpop.f32.mrf.mxu0
  %v2242 = vadd.f32 %v1858, %v2241
  %v2243 = vpop.f32.mrf.mxu0
  %v2244 = vadd.f32 %v1860, %v2243
  %2245 = vmatmul.bf16.gmra.mxu0 %v772
  %v2246 = vpop.f32.mrf.mxu0
  %v2247 = vadd.f32 %v1863, %v2246
  %v2248 = vpop.f32.mrf.mxu0
  %v2249 = vadd.f32 %v1865, %v2248
  %2250 = vmatmul.bf16.gmra.mxu0 %v775
  %v2251 = vpop.f32.mrf.mxu0
  %v2252 = vadd.f32 %v1868, %v2251
  %v2253 = vpop.f32.mrf.mxu0
  %v2254 = vadd.f32 %v1870, %v2253
  %2255 = vmatmul.bf16.gmra.mxu0 %v778
  %v2256 = vpop.f32.mrf.mxu0
  %v2257 = vadd.f32 %v1873, %v2256
  %v2258 = vpop.f32.mrf.mxu0
  %v2259 = vadd.f32 %v1875, %v2258
  %2260 = vmatmul.bf16.gmra.mxu0 %v781
  %v2261 = vpop.f32.mrf.mxu0
  %v2262 = vadd.f32 %v1878, %v2261
  %v2263 = vpop.f32.mrf.mxu0
  %v2264 = vadd.f32 %v1880, %v2263
  %2265 = vmatmul.bf16.gmra.mxu0 %v784
  %v2266 = vpop.f32.mrf.mxu0
  %v2267 = vadd.f32 %v1883, %v2266
  %v2268 = vpop.f32.mrf.mxu0
  %v2269 = vadd.f32 %v1885, %v2268
  %2270 = vmatmul.bf16.gmra.mxu0 %v787
  %v2271 = vpop.f32.mrf.mxu0
  %v2272 = vadd.f32 %v1888, %v2271
  %v2273 = vpop.f32.mrf.mxu0
  %v2274 = vadd.f32 %v1890, %v2273
  %2275 = vmatmul.bf16.gmra.mxu0 %v790
  %v2276 = vpop.f32.mrf.mxu0
  %v2277 = vadd.f32 %v1893, %v2276
  %v2278 = vpop.f32.mrf.mxu0
  %v2279 = vadd.f32 %v1895, %v2278
  %2280 = vmatmul.bf16.gmra.mxu0 %v793
  %v2281 = vpop.f32.mrf.mxu0
  %v2282 = vadd.f32 %v1898, %v2281
  %v2283 = vpop.f32.mrf.mxu0
  %v2284 = vadd.f32 %v1900, %v2283
  %2285 = vmatmul.bf16.gmra.mxu0 %v796
  %v2286 = vpop.f32.mrf.mxu0
  %v2287 = vadd.f32 %v1903, %v2286
  %v2288 = vpop.f32.mrf.mxu0
  %v2289 = vadd.f32 %v1905, %v2288
  %2290 = vmatmul.bf16.gmra.mxu0 %v799
  %v2291 = vpop.f32.mrf.mxu0
  %v2292 = vadd.f32 %v1908, %v2291
  %v2293 = vpop.f32.mrf.mxu0
  %v2294 = vadd.f32 %v1910, %v2293
  %2295 = vmatmul.bf16.gmra.mxu0 %v802
  %v2296 = vpop.f32.mrf.mxu0
  %v2297 = vadd.f32 %v1913, %v2296
  %v2298 = vpop.f32.mrf.mxu0
  %v2299 = vadd.f32 %v1915, %v2298
  %2300 = vmatmul.bf16.gmra.mxu0 %v805
  %v2301 = vpop.f32.mrf.mxu0
  %v2302 = vadd.f32 %v1918, %v2301
  %v2303 = vpop.f32.mrf.mxu0
  %v2304 = vadd.f32 %v1920, %v2303
  %2305 = vmatmul.bf16.gmra.mxu0 %v808
  %v2306 = vpop.f32.mrf.mxu0
  %v2307 = vadd.f32 %v1923, %v2306
  %v2308 = vpop.f32.mrf.mxu0
  %v2309 = vadd.f32 %v1925, %v2308
  %2310 = vmatmul.bf16.gmra.mxu0 %v811
  %v2311 = vpop.f32.mrf.mxu0
  %v2312 = vadd.f32 %v1928, %v2311
  %v2313 = vpop.f32.mrf.mxu0
  %v2314 = vadd.f32 %v1930, %v2313
  %2315 = vmatmul.bf16.gmra.mxu0 %v814
  %v2316 = vpop.f32.mrf.mxu0
  %v2317 = vadd.f32 %v1933, %v2316
  %v2318 = vpop.f32.mrf.mxu0
  %v2319 = vadd.f32 %v1935, %v2318
  %2320 = vmatmul.bf16.gmra.mxu0 %v817
  %v2321 = vpop.f32.mrf.mxu0
  %v2322 = vadd.f32 %v1938, %v2321
  %v2323 = vpop.f32.mrf.mxu0
  %v2324 = vadd.f32 %v1940, %v2323
  %2325 = vmatmul.bf16.gmra.mxu0 %v820
  %v2326 = vpop.f32.mrf.mxu0
  %v2327 = vadd.f32 %v1943, %v2326
  %v2328 = vpop.f32.mrf.mxu0
  %v2329 = vadd.f32 %v1945, %v2328
  %2330 = vmatmul.bf16.gmra.mxu0 %v823
  %v2331 = vpop.f32.mrf.mxu0
  %v2332 = vadd.f32 %v1948, %v2331
  %v2333 = vpop.f32.mrf.mxu0
  %v2334 = vadd.f32 %v1950, %v2333
  %2335 = vmatmul.bf16.gmra.mxu0 %v826
  %v2336 = vpop.f32.mrf.mxu0
  %v2337 = vadd.f32 %v1953, %v2336
  %v2338 = vpop.f32.mrf.mxu0
  %v2339 = vadd.f32 %v1955, %v2338
  %2340 = vmatmul.bf16.gmra.mxu0 %v829
  %v2341 = vpop.f32.mrf.mxu0
  %v2342 = vadd.f32 %v1958, %v2341
  %v2343 = vpop.f32.mrf.mxu0
  %v2344 = vadd.f32 %v1960, %v2343
  %2345 = vmatmul.bf16.gmra.mxu0 %v832
  %v2346 = vpop.f32.mrf.mxu0
  %v2347 = vadd.f32 %v1963, %v2346
  %v2348 = vpop.f32.mrf.mxu0
  %v2349 = vadd.f32 %v1965, %v2348
  %2350 = vmatmul.bf16.gmra.mxu0 %v835
  %v2351 = vpop.f32.mrf.mxu0
  %v2352 = vadd.f32 %v1968, %v2351
  %v2353 = vpop.f32.mrf.mxu0
  %v2354 = vadd.f32 %v1970, %v2353
  %2355 = vmatmul.bf16.gmra.mxu0 %v838
  %v2356 = vpop.f32.mrf.mxu0
  %v2357 = vadd.f32 %v1973, %v2356
  %v2358 = vpop.f32.mrf.mxu0
  %v2359 = vadd.f32 %v1975, %v2358
  %2360 = vmatmul.bf16.gmra.mxu0 %v841
  %v2361 = vpop.f32.mrf.mxu0
  %v2362 = vadd.f32 %v1978, %v2361
  %v2363 = vpop.f32.mrf.mxu0
  %v2364 = vadd.f32 %v1980, %v2363
  %2365 = vmatmul.bf16.gmra.mxu0 %v844
  %v2366 = vpop.f32.mrf.mxu0
  %v2367 = vadd.f32 %v1983, %v2366
  %v2368 = vpop.f32.mrf.mxu0
  %v2369 = vadd.f32 %v1985, %v2368
  %2370 = vmatmul.bf16.gmra.mxu0 %v847
  %v2371 = vpop.f32.mrf.mxu0
  %v2372 = vadd.f32 %v1988, %v2371
  %v2373 = vpop.f32.mrf.mxu0
  %v2374 = vadd.f32 %v1990, %v2373
  %2375 = vmatmul.bf16.gmra.mxu0 %v850
  %v2376 = vpop.f32.mrf.mxu0
  %v2377 = vadd.f32 %v1993, %v2376
  %v2378 = vpop.f32.mrf.mxu0
  %v2379 = vadd.f32 %v1995, %v2378
  %2380 = vmatmul.bf16.gmra.mxu0 %v853
  %v2381 = vpop.f32.mrf.mxu0
  %v2382 = vadd.f32 %v1998, %v2381
  %v2383 = vpop.f32.mrf.mxu0
  %v2384 = vadd.f32 %v2000, %v2383
  %2385 = vmatmul.bf16.gmra.mxu0 %v856
  %v2386 = vpop.f32.mrf.mxu0
  %v2387 = vadd.f32 %v2003, %v2386
  %v2388 = vpop.f32.mrf.mxu0
  %v2389 = vadd.f32 %v2005, %v2388
  %2390 = vmatmul.bf16.gmra.mxu0 %v859
  %v2391 = vpop.f32.mrf.mxu0
  %v2392 = vadd.f32 %v2008, %v2391
  %v2393 = vpop.f32.mrf.mxu0
  %v2394 = vadd.f32 %v2010, %v2393
  %2395 = vmatmul.bf16.gmra.mxu0 %v862
  %v2396 = vpop.f32.mrf.mxu0
  %v2397 = vadd.f32 %v2013, %v2396
  %v2398 = vpop.f32.mrf.mxu0
  %v2399 = vadd.f32 %v2015, %v2398
  %2400 = vmatmul.bf16.gmra.mxu0 %v865
  %v2401 = vpop.f32.mrf.mxu0
  %v2402 = vadd.f32 %v2018, %v2401
  %v2403 = vpop.f32.mrf.mxu0
  %v2404 = vadd.f32 %v2020, %v2403
  %2405 = vmatmul.bf16.gmra.mxu0 %v868
  %v2406 = vpop.f32.mrf.mxu0
  %v2407 = vadd.f32 %v2023, %v2406
  %v2408 = vpop.f32.mrf.mxu0
  %v2409 = vadd.f32 %v2025, %v2408
  %2410 = vmatmul.bf16.gmra.mxu0 %v871
  %v2411 = vpop.f32.mrf.mxu0
  %v2412 = vadd.f32 %v2028, %v2411
  %v2413 = vpop.f32.mrf.mxu0
  %v2414 = vadd.f32 %v2030, %v2413
  %2415 = vdwg.mxu0
  %vm2416 = vcmask 556032
  %v2417 = vsel %vm2416, %v2042, 0.0
  %v2418 = vadd.f32 %v1274, %v2417
  %2419 = vadd.xlane.f32.xlu0 %v2418
  %v2420 = vpop.xlane.xlu0 %2419
  %v2421 = vsel %vm2416, %v2044, 0.0
  %v2422 = vadd.f32 %v1276, %v2421
  %2423 = vadd.xlane.f32.xlu0 %v2422
  %v2424 = vpop.xlane.xlu0 %2423
  %v2425 = vsel %vm2416, %v2047, 0.0
  %v2426 = vadd.f32 %v1279, %v2425
  %2427 = vadd.xlane.f32.xlu0 %v2426
  %v2428 = vpop.xlane.xlu0 %2427
  %v2429 = vsel %vm2416, %v2049, 0.0
  %v2430 = vadd.f32 %v1281, %v2429
  %2431 = vadd.xlane.f32.xlu0 %v2430
  %v2432 = vpop.xlane.xlu0 %2431
  %v2433 = vsel %vm2416, %v2052, 0.0
  %v2434 = vadd.f32 %v1284, %v2433
  %2435 = vadd.xlane.f32.xlu0 %v2434
  %v2436 = vpop.xlane.xlu0 %2435
  %v2437 = vsel %vm2416, %v2054, 0.0
  %v2438 = vadd.f32 %v1286, %v2437
  %2439 = vadd.xlane.f32.xlu0 %v2438
  %v2440 = vpop.xlane.xlu0 %2439
  %v2441 = vsel %vm2416, %v2057, 0.0
  %v2442 = vadd.f32 %v1289, %v2441
  %2443 = vadd.xlane.f32.xlu0 %v2442
  %v2444 = vpop.xlane.xlu0 %2443
  %v2445 = vsel %vm2416, %v2059, 0.0
  %v2446 = vadd.f32 %v1291, %v2445
  %2447 = vadd.xlane.f32.xlu0 %v2446
  %v2448 = vpop.xlane.xlu0 %2447
  %v2449 = vsel %vm2416, %v2062, 0.0
  %v2450 = vadd.f32 %v1294, %v2449
  %2451 = vadd.xlane.f32.xlu0 %v2450
  %v2452 = vpop.xlane.xlu0 %2451
  %v2453 = vsel %vm2416, %v2064, 0.0
  %v2454 = vadd.f32 %v1296, %v2453
  %2455 = vadd.xlane.f32.xlu0 %v2454
  %v2456 = vpop.xlane.xlu0 %2455
  %v2457 = vsel %vm2416, %v2067, 0.0
  %v2458 = vadd.f32 %v1299, %v2457
  %2459 = vadd.xlane.f32.xlu0 %v2458
  %v2460 = vpop.xlane.xlu0 %2459
  %v2461 = vsel %vm2416, %v2069, 0.0
  %v2462 = vadd.f32 %v1301, %v2461
  %2463 = vadd.xlane.f32.xlu0 %v2462
  %v2464 = vpop.xlane.xlu0 %2463
  %v2465 = vsel %vm2416, %v2072, 0.0
  %v2466 = vadd.f32 %v1304, %v2465
  %2467 = vadd.xlane.f32.xlu0 %v2466
  %v2468 = vpop.xlane.xlu0 %2467
  %v2469 = vsel %vm2416, %v2074, 0.0
  %v2470 = vadd.f32 %v1306, %v2469
  %2471 = vadd.xlane.f32.xlu0 %v2470
  %v2472 = vpop.xlane.xlu0 %2471
  %v2473 = vsel %vm2416, %v2077, 0.0
  %v2474 = vadd.f32 %v1309, %v2473
  %2475 = vadd.xlane.f32.xlu0 %v2474
  %v2476 = vpop.xlane.xlu0 %2475
  %v2477 = vsel %vm2416, %v2079, 0.0
  %v2478 = vadd.f32 %v1311, %v2477
  %2479 = vadd.xlane.f32.xlu0 %v2478
  %v2480 = vpop.xlane.xlu0 %2479
  %v2481 = vsel %vm2416, %v2082, 0.0
  %v2482 = vadd.f32 %v1314, %v2481
  %2483 = vadd.xlane.f32.xlu0 %v2482
  %v2484 = vpop.xlane.xlu0 %2483
  %v2485 = vsel %vm2416, %v2084, 0.0
  %v2486 = vadd.f32 %v1316, %v2485
  %2487 = vadd.xlane.f32.xlu0 %v2486
  %v2488 = vpop.xlane.xlu0 %2487
  %v2489 = vsel %vm2416, %v2087, 0.0
  %v2490 = vadd.f32 %v1319, %v2489
  %2491 = vadd.xlane.f32.xlu0 %v2490
  %v2492 = vpop.xlane.xlu0 %2491
  %v2493 = vsel %vm2416, %v2089, 0.0
  %v2494 = vadd.f32 %v1321, %v2493
  %2495 = vadd.xlane.f32.xlu0 %v2494
  %v2496 = vpop.xlane.xlu0 %2495
  %v2497 = vsel %vm2416, %v2092, 0.0
  %v2498 = vadd.f32 %v1324, %v2497
  %2499 = vadd.xlane.f32.xlu0 %v2498
  %v2500 = vpop.xlane.xlu0 %2499
  %v2501 = vsel %vm2416, %v2094, 0.0
  %v2502 = vadd.f32 %v1326, %v2501
  %2503 = vadd.xlane.f32.xlu0 %v2502
  %v2504 = vpop.xlane.xlu0 %2503
  %v2505 = vsel %vm2416, %v2097, 0.0
  %v2506 = vadd.f32 %v1329, %v2505
  %2507 = vadd.xlane.f32.xlu0 %v2506
  %v2508 = vpop.xlane.xlu0 %2507
  %v2509 = vsel %vm2416, %v2099, 0.0
  %v2510 = vadd.f32 %v1331, %v2509
  %2511 = vadd.xlane.f32.xlu0 %v2510
  %v2512 = vpop.xlane.xlu0 %2511
  %v2513 = vsel %vm2416, %v2102, 0.0
  %v2514 = vadd.f32 %v1334, %v2513
  %2515 = vadd.xlane.f32.xlu0 %v2514
  %v2516 = vpop.xlane.xlu0 %2515
  %v2517 = vsel %vm2416, %v2104, 0.0
  %v2518 = vadd.f32 %v1336, %v2517
  %2519 = vadd.xlane.f32.xlu0 %v2518
  %v2520 = vpop.xlane.xlu0 %2519
  %v2521 = vsel %vm2416, %v2107, 0.0
  %v2522 = vadd.f32 %v1339, %v2521
  %2523 = vadd.xlane.f32.xlu0 %v2522
  %v2524 = vpop.xlane.xlu0 %2523
  %v2525 = vsel %vm2416, %v2109, 0.0
  %v2526 = vadd.f32 %v1341, %v2525
  %2527 = vadd.xlane.f32.xlu0 %v2526
  %v2528 = vpop.xlane.xlu0 %2527
  %v2529 = vsel %vm2416, %v2112, 0.0
  %v2530 = vadd.f32 %v1344, %v2529
  %2531 = vadd.xlane.f32.xlu0 %v2530
  %v2532 = vpop.xlane.xlu0 %2531
  %v2533 = vsel %vm2416, %v2114, 0.0
  %v2534 = vadd.f32 %v1346, %v2533
  %2535 = vadd.xlane.f32.xlu0 %v2534
  %v2536 = vpop.xlane.xlu0 %2535
  %v2537 = vsel %vm2416, %v2117, 0.0
  %v2538 = vadd.f32 %v1349, %v2537
  %2539 = vadd.xlane.f32.xlu0 %v2538
  %v2540 = vpop.xlane.xlu0 %2539
  %v2541 = vsel %vm2416, %v2119, 0.0
  %v2542 = vadd.f32 %v1351, %v2541
  %2543 = vadd.xlane.f32.xlu0 %v2542
  %v2544 = vpop.xlane.xlu0 %2543
  %v2545 = vsel %vm2416, %v2122, 0.0
  %v2546 = vadd.f32 %v1354, %v2545
  %2547 = vadd.xlane.f32.xlu0 %v2546
  %v2548 = vpop.xlane.xlu0 %2547
  %v2549 = vsel %vm2416, %v2124, 0.0
  %v2550 = vadd.f32 %v1356, %v2549
  %2551 = vadd.xlane.f32.xlu0 %v2550
  %v2552 = vpop.xlane.xlu0 %2551
  %v2553 = vsel %vm2416, %v2127, 0.0
  %v2554 = vadd.f32 %v1359, %v2553
  %2555 = vadd.xlane.f32.xlu0 %v2554
  %v2556 = vpop.xlane.xlu0 %2555
  %v2557 = vsel %vm2416, %v2129, 0.0
  %v2558 = vadd.f32 %v1361, %v2557
  %2559 = vadd.xlane.f32.xlu0 %v2558
  %v2560 = vpop.xlane.xlu0 %2559
  %v2561 = vsel %vm2416, %v2132, 0.0
  %v2562 = vadd.f32 %v1364, %v2561
  %2563 = vadd.xlane.f32.xlu0 %v2562
  %v2564 = vpop.xlane.xlu0 %2563
  %v2565 = vsel %vm2416, %v2134, 0.0
  %v2566 = vadd.f32 %v1366, %v2565
  %2567 = vadd.xlane.f32.xlu0 %v2566
  %v2568 = vpop.xlane.xlu0 %2567
  %v2569 = vsel %vm2416, %v2137, 0.0
  %v2570 = vadd.f32 %v1369, %v2569
  %2571 = vadd.xlane.f32.xlu0 %v2570
  %v2572 = vpop.xlane.xlu0 %2571
  %v2573 = vsel %vm2416, %v2139, 0.0
  %v2574 = vadd.f32 %v1371, %v2573
  %2575 = vadd.xlane.f32.xlu0 %v2574
  %v2576 = vpop.xlane.xlu0 %2575
  %v2577 = vsel %vm2416, %v2142, 0.0
  %v2578 = vadd.f32 %v1374, %v2577
  %2579 = vadd.xlane.f32.xlu0 %v2578
  %v2580 = vpop.xlane.xlu0 %2579
  %v2581 = vsel %vm2416, %v2144, 0.0
  %v2582 = vadd.f32 %v1376, %v2581
  %2583 = vadd.xlane.f32.xlu0 %v2582
  %v2584 = vpop.xlane.xlu0 %2583
  %v2585 = vsel %vm2416, %v2147, 0.0
  %v2586 = vadd.f32 %v1379, %v2585
  %2587 = vadd.xlane.f32.xlu0 %v2586
  %v2588 = vpop.xlane.xlu0 %2587
  %v2589 = vsel %vm2416, %v2149, 0.0
  %v2590 = vadd.f32 %v1381, %v2589
  %2591 = vadd.xlane.f32.xlu0 %v2590
  %v2592 = vpop.xlane.xlu0 %2591
  %v2593 = vsel %vm2416, %v2152, 0.0
  %v2594 = vadd.f32 %v1384, %v2593
  %2595 = vadd.xlane.f32.xlu0 %v2594
  %v2596 = vpop.xlane.xlu0 %2595
  %v2597 = vsel %vm2416, %v2154, 0.0
  %v2598 = vadd.f32 %v1386, %v2597
  %2599 = vadd.xlane.f32.xlu0 %v2598
  %v2600 = vpop.xlane.xlu0 %2599
  %v2601 = vsel %vm2416, %v2157, 0.0
  %v2602 = vadd.f32 %v1389, %v2601
  %2603 = vadd.xlane.f32.xlu0 %v2602
  %v2604 = vpop.xlane.xlu0 %2603
  %v2605 = vsel %vm2416, %v2159, 0.0
  %v2606 = vadd.f32 %v1391, %v2605
  %2607 = vadd.xlane.f32.xlu0 %v2606
  %v2608 = vpop.xlane.xlu0 %2607
  %v2609 = vsel %vm2416, %v2162, 0.0
  %v2610 = vadd.f32 %v1394, %v2609
  %2611 = vadd.xlane.f32.xlu0 %v2610
  %v2612 = vpop.xlane.xlu0 %2611
  %v2613 = vsel %vm2416, %v2164, 0.0
  %v2614 = vadd.f32 %v1396, %v2613
  %2615 = vadd.xlane.f32.xlu0 %v2614
  %v2616 = vpop.xlane.xlu0 %2615
  %v2617 = vsel %vm2416, %v2167, 0.0
  %v2618 = vadd.f32 %v1399, %v2617
  %2619 = vadd.xlane.f32.xlu0 %v2618
  %v2620 = vpop.xlane.xlu0 %2619
  %v2621 = vsel %vm2416, %v2169, 0.0
  %v2622 = vadd.f32 %v1401, %v2621
  %2623 = vadd.xlane.f32.xlu0 %v2622
  %v2624 = vpop.xlane.xlu0 %2623
  %v2625 = vsel %vm2416, %v2172, 0.0
  %v2626 = vadd.f32 %v1404, %v2625
  %2627 = vadd.xlane.f32.xlu0 %v2626
  %v2628 = vpop.xlane.xlu0 %2627
  %v2629 = vsel %vm2416, %v2174, 0.0
  %v2630 = vadd.f32 %v1406, %v2629
  %2631 = vadd.xlane.f32.xlu0 %v2630
  %v2632 = vpop.xlane.xlu0 %2631
  %v2633 = vsel %vm2416, %v2177, 0.0
  %v2634 = vadd.f32 %v1409, %v2633
  %2635 = vadd.xlane.f32.xlu0 %v2634
  %v2636 = vpop.xlane.xlu0 %2635
  %v2637 = vsel %vm2416, %v2179, 0.0
  %v2638 = vadd.f32 %v1411, %v2637
  %2639 = vadd.xlane.f32.xlu0 %v2638
  %v2640 = vpop.xlane.xlu0 %2639
  %v2641 = vsel %vm2416, %v2182, 0.0
  %v2642 = vadd.f32 %v1414, %v2641
  %2643 = vadd.xlane.f32.xlu0 %v2642
  %v2644 = vpop.xlane.xlu0 %2643
  %v2645 = vsel %vm2416, %v2184, 0.0
  %v2646 = vadd.f32 %v1416, %v2645
  %2647 = vadd.xlane.f32.xlu0 %v2646
  %v2648 = vpop.xlane.xlu0 %2647
  %v2649 = vsel %vm2416, %v2187, 0.0
  %v2650 = vadd.f32 %v1419, %v2649
  %2651 = vadd.xlane.f32.xlu0 %v2650
  %v2652 = vpop.xlane.xlu0 %2651
  %v2653 = vsel %vm2416, %v2189, 0.0
  %v2654 = vadd.f32 %v1421, %v2653
  %2655 = vadd.xlane.f32.xlu0 %v2654
  %v2656 = vpop.xlane.xlu0 %2655
  %v2657 = vsel %vm2416, %v2192, 0.0
  %v2658 = vadd.f32 %v1424, %v2657
  %2659 = vadd.xlane.f32.xlu0 %v2658
  %v2660 = vpop.xlane.xlu0 %2659
  %v2661 = vsel %vm2416, %v2194, 0.0
  %v2662 = vadd.f32 %v1426, %v2661
  %2663 = vadd.xlane.f32.xlu0 %v2662
  %v2664 = vpop.xlane.xlu0 %2663
  %v2665 = vsel %vm2416, %v2197, 0.0
  %v2666 = vadd.f32 %v1429, %v2665
  %2667 = vadd.xlane.f32.xlu0 %v2666
  %v2668 = vpop.xlane.xlu0 %2667
  %v2669 = vsel %vm2416, %v2199, 0.0
  %v2670 = vadd.f32 %v1431, %v2669
  %2671 = vadd.xlane.f32.xlu0 %v2670
  %v2672 = vpop.xlane.xlu0 %2671
  %v2673 = vsel %vm2416, %v2202, 0.0
  %v2674 = vadd.f32 %v1434, %v2673
  %2675 = vadd.xlane.f32.xlu0 %v2674
  %v2676 = vpop.xlane.xlu0 %2675
  %v2677 = vsel %vm2416, %v2204, 0.0
  %v2678 = vadd.f32 %v1436, %v2677
  %2679 = vadd.xlane.f32.xlu0 %v2678
  %v2680 = vpop.xlane.xlu0 %2679
  %v2681 = vsel %vm2416, %v2207, 0.0
  %v2682 = vadd.f32 %v1439, %v2681
  %2683 = vadd.xlane.f32.xlu0 %v2682
  %v2684 = vpop.xlane.xlu0 %2683
  %v2685 = vsel %vm2416, %v2209, 0.0
  %v2686 = vadd.f32 %v1441, %v2685
  %2687 = vadd.xlane.f32.xlu0 %v2686
  %v2688 = vpop.xlane.xlu0 %2687
  %v2689 = vsel %vm2416, %v2212, 0.0
  %v2690 = vadd.f32 %v1444, %v2689
  %2691 = vadd.xlane.f32.xlu0 %v2690
  %v2692 = vpop.xlane.xlu0 %2691
  %v2693 = vsel %vm2416, %v2214, 0.0
  %v2694 = vadd.f32 %v1446, %v2693
  %2695 = vadd.xlane.f32.xlu0 %v2694
  %v2696 = vpop.xlane.xlu0 %2695
  %v2697 = vsel %vm2416, %v2217, 0.0
  %v2698 = vadd.f32 %v1449, %v2697
  %2699 = vadd.xlane.f32.xlu0 %v2698
  %v2700 = vpop.xlane.xlu0 %2699
  %v2701 = vsel %vm2416, %v2219, 0.0
  %v2702 = vadd.f32 %v1451, %v2701
  %2703 = vadd.xlane.f32.xlu0 %v2702
  %v2704 = vpop.xlane.xlu0 %2703
  %v2705 = vsel %vm2416, %v2222, 0.0
  %v2706 = vadd.f32 %v1454, %v2705
  %2707 = vadd.xlane.f32.xlu0 %v2706
  %v2708 = vpop.xlane.xlu0 %2707
  %v2709 = vsel %vm2416, %v2224, 0.0
  %v2710 = vadd.f32 %v1456, %v2709
  %2711 = vadd.xlane.f32.xlu0 %v2710
  %v2712 = vpop.xlane.xlu0 %2711
  %v2713 = vsel %vm2416, %v2227, 0.0
  %v2714 = vadd.f32 %v1459, %v2713
  %2715 = vadd.xlane.f32.xlu0 %v2714
  %v2716 = vpop.xlane.xlu0 %2715
  %v2717 = vsel %vm2416, %v2229, 0.0
  %v2718 = vadd.f32 %v1461, %v2717
  %2719 = vadd.xlane.f32.xlu0 %v2718
  %v2720 = vpop.xlane.xlu0 %2719
  %v2721 = vsel %vm2416, %v2232, 0.0
  %v2722 = vadd.f32 %v1464, %v2721
  %2723 = vadd.xlane.f32.xlu0 %v2722
  %v2724 = vpop.xlane.xlu0 %2723
  %v2725 = vsel %vm2416, %v2234, 0.0
  %v2726 = vadd.f32 %v1466, %v2725
  %2727 = vadd.xlane.f32.xlu0 %v2726
  %v2728 = vpop.xlane.xlu0 %2727
  %v2729 = vsel %vm2416, %v2237, 0.0
  %v2730 = vadd.f32 %v1469, %v2729
  %2731 = vadd.xlane.f32.xlu0 %v2730
  %v2732 = vpop.xlane.xlu0 %2731
  %v2733 = vsel %vm2416, %v2239, 0.0
  %v2734 = vadd.f32 %v1471, %v2733
  %2735 = vadd.xlane.f32.xlu0 %v2734
  %v2736 = vpop.xlane.xlu0 %2735
  %v2737 = vsel %vm2416, %v2242, 0.0
  %v2738 = vadd.f32 %v1474, %v2737
  %2739 = vadd.xlane.f32.xlu0 %v2738
  %v2740 = vpop.xlane.xlu0 %2739
  %v2741 = vsel %vm2416, %v2244, 0.0
  %v2742 = vadd.f32 %v1476, %v2741
  %2743 = vadd.xlane.f32.xlu0 %v2742
  %v2744 = vpop.xlane.xlu0 %2743
  %v2745 = vsel %vm2416, %v2247, 0.0
  %v2746 = vadd.f32 %v1479, %v2745
  %2747 = vadd.xlane.f32.xlu0 %v2746
  %v2748 = vpop.xlane.xlu0 %2747
  %v2749 = vsel %vm2416, %v2249, 0.0
  %v2750 = vadd.f32 %v1481, %v2749
  %2751 = vadd.xlane.f32.xlu0 %v2750
  %v2752 = vpop.xlane.xlu0 %2751
  %v2753 = vsel %vm2416, %v2252, 0.0
  %v2754 = vadd.f32 %v1484, %v2753
  %2755 = vadd.xlane.f32.xlu0 %v2754
  %v2756 = vpop.xlane.xlu0 %2755
  %v2757 = vsel %vm2416, %v2254, 0.0
  %v2758 = vadd.f32 %v1486, %v2757
  %2759 = vadd.xlane.f32.xlu0 %v2758
  %v2760 = vpop.xlane.xlu0 %2759
  %v2761 = vsel %vm2416, %v2257, 0.0
  %v2762 = vadd.f32 %v1489, %v2761
  %2763 = vadd.xlane.f32.xlu0 %v2762
  %v2764 = vpop.xlane.xlu0 %2763
  %v2765 = vsel %vm2416, %v2259, 0.0
  %v2766 = vadd.f32 %v1491, %v2765
  %2767 = vadd.xlane.f32.xlu0 %v2766
  %v2768 = vpop.xlane.xlu0 %2767
  %v2769 = vsel %vm2416, %v2262, 0.0
  %v2770 = vadd.f32 %v1494, %v2769
  %2771 = vadd.xlane.f32.xlu0 %v2770
  %v2772 = vpop.xlane.xlu0 %2771
  %v2773 = vsel %vm2416, %v2264, 0.0
  %v2774 = vadd.f32 %v1496, %v2773
  %2775 = vadd.xlane.f32.xlu0 %v2774
  %v2776 = vpop.xlane.xlu0 %2775
  %v2777 = vsel %vm2416, %v2267, 0.0
  %v2778 = vadd.f32 %v1499, %v2777
  %2779 = vadd.xlane.f32.xlu0 %v2778
  %v2780 = vpop.xlane.xlu0 %2779
  %v2781 = vsel %vm2416, %v2269, 0.0
  %v2782 = vadd.f32 %v1501, %v2781
  %2783 = vadd.xlane.f32.xlu0 %v2782
  %v2784 = vpop.xlane.xlu0 %2783
  %v2785 = vsel %vm2416, %v2272, 0.0
  %v2786 = vadd.f32 %v1504, %v2785
  %2787 = vadd.xlane.f32.xlu0 %v2786
  %v2788 = vpop.xlane.xlu0 %2787
  %v2789 = vsel %vm2416, %v2274, 0.0
  %v2790 = vadd.f32 %v1506, %v2789
  %2791 = vadd.xlane.f32.xlu0 %v2790
  %v2792 = vpop.xlane.xlu0 %2791
  %v2793 = vsel %vm2416, %v2277, 0.0
  %v2794 = vadd.f32 %v1509, %v2793
  %2795 = vadd.xlane.f32.xlu0 %v2794
  %v2796 = vpop.xlane.xlu0 %2795
  %v2797 = vsel %vm2416, %v2279, 0.0
  %v2798 = vadd.f32 %v1511, %v2797
  %2799 = vadd.xlane.f32.xlu0 %v2798
  %v2800 = vpop.xlane.xlu0 %2799
  %v2801 = vsel %vm2416, %v2282, 0.0
  %v2802 = vadd.f32 %v1514, %v2801
  %2803 = vadd.xlane.f32.xlu0 %v2802
  %v2804 = vpop.xlane.xlu0 %2803
  %v2805 = vsel %vm2416, %v2284, 0.0
  %v2806 = vadd.f32 %v1516, %v2805
  %2807 = vadd.xlane.f32.xlu0 %v2806
  %v2808 = vpop.xlane.xlu0 %2807
  %v2809 = vsel %vm2416, %v2287, 0.0
  %v2810 = vadd.f32 %v1519, %v2809
  %2811 = vadd.xlane.f32.xlu0 %v2810
  %v2812 = vpop.xlane.xlu0 %2811
  %v2813 = vsel %vm2416, %v2289, 0.0
  %v2814 = vadd.f32 %v1521, %v2813
  %2815 = vadd.xlane.f32.xlu0 %v2814
  %v2816 = vpop.xlane.xlu0 %2815
  %v2817 = vsel %vm2416, %v2292, 0.0
  %v2818 = vadd.f32 %v1524, %v2817
  %2819 = vadd.xlane.f32.xlu0 %v2818
  %v2820 = vpop.xlane.xlu0 %2819
  %v2821 = vsel %vm2416, %v2294, 0.0
  %v2822 = vadd.f32 %v1526, %v2821
  %2823 = vadd.xlane.f32.xlu0 %v2822
  %v2824 = vpop.xlane.xlu0 %2823
  %v2825 = vsel %vm2416, %v2297, 0.0
  %v2826 = vadd.f32 %v1529, %v2825
  %2827 = vadd.xlane.f32.xlu0 %v2826
  %v2828 = vpop.xlane.xlu0 %2827
  %v2829 = vsel %vm2416, %v2299, 0.0
  %v2830 = vadd.f32 %v1531, %v2829
  %2831 = vadd.xlane.f32.xlu0 %v2830
  %v2832 = vpop.xlane.xlu0 %2831
  %v2833 = vsel %vm2416, %v2302, 0.0
  %v2834 = vadd.f32 %v1534, %v2833
  %2835 = vadd.xlane.f32.xlu0 %v2834
  %v2836 = vpop.xlane.xlu0 %2835
  %v2837 = vsel %vm2416, %v2304, 0.0
  %v2838 = vadd.f32 %v1536, %v2837
  %2839 = vadd.xlane.f32.xlu0 %v2838
  %v2840 = vpop.xlane.xlu0 %2839
  %v2841 = vsel %vm2416, %v2307, 0.0
  %v2842 = vadd.f32 %v1539, %v2841
  %2843 = vadd.xlane.f32.xlu0 %v2842
  %v2844 = vpop.xlane.xlu0 %2843
  %v2845 = vsel %vm2416, %v2309, 0.0
  %v2846 = vadd.f32 %v1541, %v2845
  %2847 = vadd.xlane.f32.xlu0 %v2846
  %v2848 = vpop.xlane.xlu0 %2847
  %v2849 = vsel %vm2416, %v2312, 0.0
  %v2850 = vadd.f32 %v1544, %v2849
  %2851 = vadd.xlane.f32.xlu0 %v2850
  %v2852 = vpop.xlane.xlu0 %2851
  %v2853 = vsel %vm2416, %v2314, 0.0
  %v2854 = vadd.f32 %v1546, %v2853
  %2855 = vadd.xlane.f32.xlu0 %v2854
  %v2856 = vpop.xlane.xlu0 %2855
  %v2857 = vsel %vm2416, %v2317, 0.0
  %v2858 = vadd.f32 %v1549, %v2857
  %2859 = vadd.xlane.f32.xlu0 %v2858
  %v2860 = vpop.xlane.xlu0 %2859
  %v2861 = vsel %vm2416, %v2319, 0.0
  %v2862 = vadd.f32 %v1551, %v2861
  %2863 = vadd.xlane.f32.xlu0 %v2862
  %v2864 = vpop.xlane.xlu0 %2863
  %v2865 = vsel %vm2416, %v2322, 0.0
  %v2866 = vadd.f32 %v1554, %v2865
  %2867 = vadd.xlane.f32.xlu0 %v2866
  %v2868 = vpop.xlane.xlu0 %2867
  %v2869 = vsel %vm2416, %v2324, 0.0
  %v2870 = vadd.f32 %v1556, %v2869
  %2871 = vadd.xlane.f32.xlu0 %v2870
  %v2872 = vpop.xlane.xlu0 %2871
  %v2873 = vsel %vm2416, %v2327, 0.0
  %v2874 = vadd.f32 %v1559, %v2873
  %2875 = vadd.xlane.f32.xlu0 %v2874
  %v2876 = vpop.xlane.xlu0 %2875
  %v2877 = vsel %vm2416, %v2329, 0.0
  %v2878 = vadd.f32 %v1561, %v2877
  %2879 = vadd.xlane.f32.xlu0 %v2878
  %v2880 = vpop.xlane.xlu0 %2879
  %v2881 = vsel %vm2416, %v2332, 0.0
  %v2882 = vadd.f32 %v1564, %v2881
  %2883 = vadd.xlane.f32.xlu0 %v2882
  %v2884 = vpop.xlane.xlu0 %2883
  %v2885 = vsel %vm2416, %v2334, 0.0
  %v2886 = vadd.f32 %v1566, %v2885
  %2887 = vadd.xlane.f32.xlu0 %v2886
  %v2888 = vpop.xlane.xlu0 %2887
  %v2889 = vsel %vm2416, %v2337, 0.0
  %v2890 = vadd.f32 %v1569, %v2889
  %2891 = vadd.xlane.f32.xlu0 %v2890
  %v2892 = vpop.xlane.xlu0 %2891
  %v2893 = vsel %vm2416, %v2339, 0.0
  %v2894 = vadd.f32 %v1571, %v2893
  %2895 = vadd.xlane.f32.xlu0 %v2894
  %v2896 = vpop.xlane.xlu0 %2895
  %v2897 = vsel %vm2416, %v2342, 0.0
  %v2898 = vadd.f32 %v1574, %v2897
  %2899 = vadd.xlane.f32.xlu0 %v2898
  %v2900 = vpop.xlane.xlu0 %2899
  %v2901 = vsel %vm2416, %v2344, 0.0
  %v2902 = vadd.f32 %v1576, %v2901
  %2903 = vadd.xlane.f32.xlu0 %v2902
  %v2904 = vpop.xlane.xlu0 %2903
  %v2905 = vsel %vm2416, %v2347, 0.0
  %v2906 = vadd.f32 %v1579, %v2905
  %2907 = vadd.xlane.f32.xlu0 %v2906
  %v2908 = vpop.xlane.xlu0 %2907
  %v2909 = vsel %vm2416, %v2349, 0.0
  %v2910 = vadd.f32 %v1581, %v2909
  %2911 = vadd.xlane.f32.xlu0 %v2910
  %v2912 = vpop.xlane.xlu0 %2911
  %v2913 = vsel %vm2416, %v2352, 0.0
  %v2914 = vadd.f32 %v1584, %v2913
  %2915 = vadd.xlane.f32.xlu0 %v2914
  %v2916 = vpop.xlane.xlu0 %2915
  %v2917 = vsel %vm2416, %v2354, 0.0
  %v2918 = vadd.f32 %v1586, %v2917
  %2919 = vadd.xlane.f32.xlu0 %v2918
  %v2920 = vpop.xlane.xlu0 %2919
  %v2921 = vsel %vm2416, %v2357, 0.0
  %v2922 = vadd.f32 %v1589, %v2921
  %2923 = vadd.xlane.f32.xlu0 %v2922
  %v2924 = vpop.xlane.xlu0 %2923
  %v2925 = vsel %vm2416, %v2359, 0.0
  %v2926 = vadd.f32 %v1591, %v2925
  %2927 = vadd.xlane.f32.xlu0 %v2926
  %v2928 = vpop.xlane.xlu0 %2927
  %v2929 = vsel %vm2416, %v2362, 0.0
  %v2930 = vadd.f32 %v1594, %v2929
  %2931 = vadd.xlane.f32.xlu0 %v2930
  %v2932 = vpop.xlane.xlu0 %2931
  %v2933 = vsel %vm2416, %v2364, 0.0
  %v2934 = vadd.f32 %v1596, %v2933
  %2935 = vadd.xlane.f32.xlu0 %v2934
  %v2936 = vpop.xlane.xlu0 %2935
  %v2937 = vsel %vm2416, %v2367, 0.0
  %v2938 = vadd.f32 %v1599, %v2937
  %2939 = vadd.xlane.f32.xlu0 %v2938
  %v2940 = vpop.xlane.xlu0 %2939
  %v2941 = vsel %vm2416, %v2369, 0.0
  %v2942 = vadd.f32 %v1601, %v2941
  %2943 = vadd.xlane.f32.xlu0 %v2942
  %v2944 = vpop.xlane.xlu0 %2943
  %v2945 = vsel %vm2416, %v2372, 0.0
  %v2946 = vadd.f32 %v1604, %v2945
  %2947 = vadd.xlane.f32.xlu0 %v2946
  %v2948 = vpop.xlane.xlu0 %2947
  %v2949 = vsel %vm2416, %v2374, 0.0
  %v2950 = vadd.f32 %v1606, %v2949
  %2951 = vadd.xlane.f32.xlu0 %v2950
  %v2952 = vpop.xlane.xlu0 %2951
  %v2953 = vsel %vm2416, %v2377, 0.0
  %v2954 = vadd.f32 %v1609, %v2953
  %2955 = vadd.xlane.f32.xlu0 %v2954
  %v2956 = vpop.xlane.xlu0 %2955
  %v2957 = vsel %vm2416, %v2379, 0.0
  %v2958 = vadd.f32 %v1611, %v2957
  %2959 = vadd.xlane.f32.xlu0 %v2958
  %v2960 = vpop.xlane.xlu0 %2959
  %v2961 = vsel %vm2416, %v2382, 0.0
  %v2962 = vadd.f32 %v1614, %v2961
  %2963 = vadd.xlane.f32.xlu0 %v2962
  %v2964 = vpop.xlane.xlu0 %2963
  %v2965 = vsel %vm2416, %v2384, 0.0
  %v2966 = vadd.f32 %v1616, %v2965
  %2967 = vadd.xlane.f32.xlu0 %v2966
  %v2968 = vpop.xlane.xlu0 %2967
  %v2969 = vsel %vm2416, %v2387, 0.0
  %v2970 = vadd.f32 %v1619, %v2969
  %2971 = vadd.xlane.f32.xlu0 %v2970
  %v2972 = vpop.xlane.xlu0 %2971
  %v2973 = vsel %vm2416, %v2389, 0.0
  %v2974 = vadd.f32 %v1621, %v2973
  %2975 = vadd.xlane.f32.xlu0 %v2974
  %v2976 = vpop.xlane.xlu0 %2975
  %v2977 = vsel %vm2416, %v2392, 0.0
  %v2978 = vadd.f32 %v1624, %v2977
  %2979 = vadd.xlane.f32.xlu0 %v2978
  %v2980 = vpop.xlane.xlu0 %2979
  %v2981 = vsel %vm2416, %v2394, 0.0
  %v2982 = vadd.f32 %v1626, %v2981
  %2983 = vadd.xlane.f32.xlu0 %v2982
  %v2984 = vpop.xlane.xlu0 %2983
  %v2985 = vsel %vm2416, %v2397, 0.0
  %v2986 = vadd.f32 %v1629, %v2985
  %2987 = vadd.xlane.f32.xlu0 %v2986
  %v2988 = vpop.xlane.xlu0 %2987
  %v2989 = vsel %vm2416, %v2399, 0.0
  %v2990 = vadd.f32 %v1631, %v2989
  %2991 = vadd.xlane.f32.xlu0 %v2990
  %v2992 = vpop.xlane.xlu0 %2991
  %v2993 = vsel %vm2416, %v2402, 0.0
  %v2994 = vadd.f32 %v1634, %v2993
  %2995 = vadd.xlane.f32.xlu0 %v2994
  %v2996 = vpop.xlane.xlu0 %2995
  %v2997 = vsel %vm2416, %v2404, 0.0
  %v2998 = vadd.f32 %v1636, %v2997
  %2999 = vadd.xlane.f32.xlu0 %v2998
  %v3000 = vpop.xlane.xlu0 %2999
  %v3001 = vsel %vm2416, %v2407, 0.0
  %v3002 = vadd.f32 %v1639, %v3001
  %3003 = vadd.xlane.f32.xlu0 %v3002
  %v3004 = vpop.xlane.xlu0 %3003
  %v3005 = vsel %vm2416, %v2409, 0.0
  %v3006 = vadd.f32 %v1641, %v3005
  %3007 = vadd.xlane.f32.xlu0 %v3006
  %v3008 = vpop.xlane.xlu0 %3007
  %v3009 = vsel %vm2416, %v2412, 0.0
  %v3010 = vadd.f32 %v1644, %v3009
  %3011 = vadd.xlane.f32.xlu0 %v3010
  %v3012 = vpop.xlane.xlu0 %3011
  %v3013 = vsel %vm2416, %v2414, 0.0
  %v3014 = vadd.f32 %v1646, %v3013
  %3015 = vadd.xlane.f32.xlu0 %v3014
  %v3016 = vpop.xlane.xlu0 %3015
  %v3017 = vmul.f32 %v2420, 0.0051020407
  %v3018 = vmul.f32 %v2424, 0.0051020407
  %v3019 = vmul.f32 %v2428, 0.0051020407
  %v3020 = vmul.f32 %v2432, 0.0051020407
  %v3021 = vmul.f32 %v2436, 0.0051020407
  %v3022 = vmul.f32 %v2440, 0.0051020407
  %v3023 = vmul.f32 %v2444, 0.0051020407
  %v3024 = vmul.f32 %v2448, 0.0051020407
  %v3025 = vmul.f32 %v2452, 0.0051020407
  %v3026 = vmul.f32 %v2456, 0.0051020407
  %v3027 = vmul.f32 %v2460, 0.0051020407
  %v3028 = vmul.f32 %v2464, 0.0051020407
  %v3029 = vmul.f32 %v2468, 0.0051020407
  %v3030 = vmul.f32 %v2472, 0.0051020407
  %v3031 = vmul.f32 %v2476, 0.0051020407
  %v3032 = vmul.f32 %v2480, 0.0051020407
  %v3033 = vmul.f32 %v2484, 0.0051020407
  %v3034 = vmul.f32 %v2488, 0.0051020407
  %v3035 = vmul.f32 %v2492, 0.0051020407
  %v3036 = vmul.f32 %v2496, 0.0051020407
  %v3037 = vmul.f32 %v2500, 0.0051020407
  %v3038 = vmul.f32 %v2504, 0.0051020407
  %v3039 = vmul.f32 %v2508, 0.0051020407
  %v3040 = vmul.f32 %v2512, 0.0051020407
  %v3041 = vmul.f32 %v2516, 0.0051020407
  %v3042 = vmul.f32 %v2520, 0.0051020407
  %v3043 = vmul.f32 %v2524, 0.0051020407
  %v3044 = vmul.f32 %v2528, 0.0051020407
  %v3045 = vmul.f32 %v2532, 0.0051020407
  %v3046 = vmul.f32 %v2536, 0.0051020407
  %v3047 = vmul.f32 %v2540, 0.0051020407
  %v3048 = vmul.f32 %v2544, 0.0051020407
  %v3049 = vmul.f32 %v2548, 0.0051020407
  %v3050 = vmul.f32 %v2552, 0.0051020407
  %v3051 = vmul.f32 %v2556, 0.0051020407
  %v3052 = vmul.f32 %v2560, 0.0051020407
  %v3053 = vmul.f32 %v2564, 0.0051020407
  %v3054 = vmul.f32 %v2568, 0.0051020407
  %v3055 = vmul.f32 %v2572, 0.0051020407
  %v3056 = vmul.f32 %v2576, 0.0051020407
  %v3057 = vmul.f32 %v2580, 0.0051020407
  %v3058 = vmul.f32 %v2584, 0.0051020407
  %v3059 = vmul.f32 %v2588, 0.0051020407
  %v3060 = vmul.f32 %v2592, 0.0051020407
  %v3061 = vmul.f32 %v2596, 0.0051020407
  %v3062 = vmul.f32 %v2600, 0.0051020407
  %v3063 = vmul.f32 %v2604, 0.0051020407
  %v3064 = vmul.f32 %v2608, 0.0051020407
  %v3065 = vmul.f32 %v2612, 0.0051020407
  %v3066 = vmul.f32 %v2616, 0.0051020407
  %v3067 = vmul.f32 %v2620, 0.0051020407
  %v3068 = vmul.f32 %v2624, 0.0051020407
  %v3069 = vmul.f32 %v2628, 0.0051020407
  %v3070 = vmul.f32 %v2632, 0.0051020407
  %v3071 = vmul.f32 %v2636, 0.0051020407
  %v3072 = vmul.f32 %v2640, 0.0051020407
  %v3073 = vmul.f32 %v2644, 0.0051020407
  %v3074 = vmul.f32 %v2648, 0.0051020407
  %v3075 = vmul.f32 %v2652, 0.0051020407
  %v3076 = vmul.f32 %v2656, 0.0051020407
  %v3077 = vmul.f32 %v2660, 0.0051020407
  %v3078 = vmul.f32 %v2664, 0.0051020407
  %v3079 = vmul.f32 %v2668, 0.0051020407
  %v3080 = vmul.f32 %v2672, 0.0051020407
  %v3081 = vmul.f32 %v2676, 0.0051020407
  %v3082 = vmul.f32 %v2680, 0.0051020407
  %v3083 = vmul.f32 %v2684, 0.0051020407
  %v3084 = vmul.f32 %v2688, 0.0051020407
  %v3085 = vmul.f32 %v2692, 0.0051020407
  %v3086 = vmul.f32 %v2696, 0.0051020407
  %v3087 = vmul.f32 %v2700, 0.0051020407
  %v3088 = vmul.f32 %v2704, 0.0051020407
  %v3089 = vmul.f32 %v2708, 0.0051020407
  %v3090 = vmul.f32 %v2712, 0.0051020407
  %v3091 = vmul.f32 %v2716, 0.0051020407
  %v3092 = vmul.f32 %v2720, 0.0051020407
  %v3093 = vmul.f32 %v2724, 0.0051020407
  %v3094 = vmul.f32 %v2728, 0.0051020407
  %v3095 = vmul.f32 %v2732, 0.0051020407
  %v3096 = vmul.f32 %v2736, 0.0051020407
  %v3097 = vmul.f32 %v2740, 0.0051020407
  %v3098 = vmul.f32 %v2744, 0.0051020407
  %v3099 = vmul.f32 %v2748, 0.0051020407
  %v3100 = vmul.f32 %v2752, 0.0051020407
  %v3101 = vmul.f32 %v2756, 0.0051020407
  %v3102 = vmul.f32 %v2760, 0.0051020407
  %v3103 = vmul.f32 %v2764, 0.0051020407
  %v3104 = vmul.f32 %v2768, 0.0051020407
  %v3105 = vmul.f32 %v2772, 0.0051020407
  %v3106 = vmul.f32 %v2776, 0.0051020407
  %v3107 = vmul.f32 %v2780, 0.0051020407
  %v3108 = vmul.f32 %v2784, 0.0051020407
  %v3109 = vmul.f32 %v2788, 0.0051020407
  %v3110 = vmul.f32 %v2792, 0.0051020407
  %v3111 = vmul.f32 %v2796, 0.0051020407
  %v3112 = vmul.f32 %v2800, 0.0051020407
  %v3113 = vmul.f32 %v2804, 0.0051020407
  %v3114 = vmul.f32 %v2808, 0.0051020407
  %v3115 = vmul.f32 %v2812, 0.0051020407
  %v3116 = vmul.f32 %v2816, 0.0051020407
  %v3117 = vmul.f32 %v2820, 0.0051020407
  %v3118 = vmul.f32 %v2824, 0.0051020407
  %v3119 = vmul.f32 %v2828, 0.0051020407
  %v3120 = vmul.f32 %v2832, 0.0051020407
  %v3121 = vmul.f32 %v2836, 0.0051020407
  %v3122 = vmul.f32 %v2840, 0.0051020407
  %v3123 = vmul.f32 %v2844, 0.0051020407
  %v3124 = vmul.f32 %v2848, 0.0051020407
  %v3125 = vmul.f32 %v2852, 0.0051020407
  %v3126 = vmul.f32 %v2856, 0.0051020407
  %v3127 = vmul.f32 %v2860, 0.0051020407
  %v3128 = vmul.f32 %v2864, 0.0051020407
  %v3129 = vmul.f32 %v2868, 0.0051020407
  %v3130 = vmul.f32 %v2872, 0.0051020407
  %v3131 = vmul.f32 %v2876, 0.0051020407
  %v3132 = vmul.f32 %v2880, 0.0051020407
  %v3133 = vmul.f32 %v2884, 0.0051020407
  %v3134 = vmul.f32 %v2888, 0.0051020407
  %v3135 = vmul.f32 %v2892, 0.0051020407
  %v3136 = vmul.f32 %v2896, 0.0051020407
  %v3137 = vmul.f32 %v2900, 0.0051020407
  %v3138 = vmul.f32 %v2904, 0.0051020407
  %v3139 = vmul.f32 %v2908, 0.0051020407
  %v3140 = vmul.f32 %v2912, 0.0051020407
  %v3141 = vmul.f32 %v2916, 0.0051020407
  %v3142 = vmul.f32 %v2920, 0.0051020407
  %v3143 = vmul.f32 %v2924, 0.0051020407
  %v3144 = vmul.f32 %v2928, 0.0051020407
  %v3145 = vmul.f32 %v2932, 0.0051020407
  %v3146 = vmul.f32 %v2936, 0.0051020407
  %v3147 = vmul.f32 %v2940, 0.0051020407
  %v3148 = vmul.f32 %v2944, 0.0051020407
  %v3149 = vmul.f32 %v2948, 0.0051020407
  %v3150 = vmul.f32 %v2952, 0.0051020407
  %v3151 = vmul.f32 %v2956, 0.0051020407
  %v3152 = vmul.f32 %v2960, 0.0051020407
  %v3153 = vmul.f32 %v2964, 0.0051020407
  %v3154 = vmul.f32 %v2968, 0.0051020407
  %v3155 = vmul.f32 %v2972, 0.0051020407
  %v3156 = vmul.f32 %v2976, 0.0051020407
  %v3157 = vmul.f32 %v2980, 0.0051020407
  %v3158 = vmul.f32 %v2984, 0.0051020407
  %v3159 = vmul.f32 %v2988, 0.0051020407
  %v3160 = vmul.f32 %v2992, 0.0051020407
  %v3161 = vmul.f32 %v2996, 0.0051020407
  %v3162 = vmul.f32 %v3000, 0.0051020407
  %v3163 = vmul.f32 %v3004, 0.0051020407
  %v3164 = vmul.f32 %v3008, 0.0051020407
  %v3165 = vmul.f32 %v3012, 0.0051020407
  %v3166 = vmul.f32 %v3016, 0.0051020407
  %v3167 = vmul.f32 %v1274, %v1274
  %v3168 = vmul.f32 %v2042, %v2042
  %v3169 = vmul.f32 %v1276, %v1276
  %v3170 = vmul.f32 %v2044, %v2044
  %v3171 = vmul.f32 %v1279, %v1279
  %v3172 = vmul.f32 %v2047, %v2047
  %v3173 = vmul.f32 %v1281, %v1281
  %v3174 = vmul.f32 %v2049, %v2049
  %v3175 = vmul.f32 %v1284, %v1284
  %v3176 = vmul.f32 %v2052, %v2052
  %v3177 = vmul.f32 %v1286, %v1286
  %v3178 = vmul.f32 %v2054, %v2054
  %v3179 = vmul.f32 %v1289, %v1289
  %v3180 = vmul.f32 %v2057, %v2057
  %v3181 = vmul.f32 %v1291, %v1291
  %v3182 = vmul.f32 %v2059, %v2059
  %v3183 = vmul.f32 %v1294, %v1294
  %v3184 = vmul.f32 %v2062, %v2062
  %v3185 = vmul.f32 %v1296, %v1296
  %v3186 = vmul.f32 %v2064, %v2064
  %v3187 = vmul.f32 %v1299, %v1299
  %v3188 = vmul.f32 %v2067, %v2067
  %v3189 = vmul.f32 %v1301, %v1301
  %v3190 = vmul.f32 %v2069, %v2069
  %v3191 = vmul.f32 %v1304, %v1304
  %v3192 = vmul.f32 %v2072, %v2072
  %v3193 = vmul.f32 %v1306, %v1306
  %v3194 = vmul.f32 %v2074, %v2074
  %v3195 = vmul.f32 %v1309, %v1309
  %v3196 = vmul.f32 %v2077, %v2077
  %v3197 = vmul.f32 %v1311, %v1311
  %v3198 = vmul.f32 %v2079, %v2079
  %v3199 = vmul.f32 %v1314, %v1314
  %v3200 = vmul.f32 %v2082, %v2082
  %v3201 = vmul.f32 %v1316, %v1316
  %v3202 = vmul.f32 %v2084, %v2084
  %v3203 = vmul.f32 %v1319, %v1319
  %v3204 = vmul.f32 %v2087, %v2087
  %v3205 = vmul.f32 %v1321, %v1321
  %v3206 = vmul.f32 %v2089, %v2089
  %v3207 = vmul.f32 %v1324, %v1324
  %v3208 = vmul.f32 %v2092, %v2092
  %v3209 = vmul.f32 %v1326, %v1326
  %v3210 = vmul.f32 %v2094, %v2094
  %v3211 = vmul.f32 %v1329, %v1329
  %v3212 = vmul.f32 %v2097, %v2097
  %v3213 = vmul.f32 %v1331, %v1331
  %v3214 = vmul.f32 %v2099, %v2099
  %v3215 = vmul.f32 %v1334, %v1334
  %v3216 = vmul.f32 %v2102, %v2102
  %v3217 = vmul.f32 %v1336, %v1336
  %v3218 = vmul.f32 %v2104, %v2104
  %v3219 = vmul.f32 %v1339, %v1339
  %v3220 = vmul.f32 %v2107, %v2107
  %v3221 = vmul.f32 %v1341, %v1341
  %v3222 = vmul.f32 %v2109, %v2109
  %v3223 = vmul.f32 %v1344, %v1344
  %v3224 = vmul.f32 %v2112, %v2112
  %v3225 = vmul.f32 %v1346, %v1346
  %v3226 = vmul.f32 %v2114, %v2114
  %v3227 = vmul.f32 %v1349, %v1349
  %v3228 = vmul.f32 %v2117, %v2117
  %v3229 = vmul.f32 %v1351, %v1351
  %v3230 = vmul.f32 %v2119, %v2119
  %v3231 = vmul.f32 %v1354, %v1354
  %v3232 = vmul.f32 %v2122, %v2122
  %v3233 = vmul.f32 %v1356, %v1356
  %v3234 = vmul.f32 %v2124, %v2124
  %v3235 = vmul.f32 %v1359, %v1359
  %v3236 = vmul.f32 %v2127, %v2127
  %v3237 = vmul.f32 %v1361, %v1361
  %v3238 = vmul.f32 %v2129, %v2129
  %v3239 = vmul.f32 %v1364, %v1364
  %v3240 = vmul.f32 %v2132, %v2132
  %v3241 = vmul.f32 %v1366, %v1366
  %v3242 = vmul.f32 %v2134, %v2134
  %v3243 = vmul.f32 %v1369, %v1369
  %v3244 = vmul.f32 %v2137, %v2137
  %v3245 = vmul.f32 %v1371, %v1371
  %v3246 = vmul.f32 %v2139, %v2139
  %v3247 = vmul.f32 %v1374, %v1374
  %v3248 = vmul.f32 %v2142, %v2142
  %v3249 = vmul.f32 %v1376, %v1376
  %v3250 = vmul.f32 %v2144, %v2144
  %v3251 = vmul.f32 %v1379, %v1379
  %v3252 = vmul.f32 %v2147, %v2147
  %v3253 = vmul.f32 %v1381, %v1381
  %v3254 = vmul.f32 %v2149, %v2149
  %v3255 = vmul.f32 %v1384, %v1384
  %v3256 = vmul.f32 %v2152, %v2152
  %v3257 = vmul.f32 %v1386, %v1386
  %v3258 = vmul.f32 %v2154, %v2154
  %v3259 = vmul.f32 %v1389, %v1389
  %v3260 = vmul.f32 %v2157, %v2157
  %v3261 = vmul.f32 %v1391, %v1391
  %v3262 = vmul.f32 %v2159, %v2159
  %v3263 = vmul.f32 %v1394, %v1394
  %v3264 = vmul.f32 %v2162, %v2162
  %v3265 = vmul.f32 %v1396, %v1396
  %v3266 = vmul.f32 %v2164, %v2164
  %v3267 = vmul.f32 %v1399, %v1399
  %v3268 = vmul.f32 %v2167, %v2167
  %v3269 = vmul.f32 %v1401, %v1401
  %v3270 = vmul.f32 %v2169, %v2169
  %v3271 = vmul.f32 %v1404, %v1404
  %v3272 = vmul.f32 %v2172, %v2172
  %v3273 = vmul.f32 %v1406, %v1406
  %v3274 = vmul.f32 %v2174, %v2174
  %v3275 = vmul.f32 %v1409, %v1409
  %v3276 = vmul.f32 %v2177, %v2177
  %v3277 = vmul.f32 %v1411, %v1411
  %v3278 = vmul.f32 %v2179, %v2179
  %v3279 = vmul.f32 %v1414, %v1414
  %v3280 = vmul.f32 %v2182, %v2182
  %v3281 = vmul.f32 %v1416, %v1416
  %v3282 = vmul.f32 %v2184, %v2184
  %v3283 = vmul.f32 %v1419, %v1419
  %v3284 = vmul.f32 %v2187, %v2187
  %v3285 = vmul.f32 %v1421, %v1421
  %v3286 = vmul.f32 %v2189, %v2189
  %v3287 = vmul.f32 %v1424, %v1424
  %v3288 = vmul.f32 %v2192, %v2192
  %v3289 = vmul.f32 %v1426, %v1426
  %v3290 = vmul.f32 %v2194, %v2194
  %v3291 = vmul.f32 %v1429, %v1429
  %v3292 = vmul.f32 %v2197, %v2197
  %v3293 = vmul.f32 %v1431, %v1431
  %v3294 = vmul.f32 %v2199, %v2199
  %v3295 = vmul.f32 %v1434, %v1434
  %v3296 = vmul.f32 %v2202, %v2202
  %v3297 = vmul.f32 %v1436, %v1436
  %v3298 = vmul.f32 %v2204, %v2204
  %v3299 = vmul.f32 %v1439, %v1439
  %v3300 = vmul.f32 %v2207, %v2207
  %v3301 = vmul.f32 %v1441, %v1441
  %v3302 = vmul.f32 %v2209, %v2209
  %v3303 = vmul.f32 %v1444, %v1444
  %v3304 = vmul.f32 %v2212, %v2212
  %v3305 = vmul.f32 %v1446, %v1446
  %v3306 = vmul.f32 %v2214, %v2214
  %v3307 = vmul.f32 %v1449, %v1449
  %v3308 = vmul.f32 %v2217, %v2217
  %v3309 = vmul.f32 %v1451, %v1451
  %v3310 = vmul.f32 %v2219, %v2219
  %v3311 = vmul.f32 %v1454, %v1454
  %v3312 = vmul.f32 %v2222, %v2222
  %v3313 = vmul.f32 %v1456, %v1456
  %v3314 = vmul.f32 %v2224, %v2224
  %v3315 = vmul.f32 %v1459, %v1459
  %v3316 = vmul.f32 %v2227, %v2227
  %v3317 = vmul.f32 %v1461, %v1461
  %v3318 = vmul.f32 %v2229, %v2229
  %v3319 = vmul.f32 %v1464, %v1464
  %v3320 = vmul.f32 %v2232, %v2232
  %v3321 = vmul.f32 %v1466, %v1466
  %v3322 = vmul.f32 %v2234, %v2234
  %v3323 = vmul.f32 %v1469, %v1469
  %v3324 = vmul.f32 %v2237, %v2237
  %v3325 = vmul.f32 %v1471, %v1471
  %v3326 = vmul.f32 %v2239, %v2239
  %v3327 = vmul.f32 %v1474, %v1474
  %v3328 = vmul.f32 %v2242, %v2242
  %v3329 = vmul.f32 %v1476, %v1476
  %v3330 = vmul.f32 %v2244, %v2244
  %v3331 = vmul.f32 %v1479, %v1479
  %v3332 = vmul.f32 %v2247, %v2247
  %v3333 = vmul.f32 %v1481, %v1481
  %v3334 = vmul.f32 %v2249, %v2249
  %v3335 = vmul.f32 %v1484, %v1484
  %v3336 = vmul.f32 %v2252, %v2252
  %v3337 = vmul.f32 %v1486, %v1486
  %v3338 = vmul.f32 %v2254, %v2254
  %v3339 = vmul.f32 %v1489, %v1489
  %v3340 = vmul.f32 %v2257, %v2257
  %v3341 = vmul.f32 %v1491, %v1491
  %v3342 = vmul.f32 %v2259, %v2259
  %v3343 = vmul.f32 %v1494, %v1494
  %v3344 = vmul.f32 %v2262, %v2262
  %v3345 = vmul.f32 %v1496, %v1496
  %v3346 = vmul.f32 %v2264, %v2264
  %v3347 = vmul.f32 %v1499, %v1499
  %v3348 = vmul.f32 %v2267, %v2267
  %v3349 = vmul.f32 %v1501, %v1501
  %v3350 = vmul.f32 %v2269, %v2269
  %v3351 = vmul.f32 %v1504, %v1504
  %v3352 = vmul.f32 %v2272, %v2272
  %v3353 = vmul.f32 %v1506, %v1506
  %v3354 = vmul.f32 %v2274, %v2274
  %v3355 = vmul.f32 %v1509, %v1509
  %v3356 = vmul.f32 %v2277, %v2277
  %v3357 = vmul.f32 %v1511, %v1511
  %v3358 = vmul.f32 %v2279, %v2279
  %v3359 = vmul.f32 %v1514, %v1514
  %v3360 = vmul.f32 %v2282, %v2282
  %v3361 = vmul.f32 %v1516, %v1516
  %v3362 = vmul.f32 %v2284, %v2284
  %v3363 = vmul.f32 %v1519, %v1519
  %v3364 = vmul.f32 %v2287, %v2287
  %v3365 = vmul.f32 %v1521, %v1521
  %v3366 = vmul.f32 %v2289, %v2289
  %v3367 = vmul.f32 %v1524, %v1524
  %v3368 = vmul.f32 %v2292, %v2292
  %v3369 = vmul.f32 %v1526, %v1526
  %v3370 = vmul.f32 %v2294, %v2294
  %v3371 = vmul.f32 %v1529, %v1529
  %v3372 = vmul.f32 %v2297, %v2297
  %v3373 = vmul.f32 %v1531, %v1531
  %v3374 = vmul.f32 %v2299, %v2299
  %v3375 = vmul.f32 %v1534, %v1534
  %v3376 = vmul.f32 %v2302, %v2302
  %v3377 = vmul.f32 %v1536, %v1536
  %v3378 = vmul.f32 %v2304, %v2304
  %v3379 = vmul.f32 %v1539, %v1539
  %v3380 = vmul.f32 %v2307, %v2307
  %v3381 = vmul.f32 %v1541, %v1541
  %v3382 = vmul.f32 %v2309, %v2309
  %v3383 = vmul.f32 %v1544, %v1544
  %v3384 = vmul.f32 %v2312, %v2312
  %v3385 = vmul.f32 %v1546, %v1546
  %v3386 = vmul.f32 %v2314, %v2314
  %v3387 = vmul.f32 %v1549, %v1549
  %v3388 = vmul.f32 %v2317, %v2317
  %v3389 = vmul.f32 %v1551, %v1551
  %v3390 = vmul.f32 %v2319, %v2319
  %v3391 = vmul.f32 %v1554, %v1554
  %v3392 = vmul.f32 %v2322, %v2322
  %v3393 = vmul.f32 %v1556, %v1556
  %v3394 = vmul.f32 %v2324, %v2324
  %v3395 = vmul.f32 %v1559, %v1559
  %v3396 = vmul.f32 %v2327, %v2327
  %v3397 = vmul.f32 %v1561, %v1561
  %v3398 = vmul.f32 %v2329, %v2329
  %v3399 = vmul.f32 %v1564, %v1564
  %v3400 = vmul.f32 %v2332, %v2332
  %v3401 = vmul.f32 %v1566, %v1566
  %v3402 = vmul.f32 %v2334, %v2334
  %v3403 = vmul.f32 %v1569, %v1569
  %v3404 = vmul.f32 %v2337, %v2337
  %v3405 = vmul.f32 %v1571, %v1571
  %v3406 = vmul.f32 %v2339, %v2339
  %v3407 = vmul.f32 %v1574, %v1574
  %v3408 = vmul.f32 %v2342, %v2342
  %v3409 = vmul.f32 %v1576, %v1576
  %v3410 = vmul.f32 %v2344, %v2344
  %v3411 = vmul.f32 %v1579, %v1579
  %v3412 = vmul.f32 %v2347, %v2347
  %v3413 = vmul.f32 %v1581, %v1581
  %v3414 = vmul.f32 %v2349, %v2349
  %v3415 = vmul.f32 %v1584, %v1584
  %v3416 = vmul.f32 %v2352, %v2352
  %v3417 = vmul.f32 %v1586, %v1586
  %v3418 = vmul.f32 %v2354, %v2354
  %v3419 = vmul.f32 %v1589, %v1589
  %v3420 = vmul.f32 %v2357, %v2357
  %v3421 = vmul.f32 %v1591, %v1591
  %v3422 = vmul.f32 %v2359, %v2359
  %v3423 = vmul.f32 %v1594, %v1594
  %v3424 = vmul.f32 %v2362, %v2362
  %v3425 = vmul.f32 %v1596, %v1596
  %v3426 = vmul.f32 %v2364, %v2364
  %v3427 = vmul.f32 %v1599, %v1599
  %v3428 = vmul.f32 %v2367, %v2367
  %v3429 = vmul.f32 %v1601, %v1601
  %v3430 = vmul.f32 %v2369, %v2369
  %v3431 = vmul.f32 %v1604, %v1604
  %v3432 = vmul.f32 %v2372, %v2372
  %v3433 = vmul.f32 %v1606, %v1606
  %v3434 = vmul.f32 %v2374, %v2374
  %v3435 = vmul.f32 %v1609, %v1609
  %v3436 = vmul.f32 %v2377, %v2377
  %v3437 = vmul.f32 %v1611, %v1611
  %v3438 = vmul.f32 %v2379, %v2379
  %v3439 = vmul.f32 %v1614, %v1614
  %v3440 = vmul.f32 %v2382, %v2382
  %v3441 = vmul.f32 %v1616, %v1616
  %v3442 = vmul.f32 %v2384, %v2384
  %v3443 = vmul.f32 %v1619, %v1619
  %v3444 = vmul.f32 %v2387, %v2387
  %v3445 = vmul.f32 %v1621, %v1621
  %v3446 = vmul.f32 %v2389, %v2389
  %v3447 = vmul.f32 %v1624, %v1624
  %v3448 = vmul.f32 %v2392, %v2392
  %v3449 = vmul.f32 %v1626, %v1626
  %v3450 = vmul.f32 %v2394, %v2394
  %v3451 = vmul.f32 %v1629, %v1629
  %v3452 = vmul.f32 %v2397, %v2397
  %v3453 = vmul.f32 %v1631, %v1631
  %v3454 = vmul.f32 %v2399, %v2399
  %v3455 = vmul.f32 %v1634, %v1634
  %v3456 = vmul.f32 %v2402, %v2402
  %v3457 = vmul.f32 %v1636, %v1636
  %v3458 = vmul.f32 %v2404, %v2404
  %v3459 = vmul.f32 %v1639, %v1639
  %v3460 = vmul.f32 %v2407, %v2407
  %v3461 = vmul.f32 %v1641, %v1641
  %v3462 = vmul.f32 %v2409, %v2409
  %v3463 = vmul.f32 %v1644, %v1644
  %v3464 = vmul.f32 %v2412, %v2412
  %v3465 = vmul.f32 %v1646, %v1646
  %v3466 = vmul.f32 %v2414, %v2414
  %v3467 = vsel %vm2416, %v3168, 0.0
  %v3468 = vadd.f32 %v3167, %v3467
  %3469 = vadd.xlane.f32.xlu0 %v3468
  %v3470 = vpop.xlane.xlu0 %3469
  %v3471 = vsel %vm2416, %v3170, 0.0
  %v3472 = vadd.f32 %v3169, %v3471
  %3473 = vadd.xlane.f32.xlu0 %v3472
  %v3474 = vpop.xlane.xlu0 %3473
  %v3475 = vsel %vm2416, %v3172, 0.0
  %v3476 = vadd.f32 %v3171, %v3475
  %3477 = vadd.xlane.f32.xlu0 %v3476
  %v3478 = vpop.xlane.xlu0 %3477
  %v3479 = vsel %vm2416, %v3174, 0.0
  %v3480 = vadd.f32 %v3173, %v3479
  %3481 = vadd.xlane.f32.xlu0 %v3480
  %v3482 = vpop.xlane.xlu0 %3481
  %v3483 = vsel %vm2416, %v3176, 0.0
  %v3484 = vadd.f32 %v3175, %v3483
  %3485 = vadd.xlane.f32.xlu0 %v3484
  %v3486 = vpop.xlane.xlu0 %3485
  %v3487 = vsel %vm2416, %v3178, 0.0
  %v3488 = vadd.f32 %v3177, %v3487
  %3489 = vadd.xlane.f32.xlu0 %v3488
  %v3490 = vpop.xlane.xlu0 %3489
  %v3491 = vsel %vm2416, %v3180, 0.0
  %v3492 = vadd.f32 %v3179, %v3491
  %3493 = vadd.xlane.f32.xlu0 %v3492
  %v3494 = vpop.xlane.xlu0 %3493
  %v3495 = vsel %vm2416, %v3182, 0.0
  %v3496 = vadd.f32 %v3181, %v3495
  %3497 = vadd.xlane.f32.xlu0 %v3496
  %v3498 = vpop.xlane.xlu0 %3497
  %v3499 = vsel %vm2416, %v3184, 0.0
  %v3500 = vadd.f32 %v3183, %v3499
  %3501 = vadd.xlane.f32.xlu0 %v3500
  %v3502 = vpop.xlane.xlu0 %3501
  %v3503 = vsel %vm2416, %v3186, 0.0
  %v3504 = vadd.f32 %v3185, %v3503
  %3505 = vadd.xlane.f32.xlu0 %v3504
  %v3506 = vpop.xlane.xlu0 %3505
  %v3507 = vsel %vm2416, %v3188, 0.0
  %v3508 = vadd.f32 %v3187, %v3507
  %3509 = vadd.xlane.f32.xlu0 %v3508
  %v3510 = vpop.xlane.xlu0 %3509
  %v3511 = vsel %vm2416, %v3190, 0.0
  %v3512 = vadd.f32 %v3189, %v3511
  %3513 = vadd.xlane.f32.xlu0 %v3512
  %v3514 = vpop.xlane.xlu0 %3513
  %v3515 = vsel %vm2416, %v3192, 0.0
  %v3516 = vadd.f32 %v3191, %v3515
  %3517 = vadd.xlane.f32.xlu0 %v3516
  %v3518 = vpop.xlane.xlu0 %3517
  %v3519 = vsel %vm2416, %v3194, 0.0
  %v3520 = vadd.f32 %v3193, %v3519
  %3521 = vadd.xlane.f32.xlu0 %v3520
  %v3522 = vpop.xlane.xlu0 %3521
  %v3523 = vsel %vm2416, %v3196, 0.0
  %v3524 = vadd.f32 %v3195, %v3523
  %3525 = vadd.xlane.f32.xlu0 %v3524
  %v3526 = vpop.xlane.xlu0 %3525
  %v3527 = vsel %vm2416, %v3198, 0.0
  %v3528 = vadd.f32 %v3197, %v3527
  %3529 = vadd.xlane.f32.xlu0 %v3528
  %v3530 = vpop.xlane.xlu0 %3529
  %v3531 = vsel %vm2416, %v3200, 0.0
  %v3532 = vadd.f32 %v3199, %v3531
  %3533 = vadd.xlane.f32.xlu0 %v3532
  %v3534 = vpop.xlane.xlu0 %3533
  %v3535 = vsel %vm2416, %v3202, 0.0
  %v3536 = vadd.f32 %v3201, %v3535
  %3537 = vadd.xlane.f32.xlu0 %v3536
  %v3538 = vpop.xlane.xlu0 %3537
  %v3539 = vsel %vm2416, %v3204, 0.0
  %v3540 = vadd.f32 %v3203, %v3539
  %3541 = vadd.xlane.f32.xlu0 %v3540
  %v3542 = vpop.xlane.xlu0 %3541
  %v3543 = vsel %vm2416, %v3206, 0.0
  %v3544 = vadd.f32 %v3205, %v3543
  %3545 = vadd.xlane.f32.xlu0 %v3544
  %v3546 = vpop.xlane.xlu0 %3545
  %v3547 = vsel %vm2416, %v3208, 0.0
  %v3548 = vadd.f32 %v3207, %v3547
  %3549 = vadd.xlane.f32.xlu0 %v3548
  %v3550 = vpop.xlane.xlu0 %3549
  %v3551 = vsel %vm2416, %v3210, 0.0
  %v3552 = vadd.f32 %v3209, %v3551
  %3553 = vadd.xlane.f32.xlu0 %v3552
  %v3554 = vpop.xlane.xlu0 %3553
  %v3555 = vsel %vm2416, %v3212, 0.0
  %v3556 = vadd.f32 %v3211, %v3555
  %3557 = vadd.xlane.f32.xlu0 %v3556
  %v3558 = vpop.xlane.xlu0 %3557
  %v3559 = vsel %vm2416, %v3214, 0.0
  %v3560 = vadd.f32 %v3213, %v3559
  %3561 = vadd.xlane.f32.xlu0 %v3560
  %v3562 = vpop.xlane.xlu0 %3561
  %v3563 = vsel %vm2416, %v3216, 0.0
  %v3564 = vadd.f32 %v3215, %v3563
  %3565 = vadd.xlane.f32.xlu0 %v3564
  %v3566 = vpop.xlane.xlu0 %3565
  %v3567 = vsel %vm2416, %v3218, 0.0
  %v3568 = vadd.f32 %v3217, %v3567
  %3569 = vadd.xlane.f32.xlu0 %v3568
  %v3570 = vpop.xlane.xlu0 %3569
  %v3571 = vsel %vm2416, %v3220, 0.0
  %v3572 = vadd.f32 %v3219, %v3571
  %3573 = vadd.xlane.f32.xlu0 %v3572
  %v3574 = vpop.xlane.xlu0 %3573
  %v3575 = vsel %vm2416, %v3222, 0.0
  %v3576 = vadd.f32 %v3221, %v3575
  %3577 = vadd.xlane.f32.xlu0 %v3576
  %v3578 = vpop.xlane.xlu0 %3577
  %v3579 = vsel %vm2416, %v3224, 0.0
  %v3580 = vadd.f32 %v3223, %v3579
  %3581 = vadd.xlane.f32.xlu0 %v3580
  %v3582 = vpop.xlane.xlu0 %3581
  %v3583 = vsel %vm2416, %v3226, 0.0
  %v3584 = vadd.f32 %v3225, %v3583
  %3585 = vadd.xlane.f32.xlu0 %v3584
  %v3586 = vpop.xlane.xlu0 %3585
  %v3587 = vsel %vm2416, %v3228, 0.0
  %v3588 = vadd.f32 %v3227, %v3587
  %3589 = vadd.xlane.f32.xlu0 %v3588
  %v3590 = vpop.xlane.xlu0 %3589
  %v3591 = vsel %vm2416, %v3230, 0.0
  %v3592 = vadd.f32 %v3229, %v3591
  %3593 = vadd.xlane.f32.xlu0 %v3592
  %v3594 = vpop.xlane.xlu0 %3593
  %v3595 = vsel %vm2416, %v3232, 0.0
  %v3596 = vadd.f32 %v3231, %v3595
  %3597 = vadd.xlane.f32.xlu0 %v3596
  %v3598 = vpop.xlane.xlu0 %3597
  %v3599 = vsel %vm2416, %v3234, 0.0
  %v3600 = vadd.f32 %v3233, %v3599
  %3601 = vadd.xlane.f32.xlu0 %v3600
  %v3602 = vpop.xlane.xlu0 %3601
  %v3603 = vsel %vm2416, %v3236, 0.0
  %v3604 = vadd.f32 %v3235, %v3603
  %3605 = vadd.xlane.f32.xlu0 %v3604
  %v3606 = vpop.xlane.xlu0 %3605
  %v3607 = vsel %vm2416, %v3238, 0.0
  %v3608 = vadd.f32 %v3237, %v3607
  %3609 = vadd.xlane.f32.xlu0 %v3608
  %v3610 = vpop.xlane.xlu0 %3609
  %v3611 = vsel %vm2416, %v3240, 0.0
  %v3612 = vadd.f32 %v3239, %v3611
  %3613 = vadd.xlane.f32.xlu0 %v3612
  %v3614 = vpop.xlane.xlu0 %3613
  %v3615 = vsel %vm2416, %v3242, 0.0
  %v3616 = vadd.f32 %v3241, %v3615
  %3617 = vadd.xlane.f32.xlu0 %v3616
  %v3618 = vpop.xlane.xlu0 %3617
  %v3619 = vsel %vm2416, %v3244, 0.0
  %v3620 = vadd.f32 %v3243, %v3619
  %3621 = vadd.xlane.f32.xlu0 %v3620
  %v3622 = vpop.xlane.xlu0 %3621
  %v3623 = vsel %vm2416, %v3246, 0.0
  %v3624 = vadd.f32 %v3245, %v3623
  %3625 = vadd.xlane.f32.xlu0 %v3624
  %v3626 = vpop.xlane.xlu0 %3625
  %v3627 = vsel %vm2416, %v3248, 0.0
  %v3628 = vadd.f32 %v3247, %v3627
  %3629 = vadd.xlane.f32.xlu0 %v3628
  %v3630 = vpop.xlane.xlu0 %3629
  %v3631 = vsel %vm2416, %v3250, 0.0
  %v3632 = vadd.f32 %v3249, %v3631
  %3633 = vadd.xlane.f32.xlu0 %v3632
  %v3634 = vpop.xlane.xlu0 %3633
  %v3635 = vsel %vm2416, %v3252, 0.0
  %v3636 = vadd.f32 %v3251, %v3635
  %3637 = vadd.xlane.f32.xlu0 %v3636
  %v3638 = vpop.xlane.xlu0 %3637
  %v3639 = vsel %vm2416, %v3254, 0.0
  %v3640 = vadd.f32 %v3253, %v3639
  %3641 = vadd.xlane.f32.xlu0 %v3640
  %v3642 = vpop.xlane.xlu0 %3641
  %v3643 = vsel %vm2416, %v3256, 0.0
  %v3644 = vadd.f32 %v3255, %v3643
  %3645 = vadd.xlane.f32.xlu0 %v3644
  %v3646 = vpop.xlane.xlu0 %3645
  %v3647 = vsel %vm2416, %v3258, 0.0
  %v3648 = vadd.f32 %v3257, %v3647
  %3649 = vadd.xlane.f32.xlu0 %v3648
  %v3650 = vpop.xlane.xlu0 %3649
  %v3651 = vsel %vm2416, %v3260, 0.0
  %v3652 = vadd.f32 %v3259, %v3651
  %3653 = vadd.xlane.f32.xlu0 %v3652
  %v3654 = vpop.xlane.xlu0 %3653
  %v3655 = vsel %vm2416, %v3262, 0.0
  %v3656 = vadd.f32 %v3261, %v3655
  %3657 = vadd.xlane.f32.xlu0 %v3656
  %v3658 = vpop.xlane.xlu0 %3657
  %v3659 = vsel %vm2416, %v3264, 0.0
  %v3660 = vadd.f32 %v3263, %v3659
  %3661 = vadd.xlane.f32.xlu0 %v3660
  %v3662 = vpop.xlane.xlu0 %3661
  %v3663 = vsel %vm2416, %v3266, 0.0
  %v3664 = vadd.f32 %v3265, %v3663
  %3665 = vadd.xlane.f32.xlu0 %v3664
  %v3666 = vpop.xlane.xlu0 %3665
  %v3667 = vsel %vm2416, %v3268, 0.0
  %v3668 = vadd.f32 %v3267, %v3667
  %3669 = vadd.xlane.f32.xlu0 %v3668
  %v3670 = vpop.xlane.xlu0 %3669
  %v3671 = vsel %vm2416, %v3270, 0.0
  %v3672 = vadd.f32 %v3269, %v3671
  %3673 = vadd.xlane.f32.xlu0 %v3672
  %v3674 = vpop.xlane.xlu0 %3673
  %v3675 = vsel %vm2416, %v3272, 0.0
  %v3676 = vadd.f32 %v3271, %v3675
  %3677 = vadd.xlane.f32.xlu0 %v3676
  %v3678 = vpop.xlane.xlu0 %3677
  %v3679 = vsel %vm2416, %v3274, 0.0
  %v3680 = vadd.f32 %v3273, %v3679
  %3681 = vadd.xlane.f32.xlu0 %v3680
  %v3682 = vpop.xlane.xlu0 %3681
  %v3683 = vsel %vm2416, %v3276, 0.0
  %v3684 = vadd.f32 %v3275, %v3683
  %3685 = vadd.xlane.f32.xlu0 %v3684
  %v3686 = vpop.xlane.xlu0 %3685
  %v3687 = vsel %vm2416, %v3278, 0.0
  %v3688 = vadd.f32 %v3277, %v3687
  %3689 = vadd.xlane.f32.xlu0 %v3688
  %v3690 = vpop.xlane.xlu0 %3689
  %v3691 = vsel %vm2416, %v3280, 0.0
  %v3692 = vadd.f32 %v3279, %v3691
  %3693 = vadd.xlane.f32.xlu0 %v3692
  %v3694 = vpop.xlane.xlu0 %3693
  %v3695 = vsel %vm2416, %v3282, 0.0
  %v3696 = vadd.f32 %v3281, %v3695
  %3697 = vadd.xlane.f32.xlu0 %v3696
  %v3698 = vpop.xlane.xlu0 %3697
  %v3699 = vsel %vm2416, %v3284, 0.0
  %v3700 = vadd.f32 %v3283, %v3699
  %3701 = vadd.xlane.f32.xlu0 %v3700
  %v3702 = vpop.xlane.xlu0 %3701
  %v3703 = vsel %vm2416, %v3286, 0.0
  %v3704 = vadd.f32 %v3285, %v3703
  %3705 = vadd.xlane.f32.xlu0 %v3704
  %v3706 = vpop.xlane.xlu0 %3705
  %v3707 = vsel %vm2416, %v3288, 0.0
  %v3708 = vadd.f32 %v3287, %v3707
  %3709 = vadd.xlane.f32.xlu0 %v3708
  %v3710 = vpop.xlane.xlu0 %3709
  %v3711 = vsel %vm2416, %v3290, 0.0
  %v3712 = vadd.f32 %v3289, %v3711
  %3713 = vadd.xlane.f32.xlu0 %v3712
  %v3714 = vpop.xlane.xlu0 %3713
  %v3715 = vsel %vm2416, %v3292, 0.0
  %v3716 = vadd.f32 %v3291, %v3715
  %3717 = vadd.xlane.f32.xlu0 %v3716
  %v3718 = vpop.xlane.xlu0 %3717
  %v3719 = vsel %vm2416, %v3294, 0.0
  %v3720 = vadd.f32 %v3293, %v3719
  %3721 = vadd.xlane.f32.xlu0 %v3720
  %v3722 = vpop.xlane.xlu0 %3721
  %v3723 = vsel %vm2416, %v3296, 0.0
  %v3724 = vadd.f32 %v3295, %v3723
  %3725 = vadd.xlane.f32.xlu0 %v3724
  %v3726 = vpop.xlane.xlu0 %3725
  %v3727 = vsel %vm2416, %v3298, 0.0
  %v3728 = vadd.f32 %v3297, %v3727
  %3729 = vadd.xlane.f32.xlu0 %v3728
  %v3730 = vpop.xlane.xlu0 %3729
  %v3731 = vsel %vm2416, %v3300, 0.0
  %v3732 = vadd.f32 %v3299, %v3731
  %3733 = vadd.xlane.f32.xlu0 %v3732
  %v3734 = vpop.xlane.xlu0 %3733
  %v3735 = vsel %vm2416, %v3302, 0.0
  %v3736 = vadd.f32 %v3301, %v3735
  %3737 = vadd.xlane.f32.xlu0 %v3736
  %v3738 = vpop.xlane.xlu0 %3737
  %v3739 = vsel %vm2416, %v3304, 0.0
  %v3740 = vadd.f32 %v3303, %v3739
  %3741 = vadd.xlane.f32.xlu0 %v3740
  %v3742 = vpop.xlane.xlu0 %3741
  %v3743 = vsel %vm2416, %v3306, 0.0
  %v3744 = vadd.f32 %v3305, %v3743
  %3745 = vadd.xlane.f32.xlu0 %v3744
  %v3746 = vpop.xlane.xlu0 %3745
  %v3747 = vsel %vm2416, %v3308, 0.0
  %v3748 = vadd.f32 %v3307, %v3747
  %3749 = vadd.xlane.f32.xlu0 %v3748
  %v3750 = vpop.xlane.xlu0 %3749
  %v3751 = vsel %vm2416, %v3310, 0.0
  %v3752 = vadd.f32 %v3309, %v3751
  %3753 = vadd.xlane.f32.xlu0 %v3752
  %v3754 = vpop.xlane.xlu0 %3753
  %v3755 = vsel %vm2416, %v3312, 0.0
  %v3756 = vadd.f32 %v3311, %v3755
  %3757 = vadd.xlane.f32.xlu0 %v3756
  %v3758 = vpop.xlane.xlu0 %3757
  %v3759 = vsel %vm2416, %v3314, 0.0
  %v3760 = vadd.f32 %v3313, %v3759
  %3761 = vadd.xlane.f32.xlu0 %v3760
  %v3762 = vpop.xlane.xlu0 %3761
  %v3763 = vsel %vm2416, %v3316, 0.0
  %v3764 = vadd.f32 %v3315, %v3763
  %3765 = vadd.xlane.f32.xlu0 %v3764
  %v3766 = vpop.xlane.xlu0 %3765
  %v3767 = vsel %vm2416, %v3318, 0.0
  %v3768 = vadd.f32 %v3317, %v3767
  %3769 = vadd.xlane.f32.xlu0 %v3768
  %v3770 = vpop.xlane.xlu0 %3769
  %v3771 = vsel %vm2416, %v3320, 0.0
  %v3772 = vadd.f32 %v3319, %v3771
  %3773 = vadd.xlane.f32.xlu0 %v3772
  %v3774 = vpop.xlane.xlu0 %3773
  %v3775 = vsel %vm2416, %v3322, 0.0
  %v3776 = vadd.f32 %v3321, %v3775
  %3777 = vadd.xlane.f32.xlu0 %v3776
  %v3778 = vpop.xlane.xlu0 %3777
  %v3779 = vsel %vm2416, %v3324, 0.0
  %v3780 = vadd.f32 %v3323, %v3779
  %3781 = vadd.xlane.f32.xlu0 %v3780
  %v3782 = vpop.xlane.xlu0 %3781
  %v3783 = vsel %vm2416, %v3326, 0.0
  %v3784 = vadd.f32 %v3325, %v3783
  %3785 = vadd.xlane.f32.xlu0 %v3784
  %v3786 = vpop.xlane.xlu0 %3785
  %v3787 = vsel %vm2416, %v3328, 0.0
  %v3788 = vadd.f32 %v3327, %v3787
  %3789 = vadd.xlane.f32.xlu0 %v3788
  %v3790 = vpop.xlane.xlu0 %3789
  %v3791 = vsel %vm2416, %v3330, 0.0
  %v3792 = vadd.f32 %v3329, %v3791
  %3793 = vadd.xlane.f32.xlu0 %v3792
  %v3794 = vpop.xlane.xlu0 %3793
  %v3795 = vsel %vm2416, %v3332, 0.0
  %v3796 = vadd.f32 %v3331, %v3795
  %3797 = vadd.xlane.f32.xlu0 %v3796
  %v3798 = vpop.xlane.xlu0 %3797
  %v3799 = vsel %vm2416, %v3334, 0.0
  %v3800 = vadd.f32 %v3333, %v3799
  %3801 = vadd.xlane.f32.xlu0 %v3800
  %v3802 = vpop.xlane.xlu0 %3801
  %v3803 = vsel %vm2416, %v3336, 0.0
  %v3804 = vadd.f32 %v3335, %v3803
  %3805 = vadd.xlane.f32.xlu0 %v3804
  %v3806 = vpop.xlane.xlu0 %3805
  %v3807 = vsel %vm2416, %v3338, 0.0
  %v3808 = vadd.f32 %v3337, %v3807
  %3809 = vadd.xlane.f32.xlu0 %v3808
  %v3810 = vpop.xlane.xlu0 %3809
  %v3811 = vsel %vm2416, %v3340, 0.0
  %v3812 = vadd.f32 %v3339, %v3811
  %3813 = vadd.xlane.f32.xlu0 %v3812
  %v3814 = vpop.xlane.xlu0 %3813
  %v3815 = vsel %vm2416, %v3342, 0.0
  %v3816 = vadd.f32 %v3341, %v3815
  %3817 = vadd.xlane.f32.xlu0 %v3816
  %v3818 = vpop.xlane.xlu0 %3817
  %v3819 = vsel %vm2416, %v3344, 0.0
  %v3820 = vadd.f32 %v3343, %v3819
  %3821 = vadd.xlane.f32.xlu0 %v3820
  %v3822 = vpop.xlane.xlu0 %3821
  %v3823 = vsel %vm2416, %v3346, 0.0
  %v3824 = vadd.f32 %v3345, %v3823
  %3825 = vadd.xlane.f32.xlu0 %v3824
  %v3826 = vpop.xlane.xlu0 %3825
  %v3827 = vsel %vm2416, %v3348, 0.0
  %v3828 = vadd.f32 %v3347, %v3827
  %3829 = vadd.xlane.f32.xlu0 %v3828
  %v3830 = vpop.xlane.xlu0 %3829
  %v3831 = vsel %vm2416, %v3350, 0.0
  %v3832 = vadd.f32 %v3349, %v3831
  %3833 = vadd.xlane.f32.xlu0 %v3832
  %v3834 = vpop.xlane.xlu0 %3833
  %v3835 = vsel %vm2416, %v3352, 0.0
  %v3836 = vadd.f32 %v3351, %v3835
  %3837 = vadd.xlane.f32.xlu0 %v3836
  %v3838 = vpop.xlane.xlu0 %3837
  %v3839 = vsel %vm2416, %v3354, 0.0
  %v3840 = vadd.f32 %v3353, %v3839
  %3841 = vadd.xlane.f32.xlu0 %v3840
  %v3842 = vpop.xlane.xlu0 %3841
  %v3843 = vsel %vm2416, %v3356, 0.0
  %v3844 = vadd.f32 %v3355, %v3843
  %3845 = vadd.xlane.f32.xlu0 %v3844
  %v3846 = vpop.xlane.xlu0 %3845
  %v3847 = vsel %vm2416, %v3358, 0.0
  %v3848 = vadd.f32 %v3357, %v3847
  %3849 = vadd.xlane.f32.xlu0 %v3848
  %v3850 = vpop.xlane.xlu0 %3849
  %v3851 = vsel %vm2416, %v3360, 0.0
  %v3852 = vadd.f32 %v3359, %v3851
  %3853 = vadd.xlane.f32.xlu0 %v3852
  %v3854 = vpop.xlane.xlu0 %3853
  %v3855 = vsel %vm2416, %v3362, 0.0
  %v3856 = vadd.f32 %v3361, %v3855
  %3857 = vadd.xlane.f32.xlu0 %v3856
  %v3858 = vpop.xlane.xlu0 %3857
  %v3859 = vsel %vm2416, %v3364, 0.0
  %v3860 = vadd.f32 %v3363, %v3859
  %3861 = vadd.xlane.f32.xlu0 %v3860
  %v3862 = vpop.xlane.xlu0 %3861
  %v3863 = vsel %vm2416, %v3366, 0.0
  %v3864 = vadd.f32 %v3365, %v3863
  %3865 = vadd.xlane.f32.xlu0 %v3864
  %v3866 = vpop.xlane.xlu0 %3865
  %v3867 = vsel %vm2416, %v3368, 0.0
  %v3868 = vadd.f32 %v3367, %v3867
  %3869 = vadd.xlane.f32.xlu0 %v3868
  %v3870 = vpop.xlane.xlu0 %3869
  %v3871 = vsel %vm2416, %v3370, 0.0
  %v3872 = vadd.f32 %v3369, %v3871
  %3873 = vadd.xlane.f32.xlu0 %v3872
  %v3874 = vpop.xlane.xlu0 %3873
  %v3875 = vsel %vm2416, %v3372, 0.0
  %v3876 = vadd.f32 %v3371, %v3875
  %3877 = vadd.xlane.f32.xlu0 %v3876
  %v3878 = vpop.xlane.xlu0 %3877
  %v3879 = vsel %vm2416, %v3374, 0.0
  %v3880 = vadd.f32 %v3373, %v3879
  %3881 = vadd.xlane.f32.xlu0 %v3880
  %v3882 = vpop.xlane.xlu0 %3881
  %v3883 = vsel %vm2416, %v3376, 0.0
  %v3884 = vadd.f32 %v3375, %v3883
  %3885 = vadd.xlane.f32.xlu0 %v3884
  %v3886 = vpop.xlane.xlu0 %3885
  %v3887 = vsel %vm2416, %v3378, 0.0
  %v3888 = vadd.f32 %v3377, %v3887
  %3889 = vadd.xlane.f32.xlu0 %v3888
  %v3890 = vpop.xlane.xlu0 %3889
  %v3891 = vsel %vm2416, %v3380, 0.0
  %v3892 = vadd.f32 %v3379, %v3891
  %3893 = vadd.xlane.f32.xlu0 %v3892
  %v3894 = vpop.xlane.xlu0 %3893
  %v3895 = vsel %vm2416, %v3382, 0.0
  %v3896 = vadd.f32 %v3381, %v3895
  %3897 = vadd.xlane.f32.xlu0 %v3896
  %v3898 = vpop.xlane.xlu0 %3897
  %v3899 = vsel %vm2416, %v3384, 0.0
  %v3900 = vadd.f32 %v3383, %v3899
  %3901 = vadd.xlane.f32.xlu0 %v3900
  %v3902 = vpop.xlane.xlu0 %3901
  %v3903 = vsel %vm2416, %v3386, 0.0
  %v3904 = vadd.f32 %v3385, %v3903
  %3905 = vadd.xlane.f32.xlu0 %v3904
  %v3906 = vpop.xlane.xlu0 %3905
  %v3907 = vsel %vm2416, %v3388, 0.0
  %v3908 = vadd.f32 %v3387, %v3907
  %3909 = vadd.xlane.f32.xlu0 %v3908
  %v3910 = vpop.xlane.xlu0 %3909
  %v3911 = vsel %vm2416, %v3390, 0.0
  %v3912 = vadd.f32 %v3389, %v3911
  %3913 = vadd.xlane.f32.xlu0 %v3912
  %v3914 = vpop.xlane.xlu0 %3913
  %v3915 = vsel %vm2416, %v3392, 0.0
  %v3916 = vadd.f32 %v3391, %v3915
  %3917 = vadd.xlane.f32.xlu0 %v3916
  %v3918 = vpop.xlane.xlu0 %3917
  %v3919 = vsel %vm2416, %v3394, 0.0
  %v3920 = vadd.f32 %v3393, %v3919
  %3921 = vadd.xlane.f32.xlu0 %v3920
  %v3922 = vpop.xlane.xlu0 %3921
  %v3923 = vsel %vm2416, %v3396, 0.0
  %v3924 = vadd.f32 %v3395, %v3923
  %3925 = vadd.xlane.f32.xlu0 %v3924
  %v3926 = vpop.xlane.xlu0 %3925
  %v3927 = vsel %vm2416, %v3398, 0.0
  %v3928 = vadd.f32 %v3397, %v3927
  %3929 = vadd.xlane.f32.xlu0 %v3928
  %v3930 = vpop.xlane.xlu0 %3929
  %v3931 = vsel %vm2416, %v3400, 0.0
  %v3932 = vadd.f32 %v3399, %v3931
  %3933 = vadd.xlane.f32.xlu0 %v3932
  %v3934 = vpop.xlane.xlu0 %3933
  %v3935 = vsel %vm2416, %v3402, 0.0
  %v3936 = vadd.f32 %v3401, %v3935
  %3937 = vadd.xlane.f32.xlu0 %v3936
  %v3938 = vpop.xlane.xlu0 %3937
  %v3939 = vsel %vm2416, %v3404, 0.0
  %v3940 = vadd.f32 %v3403, %v3939
  %3941 = vadd.xlane.f32.xlu0 %v3940
  %v3942 = vpop.xlane.xlu0 %3941
  %v3943 = vsel %vm2416, %v3406, 0.0
  %v3944 = vadd.f32 %v3405, %v3943
  %3945 = vadd.xlane.f32.xlu0 %v3944
  %v3946 = vpop.xlane.xlu0 %3945
  %v3947 = vsel %vm2416, %v3408, 0.0
  %v3948 = vadd.f32 %v3407, %v3947
  %3949 = vadd.xlane.f32.xlu0 %v3948
  %v3950 = vpop.xlane.xlu0 %3949
  %v3951 = vsel %vm2416, %v3410, 0.0
  %v3952 = vadd.f32 %v3409, %v3951
  %3953 = vadd.xlane.f32.xlu0 %v3952
  %v3954 = vpop.xlane.xlu0 %3953
  %v3955 = vsel %vm2416, %v3412, 0.0
  %v3956 = vadd.f32 %v3411, %v3955
  %3957 = vadd.xlane.f32.xlu0 %v3956
  %v3958 = vpop.xlane.xlu0 %3957
  %v3959 = vsel %vm2416, %v3414, 0.0
  %v3960 = vadd.f32 %v3413, %v3959
  %3961 = vadd.xlane.f32.xlu0 %v3960
  %v3962 = vpop.xlane.xlu0 %3961
  %v3963 = vsel %vm2416, %v3416, 0.0
  %v3964 = vadd.f32 %v3415, %v3963
  %3965 = vadd.xlane.f32.xlu0 %v3964
  %v3966 = vpop.xlane.xlu0 %3965
  %v3967 = vsel %vm2416, %v3418, 0.0
  %v3968 = vadd.f32 %v3417, %v3967
  %3969 = vadd.xlane.f32.xlu0 %v3968
  %v3970 = vpop.xlane.xlu0 %3969
  %v3971 = vsel %vm2416, %v3420, 0.0
  %v3972 = vadd.f32 %v3419, %v3971
  %3973 = vadd.xlane.f32.xlu0 %v3972
  %v3974 = vpop.xlane.xlu0 %3973
  %v3975 = vsel %vm2416, %v3422, 0.0
  %v3976 = vadd.f32 %v3421, %v3975
  %3977 = vadd.xlane.f32.xlu0 %v3976
  %v3978 = vpop.xlane.xlu0 %3977
  %v3979 = vsel %vm2416, %v3424, 0.0
  %v3980 = vadd.f32 %v3423, %v3979
  %3981 = vadd.xlane.f32.xlu0 %v3980
  %v3982 = vpop.xlane.xlu0 %3981
  %v3983 = vsel %vm2416, %v3426, 0.0
  %v3984 = vadd.f32 %v3425, %v3983
  %3985 = vadd.xlane.f32.xlu0 %v3984
  %v3986 = vpop.xlane.xlu0 %3985
  %v3987 = vsel %vm2416, %v3428, 0.0
  %v3988 = vadd.f32 %v3427, %v3987
  %3989 = vadd.xlane.f32.xlu0 %v3988
  %v3990 = vpop.xlane.xlu0 %3989
  %v3991 = vsel %vm2416, %v3430, 0.0
  %v3992 = vadd.f32 %v3429, %v3991
  %3993 = vadd.xlane.f32.xlu0 %v3992
  %v3994 = vpop.xlane.xlu0 %3993
  %v3995 = vsel %vm2416, %v3432, 0.0
  %v3996 = vadd.f32 %v3431, %v3995
  %3997 = vadd.xlane.f32.xlu0 %v3996
  %v3998 = vpop.xlane.xlu0 %3997
  %v3999 = vsel %vm2416, %v3434, 0.0
  %v4000 = vadd.f32 %v3433, %v3999
  %4001 = vadd.xlane.f32.xlu0 %v4000
  %v4002 = vpop.xlane.xlu0 %4001
  %v4003 = vsel %vm2416, %v3436, 0.0
  %v4004 = vadd.f32 %v3435, %v4003
  %4005 = vadd.xlane.f32.xlu0 %v4004
  %v4006 = vpop.xlane.xlu0 %4005
  %v4007 = vsel %vm2416, %v3438, 0.0
  %v4008 = vadd.f32 %v3437, %v4007
  %4009 = vadd.xlane.f32.xlu0 %v4008
  %v4010 = vpop.xlane.xlu0 %4009
  %v4011 = vsel %vm2416, %v3440, 0.0
  %v4012 = vadd.f32 %v3439, %v4011
  %4013 = vadd.xlane.f32.xlu0 %v4012
  %v4014 = vpop.xlane.xlu0 %4013
  %v4015 = vsel %vm2416, %v3442, 0.0
  %v4016 = vadd.f32 %v3441, %v4015
  %4017 = vadd.xlane.f32.xlu0 %v4016
  %v4018 = vpop.xlane.xlu0 %4017
  %v4019 = vsel %vm2416, %v3444, 0.0
  %v4020 = vadd.f32 %v3443, %v4019
  %4021 = vadd.xlane.f32.xlu0 %v4020
  %v4022 = vpop.xlane.xlu0 %4021
  %v4023 = vsel %vm2416, %v3446, 0.0
  %v4024 = vadd.f32 %v3445, %v4023
  %4025 = vadd.xlane.f32.xlu0 %v4024
  %v4026 = vpop.xlane.xlu0 %4025
  %v4027 = vsel %vm2416, %v3448, 0.0
  %v4028 = vadd.f32 %v3447, %v4027
  %4029 = vadd.xlane.f32.xlu0 %v4028
  %v4030 = vpop.xlane.xlu0 %4029
  %v4031 = vsel %vm2416, %v3450, 0.0
  %v4032 = vadd.f32 %v3449, %v4031
  %4033 = vadd.xlane.f32.xlu0 %v4032
  %v4034 = vpop.xlane.xlu0 %4033
  %v4035 = vsel %vm2416, %v3452, 0.0
  %v4036 = vadd.f32 %v3451, %v4035
  %4037 = vadd.xlane.f32.xlu0 %v4036
  %v4038 = vpop.xlane.xlu0 %4037
  %v4039 = vsel %vm2416, %v3454, 0.0
  %v4040 = vadd.f32 %v3453, %v4039
  %4041 = vadd.xlane.f32.xlu0 %v4040
  %v4042 = vpop.xlane.xlu0 %4041
  %v4043 = vsel %vm2416, %v3456, 0.0
  %v4044 = vadd.f32 %v3455, %v4043
  %4045 = vadd.xlane.f32.xlu0 %v4044
  %v4046 = vpop.xlane.xlu0 %4045
  %v4047 = vsel %vm2416, %v3458, 0.0
  %v4048 = vadd.f32 %v3457, %v4047
  %4049 = vadd.xlane.f32.xlu0 %v4048
  %v4050 = vpop.xlane.xlu0 %4049
  %v4051 = vsel %vm2416, %v3460, 0.0
  %v4052 = vadd.f32 %v3459, %v4051
  %4053 = vadd.xlane.f32.xlu0 %v4052
  %v4054 = vpop.xlane.xlu0 %4053
  %v4055 = vsel %vm2416, %v3462, 0.0
  %v4056 = vadd.f32 %v3461, %v4055
  %4057 = vadd.xlane.f32.xlu0 %v4056
  %v4058 = vpop.xlane.xlu0 %4057
  %v4059 = vsel %vm2416, %v3464, 0.0
  %v4060 = vadd.f32 %v3463, %v4059
  %4061 = vadd.xlane.f32.xlu0 %v4060
  %v4062 = vpop.xlane.xlu0 %4061
  %v4063 = vsel %vm2416, %v3466, 0.0
  %v4064 = vadd.f32 %v3465, %v4063
  %4065 = vadd.xlane.f32.xlu0 %v4064
  %v4066 = vpop.xlane.xlu0 %4065
  %v4067 = vmul.f32 %v3470, 0.0051020407
  %v4068 = vmul.f32 %v3474, 0.0051020407
  %v4069 = vmul.f32 %v3478, 0.0051020407
  %v4070 = vmul.f32 %v3482, 0.0051020407
  %v4071 = vmul.f32 %v3486, 0.0051020407
  %v4072 = vmul.f32 %v3490, 0.0051020407
  %v4073 = vmul.f32 %v3494, 0.0051020407
  %v4074 = vmul.f32 %v3498, 0.0051020407
  %v4075 = vmul.f32 %v3502, 0.0051020407
  %v4076 = vmul.f32 %v3506, 0.0051020407
  %v4077 = vmul.f32 %v3510, 0.0051020407
  %v4078 = vmul.f32 %v3514, 0.0051020407
  %v4079 = vmul.f32 %v3518, 0.0051020407
  %v4080 = vmul.f32 %v3522, 0.0051020407
  %v4081 = vmul.f32 %v3526, 0.0051020407
  %v4082 = vmul.f32 %v3530, 0.0051020407
  %v4083 = vmul.f32 %v3534, 0.0051020407
  %v4084 = vmul.f32 %v3538, 0.0051020407
  %v4085 = vmul.f32 %v3542, 0.0051020407
  %v4086 = vmul.f32 %v3546, 0.0051020407
  %v4087 = vmul.f32 %v3550, 0.0051020407
  %v4088 = vmul.f32 %v3554, 0.0051020407
  %v4089 = vmul.f32 %v3558, 0.0051020407
  %v4090 = vmul.f32 %v3562, 0.0051020407
  %v4091 = vmul.f32 %v3566, 0.0051020407
  %v4092 = vmul.f32 %v3570, 0.0051020407
  %v4093 = vmul.f32 %v3574, 0.0051020407
  %v4094 = vmul.f32 %v3578, 0.0051020407
  %v4095 = vmul.f32 %v3582, 0.0051020407
  %v4096 = vmul.f32 %v3586, 0.0051020407
  %v4097 = vmul.f32 %v3590, 0.0051020407
  %v4098 = vmul.f32 %v3594, 0.0051020407
  %v4099 = vmul.f32 %v3598, 0.0051020407
  %v4100 = vmul.f32 %v3602, 0.0051020407
  %v4101 = vmul.f32 %v3606, 0.0051020407
  %v4102 = vmul.f32 %v3610, 0.0051020407
  %v4103 = vmul.f32 %v3614, 0.0051020407
  %v4104 = vmul.f32 %v3618, 0.0051020407
  %v4105 = vmul.f32 %v3622, 0.0051020407
  %v4106 = vmul.f32 %v3626, 0.0051020407
  %v4107 = vmul.f32 %v3630, 0.0051020407
  %v4108 = vmul.f32 %v3634, 0.0051020407
  %v4109 = vmul.f32 %v3638, 0.0051020407
  %v4110 = vmul.f32 %v3642, 0.0051020407
  %v4111 = vmul.f32 %v3646, 0.0051020407
  %v4112 = vmul.f32 %v3650, 0.0051020407
  %v4113 = vmul.f32 %v3654, 0.0051020407
  %v4114 = vmul.f32 %v3658, 0.0051020407
  %v4115 = vmul.f32 %v3662, 0.0051020407
  %v4116 = vmul.f32 %v3666, 0.0051020407
  %v4117 = vmul.f32 %v3670, 0.0051020407
  %v4118 = vmul.f32 %v3674, 0.0051020407
  %v4119 = vmul.f32 %v3678, 0.0051020407
  %v4120 = vmul.f32 %v3682, 0.0051020407
  %v4121 = vmul.f32 %v3686, 0.0051020407
  %v4122 = vmul.f32 %v3690, 0.0051020407
  %v4123 = vmul.f32 %v3694, 0.0051020407
  %v4124 = vmul.f32 %v3698, 0.0051020407
  %v4125 = vmul.f32 %v3702, 0.0051020407
  %v4126 = vmul.f32 %v3706, 0.0051020407
  %v4127 = vmul.f32 %v3710, 0.0051020407
  %v4128 = vmul.f32 %v3714, 0.0051020407
  %v4129 = vmul.f32 %v3718, 0.0051020407
  %v4130 = vmul.f32 %v3722, 0.0051020407
  %v4131 = vmul.f32 %v3726, 0.0051020407
  %v4132 = vmul.f32 %v3730, 0.0051020407
  %v4133 = vmul.f32 %v3734, 0.0051020407
  %v4134 = vmul.f32 %v3738, 0.0051020407
  %v4135 = vmul.f32 %v3742, 0.0051020407
  %v4136 = vmul.f32 %v3746, 0.0051020407
  %v4137 = vmul.f32 %v3750, 0.0051020407
  %v4138 = vmul.f32 %v3754, 0.0051020407
  %v4139 = vmul.f32 %v3758, 0.0051020407
  %v4140 = vmul.f32 %v3762, 0.0051020407
  %v4141 = vmul.f32 %v3766, 0.0051020407
  %v4142 = vmul.f32 %v3770, 0.0051020407
  %v4143 = vmul.f32 %v3774, 0.0051020407
  %v4144 = vmul.f32 %v3778, 0.0051020407
  %v4145 = vmul.f32 %v3782, 0.0051020407
  %v4146 = vmul.f32 %v3786, 0.0051020407
  %v4147 = vmul.f32 %v3790, 0.0051020407
  %v4148 = vmul.f32 %v3794, 0.0051020407
  %v4149 = vmul.f32 %v3798, 0.0051020407
  %v4150 = vmul.f32 %v3802, 0.0051020407
  %v4151 = vmul.f32 %v3806, 0.0051020407
  %v4152 = vmul.f32 %v3810, 0.0051020407
  %v4153 = vmul.f32 %v3814, 0.0051020407
  %v4154 = vmul.f32 %v3818, 0.0051020407
  %v4155 = vmul.f32 %v3822, 0.0051020407
  %v4156 = vmul.f32 %v3826, 0.0051020407
  %v4157 = vmul.f32 %v3830, 0.0051020407
  %v4158 = vmul.f32 %v3834, 0.0051020407
  %v4159 = vmul.f32 %v3838, 0.0051020407
  %v4160 = vmul.f32 %v3842, 0.0051020407
  %v4161 = vmul.f32 %v3846, 0.0051020407
  %v4162 = vmul.f32 %v3850, 0.0051020407
  %v4163 = vmul.f32 %v3854, 0.0051020407
  %v4164 = vmul.f32 %v3858, 0.0051020407
  %v4165 = vmul.f32 %v3862, 0.0051020407
  %v4166 = vmul.f32 %v3866, 0.0051020407
  %v4167 = vmul.f32 %v3870, 0.0051020407
  %v4168 = vmul.f32 %v3874, 0.0051020407
  %v4169 = vmul.f32 %v3878, 0.0051020407
  %v4170 = vmul.f32 %v3882, 0.0051020407
  %v4171 = vmul.f32 %v3886, 0.0051020407
  %v4172 = vmul.f32 %v3890, 0.0051020407
  %v4173 = vmul.f32 %v3894, 0.0051020407
  %v4174 = vmul.f32 %v3898, 0.0051020407
  %v4175 = vmul.f32 %v3902, 0.0051020407
  %v4176 = vmul.f32 %v3906, 0.0051020407
  %v4177 = vmul.f32 %v3910, 0.0051020407
  %v4178 = vmul.f32 %v3914, 0.0051020407
  %v4179 = vmul.f32 %v3918, 0.0051020407
  %v4180 = vmul.f32 %v3922, 0.0051020407
  %v4181 = vmul.f32 %v3926, 0.0051020407
  %v4182 = vmul.f32 %v3930, 0.0051020407
  %v4183 = vmul.f32 %v3934, 0.0051020407
  %v4184 = vmul.f32 %v3938, 0.0051020407
  %v4185 = vmul.f32 %v3942, 0.0051020407
  %v4186 = vmul.f32 %v3946, 0.0051020407
  %v4187 = vmul.f32 %v3950, 0.0051020407
  %v4188 = vmul.f32 %v3954, 0.0051020407
  %v4189 = vmul.f32 %v3958, 0.0051020407
  %v4190 = vmul.f32 %v3962, 0.0051020407
  %v4191 = vmul.f32 %v3966, 0.0051020407
  %v4192 = vmul.f32 %v3970, 0.0051020407
  %v4193 = vmul.f32 %v3974, 0.0051020407
  %v4194 = vmul.f32 %v3978, 0.0051020407
  %v4195 = vmul.f32 %v3982, 0.0051020407
  %v4196 = vmul.f32 %v3986, 0.0051020407
  %v4197 = vmul.f32 %v3990, 0.0051020407
  %v4198 = vmul.f32 %v3994, 0.0051020407
  %v4199 = vmul.f32 %v3998, 0.0051020407
  %v4200 = vmul.f32 %v4002, 0.0051020407
  %v4201 = vmul.f32 %v4006, 0.0051020407
  %v4202 = vmul.f32 %v4010, 0.0051020407
  %v4203 = vmul.f32 %v4014, 0.0051020407
  %v4204 = vmul.f32 %v4018, 0.0051020407
  %v4205 = vmul.f32 %v4022, 0.0051020407
  %v4206 = vmul.f32 %v4026, 0.0051020407
  %v4207 = vmul.f32 %v4030, 0.0051020407
  %v4208 = vmul.f32 %v4034, 0.0051020407
  %v4209 = vmul.f32 %v4038, 0.0051020407
  %v4210 = vmul.f32 %v4042, 0.0051020407
  %v4211 = vmul.f32 %v4046, 0.0051020407
  %v4212 = vmul.f32 %v4050, 0.0051020407
  %v4213 = vmul.f32 %v4054, 0.0051020407
  %v4214 = vmul.f32 %v4058, 0.0051020407
  %v4215 = vmul.f32 %v4062, 0.0051020407
  %v4216 = vmul.f32 %v4066, 0.0051020407
  %v4217 = vmul.f32 %v3017, %v3017
  %v4218 = vmul.f32 %v3018, %v3018
  %v4219 = vmul.f32 %v3019, %v3019
  %v4220 = vmul.f32 %v3020, %v3020
  %v4221 = vmul.f32 %v3021, %v3021
  %v4222 = vmul.f32 %v3022, %v3022
  %v4223 = vmul.f32 %v3023, %v3023
  %v4224 = vmul.f32 %v3024, %v3024
  %v4225 = vmul.f32 %v3025, %v3025
  %v4226 = vmul.f32 %v3026, %v3026
  %v4227 = vmul.f32 %v3027, %v3027
  %v4228 = vmul.f32 %v3028, %v3028
  %v4229 = vmul.f32 %v3029, %v3029
  %v4230 = vmul.f32 %v3030, %v3030
  %v4231 = vmul.f32 %v3031, %v3031
  %v4232 = vmul.f32 %v3032, %v3032
  %v4233 = vmul.f32 %v3033, %v3033
  %v4234 = vmul.f32 %v3034, %v3034
  %v4235 = vmul.f32 %v3035, %v3035
  %v4236 = vmul.f32 %v3036, %v3036
  %v4237 = vmul.f32 %v3037, %v3037
  %v4238 = vmul.f32 %v3038, %v3038
  %v4239 = vmul.f32 %v3039, %v3039
  %v4240 = vmul.f32 %v3040, %v3040
  %v4241 = vmul.f32 %v3041, %v3041
  %v4242 = vmul.f32 %v3042, %v3042
  %v4243 = vmul.f32 %v3043, %v3043
  %v4244 = vmul.f32 %v3044, %v3044
  %v4245 = vmul.f32 %v3045, %v3045
  %v4246 = vmul.f32 %v3046, %v3046
  %v4247 = vmul.f32 %v3047, %v3047
  %v4248 = vmul.f32 %v3048, %v3048
  %v4249 = vmul.f32 %v3049, %v3049
  %v4250 = vmul.f32 %v3050, %v3050
  %v4251 = vmul.f32 %v3051, %v3051
  %v4252 = vmul.f32 %v3052, %v3052
  %v4253 = vmul.f32 %v3053, %v3053
  %v4254 = vmul.f32 %v3054, %v3054
  %v4255 = vmul.f32 %v3055, %v3055
  %v4256 = vmul.f32 %v3056, %v3056
  %v4257 = vmul.f32 %v3057, %v3057
  %v4258 = vmul.f32 %v3058, %v3058
  %v4259 = vmul.f32 %v3059, %v3059
  %v4260 = vmul.f32 %v3060, %v3060
  %v4261 = vmul.f32 %v3061, %v3061
  %v4262 = vmul.f32 %v3062, %v3062
  %v4263 = vmul.f32 %v3063, %v3063
  %v4264 = vmul.f32 %v3064, %v3064
  %v4265 = vmul.f32 %v3065, %v3065
  %v4266 = vmul.f32 %v3066, %v3066
  %v4267 = vmul.f32 %v3067, %v3067
  %v4268 = vmul.f32 %v3068, %v3068
  %v4269 = vmul.f32 %v3069, %v3069
  %v4270 = vmul.f32 %v3070, %v3070
  %v4271 = vmul.f32 %v3071, %v3071
  %v4272 = vmul.f32 %v3072, %v3072
  %v4273 = vmul.f32 %v3073, %v3073
  %v4274 = vmul.f32 %v3074, %v3074
  %v4275 = vmul.f32 %v3075, %v3075
  %v4276 = vmul.f32 %v3076, %v3076
  %v4277 = vmul.f32 %v3077, %v3077
  %v4278 = vmul.f32 %v3078, %v3078
  %v4279 = vmul.f32 %v3079, %v3079
  %v4280 = vmul.f32 %v3080, %v3080
  %v4281 = vmul.f32 %v3081, %v3081
  %v4282 = vmul.f32 %v3082, %v3082
  %v4283 = vmul.f32 %v3083, %v3083
  %v4284 = vmul.f32 %v3084, %v3084
  %v4285 = vmul.f32 %v3085, %v3085
  %v4286 = vmul.f32 %v3086, %v3086
  %v4287 = vmul.f32 %v3087, %v3087
  %v4288 = vmul.f32 %v3088, %v3088
  %v4289 = vmul.f32 %v3089, %v3089
  %v4290 = vmul.f32 %v3090, %v3090
  %v4291 = vmul.f32 %v3091, %v3091
  %v4292 = vmul.f32 %v3092, %v3092
  %v4293 = vmul.f32 %v3093, %v3093
  %v4294 = vmul.f32 %v3094, %v3094
  %v4295 = vmul.f32 %v3095, %v3095
  %v4296 = vmul.f32 %v3096, %v3096
  %v4297 = vmul.f32 %v3097, %v3097
  %v4298 = vmul.f32 %v3098, %v3098
  %v4299 = vmul.f32 %v3099, %v3099
  %v4300 = vmul.f32 %v3100, %v3100
  %v4301 = vmul.f32 %v3101, %v3101
  %v4302 = vmul.f32 %v3102, %v3102
  %v4303 = vmul.f32 %v3103, %v3103
  %v4304 = vmul.f32 %v3104, %v3104
  %v4305 = vmul.f32 %v3105, %v3105
  %v4306 = vmul.f32 %v3106, %v3106
  %v4307 = vmul.f32 %v3107, %v3107
  %v4308 = vmul.f32 %v3108, %v3108
  %v4309 = vmul.f32 %v3109, %v3109
  %v4310 = vmul.f32 %v3110, %v3110
  %v4311 = vmul.f32 %v3111, %v3111
  %v4312 = vmul.f32 %v3112, %v3112
  %v4313 = vmul.f32 %v3113, %v3113
  %v4314 = vmul.f32 %v3114, %v3114
  %v4315 = vmul.f32 %v3115, %v3115
  %v4316 = vmul.f32 %v3116, %v3116
  %v4317 = vmul.f32 %v3117, %v3117
  %v4318 = vmul.f32 %v3118, %v3118
  %v4319 = vmul.f32 %v3119, %v3119
  %v4320 = vmul.f32 %v3120, %v3120
  %v4321 = vmul.f32 %v3121, %v3121
  %v4322 = vmul.f32 %v3122, %v3122
  %v4323 = vmul.f32 %v3123, %v3123
  %v4324 = vmul.f32 %v3124, %v3124
  %v4325 = vmul.f32 %v3125, %v3125
  %v4326 = vmul.f32 %v3126, %v3126
  %v4327 = vmul.f32 %v3127, %v3127
  %v4328 = vmul.f32 %v3128, %v3128
  %v4329 = vmul.f32 %v3129, %v3129
  %v4330 = vmul.f32 %v3130, %v3130
  %v4331 = vmul.f32 %v3131, %v3131
  %v4332 = vmul.f32 %v3132, %v3132
  %v4333 = vmul.f32 %v3133, %v3133
  %v4334 = vmul.f32 %v3134, %v3134
  %v4335 = vmul.f32 %v3135, %v3135
  %v4336 = vmul.f32 %v3136, %v3136
  %v4337 = vmul.f32 %v3137, %v3137
  %v4338 = vmul.f32 %v3138, %v3138
  %v4339 = vmul.f32 %v3139, %v3139
  %v4340 = vmul.f32 %v3140, %v3140
  %v4341 = vmul.f32 %v3141, %v3141
  %v4342 = vmul.f32 %v3142, %v3142
  %v4343 = vmul.f32 %v3143, %v3143
  %v4344 = vmul.f32 %v3144, %v3144
  %v4345 = vmul.f32 %v3145, %v3145
  %v4346 = vmul.f32 %v3146, %v3146
  %v4347 = vmul.f32 %v3147, %v3147
  %v4348 = vmul.f32 %v3148, %v3148
  %v4349 = vmul.f32 %v3149, %v3149
  %v4350 = vmul.f32 %v3150, %v3150
  %v4351 = vmul.f32 %v3151, %v3151
  %v4352 = vmul.f32 %v3152, %v3152
  %v4353 = vmul.f32 %v3153, %v3153
  %v4354 = vmul.f32 %v3154, %v3154
  %v4355 = vmul.f32 %v3155, %v3155
  %v4356 = vmul.f32 %v3156, %v3156
  %v4357 = vmul.f32 %v3157, %v3157
  %v4358 = vmul.f32 %v3158, %v3158
  %v4359 = vmul.f32 %v3159, %v3159
  %v4360 = vmul.f32 %v3160, %v3160
  %v4361 = vmul.f32 %v3161, %v3161
  %v4362 = vmul.f32 %v3162, %v3162
  %v4363 = vmul.f32 %v3163, %v3163
  %v4364 = vmul.f32 %v3164, %v3164
  %v4365 = vmul.f32 %v3165, %v3165
  %v4366 = vmul.f32 %v3166, %v3166
  %v4367 = vsub.f32 %v4067, %v4217
  %v4368 = vsub.f32 %v4068, %v4218
  %v4369 = vsub.f32 %v4069, %v4219
  %v4370 = vsub.f32 %v4070, %v4220
  %v4371 = vsub.f32 %v4071, %v4221
  %v4372 = vsub.f32 %v4072, %v4222
  %v4373 = vsub.f32 %v4073, %v4223
  %v4374 = vsub.f32 %v4074, %v4224
  %v4375 = vsub.f32 %v4075, %v4225
  %v4376 = vsub.f32 %v4076, %v4226
  %v4377 = vsub.f32 %v4077, %v4227
  %v4378 = vsub.f32 %v4078, %v4228
  %v4379 = vsub.f32 %v4079, %v4229
  %v4380 = vsub.f32 %v4080, %v4230
  %v4381 = vsub.f32 %v4081, %v4231
  %v4382 = vsub.f32 %v4082, %v4232
  %v4383 = vsub.f32 %v4083, %v4233
  %v4384 = vsub.f32 %v4084, %v4234
  %v4385 = vsub.f32 %v4085, %v4235
  %v4386 = vsub.f32 %v4086, %v4236
  %v4387 = vsub.f32 %v4087, %v4237
  %v4388 = vsub.f32 %v4088, %v4238
  %v4389 = vsub.f32 %v4089, %v4239
  %v4390 = vsub.f32 %v4090, %v4240
  %v4391 = vsub.f32 %v4091, %v4241
  %v4392 = vsub.f32 %v4092, %v4242
  %v4393 = vsub.f32 %v4093, %v4243
  %v4394 = vsub.f32 %v4094, %v4244
  %v4395 = vsub.f32 %v4095, %v4245
  %v4396 = vsub.f32 %v4096, %v4246
  %v4397 = vsub.f32 %v4097, %v4247
  %v4398 = vsub.f32 %v4098, %v4248
  %v4399 = vsub.f32 %v4099, %v4249
  %v4400 = vsub.f32 %v4100, %v4250
  %v4401 = vsub.f32 %v4101, %v4251
  %v4402 = vsub.f32 %v4102, %v4252
  %v4403 = vsub.f32 %v4103, %v4253
  %v4404 = vsub.f32 %v4104, %v4254
  %v4405 = vsub.f32 %v4105, %v4255
  %v4406 = vsub.f32 %v4106, %v4256
  %v4407 = vsub.f32 %v4107, %v4257
  %v4408 = vsub.f32 %v4108, %v4258
  %v4409 = vsub.f32 %v4109, %v4259
  %v4410 = vsub.f32 %v4110, %v4260
  %v4411 = vsub.f32 %v4111, %v4261
  %v4412 = vsub.f32 %v4112, %v4262
  %v4413 = vsub.f32 %v4113, %v4263
  %v4414 = vsub.f32 %v4114, %v4264
  %v4415 = vsub.f32 %v4115, %v4265
  %v4416 = vsub.f32 %v4116, %v4266
  %v4417 = vsub.f32 %v4117, %v4267
  %v4418 = vsub.f32 %v4118, %v4268
  %v4419 = vsub.f32 %v4119, %v4269
  %v4420 = vsub.f32 %v4120, %v4270
  %v4421 = vsub.f32 %v4121, %v4271
  %v4422 = vsub.f32 %v4122, %v4272
  %v4423 = vsub.f32 %v4123, %v4273
  %v4424 = vsub.f32 %v4124, %v4274
  %v4425 = vsub.f32 %v4125, %v4275
  %v4426 = vsub.f32 %v4126, %v4276
  %v4427 = vsub.f32 %v4127, %v4277
  %v4428 = vsub.f32 %v4128, %v4278
  %v4429 = vsub.f32 %v4129, %v4279
  %v4430 = vsub.f32 %v4130, %v4280
  %v4431 = vsub.f32 %v4131, %v4281
  %v4432 = vsub.f32 %v4132, %v4282
  %v4433 = vsub.f32 %v4133, %v4283
  %v4434 = vsub.f32 %v4134, %v4284
  %v4435 = vsub.f32 %v4135, %v4285
  %v4436 = vsub.f32 %v4136, %v4286
  %v4437 = vsub.f32 %v4137, %v4287
  %v4438 = vsub.f32 %v4138, %v4288
  %v4439 = vsub.f32 %v4139, %v4289
  %v4440 = vsub.f32 %v4140, %v4290
  %v4441 = vsub.f32 %v4141, %v4291
  %v4442 = vsub.f32 %v4142, %v4292
  %v4443 = vsub.f32 %v4143, %v4293
  %v4444 = vsub.f32 %v4144, %v4294
  %v4445 = vsub.f32 %v4145, %v4295
  %v4446 = vsub.f32 %v4146, %v4296
  %v4447 = vsub.f32 %v4147, %v4297
  %v4448 = vsub.f32 %v4148, %v4298
  %v4449 = vsub.f32 %v4149, %v4299
  %v4450 = vsub.f32 %v4150, %v4300
  %v4451 = vsub.f32 %v4151, %v4301
  %v4452 = vsub.f32 %v4152, %v4302
  %v4453 = vsub.f32 %v4153, %v4303
  %v4454 = vsub.f32 %v4154, %v4304
  %v4455 = vsub.f32 %v4155, %v4305
  %v4456 = vsub.f32 %v4156, %v4306
  %v4457 = vsub.f32 %v4157, %v4307
  %v4458 = vsub.f32 %v4158, %v4308
  %v4459 = vsub.f32 %v4159, %v4309
  %v4460 = vsub.f32 %v4160, %v4310
  %v4461 = vsub.f32 %v4161, %v4311
  %v4462 = vsub.f32 %v4162, %v4312
  %v4463 = vsub.f32 %v4163, %v4313
  %v4464 = vsub.f32 %v4164, %v4314
  %v4465 = vsub.f32 %v4165, %v4315
  %v4466 = vsub.f32 %v4166, %v4316
  %v4467 = vsub.f32 %v4167, %v4317
  %v4468 = vsub.f32 %v4168, %v4318
  %v4469 = vsub.f32 %v4169, %v4319
  %v4470 = vsub.f32 %v4170, %v4320
  %v4471 = vsub.f32 %v4171, %v4321
  %v4472 = vsub.f32 %v4172, %v4322
  %v4473 = vsub.f32 %v4173, %v4323
  %v4474 = vsub.f32 %v4174, %v4324
  %v4475 = vsub.f32 %v4175, %v4325
  %v4476 = vsub.f32 %v4176, %v4326
  %v4477 = vsub.f32 %v4177, %v4327
  %v4478 = vsub.f32 %v4178, %v4328
  %v4479 = vsub.f32 %v4179, %v4329
  %v4480 = vsub.f32 %v4180, %v4330
  %v4481 = vsub.f32 %v4181, %v4331
  %v4482 = vsub.f32 %v4182, %v4332
  %v4483 = vsub.f32 %v4183, %v4333
  %v4484 = vsub.f32 %v4184, %v4334
  %v4485 = vsub.f32 %v4185, %v4335
  %v4486 = vsub.f32 %v4186, %v4336
  %v4487 = vsub.f32 %v4187, %v4337
  %v4488 = vsub.f32 %v4188, %v4338
  %v4489 = vsub.f32 %v4189, %v4339
  %v4490 = vsub.f32 %v4190, %v4340
  %v4491 = vsub.f32 %v4191, %v4341
  %v4492 = vsub.f32 %v4192, %v4342
  %v4493 = vsub.f32 %v4193, %v4343
  %v4494 = vsub.f32 %v4194, %v4344
  %v4495 = vsub.f32 %v4195, %v4345
  %v4496 = vsub.f32 %v4196, %v4346
  %v4497 = vsub.f32 %v4197, %v4347
  %v4498 = vsub.f32 %v4198, %v4348
  %v4499 = vsub.f32 %v4199, %v4349
  %v4500 = vsub.f32 %v4200, %v4350
  %v4501 = vsub.f32 %v4201, %v4351
  %v4502 = vsub.f32 %v4202, %v4352
  %v4503 = vsub.f32 %v4203, %v4353
  %v4504 = vsub.f32 %v4204, %v4354
  %v4505 = vsub.f32 %v4205, %v4355
  %v4506 = vsub.f32 %v4206, %v4356
  %v4507 = vsub.f32 %v4207, %v4357
  %v4508 = vsub.f32 %v4208, %v4358
  %v4509 = vsub.f32 %v4209, %v4359
  %v4510 = vsub.f32 %v4210, %v4360
  %v4511 = vsub.f32 %v4211, %v4361
  %v4512 = vsub.f32 %v4212, %v4362
  %v4513 = vsub.f32 %v4213, %v4363
  %v4514 = vsub.f32 %v4214, %v4364
  %v4515 = vsub.f32 %v4215, %v4365
  %v4516 = vsub.f32 %v4216, %v4366
  %v4517 = vmax.f32 %v4367, 0.0
  %v4518 = vmax.f32 %v4368, 0.0
  %v4519 = vmax.f32 %v4369, 0.0
  %v4520 = vmax.f32 %v4370, 0.0
  %v4521 = vmax.f32 %v4371, 0.0
  %v4522 = vmax.f32 %v4372, 0.0
  %v4523 = vmax.f32 %v4373, 0.0
  %v4524 = vmax.f32 %v4374, 0.0
  %v4525 = vmax.f32 %v4375, 0.0
  %v4526 = vmax.f32 %v4376, 0.0
  %v4527 = vmax.f32 %v4377, 0.0
  %v4528 = vmax.f32 %v4378, 0.0
  %v4529 = vmax.f32 %v4379, 0.0
  %v4530 = vmax.f32 %v4380, 0.0
  %v4531 = vmax.f32 %v4381, 0.0
  %v4532 = vmax.f32 %v4382, 0.0
  %v4533 = vmax.f32 %v4383, 0.0
  %v4534 = vmax.f32 %v4384, 0.0
  %v4535 = vmax.f32 %v4385, 0.0
  %v4536 = vmax.f32 %v4386, 0.0
  %v4537 = vmax.f32 %v4387, 0.0
  %v4538 = vmax.f32 %v4388, 0.0
  %v4539 = vmax.f32 %v4389, 0.0
  %v4540 = vmax.f32 %v4390, 0.0
  %v4541 = vmax.f32 %v4391, 0.0
  %v4542 = vmax.f32 %v4392, 0.0
  %v4543 = vmax.f32 %v4393, 0.0
  %v4544 = vmax.f32 %v4394, 0.0
  %v4545 = vmax.f32 %v4395, 0.0
  %v4546 = vmax.f32 %v4396, 0.0
  %v4547 = vmax.f32 %v4397, 0.0
  %v4548 = vmax.f32 %v4398, 0.0
  %v4549 = vmax.f32 %v4399, 0.0
  %v4550 = vmax.f32 %v4400, 0.0
  %v4551 = vmax.f32 %v4401, 0.0
  %v4552 = vmax.f32 %v4402, 0.0
  %v4553 = vmax.f32 %v4403, 0.0
  %v4554 = vmax.f32 %v4404, 0.0
  %v4555 = vmax.f32 %v4405, 0.0
  %v4556 = vmax.f32 %v4406, 0.0
  %v4557 = vmax.f32 %v4407, 0.0
  %v4558 = vmax.f32 %v4408, 0.0
  %v4559 = vmax.f32 %v4409, 0.0
  %v4560 = vmax.f32 %v4410, 0.0
  %v4561 = vmax.f32 %v4411, 0.0
  %v4562 = vmax.f32 %v4412, 0.0
  %v4563 = vmax.f32 %v4413, 0.0
  %v4564 = vmax.f32 %v4414, 0.0
  %v4565 = vmax.f32 %v4415, 0.0
  %v4566 = vmax.f32 %v4416, 0.0
  %v4567 = vmax.f32 %v4417, 0.0
  %v4568 = vmax.f32 %v4418, 0.0
  %v4569 = vmax.f32 %v4419, 0.0
  %v4570 = vmax.f32 %v4420, 0.0
  %v4571 = vmax.f32 %v4421, 0.0
  %v4572 = vmax.f32 %v4422, 0.0
  %v4573 = vmax.f32 %v4423, 0.0
  %v4574 = vmax.f32 %v4424, 0.0
  %v4575 = vmax.f32 %v4425, 0.0
  %v4576 = vmax.f32 %v4426, 0.0
  %v4577 = vmax.f32 %v4427, 0.0
  %v4578 = vmax.f32 %v4428, 0.0
  %v4579 = vmax.f32 %v4429, 0.0
  %v4580 = vmax.f32 %v4430, 0.0
  %v4581 = vmax.f32 %v4431, 0.0
  %v4582 = vmax.f32 %v4432, 0.0
  %v4583 = vmax.f32 %v4433, 0.0
  %v4584 = vmax.f32 %v4434, 0.0
  %v4585 = vmax.f32 %v4435, 0.0
  %v4586 = vmax.f32 %v4436, 0.0
  %v4587 = vmax.f32 %v4437, 0.0
  %v4588 = vmax.f32 %v4438, 0.0
  %v4589 = vmax.f32 %v4439, 0.0
  %v4590 = vmax.f32 %v4440, 0.0
  %v4591 = vmax.f32 %v4441, 0.0
  %v4592 = vmax.f32 %v4442, 0.0
  %v4593 = vmax.f32 %v4443, 0.0
  %v4594 = vmax.f32 %v4444, 0.0
  %v4595 = vmax.f32 %v4445, 0.0
  %v4596 = vmax.f32 %v4446, 0.0
  %v4597 = vmax.f32 %v4447, 0.0
  %v4598 = vmax.f32 %v4448, 0.0
  %v4599 = vmax.f32 %v4449, 0.0
  %v4600 = vmax.f32 %v4450, 0.0
  %v4601 = vmax.f32 %v4451, 0.0
  %v4602 = vmax.f32 %v4452, 0.0
  %v4603 = vmax.f32 %v4453, 0.0
  %v4604 = vmax.f32 %v4454, 0.0
  %v4605 = vmax.f32 %v4455, 0.0
  %v4606 = vmax.f32 %v4456, 0.0
  %v4607 = vmax.f32 %v4457, 0.0
  %v4608 = vmax.f32 %v4458, 0.0
  %v4609 = vmax.f32 %v4459, 0.0
  %v4610 = vmax.f32 %v4460, 0.0
  %v4611 = vmax.f32 %v4461, 0.0
  %v4612 = vmax.f32 %v4462, 0.0
  %v4613 = vmax.f32 %v4463, 0.0
  %v4614 = vmax.f32 %v4464, 0.0
  %v4615 = vmax.f32 %v4465, 0.0
  %v4616 = vmax.f32 %v4466, 0.0
  %v4617 = vmax.f32 %v4467, 0.0
  %v4618 = vmax.f32 %v4468, 0.0
  %v4619 = vmax.f32 %v4469, 0.0
  %v4620 = vmax.f32 %v4470, 0.0
  %v4621 = vmax.f32 %v4471, 0.0
  %v4622 = vmax.f32 %v4472, 0.0
  %v4623 = vmax.f32 %v4473, 0.0
  %v4624 = vmax.f32 %v4474, 0.0
  %v4625 = vmax.f32 %v4475, 0.0
  %v4626 = vmax.f32 %v4476, 0.0
  %v4627 = vmax.f32 %v4477, 0.0
  %v4628 = vmax.f32 %v4478, 0.0
  %v4629 = vmax.f32 %v4479, 0.0
  %v4630 = vmax.f32 %v4480, 0.0
  %v4631 = vmax.f32 %v4481, 0.0
  %v4632 = vmax.f32 %v4482, 0.0
  %v4633 = vmax.f32 %v4483, 0.0
  %v4634 = vmax.f32 %v4484, 0.0
  %v4635 = vmax.f32 %v4485, 0.0
  %v4636 = vmax.f32 %v4486, 0.0
  %v4637 = vmax.f32 %v4487, 0.0
  %v4638 = vmax.f32 %v4488, 0.0
  %v4639 = vmax.f32 %v4489, 0.0
  %v4640 = vmax.f32 %v4490, 0.0
  %v4641 = vmax.f32 %v4491, 0.0
  %v4642 = vmax.f32 %v4492, 0.0
  %v4643 = vmax.f32 %v4493, 0.0
  %v4644 = vmax.f32 %v4494, 0.0
  %v4645 = vmax.f32 %v4495, 0.0
  %v4646 = vmax.f32 %v4496, 0.0
  %v4647 = vmax.f32 %v4497, 0.0
  %v4648 = vmax.f32 %v4498, 0.0
  %v4649 = vmax.f32 %v4499, 0.0
  %v4650 = vmax.f32 %v4500, 0.0
  %v4651 = vmax.f32 %v4501, 0.0
  %v4652 = vmax.f32 %v4502, 0.0
  %v4653 = vmax.f32 %v4503, 0.0
  %v4654 = vmax.f32 %v4504, 0.0
  %v4655 = vmax.f32 %v4505, 0.0
  %v4656 = vmax.f32 %v4506, 0.0
  %v4657 = vmax.f32 %v4507, 0.0
  %v4658 = vmax.f32 %v4508, 0.0
  %v4659 = vmax.f32 %v4509, 0.0
  %v4660 = vmax.f32 %v4510, 0.0
  %v4661 = vmax.f32 %v4511, 0.0
  %v4662 = vmax.f32 %v4512, 0.0
  %v4663 = vmax.f32 %v4513, 0.0
  %v4664 = vmax.f32 %v4514, 0.0
  %v4665 = vmax.f32 %v4515, 0.0
  %v4666 = vmax.f32 %v4516, 0.0
  %v4667 = vld [vmem:[%s3] sm:$0xff]
  %v4668 = vld [vmem:[%s3 + $0x8] sm:$0xff]
  %v4669 = vld [vmem:[%s3 + $0x10] sm:$0xff]
  %v4670 = vld [vmem:[%s3 + $0x18] sm:$0xff]
  %v4671 = vld [vmem:[%s3 + $0x20] sm:$0xff]
  %v4672 = vld [vmem:[%s3 + $0x28] sm:$0xff]
  %v4673 = vld [vmem:[%s3 + $0x30] sm:$0xff]
  %v4674 = vld [vmem:[%s3 + $0x38] sm:$0xff]
  %v4675 = vld [vmem:[%s3 + $0x40] sm:$0xff]
  %v4676 = vld [vmem:[%s3 + $0x48] sm:$0xff]
  %v4677 = vld [vmem:[%s3 + $0x50] sm:$0xff]
  %v4678 = vld [vmem:[%s3 + $0x58] sm:$0xff]
  %v4679 = vld [vmem:[%s3 + $0x60] sm:$0xff]
  %v4680 = vld [vmem:[%s3 + $0x68] sm:$0xff]
  %v4681 = vld [vmem:[%s3 + $0x70] sm:$0xff]
  %v4682 = vld [vmem:[%s3 + $0x78] sm:$0xff]
  %v4683 = vld [vmem:[%s3 + $0x80] sm:$0xff]
  %v4684 = vld [vmem:[%s3 + $0x88] sm:$0xff]
  %v4685 = vld [vmem:[%s3 + $0x90] sm:$0xff]
  %v4686 = vld [vmem:[%s3 + $0x98] sm:$0xff]
  %v4687 = vld [vmem:[%s3 + $0xa0] sm:$0xff]
  %v4688 = vld [vmem:[%s3 + $0xa8] sm:$0xff]
  %v4689 = vld [vmem:[%s3 + $0xb0] sm:$0xff]
  %v4690 = vld [vmem:[%s3 + $0xb8] sm:$0xff]
  %v4691 = vld [vmem:[%s3 + $0xc0] sm:$0xff]
  %v4692 = vld [vmem:[%s3 + $0xc8] sm:$0xff]
  %v4693 = vld [vmem:[%s3 + $0xd0] sm:$0xff]
  %v4694 = vld [vmem:[%s3 + $0xd8] sm:$0xff]
  %v4695 = vld [vmem:[%s3 + $0xe0] sm:$0xff]
  %v4696 = vld [vmem:[%s3 + $0xe8] sm:$0xff]
  %v4697 = vld [vmem:[%s3 + $0xf0] sm:$0xff]
  %v4698 = vld [vmem:[%s3 + $0xf8] sm:$0xff]
  %v4699 = vld [vmem:[%s3 + $0x100] sm:$0xff]
  %v4700 = vld [vmem:[%s3 + $0x108] sm:$0xff]
  %v4701 = vld [vmem:[%s3 + $0x110] sm:$0xff]
  %v4702 = vld [vmem:[%s3 + $0x118] sm:$0xff]
  %v4703 = vld [vmem:[%s3 + $0x120] sm:$0xff]
  %v4704 = vld [vmem:[%s3 + $0x128] sm:$0xff]
  %v4705 = vld [vmem:[%s3 + $0x130] sm:$0xff]
  %v4706 = vld [vmem:[%s3 + $0x138] sm:$0xff]
  %v4707 = vld [vmem:[%s3 + $0x140] sm:$0xff]
  %v4708 = vld [vmem:[%s3 + $0x148] sm:$0xff]
  %v4709 = vld [vmem:[%s3 + $0x150] sm:$0xff]
  %v4710 = vld [vmem:[%s3 + $0x158] sm:$0xff]
  %v4711 = vld [vmem:[%s3 + $0x160] sm:$0xff]
  %v4712 = vld [vmem:[%s3 + $0x168] sm:$0xff]
  %v4713 = vld [vmem:[%s3 + $0x170] sm:$0xff]
  %v4714 = vld [vmem:[%s3 + $0x178] sm:$0xff]
  %v4715 = vld [vmem:[%s3 + $0x180] sm:$0xff]
  %v4716 = vld [vmem:[%s3 + $0x188] sm:$0xff]
  %v4717 = vld [vmem:[%s3 + $0x190] sm:$0xff]
  %v4718 = vld [vmem:[%s3 + $0x198] sm:$0xff]
  %v4719 = vld [vmem:[%s3 + $0x1a0] sm:$0xff]
  %v4720 = vld [vmem:[%s3 + $0x1a8] sm:$0xff]
  %v4721 = vld [vmem:[%s3 + $0x1b0] sm:$0xff]
  %v4722 = vld [vmem:[%s3 + $0x1b8] sm:$0xff]
  %v4723 = vld [vmem:[%s3 + $0x1c0] sm:$0xff]
  %v4724 = vld [vmem:[%s3 + $0x1c8] sm:$0xff]
  %v4725 = vld [vmem:[%s3 + $0x1d0] sm:$0xff]
  %v4726 = vld [vmem:[%s3 + $0x1d8] sm:$0xff]
  %v4727 = vld [vmem:[%s3 + $0x1e0] sm:$0xff]
  %v4728 = vld [vmem:[%s3 + $0x1e8] sm:$0xff]
  %v4729 = vld [vmem:[%s3 + $0x1f0] sm:$0xff]
  %v4730 = vld [vmem:[%s3 + $0x1f8] sm:$0xff]
  %v4731 = vld [vmem:[%s3 + $0x200] sm:$0xff]
  %v4732 = vld [vmem:[%s3 + $0x208] sm:$0xff]
  %v4733 = vld [vmem:[%s3 + $0x210] sm:$0xff]
  %v4734 = vld [vmem:[%s3 + $0x218] sm:$0xff]
  %v4735 = vld [vmem:[%s3 + $0x220] sm:$0xff]
  %v4736 = vld [vmem:[%s3 + $0x228] sm:$0xff]
  %v4737 = vld [vmem:[%s3 + $0x230] sm:$0xff]
  %v4738 = vld [vmem:[%s3 + $0x238] sm:$0xff]
  %v4739 = vld [vmem:[%s3 + $0x240] sm:$0xff]
  %v4740 = vld [vmem:[%s3 + $0x248] sm:$0xff]
  %v4741 = vld [vmem:[%s3 + $0x250] sm:$0xff]
  %v4742 = vld [vmem:[%s3 + $0x258] sm:$0xff]
  %v4743 = vld [vmem:[%s3 + $0x260] sm:$0xff]
  %v4744 = vld [vmem:[%s3 + $0x268] sm:$0xff]
  %v4745 = vld [vmem:[%s3 + $0x270] sm:$0xff]
  %v4746 = vld [vmem:[%s3 + $0x278] sm:$0xff]
  %v4747 = vld [vmem:[%s3 + $0x280] sm:$0xff]
  %v4748 = vld [vmem:[%s3 + $0x288] sm:$0xff]
  %v4749 = vld [vmem:[%s3 + $0x290] sm:$0xff]
  %v4750 = vld [vmem:[%s3 + $0x298] sm:$0xff]
  %v4751 = vld [vmem:[%s3 + $0x2a0] sm:$0xff]
  %v4752 = vld [vmem:[%s3 + $0x2a8] sm:$0xff]
  %v4753 = vld [vmem:[%s3 + $0x2b0] sm:$0xff]
  %v4754 = vld [vmem:[%s3 + $0x2b8] sm:$0xff]
  %v4755 = vld [vmem:[%s3 + $0x2c0] sm:$0xff]
  %v4756 = vld [vmem:[%s3 + $0x2c8] sm:$0xff]
  %v4757 = vld [vmem:[%s3 + $0x2d0] sm:$0xff]
  %v4758 = vld [vmem:[%s3 + $0x2d8] sm:$0xff]
  %v4759 = vld [vmem:[%s3 + $0x2e0] sm:$0xff]
  %v4760 = vld [vmem:[%s3 + $0x2e8] sm:$0xff]
  %v4761 = vld [vmem:[%s3 + $0x2f0] sm:$0xff]
  %v4762 = vld [vmem:[%s3 + $0x2f8] sm:$0xff]
  %v4763 = vld [vmem:[%s3 + $0x300] sm:$0xff]
  %v4764 = vld [vmem:[%s3 + $0x308] sm:$0xff]
  %v4765 = vld [vmem:[%s3 + $0x310] sm:$0xff]
  %v4766 = vld [vmem:[%s3 + $0x318] sm:$0xff]
  %v4767 = vld [vmem:[%s3 + $0x320] sm:$0xff]
  %v4768 = vld [vmem:[%s3 + $0x328] sm:$0xff]
  %v4769 = vld [vmem:[%s3 + $0x330] sm:$0xff]
  %v4770 = vld [vmem:[%s3 + $0x338] sm:$0xff]
  %v4771 = vld [vmem:[%s3 + $0x340] sm:$0xff]
  %v4772 = vld [vmem:[%s3 + $0x348] sm:$0xff]
  %v4773 = vld [vmem:[%s3 + $0x350] sm:$0xff]
  %v4774 = vld [vmem:[%s3 + $0x358] sm:$0xff]
  %v4775 = vld [vmem:[%s3 + $0x360] sm:$0xff]
  %v4776 = vld [vmem:[%s3 + $0x368] sm:$0xff]
  %v4777 = vld [vmem:[%s3 + $0x370] sm:$0xff]
  %v4778 = vld [vmem:[%s3 + $0x378] sm:$0xff]
  %v4779 = vld [vmem:[%s3 + $0x380] sm:$0xff]
  %v4780 = vld [vmem:[%s3 + $0x388] sm:$0xff]
  %v4781 = vld [vmem:[%s3 + $0x390] sm:$0xff]
  %v4782 = vld [vmem:[%s3 + $0x398] sm:$0xff]
  %v4783 = vld [vmem:[%s3 + $0x3a0] sm:$0xff]
  %v4784 = vld [vmem:[%s3 + $0x3a8] sm:$0xff]
  %v4785 = vld [vmem:[%s3 + $0x3b0] sm:$0xff]
  %v4786 = vld [vmem:[%s3 + $0x3b8] sm:$0xff]
  %v4787 = vld [vmem:[%s3 + $0x3c0] sm:$0xff]
  %v4788 = vld [vmem:[%s3 + $0x3c8] sm:$0xff]
  %v4789 = vld [vmem:[%s3 + $0x3d0] sm:$0xff]
  %v4790 = vld [vmem:[%s3 + $0x3d8] sm:$0xff]
  %v4791 = vld [vmem:[%s3 + $0x3e0] sm:$0xff]
  %v4792 = vld [vmem:[%s3 + $0x3e8] sm:$0xff]
  %v4793 = vld [vmem:[%s3 + $0x3f0] sm:$0xff]
  %v4794 = vld [vmem:[%s3 + $0x3f8] sm:$0xff]
  %v4795 = vld [vmem:[%s3 + $0x400] sm:$0xff]
  %v4796 = vld [vmem:[%s3 + $0x408] sm:$0xff]
  %v4797 = vld [vmem:[%s3 + $0x410] sm:$0xff]
  %v4798 = vld [vmem:[%s3 + $0x418] sm:$0xff]
  %v4799 = vld [vmem:[%s3 + $0x420] sm:$0xff]
  %v4800 = vld [vmem:[%s3 + $0x428] sm:$0xff]
  %v4801 = vld [vmem:[%s3 + $0x430] sm:$0xff]
  %v4802 = vld [vmem:[%s3 + $0x438] sm:$0xff]
  %v4803 = vld [vmem:[%s3 + $0x440] sm:$0xff]
  %v4804 = vld [vmem:[%s3 + $0x448] sm:$0xff]
  %v4805 = vld [vmem:[%s3 + $0x450] sm:$0xff]
  %v4806 = vld [vmem:[%s3 + $0x458] sm:$0xff]
  %v4807 = vld [vmem:[%s3 + $0x460] sm:$0xff]
  %v4808 = vld [vmem:[%s3 + $0x468] sm:$0xff]
  %v4809 = vld [vmem:[%s3 + $0x470] sm:$0xff]
  %v4810 = vld [vmem:[%s3 + $0x478] sm:$0xff]
  %v4811 = vld [vmem:[%s3 + $0x480] sm:$0xff]
  %v4812 = vld [vmem:[%s3 + $0x488] sm:$0xff]
  %v4813 = vld [vmem:[%s3 + $0x490] sm:$0xff]
  %v4814 = vld [vmem:[%s3 + $0x498] sm:$0xff]
  %v4815 = vld [vmem:[%s3 + $0x4a0] sm:$0xff]
  %v4816 = vld [vmem:[%s3 + $0x4a8] sm:$0xff]
  %v4817 = vadd.f32 %v4517, 0.001
  %v4818 = vadd.f32 %v4518, 0.001
  %v4819 = vadd.f32 %v4519, 0.001
  %v4820 = vadd.f32 %v4520, 0.001
  %v4821 = vadd.f32 %v4521, 0.001
  %v4822 = vadd.f32 %v4522, 0.001
  %v4823 = vadd.f32 %v4523, 0.001
  %v4824 = vadd.f32 %v4524, 0.001
  %v4825 = vadd.f32 %v4525, 0.001
  %v4826 = vadd.f32 %v4526, 0.001
  %v4827 = vadd.f32 %v4527, 0.001
  %v4828 = vadd.f32 %v4528, 0.001
  %v4829 = vadd.f32 %v4529, 0.001
  %v4830 = vadd.f32 %v4530, 0.001
  %v4831 = vadd.f32 %v4531, 0.001
  %v4832 = vadd.f32 %v4532, 0.001
  %v4833 = vadd.f32 %v4533, 0.001
  %v4834 = vadd.f32 %v4534, 0.001
  %v4835 = vadd.f32 %v4535, 0.001
  %v4836 = vadd.f32 %v4536, 0.001
  %v4837 = vadd.f32 %v4537, 0.001
  %v4838 = vadd.f32 %v4538, 0.001
  %v4839 = vadd.f32 %v4539, 0.001
  %v4840 = vadd.f32 %v4540, 0.001
  %v4841 = vadd.f32 %v4541, 0.001
  %v4842 = vadd.f32 %v4542, 0.001
  %v4843 = vadd.f32 %v4543, 0.001
  %v4844 = vadd.f32 %v4544, 0.001
  %v4845 = vadd.f32 %v4545, 0.001
  %v4846 = vadd.f32 %v4546, 0.001
  %v4847 = vadd.f32 %v4547, 0.001
  %v4848 = vadd.f32 %v4548, 0.001
  %v4849 = vadd.f32 %v4549, 0.001
  %v4850 = vadd.f32 %v4550, 0.001
  %v4851 = vadd.f32 %v4551, 0.001
  %v4852 = vadd.f32 %v4552, 0.001
  %v4853 = vadd.f32 %v4553, 0.001
  %v4854 = vadd.f32 %v4554, 0.001
  %v4855 = vadd.f32 %v4555, 0.001
  %v4856 = vadd.f32 %v4556, 0.001
  %v4857 = vadd.f32 %v4557, 0.001
  %v4858 = vadd.f32 %v4558, 0.001
  %v4859 = vadd.f32 %v4559, 0.001
  %v4860 = vadd.f32 %v4560, 0.001
  %v4861 = vadd.f32 %v4561, 0.001
  %v4862 = vadd.f32 %v4562, 0.001
  %v4863 = vadd.f32 %v4563, 0.001
  %v4864 = vadd.f32 %v4564, 0.001
  %v4865 = vadd.f32 %v4565, 0.001
  %v4866 = vadd.f32 %v4566, 0.001
  %v4867 = vadd.f32 %v4567, 0.001
  %v4868 = vadd.f32 %v4568, 0.001
  %v4869 = vadd.f32 %v4569, 0.001
  %v4870 = vadd.f32 %v4570, 0.001
  %v4871 = vadd.f32 %v4571, 0.001
  %v4872 = vadd.f32 %v4572, 0.001
  %v4873 = vadd.f32 %v4573, 0.001
  %v4874 = vadd.f32 %v4574, 0.001
  %v4875 = vadd.f32 %v4575, 0.001
  %v4876 = vadd.f32 %v4576, 0.001
  %v4877 = vadd.f32 %v4577, 0.001
  %v4878 = vadd.f32 %v4578, 0.001
  %v4879 = vadd.f32 %v4579, 0.001
  %v4880 = vadd.f32 %v4580, 0.001
  %v4881 = vadd.f32 %v4581, 0.001
  %v4882 = vadd.f32 %v4582, 0.001
  %v4883 = vadd.f32 %v4583, 0.001
  %v4884 = vadd.f32 %v4584, 0.001
  %v4885 = vadd.f32 %v4585, 0.001
  %v4886 = vadd.f32 %v4586, 0.001
  %v4887 = vadd.f32 %v4587, 0.001
  %v4888 = vadd.f32 %v4588, 0.001
  %v4889 = vadd.f32 %v4589, 0.001
  %v4890 = vadd.f32 %v4590, 0.001
  %v4891 = vadd.f32 %v4591, 0.001
  %v4892 = vadd.f32 %v4592, 0.001
  %v4893 = vadd.f32 %v4593, 0.001
  %v4894 = vadd.f32 %v4594, 0.001
  %v4895 = vadd.f32 %v4595, 0.001
  %v4896 = vadd.f32 %v4596, 0.001
  %v4897 = vadd.f32 %v4597, 0.001
  %v4898 = vadd.f32 %v4598, 0.001
  %v4899 = vadd.f32 %v4599, 0.001
  %v4900 = vadd.f32 %v4600, 0.001
  %v4901 = vadd.f32 %v4601, 0.001
  %v4902 = vadd.f32 %v4602, 0.001
  %v4903 = vadd.f32 %v4603, 0.001
  %v4904 = vadd.f32 %v4604, 0.001
  %v4905 = vadd.f32 %v4605, 0.001
  %v4906 = vadd.f32 %v4606, 0.001
  %v4907 = vadd.f32 %v4607, 0.001
  %v4908 = vadd.f32 %v4608, 0.001
  %v4909 = vadd.f32 %v4609, 0.001
  %v4910 = vadd.f32 %v4610, 0.001
  %v4911 = vadd.f32 %v4611, 0.001
  %v4912 = vadd.f32 %v4612, 0.001
  %v4913 = vadd.f32 %v4613, 0.001
  %v4914 = vadd.f32 %v4614, 0.001
  %v4915 = vadd.f32 %v4615, 0.001
  %v4916 = vadd.f32 %v4616, 0.001
  %v4917 = vadd.f32 %v4617, 0.001
  %v4918 = vadd.f32 %v4618, 0.001
  %v4919 = vadd.f32 %v4619, 0.001
  %v4920 = vadd.f32 %v4620, 0.001
  %v4921 = vadd.f32 %v4621, 0.001
  %v4922 = vadd.f32 %v4622, 0.001
  %v4923 = vadd.f32 %v4623, 0.001
  %v4924 = vadd.f32 %v4624, 0.001
  %v4925 = vadd.f32 %v4625, 0.001
  %v4926 = vadd.f32 %v4626, 0.001
  %v4927 = vadd.f32 %v4627, 0.001
  %v4928 = vadd.f32 %v4628, 0.001
  %v4929 = vadd.f32 %v4629, 0.001
  %v4930 = vadd.f32 %v4630, 0.001
  %v4931 = vadd.f32 %v4631, 0.001
  %v4932 = vadd.f32 %v4632, 0.001
  %v4933 = vadd.f32 %v4633, 0.001
  %v4934 = vadd.f32 %v4634, 0.001
  %v4935 = vadd.f32 %v4635, 0.001
  %v4936 = vadd.f32 %v4636, 0.001
  %v4937 = vadd.f32 %v4637, 0.001
  %v4938 = vadd.f32 %v4638, 0.001
  %v4939 = vadd.f32 %v4639, 0.001
  %v4940 = vadd.f32 %v4640, 0.001
  %v4941 = vadd.f32 %v4641, 0.001
  %v4942 = vadd.f32 %v4642, 0.001
  %v4943 = vadd.f32 %v4643, 0.001
  %v4944 = vadd.f32 %v4644, 0.001
  %v4945 = vadd.f32 %v4645, 0.001
  %v4946 = vadd.f32 %v4646, 0.001
  %v4947 = vadd.f32 %v4647, 0.001
  %v4948 = vadd.f32 %v4648, 0.001
  %v4949 = vadd.f32 %v4649, 0.001
  %v4950 = vadd.f32 %v4650, 0.001
  %v4951 = vadd.f32 %v4651, 0.001
  %v4952 = vadd.f32 %v4652, 0.001
  %v4953 = vadd.f32 %v4653, 0.001
  %v4954 = vadd.f32 %v4654, 0.001
  %v4955 = vadd.f32 %v4655, 0.001
  %v4956 = vadd.f32 %v4656, 0.001
  %v4957 = vadd.f32 %v4657, 0.001
  %v4958 = vadd.f32 %v4658, 0.001
  %v4959 = vadd.f32 %v4659, 0.001
  %v4960 = vadd.f32 %v4660, 0.001
  %v4961 = vadd.f32 %v4661, 0.001
  %v4962 = vadd.f32 %v4662, 0.001
  %v4963 = vadd.f32 %v4663, 0.001
  %v4964 = vadd.f32 %v4664, 0.001
  %v4965 = vadd.f32 %v4665, 0.001
  %v4966 = vadd.f32 %v4666, 0.001
  %v4967 = vrsqrt.pop %v4817
  %v4968 = vmul.f32 %v4967, %v4817
  %v4969 = vmul.f32 %v4968, %v4967
  %v4970 = vmul.f32 0.5, %v4969
  %v4971 = vsub.f32 1.5, %v4970
  %v4972 = vmul.f32 %v4967, %v4971
  %vm4973 = vweird.f32 %v4817
  %vm4974 = vweird.f32 %v4967
  %vm4975 = vmor %vm4973, %vm4974
  %v4976 = vsel %vm4975, %v4967, %v4972
  %v4977 = vrsqrt.pop %v4818
  %v4978 = vmul.f32 %v4977, %v4818
  %v4979 = vmul.f32 %v4978, %v4977
  %v4980 = vmul.f32 0.5, %v4979
  %v4981 = vsub.f32 1.5, %v4980
  %v4982 = vmul.f32 %v4977, %v4981
  %vm4983 = vweird.f32 %v4818
  %vm4984 = vweird.f32 %v4977
  %vm4985 = vmor %vm4983, %vm4984
  %v4986 = vsel %vm4985, %v4977, %v4982
  %v4987 = vrsqrt.pop %v4819
  %v4988 = vmul.f32 %v4987, %v4819
  %v4989 = vmul.f32 %v4988, %v4987
  %v4990 = vmul.f32 0.5, %v4989
  %v4991 = vsub.f32 1.5, %v4990
  %v4992 = vmul.f32 %v4987, %v4991
  %vm4993 = vweird.f32 %v4819
  %vm4994 = vweird.f32 %v4987
  %vm4995 = vmor %vm4993, %vm4994
  %v4996 = vsel %vm4995, %v4987, %v4992
  %v4997 = vrsqrt.pop %v4820
  %v4998 = vmul.f32 %v4997, %v4820
  %v4999 = vmul.f32 %v4998, %v4997
  %v5000 = vmul.f32 0.5, %v4999
  %v5001 = vsub.f32 1.5, %v5000
  %v5002 = vmul.f32 %v4997, %v5001
  %vm5003 = vweird.f32 %v4820
  %vm5004 = vweird.f32 %v4997
  %vm5005 = vmor %vm5003, %vm5004
  %v5006 = vsel %vm5005, %v4997, %v5002
  %v5007 = vrsqrt.pop %v4821
  %v5008 = vmul.f32 %v5007, %v4821
  %v5009 = vmul.f32 %v5008, %v5007
  %v5010 = vmul.f32 0.5, %v5009
  %v5011 = vsub.f32 1.5, %v5010
  %v5012 = vmul.f32 %v5007, %v5011
  %vm5013 = vweird.f32 %v4821
  %vm5014 = vweird.f32 %v5007
  %vm5015 = vmor %vm5013, %vm5014
  %v5016 = vsel %vm5015, %v5007, %v5012
  %v5017 = vrsqrt.pop %v4822
  %v5018 = vmul.f32 %v5017, %v4822
  %v5019 = vmul.f32 %v5018, %v5017
  %v5020 = vmul.f32 0.5, %v5019
  %v5021 = vsub.f32 1.5, %v5020
  %v5022 = vmul.f32 %v5017, %v5021
  %vm5023 = vweird.f32 %v4822
  %vm5024 = vweird.f32 %v5017
  %vm5025 = vmor %vm5023, %vm5024
  %v5026 = vsel %vm5025, %v5017, %v5022
  %v5027 = vrsqrt.pop %v4823
  %v5028 = vmul.f32 %v5027, %v4823
  %v5029 = vmul.f32 %v5028, %v5027
  %v5030 = vmul.f32 0.5, %v5029
  %v5031 = vsub.f32 1.5, %v5030
  %v5032 = vmul.f32 %v5027, %v5031
  %vm5033 = vweird.f32 %v4823
  %vm5034 = vweird.f32 %v5027
  %vm5035 = vmor %vm5033, %vm5034
  %v5036 = vsel %vm5035, %v5027, %v5032
  %v5037 = vrsqrt.pop %v4824
  %v5038 = vmul.f32 %v5037, %v4824
  %v5039 = vmul.f32 %v5038, %v5037
  %v5040 = vmul.f32 0.5, %v5039
  %v5041 = vsub.f32 1.5, %v5040
  %v5042 = vmul.f32 %v5037, %v5041
  %vm5043 = vweird.f32 %v4824
  %vm5044 = vweird.f32 %v5037
  %vm5045 = vmor %vm5043, %vm5044
  %v5046 = vsel %vm5045, %v5037, %v5042
  %v5047 = vrsqrt.pop %v4825
  %v5048 = vmul.f32 %v5047, %v4825
  %v5049 = vmul.f32 %v5048, %v5047
  %v5050 = vmul.f32 0.5, %v5049
  %v5051 = vsub.f32 1.5, %v5050
  %v5052 = vmul.f32 %v5047, %v5051
  %vm5053 = vweird.f32 %v4825
  %vm5054 = vweird.f32 %v5047
  %vm5055 = vmor %vm5053, %vm5054
  %v5056 = vsel %vm5055, %v5047, %v5052
  %v5057 = vrsqrt.pop %v4826
  %v5058 = vmul.f32 %v5057, %v4826
  %v5059 = vmul.f32 %v5058, %v5057
  %v5060 = vmul.f32 0.5, %v5059
  %v5061 = vsub.f32 1.5, %v5060
  %v5062 = vmul.f32 %v5057, %v5061
  %vm5063 = vweird.f32 %v4826
  %vm5064 = vweird.f32 %v5057
  %vm5065 = vmor %vm5063, %vm5064
  %v5066 = vsel %vm5065, %v5057, %v5062
  %v5067 = vrsqrt.pop %v4827
  %v5068 = vmul.f32 %v5067, %v4827
  %v5069 = vmul.f32 %v5068, %v5067
  %v5070 = vmul.f32 0.5, %v5069
  %v5071 = vsub.f32 1.5, %v5070
  %v5072 = vmul.f32 %v5067, %v5071
  %vm5073 = vweird.f32 %v4827
  %vm5074 = vweird.f32 %v5067
  %vm5075 = vmor %vm5073, %vm5074
  %v5076 = vsel %vm5075, %v5067, %v5072
  %v5077 = vrsqrt.pop %v4828
  %v5078 = vmul.f32 %v5077, %v4828
  %v5079 = vmul.f32 %v5078, %v5077
  %v5080 = vmul.f32 0.5, %v5079
  %v5081 = vsub.f32 1.5, %v5080
  %v5082 = vmul.f32 %v5077, %v5081
  %vm5083 = vweird.f32 %v4828
  %vm5084 = vweird.f32 %v5077
  %vm5085 = vmor %vm5083, %vm5084
  %v5086 = vsel %vm5085, %v5077, %v5082
  %v5087 = vrsqrt.pop %v4829
  %v5088 = vmul.f32 %v5087, %v4829
  %v5089 = vmul.f32 %v5088, %v5087
  %v5090 = vmul.f32 0.5, %v5089
  %v5091 = vsub.f32 1.5, %v5090
  %v5092 = vmul.f32 %v5087, %v5091
  %vm5093 = vweird.f32 %v4829
  %vm5094 = vweird.f32 %v5087
  %vm5095 = vmor %vm5093, %vm5094
  %v5096 = vsel %vm5095, %v5087, %v5092
  %v5097 = vrsqrt.pop %v4830
  %v5098 = vmul.f32 %v5097, %v4830
  %v5099 = vmul.f32 %v5098, %v5097
  %v5100 = vmul.f32 0.5, %v5099
  %v5101 = vsub.f32 1.5, %v5100
  %v5102 = vmul.f32 %v5097, %v5101
  %vm5103 = vweird.f32 %v4830
  %vm5104 = vweird.f32 %v5097
  %vm5105 = vmor %vm5103, %vm5104
  %v5106 = vsel %vm5105, %v5097, %v5102
  %v5107 = vrsqrt.pop %v4831
  %v5108 = vmul.f32 %v5107, %v4831
  %v5109 = vmul.f32 %v5108, %v5107
  %v5110 = vmul.f32 0.5, %v5109
  %v5111 = vsub.f32 1.5, %v5110
  %v5112 = vmul.f32 %v5107, %v5111
  %vm5113 = vweird.f32 %v4831
  %vm5114 = vweird.f32 %v5107
  %vm5115 = vmor %vm5113, %vm5114
  %v5116 = vsel %vm5115, %v5107, %v5112
  %v5117 = vrsqrt.pop %v4832
  %v5118 = vmul.f32 %v5117, %v4832
  %v5119 = vmul.f32 %v5118, %v5117
  %v5120 = vmul.f32 0.5, %v5119
  %v5121 = vsub.f32 1.5, %v5120
  %v5122 = vmul.f32 %v5117, %v5121
  %vm5123 = vweird.f32 %v4832
  %vm5124 = vweird.f32 %v5117
  %vm5125 = vmor %vm5123, %vm5124
  %v5126 = vsel %vm5125, %v5117, %v5122
  %v5127 = vrsqrt.pop %v4833
  %v5128 = vmul.f32 %v5127, %v4833
  %v5129 = vmul.f32 %v5128, %v5127
  %v5130 = vmul.f32 0.5, %v5129
  %v5131 = vsub.f32 1.5, %v5130
  %v5132 = vmul.f32 %v5127, %v5131
  %vm5133 = vweird.f32 %v4833
  %vm5134 = vweird.f32 %v5127
  %vm5135 = vmor %vm5133, %vm5134
  %v5136 = vsel %vm5135, %v5127, %v5132
  %v5137 = vrsqrt.pop %v4834
  %v5138 = vmul.f32 %v5137, %v4834
  %v5139 = vmul.f32 %v5138, %v5137
  %v5140 = vmul.f32 0.5, %v5139
  %v5141 = vsub.f32 1.5, %v5140
  %v5142 = vmul.f32 %v5137, %v5141
  %vm5143 = vweird.f32 %v4834
  %vm5144 = vweird.f32 %v5137
  %vm5145 = vmor %vm5143, %vm5144
  %v5146 = vsel %vm5145, %v5137, %v5142
  %v5147 = vrsqrt.pop %v4835
  %v5148 = vmul.f32 %v5147, %v4835
  %v5149 = vmul.f32 %v5148, %v5147
  %v5150 = vmul.f32 0.5, %v5149
  %v5151 = vsub.f32 1.5, %v5150
  %v5152 = vmul.f32 %v5147, %v5151
  %vm5153 = vweird.f32 %v4835
  %vm5154 = vweird.f32 %v5147
  %vm5155 = vmor %vm5153, %vm5154
  %v5156 = vsel %vm5155, %v5147, %v5152
  %v5157 = vrsqrt.pop %v4836
  %v5158 = vmul.f32 %v5157, %v4836
  %v5159 = vmul.f32 %v5158, %v5157
  %v5160 = vmul.f32 0.5, %v5159
  %v5161 = vsub.f32 1.5, %v5160
  %v5162 = vmul.f32 %v5157, %v5161
  %vm5163 = vweird.f32 %v4836
  %vm5164 = vweird.f32 %v5157
  %vm5165 = vmor %vm5163, %vm5164
  %v5166 = vsel %vm5165, %v5157, %v5162
  %v5167 = vrsqrt.pop %v4837
  %v5168 = vmul.f32 %v5167, %v4837
  %v5169 = vmul.f32 %v5168, %v5167
  %v5170 = vmul.f32 0.5, %v5169
  %v5171 = vsub.f32 1.5, %v5170
  %v5172 = vmul.f32 %v5167, %v5171
  %vm5173 = vweird.f32 %v4837
  %vm5174 = vweird.f32 %v5167
  %vm5175 = vmor %vm5173, %vm5174
  %v5176 = vsel %vm5175, %v5167, %v5172
  %v5177 = vrsqrt.pop %v4838
  %v5178 = vmul.f32 %v5177, %v4838
  %v5179 = vmul.f32 %v5178, %v5177
  %v5180 = vmul.f32 0.5, %v5179
  %v5181 = vsub.f32 1.5, %v5180
  %v5182 = vmul.f32 %v5177, %v5181
  %vm5183 = vweird.f32 %v4838
  %vm5184 = vweird.f32 %v5177
  %vm5185 = vmor %vm5183, %vm5184
  %v5186 = vsel %vm5185, %v5177, %v5182
  %v5187 = vrsqrt.pop %v4839
  %v5188 = vmul.f32 %v5187, %v4839
  %v5189 = vmul.f32 %v5188, %v5187
  %v5190 = vmul.f32 0.5, %v5189
  %v5191 = vsub.f32 1.5, %v5190
  %v5192 = vmul.f32 %v5187, %v5191
  %vm5193 = vweird.f32 %v4839
  %vm5194 = vweird.f32 %v5187
  %vm5195 = vmor %vm5193, %vm5194
  %v5196 = vsel %vm5195, %v5187, %v5192
  %v5197 = vrsqrt.pop %v4840
  %v5198 = vmul.f32 %v5197, %v4840
  %v5199 = vmul.f32 %v5198, %v5197
  %v5200 = vmul.f32 0.5, %v5199
  %v5201 = vsub.f32 1.5, %v5200
  %v5202 = vmul.f32 %v5197, %v5201
  %vm5203 = vweird.f32 %v4840
  %vm5204 = vweird.f32 %v5197
  %vm5205 = vmor %vm5203, %vm5204
  %v5206 = vsel %vm5205, %v5197, %v5202
  %v5207 = vrsqrt.pop %v4841
  %v5208 = vmul.f32 %v5207, %v4841
  %v5209 = vmul.f32 %v5208, %v5207
  %v5210 = vmul.f32 0.5, %v5209
  %v5211 = vsub.f32 1.5, %v5210
  %v5212 = vmul.f32 %v5207, %v5211
  %vm5213 = vweird.f32 %v4841
  %vm5214 = vweird.f32 %v5207
  %vm5215 = vmor %vm5213, %vm5214
  %v5216 = vsel %vm5215, %v5207, %v5212
  %v5217 = vrsqrt.pop %v4842
  %v5218 = vmul.f32 %v5217, %v4842
  %v5219 = vmul.f32 %v5218, %v5217
  %v5220 = vmul.f32 0.5, %v5219
  %v5221 = vsub.f32 1.5, %v5220
  %v5222 = vmul.f32 %v5217, %v5221
  %vm5223 = vweird.f32 %v4842
  %vm5224 = vweird.f32 %v5217
  %vm5225 = vmor %vm5223, %vm5224
  %v5226 = vsel %vm5225, %v5217, %v5222
  %v5227 = vrsqrt.pop %v4843
  %v5228 = vmul.f32 %v5227, %v4843
  %v5229 = vmul.f32 %v5228, %v5227
  %v5230 = vmul.f32 0.5, %v5229
  %v5231 = vsub.f32 1.5, %v5230
  %v5232 = vmul.f32 %v5227, %v5231
  %vm5233 = vweird.f32 %v4843
  %vm5234 = vweird.f32 %v5227
  %vm5235 = vmor %vm5233, %vm5234
  %v5236 = vsel %vm5235, %v5227, %v5232
  %v5237 = vrsqrt.pop %v4844
  %v5238 = vmul.f32 %v5237, %v4844
  %v5239 = vmul.f32 %v5238, %v5237
  %v5240 = vmul.f32 0.5, %v5239
  %v5241 = vsub.f32 1.5, %v5240
  %v5242 = vmul.f32 %v5237, %v5241
  %vm5243 = vweird.f32 %v4844
  %vm5244 = vweird.f32 %v5237
  %vm5245 = vmor %vm5243, %vm5244
  %v5246 = vsel %vm5245, %v5237, %v5242
  %v5247 = vrsqrt.pop %v4845
  %v5248 = vmul.f32 %v5247, %v4845
  %v5249 = vmul.f32 %v5248, %v5247
  %v5250 = vmul.f32 0.5, %v5249
  %v5251 = vsub.f32 1.5, %v5250
  %v5252 = vmul.f32 %v5247, %v5251
  %vm5253 = vweird.f32 %v4845
  %vm5254 = vweird.f32 %v5247
  %vm5255 = vmor %vm5253, %vm5254
  %v5256 = vsel %vm5255, %v5247, %v5252
  %v5257 = vrsqrt.pop %v4846
  %v5258 = vmul.f32 %v5257, %v4846
  %v5259 = vmul.f32 %v5258, %v5257
  %v5260 = vmul.f32 0.5, %v5259
  %v5261 = vsub.f32 1.5, %v5260
  %v5262 = vmul.f32 %v5257, %v5261
  %vm5263 = vweird.f32 %v4846
  %vm5264 = vweird.f32 %v5257
  %vm5265 = vmor %vm5263, %vm5264
  %v5266 = vsel %vm5265, %v5257, %v5262
  %v5267 = vrsqrt.pop %v4847
  %v5268 = vmul.f32 %v5267, %v4847
  %v5269 = vmul.f32 %v5268, %v5267
  %v5270 = vmul.f32 0.5, %v5269
  %v5271 = vsub.f32 1.5, %v5270
  %v5272 = vmul.f32 %v5267, %v5271
  %vm5273 = vweird.f32 %v4847
  %vm5274 = vweird.f32 %v5267
  %vm5275 = vmor %vm5273, %vm5274
  %v5276 = vsel %vm5275, %v5267, %v5272
  %v5277 = vrsqrt.pop %v4848
  %v5278 = vmul.f32 %v5277, %v4848
  %v5279 = vmul.f32 %v5278, %v5277
  %v5280 = vmul.f32 0.5, %v5279
  %v5281 = vsub.f32 1.5, %v5280
  %v5282 = vmul.f32 %v5277, %v5281
  %vm5283 = vweird.f32 %v4848
  %vm5284 = vweird.f32 %v5277
  %vm5285 = vmor %vm5283, %vm5284
  %v5286 = vsel %vm5285, %v5277, %v5282
  %v5287 = vrsqrt.pop %v4849
  %v5288 = vmul.f32 %v5287, %v4849
  %v5289 = vmul.f32 %v5288, %v5287
  %v5290 = vmul.f32 0.5, %v5289
  %v5291 = vsub.f32 1.5, %v5290
  %v5292 = vmul.f32 %v5287, %v5291
  %vm5293 = vweird.f32 %v4849
  %vm5294 = vweird.f32 %v5287
  %vm5295 = vmor %vm5293, %vm5294
  %v5296 = vsel %vm5295, %v5287, %v5292
  %v5297 = vrsqrt.pop %v4850
  %v5298 = vmul.f32 %v5297, %v4850
  %v5299 = vmul.f32 %v5298, %v5297
  %v5300 = vmul.f32 0.5, %v5299
  %v5301 = vsub.f32 1.5, %v5300
  %v5302 = vmul.f32 %v5297, %v5301
  %vm5303 = vweird.f32 %v4850
  %vm5304 = vweird.f32 %v5297
  %vm5305 = vmor %vm5303, %vm5304
  %v5306 = vsel %vm5305, %v5297, %v5302
  %v5307 = vrsqrt.pop %v4851
  %v5308 = vmul.f32 %v5307, %v4851
  %v5309 = vmul.f32 %v5308, %v5307
  %v5310 = vmul.f32 0.5, %v5309
  %v5311 = vsub.f32 1.5, %v5310
  %v5312 = vmul.f32 %v5307, %v5311
  %vm5313 = vweird.f32 %v4851
  %vm5314 = vweird.f32 %v5307
  %vm5315 = vmor %vm5313, %vm5314
  %v5316 = vsel %vm5315, %v5307, %v5312
  %v5317 = vrsqrt.pop %v4852
  %v5318 = vmul.f32 %v5317, %v4852
  %v5319 = vmul.f32 %v5318, %v5317
  %v5320 = vmul.f32 0.5, %v5319
  %v5321 = vsub.f32 1.5, %v5320
  %v5322 = vmul.f32 %v5317, %v5321
  %vm5323 = vweird.f32 %v4852
  %vm5324 = vweird.f32 %v5317
  %vm5325 = vmor %vm5323, %vm5324
  %v5326 = vsel %vm5325, %v5317, %v5322
  %v5327 = vrsqrt.pop %v4853
  %v5328 = vmul.f32 %v5327, %v4853
  %v5329 = vmul.f32 %v5328, %v5327
  %v5330 = vmul.f32 0.5, %v5329
  %v5331 = vsub.f32 1.5, %v5330
  %v5332 = vmul.f32 %v5327, %v5331
  %vm5333 = vweird.f32 %v4853
  %vm5334 = vweird.f32 %v5327
  %vm5335 = vmor %vm5333, %vm5334
  %v5336 = vsel %vm5335, %v5327, %v5332
  %v5337 = vrsqrt.pop %v4854
  %v5338 = vmul.f32 %v5337, %v4854
  %v5339 = vmul.f32 %v5338, %v5337
  %v5340 = vmul.f32 0.5, %v5339
  %v5341 = vsub.f32 1.5, %v5340
  %v5342 = vmul.f32 %v5337, %v5341
  %vm5343 = vweird.f32 %v4854
  %vm5344 = vweird.f32 %v5337
  %vm5345 = vmor %vm5343, %vm5344
  %v5346 = vsel %vm5345, %v5337, %v5342
  %v5347 = vrsqrt.pop %v4855
  %v5348 = vmul.f32 %v5347, %v4855
  %v5349 = vmul.f32 %v5348, %v5347
  %v5350 = vmul.f32 0.5, %v5349
  %v5351 = vsub.f32 1.5, %v5350
  %v5352 = vmul.f32 %v5347, %v5351
  %vm5353 = vweird.f32 %v4855
  %vm5354 = vweird.f32 %v5347
  %vm5355 = vmor %vm5353, %vm5354
  %v5356 = vsel %vm5355, %v5347, %v5352
  %v5357 = vrsqrt.pop %v4856
  %v5358 = vmul.f32 %v5357, %v4856
  %v5359 = vmul.f32 %v5358, %v5357
  %v5360 = vmul.f32 0.5, %v5359
  %v5361 = vsub.f32 1.5, %v5360
  %v5362 = vmul.f32 %v5357, %v5361
  %vm5363 = vweird.f32 %v4856
  %vm5364 = vweird.f32 %v5357
  %vm5365 = vmor %vm5363, %vm5364
  %v5366 = vsel %vm5365, %v5357, %v5362
  %v5367 = vrsqrt.pop %v4857
  %v5368 = vmul.f32 %v5367, %v4857
  %v5369 = vmul.f32 %v5368, %v5367
  %v5370 = vmul.f32 0.5, %v5369
  %v5371 = vsub.f32 1.5, %v5370
  %v5372 = vmul.f32 %v5367, %v5371
  %vm5373 = vweird.f32 %v4857
  %vm5374 = vweird.f32 %v5367
  %vm5375 = vmor %vm5373, %vm5374
  %v5376 = vsel %vm5375, %v5367, %v5372
  %v5377 = vrsqrt.pop %v4858
  %v5378 = vmul.f32 %v5377, %v4858
  %v5379 = vmul.f32 %v5378, %v5377
  %v5380 = vmul.f32 0.5, %v5379
  %v5381 = vsub.f32 1.5, %v5380
  %v5382 = vmul.f32 %v5377, %v5381
  %vm5383 = vweird.f32 %v4858
  %vm5384 = vweird.f32 %v5377
  %vm5385 = vmor %vm5383, %vm5384
  %v5386 = vsel %vm5385, %v5377, %v5382
  %v5387 = vrsqrt.pop %v4859
  %v5388 = vmul.f32 %v5387, %v4859
  %v5389 = vmul.f32 %v5388, %v5387
  %v5390 = vmul.f32 0.5, %v5389
  %v5391 = vsub.f32 1.5, %v5390
  %v5392 = vmul.f32 %v5387, %v5391
  %vm5393 = vweird.f32 %v4859
  %vm5394 = vweird.f32 %v5387
  %vm5395 = vmor %vm5393, %vm5394
  %v5396 = vsel %vm5395, %v5387, %v5392
  %v5397 = vrsqrt.pop %v4860
  %v5398 = vmul.f32 %v5397, %v4860
  %v5399 = vmul.f32 %v5398, %v5397
  %v5400 = vmul.f32 0.5, %v5399
  %v5401 = vsub.f32 1.5, %v5400
  %v5402 = vmul.f32 %v5397, %v5401
  %vm5403 = vweird.f32 %v4860
  %vm5404 = vweird.f32 %v5397
  %vm5405 = vmor %vm5403, %vm5404
  %v5406 = vsel %vm5405, %v5397, %v5402
  %v5407 = vrsqrt.pop %v4861
  %v5408 = vmul.f32 %v5407, %v4861
  %v5409 = vmul.f32 %v5408, %v5407
  %v5410 = vmul.f32 0.5, %v5409
  %v5411 = vsub.f32 1.5, %v5410
  %v5412 = vmul.f32 %v5407, %v5411
  %vm5413 = vweird.f32 %v4861
  %vm5414 = vweird.f32 %v5407
  %vm5415 = vmor %vm5413, %vm5414
  %v5416 = vsel %vm5415, %v5407, %v5412
  %v5417 = vrsqrt.pop %v4862
  %v5418 = vmul.f32 %v5417, %v4862
  %v5419 = vmul.f32 %v5418, %v5417
  %v5420 = vmul.f32 0.5, %v5419
  %v5421 = vsub.f32 1.5, %v5420
  %v5422 = vmul.f32 %v5417, %v5421
  %vm5423 = vweird.f32 %v4862
  %vm5424 = vweird.f32 %v5417
  %vm5425 = vmor %vm5423, %vm5424
  %v5426 = vsel %vm5425, %v5417, %v5422
  %v5427 = vrsqrt.pop %v4863
  %v5428 = vmul.f32 %v5427, %v4863
  %v5429 = vmul.f32 %v5428, %v5427
  %v5430 = vmul.f32 0.5, %v5429
  %v5431 = vsub.f32 1.5, %v5430
  %v5432 = vmul.f32 %v5427, %v5431
  %vm5433 = vweird.f32 %v4863
  %vm5434 = vweird.f32 %v5427
  %vm5435 = vmor %vm5433, %vm5434
  %v5436 = vsel %vm5435, %v5427, %v5432
  %v5437 = vrsqrt.pop %v4864
  %v5438 = vmul.f32 %v5437, %v4864
  %v5439 = vmul.f32 %v5438, %v5437
  %v5440 = vmul.f32 0.5, %v5439
  %v5441 = vsub.f32 1.5, %v5440
  %v5442 = vmul.f32 %v5437, %v5441
  %vm5443 = vweird.f32 %v4864
  %vm5444 = vweird.f32 %v5437
  %vm5445 = vmor %vm5443, %vm5444
  %v5446 = vsel %vm5445, %v5437, %v5442
  %v5447 = vrsqrt.pop %v4865
  %v5448 = vmul.f32 %v5447, %v4865
  %v5449 = vmul.f32 %v5448, %v5447
  %v5450 = vmul.f32 0.5, %v5449
  %v5451 = vsub.f32 1.5, %v5450
  %v5452 = vmul.f32 %v5447, %v5451
  %vm5453 = vweird.f32 %v4865
  %vm5454 = vweird.f32 %v5447
  %vm5455 = vmor %vm5453, %vm5454
  %v5456 = vsel %vm5455, %v5447, %v5452
  %v5457 = vrsqrt.pop %v4866
  %v5458 = vmul.f32 %v5457, %v4866
  %v5459 = vmul.f32 %v5458, %v5457
  %v5460 = vmul.f32 0.5, %v5459
  %v5461 = vsub.f32 1.5, %v5460
  %v5462 = vmul.f32 %v5457, %v5461
  %vm5463 = vweird.f32 %v4866
  %vm5464 = vweird.f32 %v5457
  %vm5465 = vmor %vm5463, %vm5464
  %v5466 = vsel %vm5465, %v5457, %v5462
  %v5467 = vrsqrt.pop %v4867
  %v5468 = vmul.f32 %v5467, %v4867
  %v5469 = vmul.f32 %v5468, %v5467
  %v5470 = vmul.f32 0.5, %v5469
  %v5471 = vsub.f32 1.5, %v5470
  %v5472 = vmul.f32 %v5467, %v5471
  %vm5473 = vweird.f32 %v4867
  %vm5474 = vweird.f32 %v5467
  %vm5475 = vmor %vm5473, %vm5474
  %v5476 = vsel %vm5475, %v5467, %v5472
  %v5477 = vrsqrt.pop %v4868
  %v5478 = vmul.f32 %v5477, %v4868
  %v5479 = vmul.f32 %v5478, %v5477
  %v5480 = vmul.f32 0.5, %v5479
  %v5481 = vsub.f32 1.5, %v5480
  %v5482 = vmul.f32 %v5477, %v5481
  %vm5483 = vweird.f32 %v4868
  %vm5484 = vweird.f32 %v5477
  %vm5485 = vmor %vm5483, %vm5484
  %v5486 = vsel %vm5485, %v5477, %v5482
  %v5487 = vrsqrt.pop %v4869
  %v5488 = vmul.f32 %v5487, %v4869
  %v5489 = vmul.f32 %v5488, %v5487
  %v5490 = vmul.f32 0.5, %v5489
  %v5491 = vsub.f32 1.5, %v5490
  %v5492 = vmul.f32 %v5487, %v5491
  %vm5493 = vweird.f32 %v4869
  %vm5494 = vweird.f32 %v5487
  %vm5495 = vmor %vm5493, %vm5494
  %v5496 = vsel %vm5495, %v5487, %v5492
  %v5497 = vrsqrt.pop %v4870
  %v5498 = vmul.f32 %v5497, %v4870
  %v5499 = vmul.f32 %v5498, %v5497
  %v5500 = vmul.f32 0.5, %v5499
  %v5501 = vsub.f32 1.5, %v5500
  %v5502 = vmul.f32 %v5497, %v5501
  %vm5503 = vweird.f32 %v4870
  %vm5504 = vweird.f32 %v5497
  %vm5505 = vmor %vm5503, %vm5504
  %v5506 = vsel %vm5505, %v5497, %v5502
  %v5507 = vrsqrt.pop %v4871
  %v5508 = vmul.f32 %v5507, %v4871
  %v5509 = vmul.f32 %v5508, %v5507
  %v5510 = vmul.f32 0.5, %v5509
  %v5511 = vsub.f32 1.5, %v5510
  %v5512 = vmul.f32 %v5507, %v5511
  %vm5513 = vweird.f32 %v4871
  %vm5514 = vweird.f32 %v5507
  %vm5515 = vmor %vm5513, %vm5514
  %v5516 = vsel %vm5515, %v5507, %v5512
  %v5517 = vrsqrt.pop %v4872
  %v5518 = vmul.f32 %v5517, %v4872
  %v5519 = vmul.f32 %v5518, %v5517
  %v5520 = vmul.f32 0.5, %v5519
  %v5521 = vsub.f32 1.5, %v5520
  %v5522 = vmul.f32 %v5517, %v5521
  %vm5523 = vweird.f32 %v4872
  %vm5524 = vweird.f32 %v5517
  %vm5525 = vmor %vm5523, %vm5524
  %v5526 = vsel %vm5525, %v5517, %v5522
  %v5527 = vrsqrt.pop %v4873
  %v5528 = vmul.f32 %v5527, %v4873
  %v5529 = vmul.f32 %v5528, %v5527
  %v5530 = vmul.f32 0.5, %v5529
  %v5531 = vsub.f32 1.5, %v5530
  %v5532 = vmul.f32 %v5527, %v5531
  %vm5533 = vweird.f32 %v4873
  %vm5534 = vweird.f32 %v5527
  %vm5535 = vmor %vm5533, %vm5534
  %v5536 = vsel %vm5535, %v5527, %v5532
  %v5537 = vrsqrt.pop %v4874
  %v5538 = vmul.f32 %v5537, %v4874
  %v5539 = vmul.f32 %v5538, %v5537
  %v5540 = vmul.f32 0.5, %v5539
  %v5541 = vsub.f32 1.5, %v5540
  %v5542 = vmul.f32 %v5537, %v5541
  %vm5543 = vweird.f32 %v4874
  %vm5544 = vweird.f32 %v5537
  %vm5545 = vmor %vm5543, %vm5544
  %v5546 = vsel %vm5545, %v5537, %v5542
  %v5547 = vrsqrt.pop %v4875
  %v5548 = vmul.f32 %v5547, %v4875
  %v5549 = vmul.f32 %v5548, %v5547
  %v5550 = vmul.f32 0.5, %v5549
  %v5551 = vsub.f32 1.5, %v5550
  %v5552 = vmul.f32 %v5547, %v5551
  %vm5553 = vweird.f32 %v4875
  %vm5554 = vweird.f32 %v5547
  %vm5555 = vmor %vm5553, %vm5554
  %v5556 = vsel %vm5555, %v5547, %v5552
  %v5557 = vrsqrt.pop %v4876
  %v5558 = vmul.f32 %v5557, %v4876
  %v5559 = vmul.f32 %v5558, %v5557
  %v5560 = vmul.f32 0.5, %v5559
  %v5561 = vsub.f32 1.5, %v5560
  %v5562 = vmul.f32 %v5557, %v5561
  %vm5563 = vweird.f32 %v4876
  %vm5564 = vweird.f32 %v5557
  %vm5565 = vmor %vm5563, %vm5564
  %v5566 = vsel %vm5565, %v5557, %v5562
  %v5567 = vrsqrt.pop %v4877
  %v5568 = vmul.f32 %v5567, %v4877
  %v5569 = vmul.f32 %v5568, %v5567
  %v5570 = vmul.f32 0.5, %v5569
  %v5571 = vsub.f32 1.5, %v5570
  %v5572 = vmul.f32 %v5567, %v5571
  %vm5573 = vweird.f32 %v4877
  %vm5574 = vweird.f32 %v5567
  %vm5575 = vmor %vm5573, %vm5574
  %v5576 = vsel %vm5575, %v5567, %v5572
  %v5577 = vrsqrt.pop %v4878
  %v5578 = vmul.f32 %v5577, %v4878
  %v5579 = vmul.f32 %v5578, %v5577
  %v5580 = vmul.f32 0.5, %v5579
  %v5581 = vsub.f32 1.5, %v5580
  %v5582 = vmul.f32 %v5577, %v5581
  %vm5583 = vweird.f32 %v4878
  %vm5584 = vweird.f32 %v5577
  %vm5585 = vmor %vm5583, %vm5584
  %v5586 = vsel %vm5585, %v5577, %v5582
  %v5587 = vrsqrt.pop %v4879
  %v5588 = vmul.f32 %v5587, %v4879
  %v5589 = vmul.f32 %v5588, %v5587
  %v5590 = vmul.f32 0.5, %v5589
  %v5591 = vsub.f32 1.5, %v5590
  %v5592 = vmul.f32 %v5587, %v5591
  %vm5593 = vweird.f32 %v4879
  %vm5594 = vweird.f32 %v5587
  %vm5595 = vmor %vm5593, %vm5594
  %v5596 = vsel %vm5595, %v5587, %v5592
  %v5597 = vrsqrt.pop %v4880
  %v5598 = vmul.f32 %v5597, %v4880
  %v5599 = vmul.f32 %v5598, %v5597
  %v5600 = vmul.f32 0.5, %v5599
  %v5601 = vsub.f32 1.5, %v5600
  %v5602 = vmul.f32 %v5597, %v5601
  %vm5603 = vweird.f32 %v4880
  %vm5604 = vweird.f32 %v5597
  %vm5605 = vmor %vm5603, %vm5604
  %v5606 = vsel %vm5605, %v5597, %v5602
  %v5607 = vrsqrt.pop %v4881
  %v5608 = vmul.f32 %v5607, %v4881
  %v5609 = vmul.f32 %v5608, %v5607
  %v5610 = vmul.f32 0.5, %v5609
  %v5611 = vsub.f32 1.5, %v5610
  %v5612 = vmul.f32 %v5607, %v5611
  %vm5613 = vweird.f32 %v4881
  %vm5614 = vweird.f32 %v5607
  %vm5615 = vmor %vm5613, %vm5614
  %v5616 = vsel %vm5615, %v5607, %v5612
  %v5617 = vrsqrt.pop %v4882
  %v5618 = vmul.f32 %v5617, %v4882
  %v5619 = vmul.f32 %v5618, %v5617
  %v5620 = vmul.f32 0.5, %v5619
  %v5621 = vsub.f32 1.5, %v5620
  %v5622 = vmul.f32 %v5617, %v5621
  %vm5623 = vweird.f32 %v4882
  %vm5624 = vweird.f32 %v5617
  %vm5625 = vmor %vm5623, %vm5624
  %v5626 = vsel %vm5625, %v5617, %v5622
  %v5627 = vrsqrt.pop %v4883
  %v5628 = vmul.f32 %v5627, %v4883
  %v5629 = vmul.f32 %v5628, %v5627
  %v5630 = vmul.f32 0.5, %v5629
  %v5631 = vsub.f32 1.5, %v5630
  %v5632 = vmul.f32 %v5627, %v5631
  %vm5633 = vweird.f32 %v4883
  %vm5634 = vweird.f32 %v5627
  %vm5635 = vmor %vm5633, %vm5634
  %v5636 = vsel %vm5635, %v5627, %v5632
  %v5637 = vrsqrt.pop %v4884
  %v5638 = vmul.f32 %v5637, %v4884
  %v5639 = vmul.f32 %v5638, %v5637
  %v5640 = vmul.f32 0.5, %v5639
  %v5641 = vsub.f32 1.5, %v5640
  %v5642 = vmul.f32 %v5637, %v5641
  %vm5643 = vweird.f32 %v4884
  %vm5644 = vweird.f32 %v5637
  %vm5645 = vmor %vm5643, %vm5644
  %v5646 = vsel %vm5645, %v5637, %v5642
  %v5647 = vrsqrt.pop %v4885
  %v5648 = vmul.f32 %v5647, %v4885
  %v5649 = vmul.f32 %v5648, %v5647
  %v5650 = vmul.f32 0.5, %v5649
  %v5651 = vsub.f32 1.5, %v5650
  %v5652 = vmul.f32 %v5647, %v5651
  %vm5653 = vweird.f32 %v4885
  %vm5654 = vweird.f32 %v5647
  %vm5655 = vmor %vm5653, %vm5654
  %v5656 = vsel %vm5655, %v5647, %v5652
  %v5657 = vrsqrt.pop %v4886
  %v5658 = vmul.f32 %v5657, %v4886
  %v5659 = vmul.f32 %v5658, %v5657
  %v5660 = vmul.f32 0.5, %v5659
  %v5661 = vsub.f32 1.5, %v5660
  %v5662 = vmul.f32 %v5657, %v5661
  %vm5663 = vweird.f32 %v4886
  %vm5664 = vweird.f32 %v5657
  %vm5665 = vmor %vm5663, %vm5664
  %v5666 = vsel %vm5665, %v5657, %v5662
  %v5667 = vrsqrt.pop %v4887
  %v5668 = vmul.f32 %v5667, %v4887
  %v5669 = vmul.f32 %v5668, %v5667
  %v5670 = vmul.f32 0.5, %v5669
  %v5671 = vsub.f32 1.5, %v5670
  %v5672 = vmul.f32 %v5667, %v5671
  %vm5673 = vweird.f32 %v4887
  %vm5674 = vweird.f32 %v5667
  %vm5675 = vmor %vm5673, %vm5674
  %v5676 = vsel %vm5675, %v5667, %v5672
  %v5677 = vrsqrt.pop %v4888
  %v5678 = vmul.f32 %v5677, %v4888
  %v5679 = vmul.f32 %v5678, %v5677
  %v5680 = vmul.f32 0.5, %v5679
  %v5681 = vsub.f32 1.5, %v5680
  %v5682 = vmul.f32 %v5677, %v5681
  %vm5683 = vweird.f32 %v4888
  %vm5684 = vweird.f32 %v5677
  %vm5685 = vmor %vm5683, %vm5684
  %v5686 = vsel %vm5685, %v5677, %v5682
  %v5687 = vrsqrt.pop %v4889
  %v5688 = vmul.f32 %v5687, %v4889
  %v5689 = vmul.f32 %v5688, %v5687
  %v5690 = vmul.f32 0.5, %v5689
  %v5691 = vsub.f32 1.5, %v5690
  %v5692 = vmul.f32 %v5687, %v5691
  %vm5693 = vweird.f32 %v4889
  %vm5694 = vweird.f32 %v5687
  %vm5695 = vmor %vm5693, %vm5694
  %v5696 = vsel %vm5695, %v5687, %v5692
  %v5697 = vrsqrt.pop %v4890
  %v5698 = vmul.f32 %v5697, %v4890
  %v5699 = vmul.f32 %v5698, %v5697
  %v5700 = vmul.f32 0.5, %v5699
  %v5701 = vsub.f32 1.5, %v5700
  %v5702 = vmul.f32 %v5697, %v5701
  %vm5703 = vweird.f32 %v4890
  %vm5704 = vweird.f32 %v5697
  %vm5705 = vmor %vm5703, %vm5704
  %v5706 = vsel %vm5705, %v5697, %v5702
  %v5707 = vrsqrt.pop %v4891
  %v5708 = vmul.f32 %v5707, %v4891
  %v5709 = vmul.f32 %v5708, %v5707
  %v5710 = vmul.f32 0.5, %v5709
  %v5711 = vsub.f32 1.5, %v5710
  %v5712 = vmul.f32 %v5707, %v5711
  %vm5713 = vweird.f32 %v4891
  %vm5714 = vweird.f32 %v5707
  %vm5715 = vmor %vm5713, %vm5714
  %v5716 = vsel %vm5715, %v5707, %v5712
  %v5717 = vrsqrt.pop %v4892
  %v5718 = vmul.f32 %v5717, %v4892
  %v5719 = vmul.f32 %v5718, %v5717
  %v5720 = vmul.f32 0.5, %v5719
  %v5721 = vsub.f32 1.5, %v5720
  %v5722 = vmul.f32 %v5717, %v5721
  %vm5723 = vweird.f32 %v4892
  %vm5724 = vweird.f32 %v5717
  %vm5725 = vmor %vm5723, %vm5724
  %v5726 = vsel %vm5725, %v5717, %v5722
  %v5727 = vrsqrt.pop %v4893
  %v5728 = vmul.f32 %v5727, %v4893
  %v5729 = vmul.f32 %v5728, %v5727
  %v5730 = vmul.f32 0.5, %v5729
  %v5731 = vsub.f32 1.5, %v5730
  %v5732 = vmul.f32 %v5727, %v5731
  %vm5733 = vweird.f32 %v4893
  %vm5734 = vweird.f32 %v5727
  %vm5735 = vmor %vm5733, %vm5734
  %v5736 = vsel %vm5735, %v5727, %v5732
  %v5737 = vrsqrt.pop %v4894
  %v5738 = vmul.f32 %v5737, %v4894
  %v5739 = vmul.f32 %v5738, %v5737
  %v5740 = vmul.f32 0.5, %v5739
  %v5741 = vsub.f32 1.5, %v5740
  %v5742 = vmul.f32 %v5737, %v5741
  %vm5743 = vweird.f32 %v4894
  %vm5744 = vweird.f32 %v5737
  %vm5745 = vmor %vm5743, %vm5744
  %v5746 = vsel %vm5745, %v5737, %v5742
  %v5747 = vrsqrt.pop %v4895
  %v5748 = vmul.f32 %v5747, %v4895
  %v5749 = vmul.f32 %v5748, %v5747
  %v5750 = vmul.f32 0.5, %v5749
  %v5751 = vsub.f32 1.5, %v5750
  %v5752 = vmul.f32 %v5747, %v5751
  %vm5753 = vweird.f32 %v4895
  %vm5754 = vweird.f32 %v5747
  %vm5755 = vmor %vm5753, %vm5754
  %v5756 = vsel %vm5755, %v5747, %v5752
  %v5757 = vrsqrt.pop %v4896
  %v5758 = vmul.f32 %v5757, %v4896
  %v5759 = vmul.f32 %v5758, %v5757
  %v5760 = vmul.f32 0.5, %v5759
  %v5761 = vsub.f32 1.5, %v5760
  %v5762 = vmul.f32 %v5757, %v5761
  %vm5763 = vweird.f32 %v4896
  %vm5764 = vweird.f32 %v5757
  %vm5765 = vmor %vm5763, %vm5764
  %v5766 = vsel %vm5765, %v5757, %v5762
  %v5767 = vrsqrt.pop %v4897
  %v5768 = vmul.f32 %v5767, %v4897
  %v5769 = vmul.f32 %v5768, %v5767
  %v5770 = vmul.f32 0.5, %v5769
  %v5771 = vsub.f32 1.5, %v5770
  %v5772 = vmul.f32 %v5767, %v5771
  %vm5773 = vweird.f32 %v4897
  %vm5774 = vweird.f32 %v5767
  %vm5775 = vmor %vm5773, %vm5774
  %v5776 = vsel %vm5775, %v5767, %v5772
  %v5777 = vrsqrt.pop %v4898
  %v5778 = vmul.f32 %v5777, %v4898
  %v5779 = vmul.f32 %v5778, %v5777
  %v5780 = vmul.f32 0.5, %v5779
  %v5781 = vsub.f32 1.5, %v5780
  %v5782 = vmul.f32 %v5777, %v5781
  %vm5783 = vweird.f32 %v4898
  %vm5784 = vweird.f32 %v5777
  %vm5785 = vmor %vm5783, %vm5784
  %v5786 = vsel %vm5785, %v5777, %v5782
  %v5787 = vrsqrt.pop %v4899
  %v5788 = vmul.f32 %v5787, %v4899
  %v5789 = vmul.f32 %v5788, %v5787
  %v5790 = vmul.f32 0.5, %v5789
  %v5791 = vsub.f32 1.5, %v5790
  %v5792 = vmul.f32 %v5787, %v5791
  %vm5793 = vweird.f32 %v4899
  %vm5794 = vweird.f32 %v5787
  %vm5795 = vmor %vm5793, %vm5794
  %v5796 = vsel %vm5795, %v5787, %v5792
  %v5797 = vrsqrt.pop %v4900
  %v5798 = vmul.f32 %v5797, %v4900
  %v5799 = vmul.f32 %v5798, %v5797
  %v5800 = vmul.f32 0.5, %v5799
  %v5801 = vsub.f32 1.5, %v5800
  %v5802 = vmul.f32 %v5797, %v5801
  %vm5803 = vweird.f32 %v4900
  %vm5804 = vweird.f32 %v5797
  %vm5805 = vmor %vm5803, %vm5804
  %v5806 = vsel %vm5805, %v5797, %v5802
  %v5807 = vrsqrt.pop %v4901
  %v5808 = vmul.f32 %v5807, %v4901
  %v5809 = vmul.f32 %v5808, %v5807
  %v5810 = vmul.f32 0.5, %v5809
  %v5811 = vsub.f32 1.5, %v5810
  %v5812 = vmul.f32 %v5807, %v5811
  %vm5813 = vweird.f32 %v4901
  %vm5814 = vweird.f32 %v5807
  %vm5815 = vmor %vm5813, %vm5814
  %v5816 = vsel %vm5815, %v5807, %v5812
  %v5817 = vrsqrt.pop %v4902
  %v5818 = vmul.f32 %v5817, %v4902
  %v5819 = vmul.f32 %v5818, %v5817
  %v5820 = vmul.f32 0.5, %v5819
  %v5821 = vsub.f32 1.5, %v5820
  %v5822 = vmul.f32 %v5817, %v5821
  %vm5823 = vweird.f32 %v4902
  %vm5824 = vweird.f32 %v5817
  %vm5825 = vmor %vm5823, %vm5824
  %v5826 = vsel %vm5825, %v5817, %v5822
  %v5827 = vrsqrt.pop %v4903
  %v5828 = vmul.f32 %v5827, %v4903
  %v5829 = vmul.f32 %v5828, %v5827
  %v5830 = vmul.f32 0.5, %v5829
  %v5831 = vsub.f32 1.5, %v5830
  %v5832 = vmul.f32 %v5827, %v5831
  %vm5833 = vweird.f32 %v4903
  %vm5834 = vweird.f32 %v5827
  %vm5835 = vmor %vm5833, %vm5834
  %v5836 = vsel %vm5835, %v5827, %v5832
  %v5837 = vrsqrt.pop %v4904
  %v5838 = vmul.f32 %v5837, %v4904
  %v5839 = vmul.f32 %v5838, %v5837
  %v5840 = vmul.f32 0.5, %v5839
  %v5841 = vsub.f32 1.5, %v5840
  %v5842 = vmul.f32 %v5837, %v5841
  %vm5843 = vweird.f32 %v4904
  %vm5844 = vweird.f32 %v5837
  %vm5845 = vmor %vm5843, %vm5844
  %v5846 = vsel %vm5845, %v5837, %v5842
  %v5847 = vrsqrt.pop %v4905
  %v5848 = vmul.f32 %v5847, %v4905
  %v5849 = vmul.f32 %v5848, %v5847
  %v5850 = vmul.f32 0.5, %v5849
  %v5851 = vsub.f32 1.5, %v5850
  %v5852 = vmul.f32 %v5847, %v5851
  %vm5853 = vweird.f32 %v4905
  %vm5854 = vweird.f32 %v5847
  %vm5855 = vmor %vm5853, %vm5854
  %v5856 = vsel %vm5855, %v5847, %v5852
  %v5857 = vrsqrt.pop %v4906
  %v5858 = vmul.f32 %v5857, %v4906
  %v5859 = vmul.f32 %v5858, %v5857
  %v5860 = vmul.f32 0.5, %v5859
  %v5861 = vsub.f32 1.5, %v5860
  %v5862 = vmul.f32 %v5857, %v5861
  %vm5863 = vweird.f32 %v4906
  %vm5864 = vweird.f32 %v5857
  %vm5865 = vmor %vm5863, %vm5864
  %v5866 = vsel %vm5865, %v5857, %v5862
  %v5867 = vrsqrt.pop %v4907
  %v5868 = vmul.f32 %v5867, %v4907
  %v5869 = vmul.f32 %v5868, %v5867
  %v5870 = vmul.f32 0.5, %v5869
  %v5871 = vsub.f32 1.5, %v5870
  %v5872 = vmul.f32 %v5867, %v5871
  %vm5873 = vweird.f32 %v4907
  %vm5874 = vweird.f32 %v5867
  %vm5875 = vmor %vm5873, %vm5874
  %v5876 = vsel %vm5875, %v5867, %v5872
  %v5877 = vrsqrt.pop %v4908
  %v5878 = vmul.f32 %v5877, %v4908
  %v5879 = vmul.f32 %v5878, %v5877
  %v5880 = vmul.f32 0.5, %v5879
  %v5881 = vsub.f32 1.5, %v5880
  %v5882 = vmul.f32 %v5877, %v5881
  %vm5883 = vweird.f32 %v4908
  %vm5884 = vweird.f32 %v5877
  %vm5885 = vmor %vm5883, %vm5884
  %v5886 = vsel %vm5885, %v5877, %v5882
  %v5887 = vrsqrt.pop %v4909
  %v5888 = vmul.f32 %v5887, %v4909
  %v5889 = vmul.f32 %v5888, %v5887
  %v5890 = vmul.f32 0.5, %v5889
  %v5891 = vsub.f32 1.5, %v5890
  %v5892 = vmul.f32 %v5887, %v5891
  %vm5893 = vweird.f32 %v4909
  %vm5894 = vweird.f32 %v5887
  %vm5895 = vmor %vm5893, %vm5894
  %v5896 = vsel %vm5895, %v5887, %v5892
  %v5897 = vrsqrt.pop %v4910
  %v5898 = vmul.f32 %v5897, %v4910
  %v5899 = vmul.f32 %v5898, %v5897
  %v5900 = vmul.f32 0.5, %v5899
  %v5901 = vsub.f32 1.5, %v5900
  %v5902 = vmul.f32 %v5897, %v5901
  %vm5903 = vweird.f32 %v4910
  %vm5904 = vweird.f32 %v5897
  %vm5905 = vmor %vm5903, %vm5904
  %v5906 = vsel %vm5905, %v5897, %v5902
  %v5907 = vrsqrt.pop %v4911
  %v5908 = vmul.f32 %v5907, %v4911
  %v5909 = vmul.f32 %v5908, %v5907
  %v5910 = vmul.f32 0.5, %v5909
  %v5911 = vsub.f32 1.5, %v5910
  %v5912 = vmul.f32 %v5907, %v5911
  %vm5913 = vweird.f32 %v4911
  %vm5914 = vweird.f32 %v5907
  %vm5915 = vmor %vm5913, %vm5914
  %v5916 = vsel %vm5915, %v5907, %v5912
  %v5917 = vrsqrt.pop %v4912
  %v5918 = vmul.f32 %v5917, %v4912
  %v5919 = vmul.f32 %v5918, %v5917
  %v5920 = vmul.f32 0.5, %v5919
  %v5921 = vsub.f32 1.5, %v5920
  %v5922 = vmul.f32 %v5917, %v5921
  %vm5923 = vweird.f32 %v4912
  %vm5924 = vweird.f32 %v5917
  %vm5925 = vmor %vm5923, %vm5924
  %v5926 = vsel %vm5925, %v5917, %v5922
  %v5927 = vrsqrt.pop %v4913
  %v5928 = vmul.f32 %v5927, %v4913
  %v5929 = vmul.f32 %v5928, %v5927
  %v5930 = vmul.f32 0.5, %v5929
  %v5931 = vsub.f32 1.5, %v5930
  %v5932 = vmul.f32 %v5927, %v5931
  %vm5933 = vweird.f32 %v4913
  %vm5934 = vweird.f32 %v5927
  %vm5935 = vmor %vm5933, %vm5934
  %v5936 = vsel %vm5935, %v5927, %v5932
  %v5937 = vrsqrt.pop %v4914
  %v5938 = vmul.f32 %v5937, %v4914
  %v5939 = vmul.f32 %v5938, %v5937
  %v5940 = vmul.f32 0.5, %v5939
  %v5941 = vsub.f32 1.5, %v5940
  %v5942 = vmul.f32 %v5937, %v5941
  %vm5943 = vweird.f32 %v4914
  %vm5944 = vweird.f32 %v5937
  %vm5945 = vmor %vm5943, %vm5944
  %v5946 = vsel %vm5945, %v5937, %v5942
  %v5947 = vrsqrt.pop %v4915
  %v5948 = vmul.f32 %v5947, %v4915
  %v5949 = vmul.f32 %v5948, %v5947
  %v5950 = vmul.f32 0.5, %v5949
  %v5951 = vsub.f32 1.5, %v5950
  %v5952 = vmul.f32 %v5947, %v5951
  %vm5953 = vweird.f32 %v4915
  %vm5954 = vweird.f32 %v5947
  %vm5955 = vmor %vm5953, %vm5954
  %v5956 = vsel %vm5955, %v5947, %v5952
  %v5957 = vrsqrt.pop %v4916
  %v5958 = vmul.f32 %v5957, %v4916
  %v5959 = vmul.f32 %v5958, %v5957
  %v5960 = vmul.f32 0.5, %v5959
  %v5961 = vsub.f32 1.5, %v5960
  %v5962 = vmul.f32 %v5957, %v5961
  %vm5963 = vweird.f32 %v4916
  %vm5964 = vweird.f32 %v5957
  %vm5965 = vmor %vm5963, %vm5964
  %v5966 = vsel %vm5965, %v5957, %v5962
  %v5967 = vrsqrt.pop %v4917
  %v5968 = vmul.f32 %v5967, %v4917
  %v5969 = vmul.f32 %v5968, %v5967
  %v5970 = vmul.f32 0.5, %v5969
  %v5971 = vsub.f32 1.5, %v5970
  %v5972 = vmul.f32 %v5967, %v5971
  %vm5973 = vweird.f32 %v4917
  %vm5974 = vweird.f32 %v5967
  %vm5975 = vmor %vm5973, %vm5974
  %v5976 = vsel %vm5975, %v5967, %v5972
  %v5977 = vrsqrt.pop %v4918
  %v5978 = vmul.f32 %v5977, %v4918
  %v5979 = vmul.f32 %v5978, %v5977
  %v5980 = vmul.f32 0.5, %v5979
  %v5981 = vsub.f32 1.5, %v5980
  %v5982 = vmul.f32 %v5977, %v5981
  %vm5983 = vweird.f32 %v4918
  %vm5984 = vweird.f32 %v5977
  %vm5985 = vmor %vm5983, %vm5984
  %v5986 = vsel %vm5985, %v5977, %v5982
  %v5987 = vrsqrt.pop %v4919
  %v5988 = vmul.f32 %v5987, %v4919
  %v5989 = vmul.f32 %v5988, %v5987
  %v5990 = vmul.f32 0.5, %v5989
  %v5991 = vsub.f32 1.5, %v5990
  %v5992 = vmul.f32 %v5987, %v5991
  %vm5993 = vweird.f32 %v4919
  %vm5994 = vweird.f32 %v5987
  %vm5995 = vmor %vm5993, %vm5994
  %v5996 = vsel %vm5995, %v5987, %v5992
  %v5997 = vrsqrt.pop %v4920
  %v5998 = vmul.f32 %v5997, %v4920
  %v5999 = vmul.f32 %v5998, %v5997
  %v6000 = vmul.f32 0.5, %v5999
  %v6001 = vsub.f32 1.5, %v6000
  %v6002 = vmul.f32 %v5997, %v6001
  %vm6003 = vweird.f32 %v4920
  %vm6004 = vweird.f32 %v5997
  %vm6005 = vmor %vm6003, %vm6004
  %v6006 = vsel %vm6005, %v5997, %v6002
  %v6007 = vrsqrt.pop %v4921
  %v6008 = vmul.f32 %v6007, %v4921
  %v6009 = vmul.f32 %v6008, %v6007
  %v6010 = vmul.f32 0.5, %v6009
  %v6011 = vsub.f32 1.5, %v6010
  %v6012 = vmul.f32 %v6007, %v6011
  %vm6013 = vweird.f32 %v4921
  %vm6014 = vweird.f32 %v6007
  %vm6015 = vmor %vm6013, %vm6014
  %v6016 = vsel %vm6015, %v6007, %v6012
  %v6017 = vrsqrt.pop %v4922
  %v6018 = vmul.f32 %v6017, %v4922
  %v6019 = vmul.f32 %v6018, %v6017
  %v6020 = vmul.f32 0.5, %v6019
  %v6021 = vsub.f32 1.5, %v6020
  %v6022 = vmul.f32 %v6017, %v6021
  %vm6023 = vweird.f32 %v4922
  %vm6024 = vweird.f32 %v6017
  %vm6025 = vmor %vm6023, %vm6024
  %v6026 = vsel %vm6025, %v6017, %v6022
  %v6027 = vrsqrt.pop %v4923
  %v6028 = vmul.f32 %v6027, %v4923
  %v6029 = vmul.f32 %v6028, %v6027
  %v6030 = vmul.f32 0.5, %v6029
  %v6031 = vsub.f32 1.5, %v6030
  %v6032 = vmul.f32 %v6027, %v6031
  %vm6033 = vweird.f32 %v4923
  %vm6034 = vweird.f32 %v6027
  %vm6035 = vmor %vm6033, %vm6034
  %v6036 = vsel %vm6035, %v6027, %v6032
  %v6037 = vrsqrt.pop %v4924
  %v6038 = vmul.f32 %v6037, %v4924
  %v6039 = vmul.f32 %v6038, %v6037
  %v6040 = vmul.f32 0.5, %v6039
  %v6041 = vsub.f32 1.5, %v6040
  %v6042 = vmul.f32 %v6037, %v6041
  %vm6043 = vweird.f32 %v4924
  %vm6044 = vweird.f32 %v6037
  %vm6045 = vmor %vm6043, %vm6044
  %v6046 = vsel %vm6045, %v6037, %v6042
  %v6047 = vrsqrt.pop %v4925
  %v6048 = vmul.f32 %v6047, %v4925
  %v6049 = vmul.f32 %v6048, %v6047
  %v6050 = vmul.f32 0.5, %v6049
  %v6051 = vsub.f32 1.5, %v6050
  %v6052 = vmul.f32 %v6047, %v6051
  %vm6053 = vweird.f32 %v4925
  %vm6054 = vweird.f32 %v6047
  %vm6055 = vmor %vm6053, %vm6054
  %v6056 = vsel %vm6055, %v6047, %v6052
  %v6057 = vrsqrt.pop %v4926
  %v6058 = vmul.f32 %v6057, %v4926
  %v6059 = vmul.f32 %v6058, %v6057
  %v6060 = vmul.f32 0.5, %v6059
  %v6061 = vsub.f32 1.5, %v6060
  %v6062 = vmul.f32 %v6057, %v6061
  %vm6063 = vweird.f32 %v4926
  %vm6064 = vweird.f32 %v6057
  %vm6065 = vmor %vm6063, %vm6064
  %v6066 = vsel %vm6065, %v6057, %v6062
  %v6067 = vrsqrt.pop %v4927
  %v6068 = vmul.f32 %v6067, %v4927
  %v6069 = vmul.f32 %v6068, %v6067
  %v6070 = vmul.f32 0.5, %v6069
  %v6071 = vsub.f32 1.5, %v6070
  %v6072 = vmul.f32 %v6067, %v6071
  %vm6073 = vweird.f32 %v4927
  %vm6074 = vweird.f32 %v6067
  %vm6075 = vmor %vm6073, %vm6074
  %v6076 = vsel %vm6075, %v6067, %v6072
  %v6077 = vrsqrt.pop %v4928
  %v6078 = vmul.f32 %v6077, %v4928
  %v6079 = vmul.f32 %v6078, %v6077
  %v6080 = vmul.f32 0.5, %v6079
  %v6081 = vsub.f32 1.5, %v6080
  %v6082 = vmul.f32 %v6077, %v6081
  %vm6083 = vweird.f32 %v4928
  %vm6084 = vweird.f32 %v6077
  %vm6085 = vmor %vm6083, %vm6084
  %v6086 = vsel %vm6085, %v6077, %v6082
  %v6087 = vrsqrt.pop %v4929
  %v6088 = vmul.f32 %v6087, %v4929
  %v6089 = vmul.f32 %v6088, %v6087
  %v6090 = vmul.f32 0.5, %v6089
  %v6091 = vsub.f32 1.5, %v6090
  %v6092 = vmul.f32 %v6087, %v6091
  %vm6093 = vweird.f32 %v4929
  %vm6094 = vweird.f32 %v6087
  %vm6095 = vmor %vm6093, %vm6094
  %v6096 = vsel %vm6095, %v6087, %v6092
  %v6097 = vrsqrt.pop %v4930
  %v6098 = vmul.f32 %v6097, %v4930
  %v6099 = vmul.f32 %v6098, %v6097
  %v6100 = vmul.f32 0.5, %v6099
  %v6101 = vsub.f32 1.5, %v6100
  %v6102 = vmul.f32 %v6097, %v6101
  %vm6103 = vweird.f32 %v4930
  %vm6104 = vweird.f32 %v6097
  %vm6105 = vmor %vm6103, %vm6104
  %v6106 = vsel %vm6105, %v6097, %v6102
  %v6107 = vrsqrt.pop %v4931
  %v6108 = vmul.f32 %v6107, %v4931
  %v6109 = vmul.f32 %v6108, %v6107
  %v6110 = vmul.f32 0.5, %v6109
  %v6111 = vsub.f32 1.5, %v6110
  %v6112 = vmul.f32 %v6107, %v6111
  %vm6113 = vweird.f32 %v4931
  %vm6114 = vweird.f32 %v6107
  %vm6115 = vmor %vm6113, %vm6114
  %v6116 = vsel %vm6115, %v6107, %v6112
  %v6117 = vrsqrt.pop %v4932
  %v6118 = vmul.f32 %v6117, %v4932
  %v6119 = vmul.f32 %v6118, %v6117
  %v6120 = vmul.f32 0.5, %v6119
  %v6121 = vsub.f32 1.5, %v6120
  %v6122 = vmul.f32 %v6117, %v6121
  %vm6123 = vweird.f32 %v4932
  %vm6124 = vweird.f32 %v6117
  %vm6125 = vmor %vm6123, %vm6124
  %v6126 = vsel %vm6125, %v6117, %v6122
  %v6127 = vrsqrt.pop %v4933
  %v6128 = vmul.f32 %v6127, %v4933
  %v6129 = vmul.f32 %v6128, %v6127
  %v6130 = vmul.f32 0.5, %v6129
  %v6131 = vsub.f32 1.5, %v6130
  %v6132 = vmul.f32 %v6127, %v6131
  %vm6133 = vweird.f32 %v4933
  %vm6134 = vweird.f32 %v6127
  %vm6135 = vmor %vm6133, %vm6134
  %v6136 = vsel %vm6135, %v6127, %v6132
  %v6137 = vrsqrt.pop %v4934
  %v6138 = vmul.f32 %v6137, %v4934
  %v6139 = vmul.f32 %v6138, %v6137
  %v6140 = vmul.f32 0.5, %v6139
  %v6141 = vsub.f32 1.5, %v6140
  %v6142 = vmul.f32 %v6137, %v6141
  %vm6143 = vweird.f32 %v4934
  %vm6144 = vweird.f32 %v6137
  %vm6145 = vmor %vm6143, %vm6144
  %v6146 = vsel %vm6145, %v6137, %v6142
  %v6147 = vrsqrt.pop %v4935
  %v6148 = vmul.f32 %v6147, %v4935
  %v6149 = vmul.f32 %v6148, %v6147
  %v6150 = vmul.f32 0.5, %v6149
  %v6151 = vsub.f32 1.5, %v6150
  %v6152 = vmul.f32 %v6147, %v6151
  %vm6153 = vweird.f32 %v4935
  %vm6154 = vweird.f32 %v6147
  %vm6155 = vmor %vm6153, %vm6154
  %v6156 = vsel %vm6155, %v6147, %v6152
  %v6157 = vrsqrt.pop %v4936
  %v6158 = vmul.f32 %v6157, %v4936
  %v6159 = vmul.f32 %v6158, %v6157
  %v6160 = vmul.f32 0.5, %v6159
  %v6161 = vsub.f32 1.5, %v6160
  %v6162 = vmul.f32 %v6157, %v6161
  %vm6163 = vweird.f32 %v4936
  %vm6164 = vweird.f32 %v6157
  %vm6165 = vmor %vm6163, %vm6164
  %v6166 = vsel %vm6165, %v6157, %v6162
  %v6167 = vrsqrt.pop %v4937
  %v6168 = vmul.f32 %v6167, %v4937
  %v6169 = vmul.f32 %v6168, %v6167
  %v6170 = vmul.f32 0.5, %v6169
  %v6171 = vsub.f32 1.5, %v6170
  %v6172 = vmul.f32 %v6167, %v6171
  %vm6173 = vweird.f32 %v4937
  %vm6174 = vweird.f32 %v6167
  %vm6175 = vmor %vm6173, %vm6174
  %v6176 = vsel %vm6175, %v6167, %v6172
  %v6177 = vrsqrt.pop %v4938
  %v6178 = vmul.f32 %v6177, %v4938
  %v6179 = vmul.f32 %v6178, %v6177
  %v6180 = vmul.f32 0.5, %v6179
  %v6181 = vsub.f32 1.5, %v6180
  %v6182 = vmul.f32 %v6177, %v6181
  %vm6183 = vweird.f32 %v4938
  %vm6184 = vweird.f32 %v6177
  %vm6185 = vmor %vm6183, %vm6184
  %v6186 = vsel %vm6185, %v6177, %v6182
  %v6187 = vrsqrt.pop %v4939
  %v6188 = vmul.f32 %v6187, %v4939
  %v6189 = vmul.f32 %v6188, %v6187
  %v6190 = vmul.f32 0.5, %v6189
  %v6191 = vsub.f32 1.5, %v6190
  %v6192 = vmul.f32 %v6187, %v6191
  %vm6193 = vweird.f32 %v4939
  %vm6194 = vweird.f32 %v6187
  %vm6195 = vmor %vm6193, %vm6194
  %v6196 = vsel %vm6195, %v6187, %v6192
  %v6197 = vrsqrt.pop %v4940
  %v6198 = vmul.f32 %v6197, %v4940
  %v6199 = vmul.f32 %v6198, %v6197
  %v6200 = vmul.f32 0.5, %v6199
  %v6201 = vsub.f32 1.5, %v6200
  %v6202 = vmul.f32 %v6197, %v6201
  %vm6203 = vweird.f32 %v4940
  %vm6204 = vweird.f32 %v6197
  %vm6205 = vmor %vm6203, %vm6204
  %v6206 = vsel %vm6205, %v6197, %v6202
  %v6207 = vrsqrt.pop %v4941
  %v6208 = vmul.f32 %v6207, %v4941
  %v6209 = vmul.f32 %v6208, %v6207
  %v6210 = vmul.f32 0.5, %v6209
  %v6211 = vsub.f32 1.5, %v6210
  %v6212 = vmul.f32 %v6207, %v6211
  %vm6213 = vweird.f32 %v4941
  %vm6214 = vweird.f32 %v6207
  %vm6215 = vmor %vm6213, %vm6214
  %v6216 = vsel %vm6215, %v6207, %v6212
  %v6217 = vrsqrt.pop %v4942
  %v6218 = vmul.f32 %v6217, %v4942
  %v6219 = vmul.f32 %v6218, %v6217
  %v6220 = vmul.f32 0.5, %v6219
  %v6221 = vsub.f32 1.5, %v6220
  %v6222 = vmul.f32 %v6217, %v6221
  %vm6223 = vweird.f32 %v4942
  %vm6224 = vweird.f32 %v6217
  %vm6225 = vmor %vm6223, %vm6224
  %v6226 = vsel %vm6225, %v6217, %v6222
  %v6227 = vrsqrt.pop %v4943
  %v6228 = vmul.f32 %v6227, %v4943
  %v6229 = vmul.f32 %v6228, %v6227
  %v6230 = vmul.f32 0.5, %v6229
  %v6231 = vsub.f32 1.5, %v6230
  %v6232 = vmul.f32 %v6227, %v6231
  %vm6233 = vweird.f32 %v4943
  %vm6234 = vweird.f32 %v6227
  %vm6235 = vmor %vm6233, %vm6234
  %v6236 = vsel %vm6235, %v6227, %v6232
  %v6237 = vrsqrt.pop %v4944
  %v6238 = vmul.f32 %v6237, %v4944
  %v6239 = vmul.f32 %v6238, %v6237
  %v6240 = vmul.f32 0.5, %v6239
  %v6241 = vsub.f32 1.5, %v6240
  %v6242 = vmul.f32 %v6237, %v6241
  %vm6243 = vweird.f32 %v4944
  %vm6244 = vweird.f32 %v6237
  %vm6245 = vmor %vm6243, %vm6244
  %v6246 = vsel %vm6245, %v6237, %v6242
  %v6247 = vrsqrt.pop %v4945
  %v6248 = vmul.f32 %v6247, %v4945
  %v6249 = vmul.f32 %v6248, %v6247
  %v6250 = vmul.f32 0.5, %v6249
  %v6251 = vsub.f32 1.5, %v6250
  %v6252 = vmul.f32 %v6247, %v6251
  %vm6253 = vweird.f32 %v4945
  %vm6254 = vweird.f32 %v6247
  %vm6255 = vmor %vm6253, %vm6254
  %v6256 = vsel %vm6255, %v6247, %v6252
  %v6257 = vrsqrt.pop %v4946
  %v6258 = vmul.f32 %v6257, %v4946
  %v6259 = vmul.f32 %v6258, %v6257
  %v6260 = vmul.f32 0.5, %v6259
  %v6261 = vsub.f32 1.5, %v6260
  %v6262 = vmul.f32 %v6257, %v6261
  %vm6263 = vweird.f32 %v4946
  %vm6264 = vweird.f32 %v6257
  %vm6265 = vmor %vm6263, %vm6264
  %v6266 = vsel %vm6265, %v6257, %v6262
  %v6267 = vrsqrt.pop %v4947
  %v6268 = vmul.f32 %v6267, %v4947
  %v6269 = vmul.f32 %v6268, %v6267
  %v6270 = vmul.f32 0.5, %v6269
  %v6271 = vsub.f32 1.5, %v6270
  %v6272 = vmul.f32 %v6267, %v6271
  %vm6273 = vweird.f32 %v4947
  %vm6274 = vweird.f32 %v6267
  %vm6275 = vmor %vm6273, %vm6274
  %v6276 = vsel %vm6275, %v6267, %v6272
  %v6277 = vrsqrt.pop %v4948
  %v6278 = vmul.f32 %v6277, %v4948
  %v6279 = vmul.f32 %v6278, %v6277
  %v6280 = vmul.f32 0.5, %v6279
  %v6281 = vsub.f32 1.5, %v6280
  %v6282 = vmul.f32 %v6277, %v6281
  %vm6283 = vweird.f32 %v4948
  %vm6284 = vweird.f32 %v6277
  %vm6285 = vmor %vm6283, %vm6284
  %v6286 = vsel %vm6285, %v6277, %v6282
  %v6287 = vrsqrt.pop %v4949
  %v6288 = vmul.f32 %v6287, %v4949
  %v6289 = vmul.f32 %v6288, %v6287
  %v6290 = vmul.f32 0.5, %v6289
  %v6291 = vsub.f32 1.5, %v6290
  %v6292 = vmul.f32 %v6287, %v6291
  %vm6293 = vweird.f32 %v4949
  %vm6294 = vweird.f32 %v6287
  %vm6295 = vmor %vm6293, %vm6294
  %v6296 = vsel %vm6295, %v6287, %v6292
  %v6297 = vrsqrt.pop %v4950
  %v6298 = vmul.f32 %v6297, %v4950
  %v6299 = vmul.f32 %v6298, %v6297
  %v6300 = vmul.f32 0.5, %v6299
  %v6301 = vsub.f32 1.5, %v6300
  %v6302 = vmul.f32 %v6297, %v6301
  %vm6303 = vweird.f32 %v4950
  %vm6304 = vweird.f32 %v6297
  %vm6305 = vmor %vm6303, %vm6304
  %v6306 = vsel %vm6305, %v6297, %v6302
  %v6307 = vrsqrt.pop %v4951
  %v6308 = vmul.f32 %v6307, %v4951
  %v6309 = vmul.f32 %v6308, %v6307
  %v6310 = vmul.f32 0.5, %v6309
  %v6311 = vsub.f32 1.5, %v6310
  %v6312 = vmul.f32 %v6307, %v6311
  %vm6313 = vweird.f32 %v4951
  %vm6314 = vweird.f32 %v6307
  %vm6315 = vmor %vm6313, %vm6314
  %v6316 = vsel %vm6315, %v6307, %v6312
  %v6317 = vrsqrt.pop %v4952
  %v6318 = vmul.f32 %v6317, %v4952
  %v6319 = vmul.f32 %v6318, %v6317
  %v6320 = vmul.f32 0.5, %v6319
  %v6321 = vsub.f32 1.5, %v6320
  %v6322 = vmul.f32 %v6317, %v6321
  %vm6323 = vweird.f32 %v4952
  %vm6324 = vweird.f32 %v6317
  %vm6325 = vmor %vm6323, %vm6324
  %v6326 = vsel %vm6325, %v6317, %v6322
  %v6327 = vrsqrt.pop %v4953
  %v6328 = vmul.f32 %v6327, %v4953
  %v6329 = vmul.f32 %v6328, %v6327
  %v6330 = vmul.f32 0.5, %v6329
  %v6331 = vsub.f32 1.5, %v6330
  %v6332 = vmul.f32 %v6327, %v6331
  %vm6333 = vweird.f32 %v4953
  %vm6334 = vweird.f32 %v6327
  %vm6335 = vmor %vm6333, %vm6334
  %v6336 = vsel %vm6335, %v6327, %v6332
  %v6337 = vrsqrt.pop %v4954
  %v6338 = vmul.f32 %v6337, %v4954
  %v6339 = vmul.f32 %v6338, %v6337
  %v6340 = vmul.f32 0.5, %v6339
  %v6341 = vsub.f32 1.5, %v6340
  %v6342 = vmul.f32 %v6337, %v6341
  %vm6343 = vweird.f32 %v4954
  %vm6344 = vweird.f32 %v6337
  %vm6345 = vmor %vm6343, %vm6344
  %v6346 = vsel %vm6345, %v6337, %v6342
  %v6347 = vrsqrt.pop %v4955
  %v6348 = vmul.f32 %v6347, %v4955
  %v6349 = vmul.f32 %v6348, %v6347
  %v6350 = vmul.f32 0.5, %v6349
  %v6351 = vsub.f32 1.5, %v6350
  %v6352 = vmul.f32 %v6347, %v6351
  %vm6353 = vweird.f32 %v4955
  %vm6354 = vweird.f32 %v6347
  %vm6355 = vmor %vm6353, %vm6354
  %v6356 = vsel %vm6355, %v6347, %v6352
  %v6357 = vrsqrt.pop %v4956
  %v6358 = vmul.f32 %v6357, %v4956
  %v6359 = vmul.f32 %v6358, %v6357
  %v6360 = vmul.f32 0.5, %v6359
  %v6361 = vsub.f32 1.5, %v6360
  %v6362 = vmul.f32 %v6357, %v6361
  %vm6363 = vweird.f32 %v4956
  %vm6364 = vweird.f32 %v6357
  %vm6365 = vmor %vm6363, %vm6364
  %v6366 = vsel %vm6365, %v6357, %v6362
  %v6367 = vrsqrt.pop %v4957
  %v6368 = vmul.f32 %v6367, %v4957
  %v6369 = vmul.f32 %v6368, %v6367
  %v6370 = vmul.f32 0.5, %v6369
  %v6371 = vsub.f32 1.5, %v6370
  %v6372 = vmul.f32 %v6367, %v6371
  %vm6373 = vweird.f32 %v4957
  %vm6374 = vweird.f32 %v6367
  %vm6375 = vmor %vm6373, %vm6374
  %v6376 = vsel %vm6375, %v6367, %v6372
  %v6377 = vrsqrt.pop %v4958
  %v6378 = vmul.f32 %v6377, %v4958
  %v6379 = vmul.f32 %v6378, %v6377
  %v6380 = vmul.f32 0.5, %v6379
  %v6381 = vsub.f32 1.5, %v6380
  %v6382 = vmul.f32 %v6377, %v6381
  %vm6383 = vweird.f32 %v4958
  %vm6384 = vweird.f32 %v6377
  %vm6385 = vmor %vm6383, %vm6384
  %v6386 = vsel %vm6385, %v6377, %v6382
  %v6387 = vrsqrt.pop %v4959
  %v6388 = vmul.f32 %v6387, %v4959
  %v6389 = vmul.f32 %v6388, %v6387
  %v6390 = vmul.f32 0.5, %v6389
  %v6391 = vsub.f32 1.5, %v6390
  %v6392 = vmul.f32 %v6387, %v6391
  %vm6393 = vweird.f32 %v4959
  %vm6394 = vweird.f32 %v6387
  %vm6395 = vmor %vm6393, %vm6394
  %v6396 = vsel %vm6395, %v6387, %v6392
  %v6397 = vrsqrt.pop %v4960
  %v6398 = vmul.f32 %v6397, %v4960
  %v6399 = vmul.f32 %v6398, %v6397
  %v6400 = vmul.f32 0.5, %v6399
  %v6401 = vsub.f32 1.5, %v6400
  %v6402 = vmul.f32 %v6397, %v6401
  %vm6403 = vweird.f32 %v4960
  %vm6404 = vweird.f32 %v6397
  %vm6405 = vmor %vm6403, %vm6404
  %v6406 = vsel %vm6405, %v6397, %v6402
  %v6407 = vrsqrt.pop %v4961
  %v6408 = vmul.f32 %v6407, %v4961
  %v6409 = vmul.f32 %v6408, %v6407
  %v6410 = vmul.f32 0.5, %v6409
  %v6411 = vsub.f32 1.5, %v6410
  %v6412 = vmul.f32 %v6407, %v6411
  %vm6413 = vweird.f32 %v4961
  %vm6414 = vweird.f32 %v6407
  %vm6415 = vmor %vm6413, %vm6414
  %v6416 = vsel %vm6415, %v6407, %v6412
  %v6417 = vrsqrt.pop %v4962
  %v6418 = vmul.f32 %v6417, %v4962
  %v6419 = vmul.f32 %v6418, %v6417
  %v6420 = vmul.f32 0.5, %v6419
  %v6421 = vsub.f32 1.5, %v6420
  %v6422 = vmul.f32 %v6417, %v6421
  %vm6423 = vweird.f32 %v4962
  %vm6424 = vweird.f32 %v6417
  %vm6425 = vmor %vm6423, %vm6424
  %v6426 = vsel %vm6425, %v6417, %v6422
  %v6427 = vrsqrt.pop %v4963
  %v6428 = vmul.f32 %v6427, %v4963
  %v6429 = vmul.f32 %v6428, %v6427
  %v6430 = vmul.f32 0.5, %v6429
  %v6431 = vsub.f32 1.5, %v6430
  %v6432 = vmul.f32 %v6427, %v6431
  %vm6433 = vweird.f32 %v4963
  %vm6434 = vweird.f32 %v6427
  %vm6435 = vmor %vm6433, %vm6434
  %v6436 = vsel %vm6435, %v6427, %v6432
  %v6437 = vrsqrt.pop %v4964
  %v6438 = vmul.f32 %v6437, %v4964
  %v6439 = vmul.f32 %v6438, %v6437
  %v6440 = vmul.f32 0.5, %v6439
  %v6441 = vsub.f32 1.5, %v6440
  %v6442 = vmul.f32 %v6437, %v6441
  %vm6443 = vweird.f32 %v4964
  %vm6444 = vweird.f32 %v6437
  %vm6445 = vmor %vm6443, %vm6444
  %v6446 = vsel %vm6445, %v6437, %v6442
  %v6447 = vrsqrt.pop %v4965
  %v6448 = vmul.f32 %v6447, %v4965
  %v6449 = vmul.f32 %v6448, %v6447
  %v6450 = vmul.f32 0.5, %v6449
  %v6451 = vsub.f32 1.5, %v6450
  %v6452 = vmul.f32 %v6447, %v6451
  %vm6453 = vweird.f32 %v4965
  %vm6454 = vweird.f32 %v6447
  %vm6455 = vmor %vm6453, %vm6454
  %v6456 = vsel %vm6455, %v6447, %v6452
  %v6457 = vrsqrt.pop %v4966
  %v6458 = vmul.f32 %v6457, %v4966
  %v6459 = vmul.f32 %v6458, %v6457
  %v6460 = vmul.f32 0.5, %v6459
  %v6461 = vsub.f32 1.5, %v6460
  %v6462 = vmul.f32 %v6457, %v6461
  %vm6463 = vweird.f32 %v4966
  %vm6464 = vweird.f32 %v6457
  %vm6465 = vmor %vm6463, %vm6464
  %v6466 = vsel %vm6465, %v6457, %v6462
  %v6467 = vmul.f32 %v4667, %v4976
  %v6468 = vmul.f32 %v4668, %v4986
  %v6469 = vmul.f32 %v4669, %v4996
  %v6470 = vmul.f32 %v4670, %v5006
  %v6471 = vmul.f32 %v4671, %v5016
  %v6472 = vmul.f32 %v4672, %v5026
  %v6473 = vmul.f32 %v4673, %v5036
  %v6474 = vmul.f32 %v4674, %v5046
  %v6475 = vmul.f32 %v4675, %v5056
  %v6476 = vmul.f32 %v4676, %v5066
  %v6477 = vmul.f32 %v4677, %v5076
  %v6478 = vmul.f32 %v4678, %v5086
  %v6479 = vmul.f32 %v4679, %v5096
  %v6480 = vmul.f32 %v4680, %v5106
  %v6481 = vmul.f32 %v4681, %v5116
  %v6482 = vmul.f32 %v4682, %v5126
  %v6483 = vmul.f32 %v4683, %v5136
  %v6484 = vmul.f32 %v4684, %v5146
  %v6485 = vmul.f32 %v4685, %v5156
  %v6486 = vmul.f32 %v4686, %v5166
  %v6487 = vmul.f32 %v4687, %v5176
  %v6488 = vmul.f32 %v4688, %v5186
  %v6489 = vmul.f32 %v4689, %v5196
  %v6490 = vmul.f32 %v4690, %v5206
  %v6491 = vmul.f32 %v4691, %v5216
  %v6492 = vmul.f32 %v4692, %v5226
  %v6493 = vmul.f32 %v4693, %v5236
  %v6494 = vmul.f32 %v4694, %v5246
  %v6495 = vmul.f32 %v4695, %v5256
  %v6496 = vmul.f32 %v4696, %v5266
  %v6497 = vmul.f32 %v4697, %v5276
  %v6498 = vmul.f32 %v4698, %v5286
  %v6499 = vmul.f32 %v4699, %v5296
  %v6500 = vmul.f32 %v4700, %v5306
  %v6501 = vmul.f32 %v4701, %v5316
  %v6502 = vmul.f32 %v4702, %v5326
  %v6503 = vmul.f32 %v4703, %v5336
  %v6504 = vmul.f32 %v4704, %v5346
  %v6505 = vmul.f32 %v4705, %v5356
  %v6506 = vmul.f32 %v4706, %v5366
  %v6507 = vmul.f32 %v4707, %v5376
  %v6508 = vmul.f32 %v4708, %v5386
  %v6509 = vmul.f32 %v4709, %v5396
  %v6510 = vmul.f32 %v4710, %v5406
  %v6511 = vmul.f32 %v4711, %v5416
  %v6512 = vmul.f32 %v4712, %v5426
  %v6513 = vmul.f32 %v4713, %v5436
  %v6514 = vmul.f32 %v4714, %v5446
  %v6515 = vmul.f32 %v4715, %v5456
  %v6516 = vmul.f32 %v4716, %v5466
  %v6517 = vmul.f32 %v4717, %v5476
  %v6518 = vmul.f32 %v4718, %v5486
  %v6519 = vmul.f32 %v4719, %v5496
  %v6520 = vmul.f32 %v4720, %v5506
  %v6521 = vmul.f32 %v4721, %v5516
  %v6522 = vmul.f32 %v4722, %v5526
  %v6523 = vmul.f32 %v4723, %v5536
  %v6524 = vmul.f32 %v4724, %v5546
  %v6525 = vmul.f32 %v4725, %v5556
  %v6526 = vmul.f32 %v4726, %v5566
  %v6527 = vmul.f32 %v4727, %v5576
  %v6528 = vmul.f32 %v4728, %v5586
  %v6529 = vmul.f32 %v4729, %v5596
  %v6530 = vmul.f32 %v4730, %v5606
  %v6531 = vmul.f32 %v4731, %v5616
  %v6532 = vmul.f32 %v4732, %v5626
  %v6533 = vmul.f32 %v4733, %v5636
  %v6534 = vmul.f32 %v4734, %v5646
  %v6535 = vmul.f32 %v4735, %v5656
  %v6536 = vmul.f32 %v4736, %v5666
  %v6537 = vmul.f32 %v4737, %v5676
  %v6538 = vmul.f32 %v4738, %v5686
  %v6539 = vmul.f32 %v4739, %v5696
  %v6540 = vmul.f32 %v4740, %v5706
  %v6541 = vmul.f32 %v4741, %v5716
  %v6542 = vmul.f32 %v4742, %v5726
  %v6543 = vmul.f32 %v4743, %v5736
  %v6544 = vmul.f32 %v4744, %v5746
  %v6545 = vmul.f32 %v4745, %v5756
  %v6546 = vmul.f32 %v4746, %v5766
  %v6547 = vmul.f32 %v4747, %v5776
  %v6548 = vmul.f32 %v4748, %v5786
  %v6549 = vmul.f32 %v4749, %v5796
  %v6550 = vmul.f32 %v4750, %v5806
  %v6551 = vmul.f32 %v4751, %v5816
  %v6552 = vmul.f32 %v4752, %v5826
  %v6553 = vmul.f32 %v4753, %v5836
  %v6554 = vmul.f32 %v4754, %v5846
  %v6555 = vmul.f32 %v4755, %v5856
  %v6556 = vmul.f32 %v4756, %v5866
  %v6557 = vmul.f32 %v4757, %v5876
  %v6558 = vmul.f32 %v4758, %v5886
  %v6559 = vmul.f32 %v4759, %v5896
  %v6560 = vmul.f32 %v4760, %v5906
  %v6561 = vmul.f32 %v4761, %v5916
  %v6562 = vmul.f32 %v4762, %v5926
  %v6563 = vmul.f32 %v4763, %v5936
  %v6564 = vmul.f32 %v4764, %v5946
  %v6565 = vmul.f32 %v4765, %v5956
  %v6566 = vmul.f32 %v4766, %v5966
  %v6567 = vmul.f32 %v4767, %v5976
  %v6568 = vmul.f32 %v4768, %v5986
  %v6569 = vmul.f32 %v4769, %v5996
  %v6570 = vmul.f32 %v4770, %v6006
  %v6571 = vmul.f32 %v4771, %v6016
  %v6572 = vmul.f32 %v4772, %v6026
  %v6573 = vmul.f32 %v4773, %v6036
  %v6574 = vmul.f32 %v4774, %v6046
  %v6575 = vmul.f32 %v4775, %v6056
  %v6576 = vmul.f32 %v4776, %v6066
  %v6577 = vmul.f32 %v4777, %v6076
  %v6578 = vmul.f32 %v4778, %v6086
  %v6579 = vmul.f32 %v4779, %v6096
  %v6580 = vmul.f32 %v4780, %v6106
  %v6581 = vmul.f32 %v4781, %v6116
  %v6582 = vmul.f32 %v4782, %v6126
  %v6583 = vmul.f32 %v4783, %v6136
  %v6584 = vmul.f32 %v4784, %v6146
  %v6585 = vmul.f32 %v4785, %v6156
  %v6586 = vmul.f32 %v4786, %v6166
  %v6587 = vmul.f32 %v4787, %v6176
  %v6588 = vmul.f32 %v4788, %v6186
  %v6589 = vmul.f32 %v4789, %v6196
  %v6590 = vmul.f32 %v4790, %v6206
  %v6591 = vmul.f32 %v4791, %v6216
  %v6592 = vmul.f32 %v4792, %v6226
  %v6593 = vmul.f32 %v4793, %v6236
  %v6594 = vmul.f32 %v4794, %v6246
  %v6595 = vmul.f32 %v4795, %v6256
  %v6596 = vmul.f32 %v4796, %v6266
  %v6597 = vmul.f32 %v4797, %v6276
  %v6598 = vmul.f32 %v4798, %v6286
  %v6599 = vmul.f32 %v4799, %v6296
  %v6600 = vmul.f32 %v4800, %v6306
  %v6601 = vmul.f32 %v4801, %v6316
  %v6602 = vmul.f32 %v4802, %v6326
  %v6603 = vmul.f32 %v4803, %v6336
  %v6604 = vmul.f32 %v4804, %v6346
  %v6605 = vmul.f32 %v4805, %v6356
  %v6606 = vmul.f32 %v4806, %v6366
  %v6607 = vmul.f32 %v4807, %v6376
  %v6608 = vmul.f32 %v4808, %v6386
  %v6609 = vmul.f32 %v4809, %v6396
  %v6610 = vmul.f32 %v4810, %v6406
  %v6611 = vmul.f32 %v4811, %v6416
  %v6612 = vmul.f32 %v4812, %v6426
  %v6613 = vmul.f32 %v4813, %v6436
  %v6614 = vmul.f32 %v4814, %v6446
  %v6615 = vmul.f32 %v4815, %v6456
  %v6616 = vmul.f32 %v4816, %v6466
  %v6617 = vld [vmem:[%s4] sm:$0xff]
  %v6618 = vld [vmem:[%s4 + $0x8] sm:$0xff]
  %v6619 = vld [vmem:[%s4 + $0x10] sm:$0xff]
  %v6620 = vld [vmem:[%s4 + $0x18] sm:$0xff]
  %v6621 = vld [vmem:[%s4 + $0x20] sm:$0xff]
  %v6622 = vld [vmem:[%s4 + $0x28] sm:$0xff]
  %v6623 = vld [vmem:[%s4 + $0x30] sm:$0xff]
  %v6624 = vld [vmem:[%s4 + $0x38] sm:$0xff]
  %v6625 = vld [vmem:[%s4 + $0x40] sm:$0xff]
  %v6626 = vld [vmem:[%s4 + $0x48] sm:$0xff]
  %v6627 = vld [vmem:[%s4 + $0x50] sm:$0xff]
  %v6628 = vld [vmem:[%s4 + $0x58] sm:$0xff]
  %v6629 = vld [vmem:[%s4 + $0x60] sm:$0xff]
  %v6630 = vld [vmem:[%s4 + $0x68] sm:$0xff]
  %v6631 = vld [vmem:[%s4 + $0x70] sm:$0xff]
  %v6632 = vld [vmem:[%s4 + $0x78] sm:$0xff]
  %v6633 = vld [vmem:[%s4 + $0x80] sm:$0xff]
  %v6634 = vld [vmem:[%s4 + $0x88] sm:$0xff]
  %v6635 = vld [vmem:[%s4 + $0x90] sm:$0xff]
  %v6636 = vld [vmem:[%s4 + $0x98] sm:$0xff]
  %v6637 = vld [vmem:[%s4 + $0xa0] sm:$0xff]
  %v6638 = vld [vmem:[%s4 + $0xa8] sm:$0xff]
  %v6639 = vld [vmem:[%s4 + $0xb0] sm:$0xff]
  %v6640 = vld [vmem:[%s4 + $0xb8] sm:$0xff]
  %v6641 = vld [vmem:[%s4 + $0xc0] sm:$0xff]
  %v6642 = vld [vmem:[%s4 + $0xc8] sm:$0xff]
  %v6643 = vld [vmem:[%s4 + $0xd0] sm:$0xff]
  %v6644 = vld [vmem:[%s4 + $0xd8] sm:$0xff]
  %v6645 = vld [vmem:[%s4 + $0xe0] sm:$0xff]
  %v6646 = vld [vmem:[%s4 + $0xe8] sm:$0xff]
  %v6647 = vld [vmem:[%s4 + $0xf0] sm:$0xff]
  %v6648 = vld [vmem:[%s4 + $0xf8] sm:$0xff]
  %v6649 = vld [vmem:[%s4 + $0x100] sm:$0xff]
  %v6650 = vld [vmem:[%s4 + $0x108] sm:$0xff]
  %v6651 = vld [vmem:[%s4 + $0x110] sm:$0xff]
  %v6652 = vld [vmem:[%s4 + $0x118] sm:$0xff]
  %v6653 = vld [vmem:[%s4 + $0x120] sm:$0xff]
  %v6654 = vld [vmem:[%s4 + $0x128] sm:$0xff]
  %v6655 = vld [vmem:[%s4 + $0x130] sm:$0xff]
  %v6656 = vld [vmem:[%s4 + $0x138] sm:$0xff]
  %v6657 = vld [vmem:[%s4 + $0x140] sm:$0xff]
  %v6658 = vld [vmem:[%s4 + $0x148] sm:$0xff]
  %v6659 = vld [vmem:[%s4 + $0x150] sm:$0xff]
  %v6660 = vld [vmem:[%s4 + $0x158] sm:$0xff]
  %v6661 = vld [vmem:[%s4 + $0x160] sm:$0xff]
  %v6662 = vld [vmem:[%s4 + $0x168] sm:$0xff]
  %v6663 = vld [vmem:[%s4 + $0x170] sm:$0xff]
  %v6664 = vld [vmem:[%s4 + $0x178] sm:$0xff]
  %v6665 = vld [vmem:[%s4 + $0x180] sm:$0xff]
  %v6666 = vld [vmem:[%s4 + $0x188] sm:$0xff]
  %v6667 = vld [vmem:[%s4 + $0x190] sm:$0xff]
  %v6668 = vld [vmem:[%s4 + $0x198] sm:$0xff]
  %v6669 = vld [vmem:[%s4 + $0x1a0] sm:$0xff]
  %v6670 = vld [vmem:[%s4 + $0x1a8] sm:$0xff]
  %v6671 = vld [vmem:[%s4 + $0x1b0] sm:$0xff]
  %v6672 = vld [vmem:[%s4 + $0x1b8] sm:$0xff]
  %v6673 = vld [vmem:[%s4 + $0x1c0] sm:$0xff]
  %v6674 = vld [vmem:[%s4 + $0x1c8] sm:$0xff]
  %v6675 = vld [vmem:[%s4 + $0x1d0] sm:$0xff]
  %v6676 = vld [vmem:[%s4 + $0x1d8] sm:$0xff]
  %v6677 = vld [vmem:[%s4 + $0x1e0] sm:$0xff]
  %v6678 = vld [vmem:[%s4 + $0x1e8] sm:$0xff]
  %v6679 = vld [vmem:[%s4 + $0x1f0] sm:$0xff]
  %v6680 = vld [vmem:[%s4 + $0x1f8] sm:$0xff]
  %v6681 = vld [vmem:[%s4 + $0x200] sm:$0xff]
  %v6682 = vld [vmem:[%s4 + $0x208] sm:$0xff]
  %v6683 = vld [vmem:[%s4 + $0x210] sm:$0xff]
  %v6684 = vld [vmem:[%s4 + $0x218] sm:$0xff]
  %v6685 = vld [vmem:[%s4 + $0x220] sm:$0xff]
  %v6686 = vld [vmem:[%s4 + $0x228] sm:$0xff]
  %v6687 = vld [vmem:[%s4 + $0x230] sm:$0xff]
  %v6688 = vld [vmem:[%s4 + $0x238] sm:$0xff]
  %v6689 = vld [vmem:[%s4 + $0x240] sm:$0xff]
  %v6690 = vld [vmem:[%s4 + $0x248] sm:$0xff]
  %v6691 = vld [vmem:[%s4 + $0x250] sm:$0xff]
  %v6692 = vld [vmem:[%s4 + $0x258] sm:$0xff]
  %v6693 = vld [vmem:[%s4 + $0x260] sm:$0xff]
  %v6694 = vld [vmem:[%s4 + $0x268] sm:$0xff]
  %v6695 = vld [vmem:[%s4 + $0x270] sm:$0xff]
  %v6696 = vld [vmem:[%s4 + $0x278] sm:$0xff]
  %v6697 = vld [vmem:[%s4 + $0x280] sm:$0xff]
  %v6698 = vld [vmem:[%s4 + $0x288] sm:$0xff]
  %v6699 = vld [vmem:[%s4 + $0x290] sm:$0xff]
  %v6700 = vld [vmem:[%s4 + $0x298] sm:$0xff]
  %v6701 = vld [vmem:[%s4 + $0x2a0] sm:$0xff]
  %v6702 = vld [vmem:[%s4 + $0x2a8] sm:$0xff]
  %v6703 = vld [vmem:[%s4 + $0x2b0] sm:$0xff]
  %v6704 = vld [vmem:[%s4 + $0x2b8] sm:$0xff]
  %v6705 = vld [vmem:[%s4 + $0x2c0] sm:$0xff]
  %v6706 = vld [vmem:[%s4 + $0x2c8] sm:$0xff]
  %v6707 = vld [vmem:[%s4 + $0x2d0] sm:$0xff]
  %v6708 = vld [vmem:[%s4 + $0x2d8] sm:$0xff]
  %v6709 = vld [vmem:[%s4 + $0x2e0] sm:$0xff]
  %v6710 = vld [vmem:[%s4 + $0x2e8] sm:$0xff]
  %v6711 = vld [vmem:[%s4 + $0x2f0] sm:$0xff]
  %v6712 = vld [vmem:[%s4 + $0x2f8] sm:$0xff]
  %v6713 = vld [vmem:[%s4 + $0x300] sm:$0xff]
  %v6714 = vld [vmem:[%s4 + $0x308] sm:$0xff]
  %v6715 = vld [vmem:[%s4 + $0x310] sm:$0xff]
  %v6716 = vld [vmem:[%s4 + $0x318] sm:$0xff]
  %v6717 = vld [vmem:[%s4 + $0x320] sm:$0xff]
  %v6718 = vld [vmem:[%s4 + $0x328] sm:$0xff]
  %v6719 = vld [vmem:[%s4 + $0x330] sm:$0xff]
  %v6720 = vld [vmem:[%s4 + $0x338] sm:$0xff]
  %v6721 = vld [vmem:[%s4 + $0x340] sm:$0xff]
  %v6722 = vld [vmem:[%s4 + $0x348] sm:$0xff]
  %v6723 = vld [vmem:[%s4 + $0x350] sm:$0xff]
  %v6724 = vld [vmem:[%s4 + $0x358] sm:$0xff]
  %v6725 = vld [vmem:[%s4 + $0x360] sm:$0xff]
  %v6726 = vld [vmem:[%s4 + $0x368] sm:$0xff]
  %v6727 = vld [vmem:[%s4 + $0x370] sm:$0xff]
  %v6728 = vld [vmem:[%s4 + $0x378] sm:$0xff]
  %v6729 = vld [vmem:[%s4 + $0x380] sm:$0xff]
  %v6730 = vld [vmem:[%s4 + $0x388] sm:$0xff]
  %v6731 = vld [vmem:[%s4 + $0x390] sm:$0xff]
  %v6732 = vld [vmem:[%s4 + $0x398] sm:$0xff]
  %v6733 = vld [vmem:[%s4 + $0x3a0] sm:$0xff]
  %v6734 = vld [vmem:[%s4 + $0x3a8] sm:$0xff]
  %v6735 = vld [vmem:[%s4 + $0x3b0] sm:$0xff]
  %v6736 = vld [vmem:[%s4 + $0x3b8] sm:$0xff]
  %v6737 = vld [vmem:[%s4 + $0x3c0] sm:$0xff]
  %v6738 = vld [vmem:[%s4 + $0x3c8] sm:$0xff]
  %v6739 = vld [vmem:[%s4 + $0x3d0] sm:$0xff]
  %v6740 = vld [vmem:[%s4 + $0x3d8] sm:$0xff]
  %v6741 = vld [vmem:[%s4 + $0x3e0] sm:$0xff]
  %v6742 = vld [vmem:[%s4 + $0x3e8] sm:$0xff]
  %v6743 = vld [vmem:[%s4 + $0x3f0] sm:$0xff]
  %v6744 = vld [vmem:[%s4 + $0x3f8] sm:$0xff]
  %v6745 = vld [vmem:[%s4 + $0x400] sm:$0xff]
  %v6746 = vld [vmem:[%s4 + $0x408] sm:$0xff]
  %v6747 = vld [vmem:[%s4 + $0x410] sm:$0xff]
  %v6748 = vld [vmem:[%s4 + $0x418] sm:$0xff]
  %v6749 = vld [vmem:[%s4 + $0x420] sm:$0xff]
  %v6750 = vld [vmem:[%s4 + $0x428] sm:$0xff]
  %v6751 = vld [vmem:[%s4 + $0x430] sm:$0xff]
  %v6752 = vld [vmem:[%s4 + $0x438] sm:$0xff]
  %v6753 = vld [vmem:[%s4 + $0x440] sm:$0xff]
  %v6754 = vld [vmem:[%s4 + $0x448] sm:$0xff]
  %v6755 = vld [vmem:[%s4 + $0x450] sm:$0xff]
  %v6756 = vld [vmem:[%s4 + $0x458] sm:$0xff]
  %v6757 = vld [vmem:[%s4 + $0x460] sm:$0xff]
  %v6758 = vld [vmem:[%s4 + $0x468] sm:$0xff]
  %v6759 = vld [vmem:[%s4 + $0x470] sm:$0xff]
  %v6760 = vld [vmem:[%s4 + $0x478] sm:$0xff]
  %v6761 = vld [vmem:[%s4 + $0x480] sm:$0xff]
  %v6762 = vld [vmem:[%s4 + $0x488] sm:$0xff]
  %v6763 = vld [vmem:[%s4 + $0x490] sm:$0xff]
  %v6764 = vld [vmem:[%s4 + $0x498] sm:$0xff]
  %v6765 = vld [vmem:[%s4 + $0x4a0] sm:$0xff]
  %v6766 = vld [vmem:[%s4 + $0x4a8] sm:$0xff]
  %v6767 = vmul.f32 %v3017, %v6467
  %v6768 = vmul.f32 %v3018, %v6468
  %v6769 = vmul.f32 %v3019, %v6469
  %v6770 = vmul.f32 %v3020, %v6470
  %v6771 = vmul.f32 %v3021, %v6471
  %v6772 = vmul.f32 %v3022, %v6472
  %v6773 = vmul.f32 %v3023, %v6473
  %v6774 = vmul.f32 %v3024, %v6474
  %v6775 = vmul.f32 %v3025, %v6475
  %v6776 = vmul.f32 %v3026, %v6476
  %v6777 = vmul.f32 %v3027, %v6477
  %v6778 = vmul.f32 %v3028, %v6478
  %v6779 = vmul.f32 %v3029, %v6479
  %v6780 = vmul.f32 %v3030, %v6480
  %v6781 = vmul.f32 %v3031, %v6481
  %v6782 = vmul.f32 %v3032, %v6482
  %v6783 = vmul.f32 %v3033, %v6483
  %v6784 = vmul.f32 %v3034, %v6484
  %v6785 = vmul.f32 %v3035, %v6485
  %v6786 = vmul.f32 %v3036, %v6486
  %v6787 = vmul.f32 %v3037, %v6487
  %v6788 = vmul.f32 %v3038, %v6488
  %v6789 = vmul.f32 %v3039, %v6489
  %v6790 = vmul.f32 %v3040, %v6490
  %v6791 = vmul.f32 %v3041, %v6491
  %v6792 = vmul.f32 %v3042, %v6492
  %v6793 = vmul.f32 %v3043, %v6493
  %v6794 = vmul.f32 %v3044, %v6494
  %v6795 = vmul.f32 %v3045, %v6495
  %v6796 = vmul.f32 %v3046, %v6496
  %v6797 = vmul.f32 %v3047, %v6497
  %v6798 = vmul.f32 %v3048, %v6498
  %v6799 = vmul.f32 %v3049, %v6499
  %v6800 = vmul.f32 %v3050, %v6500
  %v6801 = vmul.f32 %v3051, %v6501
  %v6802 = vmul.f32 %v3052, %v6502
  %v6803 = vmul.f32 %v3053, %v6503
  %v6804 = vmul.f32 %v3054, %v6504
  %v6805 = vmul.f32 %v3055, %v6505
  %v6806 = vmul.f32 %v3056, %v6506
  %v6807 = vmul.f32 %v3057, %v6507
  %v6808 = vmul.f32 %v3058, %v6508
  %v6809 = vmul.f32 %v3059, %v6509
  %v6810 = vmul.f32 %v3060, %v6510
  %v6811 = vmul.f32 %v3061, %v6511
  %v6812 = vmul.f32 %v3062, %v6512
  %v6813 = vmul.f32 %v3063, %v6513
  %v6814 = vmul.f32 %v3064, %v6514
  %v6815 = vmul.f32 %v3065, %v6515
  %v6816 = vmul.f32 %v3066, %v6516
  %v6817 = vmul.f32 %v3067, %v6517
  %v6818 = vmul.f32 %v3068, %v6518
  %v6819 = vmul.f32 %v3069, %v6519
  %v6820 = vmul.f32 %v3070, %v6520
  %v6821 = vmul.f32 %v3071, %v6521
  %v6822 = vmul.f32 %v3072, %v6522
  %v6823 = vmul.f32 %v3073, %v6523
  %v6824 = vmul.f32 %v3074, %v6524
  %v6825 = vmul.f32 %v3075, %v6525
  %v6826 = vmul.f32 %v3076, %v6526
  %v6827 = vmul.f32 %v3077, %v6527
  %v6828 = vmul.f32 %v3078, %v6528
  %v6829 = vmul.f32 %v3079, %v6529
  %v6830 = vmul.f32 %v3080, %v6530
  %v6831 = vmul.f32 %v3081, %v6531
  %v6832 = vmul.f32 %v3082, %v6532
  %v6833 = vmul.f32 %v3083, %v6533
  %v6834 = vmul.f32 %v3084, %v6534
  %v6835 = vmul.f32 %v3085, %v6535
  %v6836 = vmul.f32 %v3086, %v6536
  %v6837 = vmul.f32 %v3087, %v6537
  %v6838 = vmul.f32 %v3088, %v6538
  %v6839 = vmul.f32 %v3089, %v6539
  %v6840 = vmul.f32 %v3090, %v6540
  %v6841 = vmul.f32 %v3091, %v6541
  %v6842 = vmul.f32 %v3092, %v6542
  %v6843 = vmul.f32 %v3093, %v6543
  %v6844 = vmul.f32 %v3094, %v6544
  %v6845 = vmul.f32 %v3095, %v6545
  %v6846 = vmul.f32 %v3096, %v6546
  %v6847 = vmul.f32 %v3097, %v6547
  %v6848 = vmul.f32 %v3098, %v6548
  %v6849 = vmul.f32 %v3099, %v6549
  %v6850 = vmul.f32 %v3100, %v6550
  %v6851 = vmul.f32 %v3101, %v6551
  %v6852 = vmul.f32 %v3102, %v6552
  %v6853 = vmul.f32 %v3103, %v6553
  %v6854 = vmul.f32 %v3104, %v6554
  %v6855 = vmul.f32 %v3105, %v6555
  %v6856 = vmul.f32 %v3106, %v6556
  %v6857 = vmul.f32 %v3107, %v6557
  %v6858 = vmul.f32 %v3108, %v6558
  %v6859 = vmul.f32 %v3109, %v6559
  %v6860 = vmul.f32 %v3110, %v6560
  %v6861 = vmul.f32 %v3111, %v6561
  %v6862 = vmul.f32 %v3112, %v6562
  %v6863 = vmul.f32 %v3113, %v6563
  %v6864 = vmul.f32 %v3114, %v6564
  %v6865 = vmul.f32 %v3115, %v6565
  %v6866 = vmul.f32 %v3116, %v6566
  %v6867 = vmul.f32 %v3117, %v6567
  %v6868 = vmul.f32 %v3118, %v6568
  %v6869 = vmul.f32 %v3119, %v6569
  %v6870 = vmul.f32 %v3120, %v6570
  %v6871 = vmul.f32 %v3121, %v6571
  %v6872 = vmul.f32 %v3122, %v6572
  %v6873 = vmul.f32 %v3123, %v6573
  %v6874 = vmul.f32 %v3124, %v6574
  %v6875 = vmul.f32 %v3125, %v6575
  %v6876 = vmul.f32 %v3126, %v6576
  %v6877 = vmul.f32 %v3127, %v6577
  %v6878 = vmul.f32 %v3128, %v6578
  %v6879 = vmul.f32 %v3129, %v6579
  %v6880 = vmul.f32 %v3130, %v6580
  %v6881 = vmul.f32 %v3131, %v6581
  %v6882 = vmul.f32 %v3132, %v6582
  %v6883 = vmul.f32 %v3133, %v6583
  %v6884 = vmul.f32 %v3134, %v6584
  %v6885 = vmul.f32 %v3135, %v6585
  %v6886 = vmul.f32 %v3136, %v6586
  %v6887 = vmul.f32 %v3137, %v6587
  %v6888 = vmul.f32 %v3138, %v6588
  %v6889 = vmul.f32 %v3139, %v6589
  %v6890 = vmul.f32 %v3140, %v6590
  %v6891 = vmul.f32 %v3141, %v6591
  %v6892 = vmul.f32 %v3142, %v6592
  %v6893 = vmul.f32 %v3143, %v6593
  %v6894 = vmul.f32 %v3144, %v6594
  %v6895 = vmul.f32 %v3145, %v6595
  %v6896 = vmul.f32 %v3146, %v6596
  %v6897 = vmul.f32 %v3147, %v6597
  %v6898 = vmul.f32 %v3148, %v6598
  %v6899 = vmul.f32 %v3149, %v6599
  %v6900 = vmul.f32 %v3150, %v6600
  %v6901 = vmul.f32 %v3151, %v6601
  %v6902 = vmul.f32 %v3152, %v6602
  %v6903 = vmul.f32 %v3153, %v6603
  %v6904 = vmul.f32 %v3154, %v6604
  %v6905 = vmul.f32 %v3155, %v6605
  %v6906 = vmul.f32 %v3156, %v6606
  %v6907 = vmul.f32 %v3157, %v6607
  %v6908 = vmul.f32 %v3158, %v6608
  %v6909 = vmul.f32 %v3159, %v6609
  %v6910 = vmul.f32 %v3160, %v6610
  %v6911 = vmul.f32 %v3161, %v6611
  %v6912 = vmul.f32 %v3162, %v6612
  %v6913 = vmul.f32 %v3163, %v6613
  %v6914 = vmul.f32 %v3164, %v6614
  %v6915 = vmul.f32 %v3165, %v6615
  %v6916 = vmul.f32 %v3166, %v6616
  %v6917 = vsub.f32 %v6617, %v6767
  %v6918 = vsub.f32 %v6618, %v6768
  %v6919 = vsub.f32 %v6619, %v6769
  %v6920 = vsub.f32 %v6620, %v6770
  %v6921 = vsub.f32 %v6621, %v6771
  %v6922 = vsub.f32 %v6622, %v6772
  %v6923 = vsub.f32 %v6623, %v6773
  %v6924 = vsub.f32 %v6624, %v6774
  %v6925 = vsub.f32 %v6625, %v6775
  %v6926 = vsub.f32 %v6626, %v6776
  %v6927 = vsub.f32 %v6627, %v6777
  %v6928 = vsub.f32 %v6628, %v6778
  %v6929 = vsub.f32 %v6629, %v6779
  %v6930 = vsub.f32 %v6630, %v6780
  %v6931 = vsub.f32 %v6631, %v6781
  %v6932 = vsub.f32 %v6632, %v6782
  %v6933 = vsub.f32 %v6633, %v6783
  %v6934 = vsub.f32 %v6634, %v6784
  %v6935 = vsub.f32 %v6635, %v6785
  %v6936 = vsub.f32 %v6636, %v6786
  %v6937 = vsub.f32 %v6637, %v6787
  %v6938 = vsub.f32 %v6638, %v6788
  %v6939 = vsub.f32 %v6639, %v6789
  %v6940 = vsub.f32 %v6640, %v6790
  %v6941 = vsub.f32 %v6641, %v6791
  %v6942 = vsub.f32 %v6642, %v6792
  %v6943 = vsub.f32 %v6643, %v6793
  %v6944 = vsub.f32 %v6644, %v6794
  %v6945 = vsub.f32 %v6645, %v6795
  %v6946 = vsub.f32 %v6646, %v6796
  %v6947 = vsub.f32 %v6647, %v6797
  %v6948 = vsub.f32 %v6648, %v6798
  %v6949 = vsub.f32 %v6649, %v6799
  %v6950 = vsub.f32 %v6650, %v6800
  %v6951 = vsub.f32 %v6651, %v6801
  %v6952 = vsub.f32 %v6652, %v6802
  %v6953 = vsub.f32 %v6653, %v6803
  %v6954 = vsub.f32 %v6654, %v6804
  %v6955 = vsub.f32 %v6655, %v6805
  %v6956 = vsub.f32 %v6656, %v6806
  %v6957 = vsub.f32 %v6657, %v6807
  %v6958 = vsub.f32 %v6658, %v6808
  %v6959 = vsub.f32 %v6659, %v6809
  %v6960 = vsub.f32 %v6660, %v6810
  %v6961 = vsub.f32 %v6661, %v6811
  %v6962 = vsub.f32 %v6662, %v6812
  %v6963 = vsub.f32 %v6663, %v6813
  %v6964 = vsub.f32 %v6664, %v6814
  %v6965 = vsub.f32 %v6665, %v6815
  %v6966 = vsub.f32 %v6666, %v6816
  %v6967 = vsub.f32 %v6667, %v6817
  %v6968 = vsub.f32 %v6668, %v6818
  %v6969 = vsub.f32 %v6669, %v6819
  %v6970 = vsub.f32 %v6670, %v6820
  %v6971 = vsub.f32 %v6671, %v6821
  %v6972 = vsub.f32 %v6672, %v6822
  %v6973 = vsub.f32 %v6673, %v6823
  %v6974 = vsub.f32 %v6674, %v6824
  %v6975 = vsub.f32 %v6675, %v6825
  %v6976 = vsub.f32 %v6676, %v6826
  %v6977 = vsub.f32 %v6677, %v6827
  %v6978 = vsub.f32 %v6678, %v6828
  %v6979 = vsub.f32 %v6679, %v6829
  %v6980 = vsub.f32 %v6680, %v6830
  %v6981 = vsub.f32 %v6681, %v6831
  %v6982 = vsub.f32 %v6682, %v6832
  %v6983 = vsub.f32 %v6683, %v6833
  %v6984 = vsub.f32 %v6684, %v6834
  %v6985 = vsub.f32 %v6685, %v6835
  %v6986 = vsub.f32 %v6686, %v6836
  %v6987 = vsub.f32 %v6687, %v6837
  %v6988 = vsub.f32 %v6688, %v6838
  %v6989 = vsub.f32 %v6689, %v6839
  %v6990 = vsub.f32 %v6690, %v6840
  %v6991 = vsub.f32 %v6691, %v6841
  %v6992 = vsub.f32 %v6692, %v6842
  %v6993 = vsub.f32 %v6693, %v6843
  %v6994 = vsub.f32 %v6694, %v6844
  %v6995 = vsub.f32 %v6695, %v6845
  %v6996 = vsub.f32 %v6696, %v6846
  %v6997 = vsub.f32 %v6697, %v6847
  %v6998 = vsub.f32 %v6698, %v6848
  %v6999 = vsub.f32 %v6699, %v6849
  %v7000 = vsub.f32 %v6700, %v6850
  %v7001 = vsub.f32 %v6701, %v6851
  %v7002 = vsub.f32 %v6702, %v6852
  %v7003 = vsub.f32 %v6703, %v6853
  %v7004 = vsub.f32 %v6704, %v6854
  %v7005 = vsub.f32 %v6705, %v6855
  %v7006 = vsub.f32 %v6706, %v6856
  %v7007 = vsub.f32 %v6707, %v6857
  %v7008 = vsub.f32 %v6708, %v6858
  %v7009 = vsub.f32 %v6709, %v6859
  %v7010 = vsub.f32 %v6710, %v6860
  %v7011 = vsub.f32 %v6711, %v6861
  %v7012 = vsub.f32 %v6712, %v6862
  %v7013 = vsub.f32 %v6713, %v6863
  %v7014 = vsub.f32 %v6714, %v6864
  %v7015 = vsub.f32 %v6715, %v6865
  %v7016 = vsub.f32 %v6716, %v6866
  %v7017 = vsub.f32 %v6717, %v6867
  %v7018 = vsub.f32 %v6718, %v6868
  %v7019 = vsub.f32 %v6719, %v6869
  %v7020 = vsub.f32 %v6720, %v6870
  %v7021 = vsub.f32 %v6721, %v6871
  %v7022 = vsub.f32 %v6722, %v6872
  %v7023 = vsub.f32 %v6723, %v6873
  %v7024 = vsub.f32 %v6724, %v6874
  %v7025 = vsub.f32 %v6725, %v6875
  %v7026 = vsub.f32 %v6726, %v6876
  %v7027 = vsub.f32 %v6727, %v6877
  %v7028 = vsub.f32 %v6728, %v6878
  %v7029 = vsub.f32 %v6729, %v6879
  %v7030 = vsub.f32 %v6730, %v6880
  %v7031 = vsub.f32 %v6731, %v6881
  %v7032 = vsub.f32 %v6732, %v6882
  %v7033 = vsub.f32 %v6733, %v6883
  %v7034 = vsub.f32 %v6734, %v6884
  %v7035 = vsub.f32 %v6735, %v6885
  %v7036 = vsub.f32 %v6736, %v6886
  %v7037 = vsub.f32 %v6737, %v6887
  %v7038 = vsub.f32 %v6738, %v6888
  %v7039 = vsub.f32 %v6739, %v6889
  %v7040 = vsub.f32 %v6740, %v6890
  %v7041 = vsub.f32 %v6741, %v6891
  %v7042 = vsub.f32 %v6742, %v6892
  %v7043 = vsub.f32 %v6743, %v6893
  %v7044 = vsub.f32 %v6744, %v6894
  %v7045 = vsub.f32 %v6745, %v6895
  %v7046 = vsub.f32 %v6746, %v6896
  %v7047 = vsub.f32 %v6747, %v6897
  %v7048 = vsub.f32 %v6748, %v6898
  %v7049 = vsub.f32 %v6749, %v6899
  %v7050 = vsub.f32 %v6750, %v6900
  %v7051 = vsub.f32 %v6751, %v6901
  %v7052 = vsub.f32 %v6752, %v6902
  %v7053 = vsub.f32 %v6753, %v6903
  %v7054 = vsub.f32 %v6754, %v6904
  %v7055 = vsub.f32 %v6755, %v6905
  %v7056 = vsub.f32 %v6756, %v6906
  %v7057 = vsub.f32 %v6757, %v6907
  %v7058 = vsub.f32 %v6758, %v6908
  %v7059 = vsub.f32 %v6759, %v6909
  %v7060 = vsub.f32 %v6760, %v6910
  %v7061 = vsub.f32 %v6761, %v6911
  %v7062 = vsub.f32 %v6762, %v6912
  %v7063 = vsub.f32 %v6763, %v6913
  %v7064 = vsub.f32 %v6764, %v6914
  %v7065 = vsub.f32 %v6765, %v6915
  %v7066 = vsub.f32 %v6766, %v6916
  %7068 = vset.pattern.permute.xlu0 0
  %7069 = vperm.xlu0 %7068, %v6467
  %v7070 = vpop.permute.xlu0 %7069
  %7073 = vset.pattern.permute.xlu0 0
  %7074 = vperm.xlu0 %7073, %v6468
  %v7075 = vpop.permute.xlu0 %7074
  %7078 = vset.pattern.permute.xlu0 0
  %7079 = vperm.xlu0 %7078, %v6469
  %v7080 = vpop.permute.xlu0 %7079
  %7083 = vset.pattern.permute.xlu0 0
  %7084 = vperm.xlu0 %7083, %v6470
  %v7085 = vpop.permute.xlu0 %7084
  %7088 = vset.pattern.permute.xlu0 0
  %7089 = vperm.xlu0 %7088, %v6471
  %v7090 = vpop.permute.xlu0 %7089
  %7093 = vset.pattern.permute.xlu0 0
  %7094 = vperm.xlu0 %7093, %v6472
  %v7095 = vpop.permute.xlu0 %7094
  %7098 = vset.pattern.permute.xlu0 0
  %7099 = vperm.xlu0 %7098, %v6473
  %v7100 = vpop.permute.xlu0 %7099
  %7103 = vset.pattern.permute.xlu0 0
  %7104 = vperm.xlu0 %7103, %v6474
  %v7105 = vpop.permute.xlu0 %7104
  %7108 = vset.pattern.permute.xlu0 0
  %7109 = vperm.xlu0 %7108, %v6475
  %v7110 = vpop.permute.xlu0 %7109
  %7113 = vset.pattern.permute.xlu0 0
  %7114 = vperm.xlu0 %7113, %v6476
  %v7115 = vpop.permute.xlu0 %7114
  %7118 = vset.pattern.permute.xlu0 0
  %7119 = vperm.xlu0 %7118, %v6477
  %v7120 = vpop.permute.xlu0 %7119
  %7123 = vset.pattern.permute.xlu0 0
  %7124 = vperm.xlu0 %7123, %v6478
  %v7125 = vpop.permute.xlu0 %7124
  %7128 = vset.pattern.permute.xlu0 0
  %7129 = vperm.xlu0 %7128, %v6479
  %v7130 = vpop.permute.xlu0 %7129
  %7133 = vset.pattern.permute.xlu0 0
  %7134 = vperm.xlu0 %7133, %v6480
  %v7135 = vpop.permute.xlu0 %7134
  %7138 = vset.pattern.permute.xlu0 0
  %7139 = vperm.xlu0 %7138, %v6481
  %v7140 = vpop.permute.xlu0 %7139
  %7143 = vset.pattern.permute.xlu0 0
  %7144 = vperm.xlu0 %7143, %v6482
  %v7145 = vpop.permute.xlu0 %7144
  %7148 = vset.pattern.permute.xlu0 0
  %7149 = vperm.xlu0 %7148, %v6483
  %v7150 = vpop.permute.xlu0 %7149
  %7153 = vset.pattern.permute.xlu0 0
  %7154 = vperm.xlu0 %7153, %v6484
  %v7155 = vpop.permute.xlu0 %7154
  %7158 = vset.pattern.permute.xlu0 0
  %7159 = vperm.xlu0 %7158, %v6485
  %v7160 = vpop.permute.xlu0 %7159
  %7163 = vset.pattern.permute.xlu0 0
  %7164 = vperm.xlu0 %7163, %v6486
  %v7165 = vpop.permute.xlu0 %7164
  %7168 = vset.pattern.permute.xlu0 0
  %7169 = vperm.xlu0 %7168, %v6487
  %v7170 = vpop.permute.xlu0 %7169
  %7173 = vset.pattern.permute.xlu0 0
  %7174 = vperm.xlu0 %7173, %v6488
  %v7175 = vpop.permute.xlu0 %7174
  %7178 = vset.pattern.permute.xlu0 0
  %7179 = vperm.xlu0 %7178, %v6489
  %v7180 = vpop.permute.xlu0 %7179
  %7183 = vset.pattern.permute.xlu0 0
  %7184 = vperm.xlu0 %7183, %v6490
  %v7185 = vpop.permute.xlu0 %7184
  %7188 = vset.pattern.permute.xlu0 0
  %7189 = vperm.xlu0 %7188, %v6491
  %v7190 = vpop.permute.xlu0 %7189
  %7193 = vset.pattern.permute.xlu0 0
  %7194 = vperm.xlu0 %7193, %v6492
  %v7195 = vpop.permute.xlu0 %7194
  %7198 = vset.pattern.permute.xlu0 0
  %7199 = vperm.xlu0 %7198, %v6493
  %v7200 = vpop.permute.xlu0 %7199
  %7203 = vset.pattern.permute.xlu0 0
  %7204 = vperm.xlu0 %7203, %v6494
  %v7205 = vpop.permute.xlu0 %7204
  %7208 = vset.pattern.permute.xlu0 0
  %7209 = vperm.xlu0 %7208, %v6495
  %v7210 = vpop.permute.xlu0 %7209
  %7213 = vset.pattern.permute.xlu0 0
  %7214 = vperm.xlu0 %7213, %v6496
  %v7215 = vpop.permute.xlu0 %7214
  %7218 = vset.pattern.permute.xlu0 0
  %7219 = vperm.xlu0 %7218, %v6497
  %v7220 = vpop.permute.xlu0 %7219
  %7223 = vset.pattern.permute.xlu0 0
  %7224 = vperm.xlu0 %7223, %v6498
  %v7225 = vpop.permute.xlu0 %7224
  %7228 = vset.pattern.permute.xlu0 0
  %7229 = vperm.xlu0 %7228, %v6499
  %v7230 = vpop.permute.xlu0 %7229
  %7233 = vset.pattern.permute.xlu0 0
  %7234 = vperm.xlu0 %7233, %v6500
  %v7235 = vpop.permute.xlu0 %7234
  %7238 = vset.pattern.permute.xlu0 0
  %7239 = vperm.xlu0 %7238, %v6501
  %v7240 = vpop.permute.xlu0 %7239
  %7243 = vset.pattern.permute.xlu0 0
  %7244 = vperm.xlu0 %7243, %v6502
  %v7245 = vpop.permute.xlu0 %7244
  %7248 = vset.pattern.permute.xlu0 0
  %7249 = vperm.xlu0 %7248, %v6503
  %v7250 = vpop.permute.xlu0 %7249
  %7253 = vset.pattern.permute.xlu0 0
  %7254 = vperm.xlu0 %7253, %v6504
  %v7255 = vpop.permute.xlu0 %7254
  %7258 = vset.pattern.permute.xlu0 0
  %7259 = vperm.xlu0 %7258, %v6505
  %v7260 = vpop.permute.xlu0 %7259
  %7263 = vset.pattern.permute.xlu0 0
  %7264 = vperm.xlu0 %7263, %v6506
  %v7265 = vpop.permute.xlu0 %7264
  %7268 = vset.pattern.permute.xlu0 0
  %7269 = vperm.xlu0 %7268, %v6507
  %v7270 = vpop.permute.xlu0 %7269
  %7273 = vset.pattern.permute.xlu0 0
  %7274 = vperm.xlu0 %7273, %v6508
  %v7275 = vpop.permute.xlu0 %7274
  %7278 = vset.pattern.permute.xlu0 0
  %7279 = vperm.xlu0 %7278, %v6509
  %v7280 = vpop.permute.xlu0 %7279
  %7283 = vset.pattern.permute.xlu0 0
  %7284 = vperm.xlu0 %7283, %v6510
  %v7285 = vpop.permute.xlu0 %7284
  %7288 = vset.pattern.permute.xlu0 0
  %7289 = vperm.xlu0 %7288, %v6511
  %v7290 = vpop.permute.xlu0 %7289
  %7293 = vset.pattern.permute.xlu0 0
  %7294 = vperm.xlu0 %7293, %v6512
  %v7295 = vpop.permute.xlu0 %7294
  %7298 = vset.pattern.permute.xlu0 0
  %7299 = vperm.xlu0 %7298, %v6513
  %v7300 = vpop.permute.xlu0 %7299
  %7303 = vset.pattern.permute.xlu0 0
  %7304 = vperm.xlu0 %7303, %v6514
  %v7305 = vpop.permute.xlu0 %7304
  %7308 = vset.pattern.permute.xlu0 0
  %7309 = vperm.xlu0 %7308, %v6515
  %v7310 = vpop.permute.xlu0 %7309
  %7313 = vset.pattern.permute.xlu0 0
  %7314 = vperm.xlu0 %7313, %v6516
  %v7315 = vpop.permute.xlu0 %7314
  %7318 = vset.pattern.permute.xlu0 0
  %7319 = vperm.xlu0 %7318, %v6517
  %v7320 = vpop.permute.xlu0 %7319
  %7323 = vset.pattern.permute.xlu0 0
  %7324 = vperm.xlu0 %7323, %v6518
  %v7325 = vpop.permute.xlu0 %7324
  %7328 = vset.pattern.permute.xlu0 0
  %7329 = vperm.xlu0 %7328, %v6519
  %v7330 = vpop.permute.xlu0 %7329
  %7333 = vset.pattern.permute.xlu0 0
  %7334 = vperm.xlu0 %7333, %v6520
  %v7335 = vpop.permute.xlu0 %7334
  %7338 = vset.pattern.permute.xlu0 0
  %7339 = vperm.xlu0 %7338, %v6521
  %v7340 = vpop.permute.xlu0 %7339
  %7343 = vset.pattern.permute.xlu0 0
  %7344 = vperm.xlu0 %7343, %v6522
  %v7345 = vpop.permute.xlu0 %7344
  %7348 = vset.pattern.permute.xlu0 0
  %7349 = vperm.xlu0 %7348, %v6523
  %v7350 = vpop.permute.xlu0 %7349
  %7353 = vset.pattern.permute.xlu0 0
  %7354 = vperm.xlu0 %7353, %v6524
  %v7355 = vpop.permute.xlu0 %7354
  %7358 = vset.pattern.permute.xlu0 0
  %7359 = vperm.xlu0 %7358, %v6525
  %v7360 = vpop.permute.xlu0 %7359
  %7363 = vset.pattern.permute.xlu0 0
  %7364 = vperm.xlu0 %7363, %v6526
  %v7365 = vpop.permute.xlu0 %7364
  %7368 = vset.pattern.permute.xlu0 0
  %7369 = vperm.xlu0 %7368, %v6527
  %v7370 = vpop.permute.xlu0 %7369
  %7373 = vset.pattern.permute.xlu0 0
  %7374 = vperm.xlu0 %7373, %v6528
  %v7375 = vpop.permute.xlu0 %7374
  %7378 = vset.pattern.permute.xlu0 0
  %7379 = vperm.xlu0 %7378, %v6529
  %v7380 = vpop.permute.xlu0 %7379
  %7383 = vset.pattern.permute.xlu0 0
  %7384 = vperm.xlu0 %7383, %v6530
  %v7385 = vpop.permute.xlu0 %7384
  %7388 = vset.pattern.permute.xlu0 0
  %7389 = vperm.xlu0 %7388, %v6531
  %v7390 = vpop.permute.xlu0 %7389
  %7393 = vset.pattern.permute.xlu0 0
  %7394 = vperm.xlu0 %7393, %v6532
  %v7395 = vpop.permute.xlu0 %7394
  %7398 = vset.pattern.permute.xlu0 0
  %7399 = vperm.xlu0 %7398, %v6533
  %v7400 = vpop.permute.xlu0 %7399
  %7403 = vset.pattern.permute.xlu0 0
  %7404 = vperm.xlu0 %7403, %v6534
  %v7405 = vpop.permute.xlu0 %7404
  %7408 = vset.pattern.permute.xlu0 0
  %7409 = vperm.xlu0 %7408, %v6535
  %v7410 = vpop.permute.xlu0 %7409
  %7413 = vset.pattern.permute.xlu0 0
  %7414 = vperm.xlu0 %7413, %v6536
  %v7415 = vpop.permute.xlu0 %7414
  %7418 = vset.pattern.permute.xlu0 0
  %7419 = vperm.xlu0 %7418, %v6537
  %v7420 = vpop.permute.xlu0 %7419
  %7423 = vset.pattern.permute.xlu0 0
  %7424 = vperm.xlu0 %7423, %v6538
  %v7425 = vpop.permute.xlu0 %7424
  %7428 = vset.pattern.permute.xlu0 0
  %7429 = vperm.xlu0 %7428, %v6539
  %v7430 = vpop.permute.xlu0 %7429
  %7433 = vset.pattern.permute.xlu0 0
  %7434 = vperm.xlu0 %7433, %v6540
  %v7435 = vpop.permute.xlu0 %7434
  %7438 = vset.pattern.permute.xlu0 0
  %7439 = vperm.xlu0 %7438, %v6541
  %v7440 = vpop.permute.xlu0 %7439
  %7443 = vset.pattern.permute.xlu0 0
  %7444 = vperm.xlu0 %7443, %v6542
  %v7445 = vpop.permute.xlu0 %7444
  %7448 = vset.pattern.permute.xlu0 0
  %7449 = vperm.xlu0 %7448, %v6543
  %v7450 = vpop.permute.xlu0 %7449
  %7453 = vset.pattern.permute.xlu0 0
  %7454 = vperm.xlu0 %7453, %v6544
  %v7455 = vpop.permute.xlu0 %7454
  %7458 = vset.pattern.permute.xlu0 0
  %7459 = vperm.xlu0 %7458, %v6545
  %v7460 = vpop.permute.xlu0 %7459
  %7463 = vset.pattern.permute.xlu0 0
  %7464 = vperm.xlu0 %7463, %v6546
  %v7465 = vpop.permute.xlu0 %7464
  %7468 = vset.pattern.permute.xlu0 0
  %7469 = vperm.xlu0 %7468, %v6547
  %v7470 = vpop.permute.xlu0 %7469
  %7473 = vset.pattern.permute.xlu0 0
  %7474 = vperm.xlu0 %7473, %v6548
  %v7475 = vpop.permute.xlu0 %7474
  %7478 = vset.pattern.permute.xlu0 0
  %7479 = vperm.xlu0 %7478, %v6549
  %v7480 = vpop.permute.xlu0 %7479
  %7483 = vset.pattern.permute.xlu0 0
  %7484 = vperm.xlu0 %7483, %v6550
  %v7485 = vpop.permute.xlu0 %7484
  %7488 = vset.pattern.permute.xlu0 0
  %7489 = vperm.xlu0 %7488, %v6551
  %v7490 = vpop.permute.xlu0 %7489
  %7493 = vset.pattern.permute.xlu0 0
  %7494 = vperm.xlu0 %7493, %v6552
  %v7495 = vpop.permute.xlu0 %7494
  %7498 = vset.pattern.permute.xlu0 0
  %7499 = vperm.xlu0 %7498, %v6553
  %v7500 = vpop.permute.xlu0 %7499
  %7503 = vset.pattern.permute.xlu0 0
  %7504 = vperm.xlu0 %7503, %v6554
  %v7505 = vpop.permute.xlu0 %7504
  %7508 = vset.pattern.permute.xlu0 0
  %7509 = vperm.xlu0 %7508, %v6555
  %v7510 = vpop.permute.xlu0 %7509
  %7513 = vset.pattern.permute.xlu0 0
  %7514 = vperm.xlu0 %7513, %v6556
  %v7515 = vpop.permute.xlu0 %7514
  %7518 = vset.pattern.permute.xlu0 0
  %7519 = vperm.xlu0 %7518, %v6557
  %v7520 = vpop.permute.xlu0 %7519
  %7523 = vset.pattern.permute.xlu0 0
  %7524 = vperm.xlu0 %7523, %v6558
  %v7525 = vpop.permute.xlu0 %7524
  %7528 = vset.pattern.permute.xlu0 0
  %7529 = vperm.xlu0 %7528, %v6559
  %v7530 = vpop.permute.xlu0 %7529
  %7533 = vset.pattern.permute.xlu0 0
  %7534 = vperm.xlu0 %7533, %v6560
  %v7535 = vpop.permute.xlu0 %7534
  %7538 = vset.pattern.permute.xlu0 0
  %7539 = vperm.xlu0 %7538, %v6561
  %v7540 = vpop.permute.xlu0 %7539
  %7543 = vset.pattern.permute.xlu0 0
  %7544 = vperm.xlu0 %7543, %v6562
  %v7545 = vpop.permute.xlu0 %7544
  %7548 = vset.pattern.permute.xlu0 0
  %7549 = vperm.xlu0 %7548, %v6563
  %v7550 = vpop.permute.xlu0 %7549
  %7553 = vset.pattern.permute.xlu0 0
  %7554 = vperm.xlu0 %7553, %v6564
  %v7555 = vpop.permute.xlu0 %7554
  %7558 = vset.pattern.permute.xlu0 0
  %7559 = vperm.xlu0 %7558, %v6565
  %v7560 = vpop.permute.xlu0 %7559
  %7563 = vset.pattern.permute.xlu0 0
  %7564 = vperm.xlu0 %7563, %v6566
  %v7565 = vpop.permute.xlu0 %7564
  %7568 = vset.pattern.permute.xlu0 0
  %7569 = vperm.xlu0 %7568, %v6567
  %v7570 = vpop.permute.xlu0 %7569
  %7573 = vset.pattern.permute.xlu0 0
  %7574 = vperm.xlu0 %7573, %v6568
  %v7575 = vpop.permute.xlu0 %7574
  %7578 = vset.pattern.permute.xlu0 0
  %7579 = vperm.xlu0 %7578, %v6569
  %v7580 = vpop.permute.xlu0 %7579
  %7583 = vset.pattern.permute.xlu0 0
  %7584 = vperm.xlu0 %7583, %v6570
  %v7585 = vpop.permute.xlu0 %7584
  %7588 = vset.pattern.permute.xlu0 0
  %7589 = vperm.xlu0 %7588, %v6571
  %v7590 = vpop.permute.xlu0 %7589
  %7593 = vset.pattern.permute.xlu0 0
  %7594 = vperm.xlu0 %7593, %v6572
  %v7595 = vpop.permute.xlu0 %7594
  %7598 = vset.pattern.permute.xlu0 0
  %7599 = vperm.xlu0 %7598, %v6573
  %v7600 = vpop.permute.xlu0 %7599
  %7603 = vset.pattern.permute.xlu0 0
  %7604 = vperm.xlu0 %7603, %v6574
  %v7605 = vpop.permute.xlu0 %7604
  %7608 = vset.pattern.permute.xlu0 0
  %7609 = vperm.xlu0 %7608, %v6575
  %v7610 = vpop.permute.xlu0 %7609
  %7613 = vset.pattern.permute.xlu0 0
  %7614 = vperm.xlu0 %7613, %v6576
  %v7615 = vpop.permute.xlu0 %7614
  %7618 = vset.pattern.permute.xlu0 0
  %7619 = vperm.xlu0 %7618, %v6577
  %v7620 = vpop.permute.xlu0 %7619
  %7623 = vset.pattern.permute.xlu0 0
  %7624 = vperm.xlu0 %7623, %v6578
  %v7625 = vpop.permute.xlu0 %7624
  %7628 = vset.pattern.permute.xlu0 0
  %7629 = vperm.xlu0 %7628, %v6579
  %v7630 = vpop.permute.xlu0 %7629
  %7633 = vset.pattern.permute.xlu0 0
  %7634 = vperm.xlu0 %7633, %v6580
  %v7635 = vpop.permute.xlu0 %7634
  %7638 = vset.pattern.permute.xlu0 0
  %7639 = vperm.xlu0 %7638, %v6581
  %v7640 = vpop.permute.xlu0 %7639
  %7643 = vset.pattern.permute.xlu0 0
  %7644 = vperm.xlu0 %7643, %v6582
  %v7645 = vpop.permute.xlu0 %7644
  %7648 = vset.pattern.permute.xlu0 0
  %7649 = vperm.xlu0 %7648, %v6583
  %v7650 = vpop.permute.xlu0 %7649
  %7653 = vset.pattern.permute.xlu0 0
  %7654 = vperm.xlu0 %7653, %v6584
  %v7655 = vpop.permute.xlu0 %7654
  %7658 = vset.pattern.permute.xlu0 0
  %7659 = vperm.xlu0 %7658, %v6585
  %v7660 = vpop.permute.xlu0 %7659
  %7663 = vset.pattern.permute.xlu0 0
  %7664 = vperm.xlu0 %7663, %v6586
  %v7665 = vpop.permute.xlu0 %7664
  %7668 = vset.pattern.permute.xlu0 0
  %7669 = vperm.xlu0 %7668, %v6587
  %v7670 = vpop.permute.xlu0 %7669
  %7673 = vset.pattern.permute.xlu0 0
  %7674 = vperm.xlu0 %7673, %v6588
  %v7675 = vpop.permute.xlu0 %7674
  %7678 = vset.pattern.permute.xlu0 0
  %7679 = vperm.xlu0 %7678, %v6589
  %v7680 = vpop.permute.xlu0 %7679
  %7683 = vset.pattern.permute.xlu0 0
  %7684 = vperm.xlu0 %7683, %v6590
  %v7685 = vpop.permute.xlu0 %7684
  %7688 = vset.pattern.permute.xlu0 0
  %7689 = vperm.xlu0 %7688, %v6591
  %v7690 = vpop.permute.xlu0 %7689
  %7693 = vset.pattern.permute.xlu0 0
  %7694 = vperm.xlu0 %7693, %v6592
  %v7695 = vpop.permute.xlu0 %7694
  %7698 = vset.pattern.permute.xlu0 0
  %7699 = vperm.xlu0 %7698, %v6593
  %v7700 = vpop.permute.xlu0 %7699
  %7703 = vset.pattern.permute.xlu0 0
  %7704 = vperm.xlu0 %7703, %v6594
  %v7705 = vpop.permute.xlu0 %7704
  %7708 = vset.pattern.permute.xlu0 0
  %7709 = vperm.xlu0 %7708, %v6595
  %v7710 = vpop.permute.xlu0 %7709
  %7713 = vset.pattern.permute.xlu0 0
  %7714 = vperm.xlu0 %7713, %v6596
  %v7715 = vpop.permute.xlu0 %7714
  %7718 = vset.pattern.permute.xlu0 0
  %7719 = vperm.xlu0 %7718, %v6597
  %v7720 = vpop.permute.xlu0 %7719
  %7723 = vset.pattern.permute.xlu0 0
  %7724 = vperm.xlu0 %7723, %v6598
  %v7725 = vpop.permute.xlu0 %7724
  %7728 = vset.pattern.permute.xlu0 0
  %7729 = vperm.xlu0 %7728, %v6599
  %v7730 = vpop.permute.xlu0 %7729
  %7733 = vset.pattern.permute.xlu0 0
  %7734 = vperm.xlu0 %7733, %v6600
  %v7735 = vpop.permute.xlu0 %7734
  %7738 = vset.pattern.permute.xlu0 0
  %7739 = vperm.xlu0 %7738, %v6601
  %v7740 = vpop.permute.xlu0 %7739
  %7743 = vset.pattern.permute.xlu0 0
  %7744 = vperm.xlu0 %7743, %v6602
  %v7745 = vpop.permute.xlu0 %7744
  %7748 = vset.pattern.permute.xlu0 0
  %7749 = vperm.xlu0 %7748, %v6603
  %v7750 = vpop.permute.xlu0 %7749
  %7753 = vset.pattern.permute.xlu0 0
  %7754 = vperm.xlu0 %7753, %v6604
  %v7755 = vpop.permute.xlu0 %7754
  %7758 = vset.pattern.permute.xlu0 0
  %7759 = vperm.xlu0 %7758, %v6605
  %v7760 = vpop.permute.xlu0 %7759
  %7763 = vset.pattern.permute.xlu0 0
  %7764 = vperm.xlu0 %7763, %v6606
  %v7765 = vpop.permute.xlu0 %7764
  %7768 = vset.pattern.permute.xlu0 0
  %7769 = vperm.xlu0 %7768, %v6607
  %v7770 = vpop.permute.xlu0 %7769
  %7773 = vset.pattern.permute.xlu0 0
  %7774 = vperm.xlu0 %7773, %v6608
  %v7775 = vpop.permute.xlu0 %7774
  %7778 = vset.pattern.permute.xlu0 0
  %7779 = vperm.xlu0 %7778, %v6609
  %v7780 = vpop.permute.xlu0 %7779
  %7783 = vset.pattern.permute.xlu0 0
  %7784 = vperm.xlu0 %7783, %v6610
  %v7785 = vpop.permute.xlu0 %7784
  %7788 = vset.pattern.permute.xlu0 0
  %7789 = vperm.xlu0 %7788, %v6611
  %v7790 = vpop.permute.xlu0 %7789
  %7793 = vset.pattern.permute.xlu0 0
  %7794 = vperm.xlu0 %7793, %v6612
  %v7795 = vpop.permute.xlu0 %7794
  %7798 = vset.pattern.permute.xlu0 0
  %7799 = vperm.xlu0 %7798, %v6613
  %v7800 = vpop.permute.xlu0 %7799
  %7803 = vset.pattern.permute.xlu0 0
  %7804 = vperm.xlu0 %7803, %v6614
  %v7805 = vpop.permute.xlu0 %7804
  %7808 = vset.pattern.permute.xlu0 0
  %7809 = vperm.xlu0 %7808, %v6615
  %v7810 = vpop.permute.xlu0 %7809
  %7813 = vset.pattern.permute.xlu0 0
  %7814 = vperm.xlu0 %7813, %v6616
  %v7815 = vpop.permute.xlu0 %7814
  %v7817 = vmul.f32 %v1274, %v7070
  %v7818 = vmul.f32 %v2042, %v7070
  %v7819 = vmul.f32 %v1276, %v7075
  %v7820 = vmul.f32 %v2044, %v7075
  %v7821 = vmul.f32 %v1279, %v7080
  %v7822 = vmul.f32 %v2047, %v7080
  %v7823 = vmul.f32 %v1281, %v7085
  %v7824 = vmul.f32 %v2049, %v7085
  %v7825 = vmul.f32 %v1284, %v7090
  %v7826 = vmul.f32 %v2052, %v7090
  %v7827 = vmul.f32 %v1286, %v7095
  %v7828 = vmul.f32 %v2054, %v7095
  %v7829 = vmul.f32 %v1289, %v7100
  %v7830 = vmul.f32 %v2057, %v7100
  %v7831 = vmul.f32 %v1291, %v7105
  %v7832 = vmul.f32 %v2059, %v7105
  %v7833 = vmul.f32 %v1294, %v7110
  %v7834 = vmul.f32 %v2062, %v7110
  %v7835 = vmul.f32 %v1296, %v7115
  %v7836 = vmul.f32 %v2064, %v7115
  %v7837 = vmul.f32 %v1299, %v7120
  %v7838 = vmul.f32 %v2067, %v7120
  %v7839 = vmul.f32 %v1301, %v7125
  %v7840 = vmul.f32 %v2069, %v7125
  %v7841 = vmul.f32 %v1304, %v7130
  %v7842 = vmul.f32 %v2072, %v7130
  %v7843 = vmul.f32 %v1306, %v7135
  %v7844 = vmul.f32 %v2074, %v7135
  %v7845 = vmul.f32 %v1309, %v7140
  %v7846 = vmul.f32 %v2077, %v7140
  %v7847 = vmul.f32 %v1311, %v7145
  %v7848 = vmul.f32 %v2079, %v7145
  %v7849 = vmul.f32 %v1314, %v7150
  %v7850 = vmul.f32 %v2082, %v7150
  %v7851 = vmul.f32 %v1316, %v7155
  %v7852 = vmul.f32 %v2084, %v7155
  %v7853 = vmul.f32 %v1319, %v7160
  %v7854 = vmul.f32 %v2087, %v7160
  %v7855 = vmul.f32 %v1321, %v7165
  %v7856 = vmul.f32 %v2089, %v7165
  %v7857 = vmul.f32 %v1324, %v7170
  %v7858 = vmul.f32 %v2092, %v7170
  %v7859 = vmul.f32 %v1326, %v7175
  %v7860 = vmul.f32 %v2094, %v7175
  %v7861 = vmul.f32 %v1329, %v7180
  %v7862 = vmul.f32 %v2097, %v7180
  %v7863 = vmul.f32 %v1331, %v7185
  %v7864 = vmul.f32 %v2099, %v7185
  %v7865 = vmul.f32 %v1334, %v7190
  %v7866 = vmul.f32 %v2102, %v7190
  %v7867 = vmul.f32 %v1336, %v7195
  %v7868 = vmul.f32 %v2104, %v7195
  %v7869 = vmul.f32 %v1339, %v7200
  %v7870 = vmul.f32 %v2107, %v7200
  %v7871 = vmul.f32 %v1341, %v7205
  %v7872 = vmul.f32 %v2109, %v7205
  %v7873 = vmul.f32 %v1344, %v7210
  %v7874 = vmul.f32 %v2112, %v7210
  %v7875 = vmul.f32 %v1346, %v7215
  %v7876 = vmul.f32 %v2114, %v7215
  %v7877 = vmul.f32 %v1349, %v7220
  %v7878 = vmul.f32 %v2117, %v7220
  %v7879 = vmul.f32 %v1351, %v7225
  %v7880 = vmul.f32 %v2119, %v7225
  %v7881 = vmul.f32 %v1354, %v7230
  %v7882 = vmul.f32 %v2122, %v7230
  %v7883 = vmul.f32 %v1356, %v7235
  %v7884 = vmul.f32 %v2124, %v7235
  %v7885 = vmul.f32 %v1359, %v7240
  %v7886 = vmul.f32 %v2127, %v7240
  %v7887 = vmul.f32 %v1361, %v7245
  %v7888 = vmul.f32 %v2129, %v7245
  %v7889 = vmul.f32 %v1364, %v7250
  %v7890 = vmul.f32 %v2132, %v7250
  %v7891 = vmul.f32 %v1366, %v7255
  %v7892 = vmul.f32 %v2134, %v7255
  %v7893 = vmul.f32 %v1369, %v7260
  %v7894 = vmul.f32 %v2137, %v7260
  %v7895 = vmul.f32 %v1371, %v7265
  %v7896 = vmul.f32 %v2139, %v7265
  %v7897 = vmul.f32 %v1374, %v7270
  %v7898 = vmul.f32 %v2142, %v7270
  %v7899 = vmul.f32 %v1376, %v7275
  %v7900 = vmul.f32 %v2144, %v7275
  %v7901 = vmul.f32 %v1379, %v7280
  %v7902 = vmul.f32 %v2147, %v7280
  %v7903 = vmul.f32 %v1381, %v7285
  %v7904 = vmul.f32 %v2149, %v7285
  %v7905 = vmul.f32 %v1384, %v7290
  %v7906 = vmul.f32 %v2152, %v7290
  %v7907 = vmul.f32 %v1386, %v7295
  %v7908 = vmul.f32 %v2154, %v7295
  %v7909 = vmul.f32 %v1389, %v7300
  %v7910 = vmul.f32 %v2157, %v7300
  %v7911 = vmul.f32 %v1391, %v7305
  %v7912 = vmul.f32 %v2159, %v7305
  %v7913 = vmul.f32 %v1394, %v7310
  %v7914 = vmul.f32 %v2162, %v7310
  %v7915 = vmul.f32 %v1396, %v7315
  %v7916 = vmul.f32 %v2164, %v7315
  %v7917 = vmul.f32 %v1399, %v7320
  %v7918 = vmul.f32 %v2167, %v7320
  %v7919 = vmul.f32 %v1401, %v7325
  %v7920 = vmul.f32 %v2169, %v7325
  %v7921 = vmul.f32 %v1404, %v7330
  %v7922 = vmul.f32 %v2172, %v7330
  %v7923 = vmul.f32 %v1406, %v7335
  %v7924 = vmul.f32 %v2174, %v7335
  %v7925 = vmul.f32 %v1409, %v7340
  %v7926 = vmul.f32 %v2177, %v7340
  %v7927 = vmul.f32 %v1411, %v7345
  %v7928 = vmul.f32 %v2179, %v7345
  %v7929 = vmul.f32 %v1414, %v7350
  %v7930 = vmul.f32 %v2182, %v7350
  %v7931 = vmul.f32 %v1416, %v7355
  %v7932 = vmul.f32 %v2184, %v7355
  %v7933 = vmul.f32 %v1419, %v7360
  %v7934 = vmul.f32 %v2187, %v7360
  %v7935 = vmul.f32 %v1421, %v7365
  %v7936 = vmul.f32 %v2189, %v7365
  %v7937 = vmul.f32 %v1424, %v7370
  %v7938 = vmul.f32 %v2192, %v7370
  %v7939 = vmul.f32 %v1426, %v7375
  %v7940 = vmul.f32 %v2194, %v7375
  %v7941 = vmul.f32 %v1429, %v7380
  %v7942 = vmul.f32 %v2197, %v7380
  %v7943 = vmul.f32 %v1431, %v7385
  %v7944 = vmul.f32 %v2199, %v7385
  %v7945 = vmul.f32 %v1434, %v7390
  %v7946 = vmul.f32 %v2202, %v7390
  %v7947 = vmul.f32 %v1436, %v7395
  %v7948 = vmul.f32 %v2204, %v7395
  %v7949 = vmul.f32 %v1439, %v7400
  %v7950 = vmul.f32 %v2207, %v7400
  %v7951 = vmul.f32 %v1441, %v7405
  %v7952 = vmul.f32 %v2209, %v7405
  %v7953 = vmul.f32 %v1444, %v7410
  %v7954 = vmul.f32 %v2212, %v7410
  %v7955 = vmul.f32 %v1446, %v7415
  %v7956 = vmul.f32 %v2214, %v7415
  %v7957 = vmul.f32 %v1449, %v7420
  %v7958 = vmul.f32 %v2217, %v7420
  %v7959 = vmul.f32 %v1451, %v7425
  %v7960 = vmul.f32 %v2219, %v7425
  %v7961 = vmul.f32 %v1454, %v7430
  %v7962 = vmul.f32 %v2222, %v7430
  %v7963 = vmul.f32 %v1456, %v7435
  %v7964 = vmul.f32 %v2224, %v7435
  %v7965 = vmul.f32 %v1459, %v7440
  %v7966 = vmul.f32 %v2227, %v7440
  %v7967 = vmul.f32 %v1461, %v7445
  %v7968 = vmul.f32 %v2229, %v7445
  %v7969 = vmul.f32 %v1464, %v7450
  %v7970 = vmul.f32 %v2232, %v7450
  %v7971 = vmul.f32 %v1466, %v7455
  %v7972 = vmul.f32 %v2234, %v7455
  %v7973 = vmul.f32 %v1469, %v7460
  %v7974 = vmul.f32 %v2237, %v7460
  %v7975 = vmul.f32 %v1471, %v7465
  %v7976 = vmul.f32 %v2239, %v7465
  %v7977 = vmul.f32 %v1474, %v7470
  %v7978 = vmul.f32 %v2242, %v7470
  %v7979 = vmul.f32 %v1476, %v7475
  %v7980 = vmul.f32 %v2244, %v7475
  %v7981 = vmul.f32 %v1479, %v7480
  %v7982 = vmul.f32 %v2247, %v7480
  %v7983 = vmul.f32 %v1481, %v7485
  %v7984 = vmul.f32 %v2249, %v7485
  %v7985 = vmul.f32 %v1484, %v7490
  %v7986 = vmul.f32 %v2252, %v7490
  %v7987 = vmul.f32 %v1486, %v7495
  %v7988 = vmul.f32 %v2254, %v7495
  %v7989 = vmul.f32 %v1489, %v7500
  %v7990 = vmul.f32 %v2257, %v7500
  %v7991 = vmul.f32 %v1491, %v7505
  %v7992 = vmul.f32 %v2259, %v7505
  %v7993 = vmul.f32 %v1494, %v7510
  %v7994 = vmul.f32 %v2262, %v7510
  %v7995 = vmul.f32 %v1496, %v7515
  %v7996 = vmul.f32 %v2264, %v7515
  %v7997 = vmul.f32 %v1499, %v7520
  %v7998 = vmul.f32 %v2267, %v7520
  %v7999 = vmul.f32 %v1501, %v7525
  %v8000 = vmul.f32 %v2269, %v7525
  %v8001 = vmul.f32 %v1504, %v7530
  %v8002 = vmul.f32 %v2272, %v7530
  %v8003 = vmul.f32 %v1506, %v7535
  %v8004 = vmul.f32 %v2274, %v7535
  %v8005 = vmul.f32 %v1509, %v7540
  %v8006 = vmul.f32 %v2277, %v7540
  %v8007 = vmul.f32 %v1511, %v7545
  %v8008 = vmul.f32 %v2279, %v7545
  %v8009 = vmul.f32 %v1514, %v7550
  %v8010 = vmul.f32 %v2282, %v7550
  %v8011 = vmul.f32 %v1516, %v7555
  %v8012 = vmul.f32 %v2284, %v7555
  %v8013 = vmul.f32 %v1519, %v7560
  %v8014 = vmul.f32 %v2287, %v7560
  %v8015 = vmul.f32 %v1521, %v7565
  %v8016 = vmul.f32 %v2289, %v7565
  %v8017 = vmul.f32 %v1524, %v7570
  %v8018 = vmul.f32 %v2292, %v7570
  %v8019 = vmul.f32 %v1526, %v7575
  %v8020 = vmul.f32 %v2294, %v7575
  %v8021 = vmul.f32 %v1529, %v7580
  %v8022 = vmul.f32 %v2297, %v7580
  %v8023 = vmul.f32 %v1531, %v7585
  %v8024 = vmul.f32 %v2299, %v7585
  %v8025 = vmul.f32 %v1534, %v7590
  %v8026 = vmul.f32 %v2302, %v7590
  %v8027 = vmul.f32 %v1536, %v7595
  %v8028 = vmul.f32 %v2304, %v7595
  %v8029 = vmul.f32 %v1539, %v7600
  %v8030 = vmul.f32 %v2307, %v7600
  %v8031 = vmul.f32 %v1541, %v7605
  %v8032 = vmul.f32 %v2309, %v7605
  %v8033 = vmul.f32 %v1544, %v7610
  %v8034 = vmul.f32 %v2312, %v7610
  %v8035 = vmul.f32 %v1546, %v7615
  %v8036 = vmul.f32 %v2314, %v7615
  %v8037 = vmul.f32 %v1549, %v7620
  %v8038 = vmul.f32 %v2317, %v7620
  %v8039 = vmul.f32 %v1551, %v7625
  %v8040 = vmul.f32 %v2319, %v7625
  %v8041 = vmul.f32 %v1554, %v7630
  %v8042 = vmul.f32 %v2322, %v7630
  %v8043 = vmul.f32 %v1556, %v7635
  %v8044 = vmul.f32 %v2324, %v7635
  %v8045 = vmul.f32 %v1559, %v7640
  %v8046 = vmul.f32 %v2327, %v7640
  %v8047 = vmul.f32 %v1561, %v7645
  %v8048 = vmul.f32 %v2329, %v7645
  %v8049 = vmul.f32 %v1564, %v7650
  %v8050 = vmul.f32 %v2332, %v7650
  %v8051 = vmul.f32 %v1566, %v7655
  %v8052 = vmul.f32 %v2334, %v7655
  %v8053 = vmul.f32 %v1569, %v7660
  %v8054 = vmul.f32 %v2337, %v7660
  %v8055 = vmul.f32 %v1571, %v7665
  %v8056 = vmul.f32 %v2339, %v7665
  %v8057 = vmul.f32 %v1574, %v7670
  %v8058 = vmul.f32 %v2342, %v7670
  %v8059 = vmul.f32 %v1576, %v7675
  %v8060 = vmul.f32 %v2344, %v7675
  %v8061 = vmul.f32 %v1579, %v7680
  %v8062 = vmul.f32 %v2347, %v7680
  %v8063 = vmul.f32 %v1581, %v7685
  %v8064 = vmul.f32 %v2349, %v7685
  %v8065 = vmul.f32 %v1584, %v7690
  %v8066 = vmul.f32 %v2352, %v7690
  %v8067 = vmul.f32 %v1586, %v7695
  %v8068 = vmul.f32 %v2354, %v7695
  %v8069 = vmul.f32 %v1589, %v7700
  %v8070 = vmul.f32 %v2357, %v7700
  %v8071 = vmul.f32 %v1591, %v7705
  %v8072 = vmul.f32 %v2359, %v7705
  %v8073 = vmul.f32 %v1594, %v7710
  %v8074 = vmul.f32 %v2362, %v7710
  %v8075 = vmul.f32 %v1596, %v7715
  %v8076 = vmul.f32 %v2364, %v7715
  %v8077 = vmul.f32 %v1599, %v7720
  %v8078 = vmul.f32 %v2367, %v7720
  %v8079 = vmul.f32 %v1601, %v7725
  %v8080 = vmul.f32 %v2369, %v7725
  %v8081 = vmul.f32 %v1604, %v7730
  %v8082 = vmul.f32 %v2372, %v7730
  %v8083 = vmul.f32 %v1606, %v7735
  %v8084 = vmul.f32 %v2374, %v7735
  %v8085 = vmul.f32 %v1609, %v7740
  %v8086 = vmul.f32 %v2377, %v7740
  %v8087 = vmul.f32 %v1611, %v7745
  %v8088 = vmul.f32 %v2379, %v7745
  %v8089 = vmul.f32 %v1614, %v7750
  %v8090 = vmul.f32 %v2382, %v7750
  %v8091 = vmul.f32 %v1616, %v7755
  %v8092 = vmul.f32 %v2384, %v7755
  %v8093 = vmul.f32 %v1619, %v7760
  %v8094 = vmul.f32 %v2387, %v7760
  %v8095 = vmul.f32 %v1621, %v7765
  %v8096 = vmul.f32 %v2389, %v7765
  %v8097 = vmul.f32 %v1624, %v7770
  %v8098 = vmul.f32 %v2392, %v7770
  %v8099 = vmul.f32 %v1626, %v7775
  %v8100 = vmul.f32 %v2394, %v7775
  %v8101 = vmul.f32 %v1629, %v7780
  %v8102 = vmul.f32 %v2397, %v7780
  %v8103 = vmul.f32 %v1631, %v7785
  %v8104 = vmul.f32 %v2399, %v7785
  %v8105 = vmul.f32 %v1634, %v7790
  %v8106 = vmul.f32 %v2402, %v7790
  %v8107 = vmul.f32 %v1636, %v7795
  %v8108 = vmul.f32 %v2404, %v7795
  %v8109 = vmul.f32 %v1639, %v7800
  %v8110 = vmul.f32 %v2407, %v7800
  %v8111 = vmul.f32 %v1641, %v7805
  %v8112 = vmul.f32 %v2409, %v7805
  %v8113 = vmul.f32 %v1644, %v7810
  %v8114 = vmul.f32 %v2412, %v7810
  %v8115 = vmul.f32 %v1646, %v7815
  %v8116 = vmul.f32 %v2414, %v7815
  %8118 = vset.pattern.permute.xlu0 0
  %8119 = vperm.xlu0 %8118, %v6917
  %v8120 = vpop.permute.xlu0 %8119
  %8123 = vset.pattern.permute.xlu0 0
  %8124 = vperm.xlu0 %8123, %v6918
  %v8125 = vpop.permute.xlu0 %8124
  %8128 = vset.pattern.permute.xlu0 0
  %8129 = vperm.xlu0 %8128, %v6919
  %v8130 = vpop.permute.xlu0 %8129
  %8133 = vset.pattern.permute.xlu0 0
  %8134 = vperm.xlu0 %8133, %v6920
  %v8135 = vpop.permute.xlu0 %8134
  %8138 = vset.pattern.permute.xlu0 0
  %8139 = vperm.xlu0 %8138, %v6921
  %v8140 = vpop.permute.xlu0 %8139
  %8143 = vset.pattern.permute.xlu0 0
  %8144 = vperm.xlu0 %8143, %v6922
  %v8145 = vpop.permute.xlu0 %8144
  %8148 = vset.pattern.permute.xlu0 0
  %8149 = vperm.xlu0 %8148, %v6923
  %v8150 = vpop.permute.xlu0 %8149
  %8153 = vset.pattern.permute.xlu0 0
  %8154 = vperm.xlu0 %8153, %v6924
  %v8155 = vpop.permute.xlu0 %8154
  %8158 = vset.pattern.permute.xlu0 0
  %8159 = vperm.xlu0 %8158, %v6925
  %v8160 = vpop.permute.xlu0 %8159
  %8163 = vset.pattern.permute.xlu0 0
  %8164 = vperm.xlu0 %8163, %v6926
  %v8165 = vpop.permute.xlu0 %8164
  %8168 = vset.pattern.permute.xlu0 0
  %8169 = vperm.xlu0 %8168, %v6927
  %v8170 = vpop.permute.xlu0 %8169
  %8173 = vset.pattern.permute.xlu0 0
  %8174 = vperm.xlu0 %8173, %v6928
  %v8175 = vpop.permute.xlu0 %8174
  %8178 = vset.pattern.permute.xlu0 0
  %8179 = vperm.xlu0 %8178, %v6929
  %v8180 = vpop.permute.xlu0 %8179
  %8183 = vset.pattern.permute.xlu0 0
  %8184 = vperm.xlu0 %8183, %v6930
  %v8185 = vpop.permute.xlu0 %8184
  %8188 = vset.pattern.permute.xlu0 0
  %8189 = vperm.xlu0 %8188, %v6931
  %v8190 = vpop.permute.xlu0 %8189
  %8193 = vset.pattern.permute.xlu0 0
  %8194 = vperm.xlu0 %8193, %v6932
  %v8195 = vpop.permute.xlu0 %8194
  %8198 = vset.pattern.permute.xlu0 0
  %8199 = vperm.xlu0 %8198, %v6933
  %v8200 = vpop.permute.xlu0 %8199
  %8203 = vset.pattern.permute.xlu0 0
  %8204 = vperm.xlu0 %8203, %v6934
  %v8205 = vpop.permute.xlu0 %8204
  %8208 = vset.pattern.permute.xlu0 0
  %8209 = vperm.xlu0 %8208, %v6935
  %v8210 = vpop.permute.xlu0 %8209
  %8213 = vset.pattern.permute.xlu0 0
  %8214 = vperm.xlu0 %8213, %v6936
  %v8215 = vpop.permute.xlu0 %8214
  %8218 = vset.pattern.permute.xlu0 0
  %8219 = vperm.xlu0 %8218, %v6937
  %v8220 = vpop.permute.xlu0 %8219
  %8223 = vset.pattern.permute.xlu0 0
  %8224 = vperm.xlu0 %8223, %v6938
  %v8225 = vpop.permute.xlu0 %8224
  %8228 = vset.pattern.permute.xlu0 0
  %8229 = vperm.xlu0 %8228, %v6939
  %v8230 = vpop.permute.xlu0 %8229
  %8233 = vset.pattern.permute.xlu0 0
  %8234 = vperm.xlu0 %8233, %v6940
  %v8235 = vpop.permute.xlu0 %8234
  %8238 = vset.pattern.permute.xlu0 0
  %8239 = vperm.xlu0 %8238, %v6941
  %v8240 = vpop.permute.xlu0 %8239
  %8243 = vset.pattern.permute.xlu0 0
  %8244 = vperm.xlu0 %8243, %v6942
  %v8245 = vpop.permute.xlu0 %8244
  %8248 = vset.pattern.permute.xlu0 0
  %8249 = vperm.xlu0 %8248, %v6943
  %v8250 = vpop.permute.xlu0 %8249
  %8253 = vset.pattern.permute.xlu0 0
  %8254 = vperm.xlu0 %8253, %v6944
  %v8255 = vpop.permute.xlu0 %8254
  %8258 = vset.pattern.permute.xlu0 0
  %8259 = vperm.xlu0 %8258, %v6945
  %v8260 = vpop.permute.xlu0 %8259
  %8263 = vset.pattern.permute.xlu0 0
  %8264 = vperm.xlu0 %8263, %v6946
  %v8265 = vpop.permute.xlu0 %8264
  %8268 = vset.pattern.permute.xlu0 0
  %8269 = vperm.xlu0 %8268, %v6947
  %v8270 = vpop.permute.xlu0 %8269
  %8273 = vset.pattern.permute.xlu0 0
  %8274 = vperm.xlu0 %8273, %v6948
  %v8275 = vpop.permute.xlu0 %8274
  %8278 = vset.pattern.permute.xlu0 0
  %8279 = vperm.xlu0 %8278, %v6949
  %v8280 = vpop.permute.xlu0 %8279
  %8283 = vset.pattern.permute.xlu0 0
  %8284 = vperm.xlu0 %8283, %v6950
  %v8285 = vpop.permute.xlu0 %8284
  %8288 = vset.pattern.permute.xlu0 0
  %8289 = vperm.xlu0 %8288, %v6951
  %v8290 = vpop.permute.xlu0 %8289
  %8293 = vset.pattern.permute.xlu0 0
  %8294 = vperm.xlu0 %8293, %v6952
  %v8295 = vpop.permute.xlu0 %8294
  %8298 = vset.pattern.permute.xlu0 0
  %8299 = vperm.xlu0 %8298, %v6953
  %v8300 = vpop.permute.xlu0 %8299
  %8303 = vset.pattern.permute.xlu0 0
  %8304 = vperm.xlu0 %8303, %v6954
  %v8305 = vpop.permute.xlu0 %8304
  %8308 = vset.pattern.permute.xlu0 0
  %8309 = vperm.xlu0 %8308, %v6955
  %v8310 = vpop.permute.xlu0 %8309
  %8313 = vset.pattern.permute.xlu0 0
  %8314 = vperm.xlu0 %8313, %v6956
  %v8315 = vpop.permute.xlu0 %8314
  %8318 = vset.pattern.permute.xlu0 0
  %8319 = vperm.xlu0 %8318, %v6957
  %v8320 = vpop.permute.xlu0 %8319
  %8323 = vset.pattern.permute.xlu0 0
  %8324 = vperm.xlu0 %8323, %v6958
  %v8325 = vpop.permute.xlu0 %8324
  %8328 = vset.pattern.permute.xlu0 0
  %8329 = vperm.xlu0 %8328, %v6959
  %v8330 = vpop.permute.xlu0 %8329
  %8333 = vset.pattern.permute.xlu0 0
  %8334 = vperm.xlu0 %8333, %v6960
  %v8335 = vpop.permute.xlu0 %8334
  %8338 = vset.pattern.permute.xlu0 0
  %8339 = vperm.xlu0 %8338, %v6961
  %v8340 = vpop.permute.xlu0 %8339
  %8343 = vset.pattern.permute.xlu0 0
  %8344 = vperm.xlu0 %8343, %v6962
  %v8345 = vpop.permute.xlu0 %8344
  %8348 = vset.pattern.permute.xlu0 0
  %8349 = vperm.xlu0 %8348, %v6963
  %v8350 = vpop.permute.xlu0 %8349
  %8353 = vset.pattern.permute.xlu0 0
  %8354 = vperm.xlu0 %8353, %v6964
  %v8355 = vpop.permute.xlu0 %8354
  %8358 = vset.pattern.permute.xlu0 0
  %8359 = vperm.xlu0 %8358, %v6965
  %v8360 = vpop.permute.xlu0 %8359
  %8363 = vset.pattern.permute.xlu0 0
  %8364 = vperm.xlu0 %8363, %v6966
  %v8365 = vpop.permute.xlu0 %8364
  %8368 = vset.pattern.permute.xlu0 0
  %8369 = vperm.xlu0 %8368, %v6967
  %v8370 = vpop.permute.xlu0 %8369
  %8373 = vset.pattern.permute.xlu0 0
  %8374 = vperm.xlu0 %8373, %v6968
  %v8375 = vpop.permute.xlu0 %8374
  %8378 = vset.pattern.permute.xlu0 0
  %8379 = vperm.xlu0 %8378, %v6969
  %v8380 = vpop.permute.xlu0 %8379
  %8383 = vset.pattern.permute.xlu0 0
  %8384 = vperm.xlu0 %8383, %v6970
  %v8385 = vpop.permute.xlu0 %8384
  %8388 = vset.pattern.permute.xlu0 0
  %8389 = vperm.xlu0 %8388, %v6971
  %v8390 = vpop.permute.xlu0 %8389
  %8393 = vset.pattern.permute.xlu0 0
  %8394 = vperm.xlu0 %8393, %v6972
  %v8395 = vpop.permute.xlu0 %8394
  %8398 = vset.pattern.permute.xlu0 0
  %8399 = vperm.xlu0 %8398, %v6973
  %v8400 = vpop.permute.xlu0 %8399
  %8403 = vset.pattern.permute.xlu0 0
  %8404 = vperm.xlu0 %8403, %v6974
  %v8405 = vpop.permute.xlu0 %8404
  %8408 = vset.pattern.permute.xlu0 0
  %8409 = vperm.xlu0 %8408, %v6975
  %v8410 = vpop.permute.xlu0 %8409
  %8413 = vset.pattern.permute.xlu0 0
  %8414 = vperm.xlu0 %8413, %v6976
  %v8415 = vpop.permute.xlu0 %8414
  %8418 = vset.pattern.permute.xlu0 0
  %8419 = vperm.xlu0 %8418, %v6977
  %v8420 = vpop.permute.xlu0 %8419
  %8423 = vset.pattern.permute.xlu0 0
  %8424 = vperm.xlu0 %8423, %v6978
  %v8425 = vpop.permute.xlu0 %8424
  %8428 = vset.pattern.permute.xlu0 0
  %8429 = vperm.xlu0 %8428, %v6979
  %v8430 = vpop.permute.xlu0 %8429
  %8433 = vset.pattern.permute.xlu0 0
  %8434 = vperm.xlu0 %8433, %v6980
  %v8435 = vpop.permute.xlu0 %8434
  %8438 = vset.pattern.permute.xlu0 0
  %8439 = vperm.xlu0 %8438, %v6981
  %v8440 = vpop.permute.xlu0 %8439
  %8443 = vset.pattern.permute.xlu0 0
  %8444 = vperm.xlu0 %8443, %v6982
  %v8445 = vpop.permute.xlu0 %8444
  %8448 = vset.pattern.permute.xlu0 0
  %8449 = vperm.xlu0 %8448, %v6983
  %v8450 = vpop.permute.xlu0 %8449
  %8453 = vset.pattern.permute.xlu0 0
  %8454 = vperm.xlu0 %8453, %v6984
  %v8455 = vpop.permute.xlu0 %8454
  %8458 = vset.pattern.permute.xlu0 0
  %8459 = vperm.xlu0 %8458, %v6985
  %v8460 = vpop.permute.xlu0 %8459
  %8463 = vset.pattern.permute.xlu0 0
  %8464 = vperm.xlu0 %8463, %v6986
  %v8465 = vpop.permute.xlu0 %8464
  %8468 = vset.pattern.permute.xlu0 0
  %8469 = vperm.xlu0 %8468, %v6987
  %v8470 = vpop.permute.xlu0 %8469
  %8473 = vset.pattern.permute.xlu0 0
  %8474 = vperm.xlu0 %8473, %v6988
  %v8475 = vpop.permute.xlu0 %8474
  %8478 = vset.pattern.permute.xlu0 0
  %8479 = vperm.xlu0 %8478, %v6989
  %v8480 = vpop.permute.xlu0 %8479
  %8483 = vset.pattern.permute.xlu0 0
  %8484 = vperm.xlu0 %8483, %v6990
  %v8485 = vpop.permute.xlu0 %8484
  %8488 = vset.pattern.permute.xlu0 0
  %8489 = vperm.xlu0 %8488, %v6991
  %v8490 = vpop.permute.xlu0 %8489
  %8493 = vset.pattern.permute.xlu0 0
  %8494 = vperm.xlu0 %8493, %v6992
  %v8495 = vpop.permute.xlu0 %8494
  %8498 = vset.pattern.permute.xlu0 0
  %8499 = vperm.xlu0 %8498, %v6993
  %v8500 = vpop.permute.xlu0 %8499
  %8503 = vset.pattern.permute.xlu0 0
  %8504 = vperm.xlu0 %8503, %v6994
  %v8505 = vpop.permute.xlu0 %8504
  %8508 = vset.pattern.permute.xlu0 0
  %8509 = vperm.xlu0 %8508, %v6995
  %v8510 = vpop.permute.xlu0 %8509
  %8513 = vset.pattern.permute.xlu0 0
  %8514 = vperm.xlu0 %8513, %v6996
  %v8515 = vpop.permute.xlu0 %8514
  %8518 = vset.pattern.permute.xlu0 0
  %8519 = vperm.xlu0 %8518, %v6997
  %v8520 = vpop.permute.xlu0 %8519
  %8523 = vset.pattern.permute.xlu0 0
  %8524 = vperm.xlu0 %8523, %v6998
  %v8525 = vpop.permute.xlu0 %8524
  %8528 = vset.pattern.permute.xlu0 0
  %8529 = vperm.xlu0 %8528, %v6999
  %v8530 = vpop.permute.xlu0 %8529
  %8533 = vset.pattern.permute.xlu0 0
  %8534 = vperm.xlu0 %8533, %v7000
  %v8535 = vpop.permute.xlu0 %8534
  %8538 = vset.pattern.permute.xlu0 0
  %8539 = vperm.xlu0 %8538, %v7001
  %v8540 = vpop.permute.xlu0 %8539
  %8543 = vset.pattern.permute.xlu0 0
  %8544 = vperm.xlu0 %8543, %v7002
  %v8545 = vpop.permute.xlu0 %8544
  %8548 = vset.pattern.permute.xlu0 0
  %8549 = vperm.xlu0 %8548, %v7003
  %v8550 = vpop.permute.xlu0 %8549
  %8553 = vset.pattern.permute.xlu0 0
  %8554 = vperm.xlu0 %8553, %v7004
  %v8555 = vpop.permute.xlu0 %8554
  %8558 = vset.pattern.permute.xlu0 0
  %8559 = vperm.xlu0 %8558, %v7005
  %v8560 = vpop.permute.xlu0 %8559
  %8563 = vset.pattern.permute.xlu0 0
  %8564 = vperm.xlu0 %8563, %v7006
  %v8565 = vpop.permute.xlu0 %8564
  %8568 = vset.pattern.permute.xlu0 0
  %8569 = vperm.xlu0 %8568, %v7007
  %v8570 = vpop.permute.xlu0 %8569
  %8573 = vset.pattern.permute.xlu0 0
  %8574 = vperm.xlu0 %8573, %v7008
  %v8575 = vpop.permute.xlu0 %8574
  %8578 = vset.pattern.permute.xlu0 0
  %8579 = vperm.xlu0 %8578, %v7009
  %v8580 = vpop.permute.xlu0 %8579
  %8583 = vset.pattern.permute.xlu0 0
  %8584 = vperm.xlu0 %8583, %v7010
  %v8585 = vpop.permute.xlu0 %8584
  %8588 = vset.pattern.permute.xlu0 0
  %8589 = vperm.xlu0 %8588, %v7011
  %v8590 = vpop.permute.xlu0 %8589
  %8593 = vset.pattern.permute.xlu0 0
  %8594 = vperm.xlu0 %8593, %v7012
  %v8595 = vpop.permute.xlu0 %8594
  %8598 = vset.pattern.permute.xlu0 0
  %8599 = vperm.xlu0 %8598, %v7013
  %v8600 = vpop.permute.xlu0 %8599
  %8603 = vset.pattern.permute.xlu0 0
  %8604 = vperm.xlu0 %8603, %v7014
  %v8605 = vpop.permute.xlu0 %8604
  %8608 = vset.pattern.permute.xlu0 0
  %8609 = vperm.xlu0 %8608, %v7015
  %v8610 = vpop.permute.xlu0 %8609
  %8613 = vset.pattern.permute.xlu0 0
  %8614 = vperm.xlu0 %8613, %v7016
  %v8615 = vpop.permute.xlu0 %8614
  %8618 = vset.pattern.permute.xlu0 0
  %8619 = vperm.xlu0 %8618, %v7017
  %v8620 = vpop.permute.xlu0 %8619
  %8623 = vset.pattern.permute.xlu0 0
  %8624 = vperm.xlu0 %8623, %v7018
  %v8625 = vpop.permute.xlu0 %8624
  %8628 = vset.pattern.permute.xlu0 0
  %8629 = vperm.xlu0 %8628, %v7019
  %v8630 = vpop.permute.xlu0 %8629
  %8633 = vset.pattern.permute.xlu0 0
  %8634 = vperm.xlu0 %8633, %v7020
  %v8635 = vpop.permute.xlu0 %8634
  %8638 = vset.pattern.permute.xlu0 0
  %8639 = vperm.xlu0 %8638, %v7021
  %v8640 = vpop.permute.xlu0 %8639
  %8643 = vset.pattern.permute.xlu0 0
  %8644 = vperm.xlu0 %8643, %v7022
  %v8645 = vpop.permute.xlu0 %8644
  %8648 = vset.pattern.permute.xlu0 0
  %8649 = vperm.xlu0 %8648, %v7023
  %v8650 = vpop.permute.xlu0 %8649
  %8653 = vset.pattern.permute.xlu0 0
  %8654 = vperm.xlu0 %8653, %v7024
  %v8655 = vpop.permute.xlu0 %8654
  %8658 = vset.pattern.permute.xlu0 0
  %8659 = vperm.xlu0 %8658, %v7025
  %v8660 = vpop.permute.xlu0 %8659
  %8663 = vset.pattern.permute.xlu0 0
  %8664 = vperm.xlu0 %8663, %v7026
  %v8665 = vpop.permute.xlu0 %8664
  %8668 = vset.pattern.permute.xlu0 0
  %8669 = vperm.xlu0 %8668, %v7027
  %v8670 = vpop.permute.xlu0 %8669
  %8673 = vset.pattern.permute.xlu0 0
  %8674 = vperm.xlu0 %8673, %v7028
  %v8675 = vpop.permute.xlu0 %8674
  %8678 = vset.pattern.permute.xlu0 0
  %8679 = vperm.xlu0 %8678, %v7029
  %v8680 = vpop.permute.xlu0 %8679
  %8683 = vset.pattern.permute.xlu0 0
  %8684 = vperm.xlu0 %8683, %v7030
  %v8685 = vpop.permute.xlu0 %8684
  %8688 = vset.pattern.permute.xlu0 0
  %8689 = vperm.xlu0 %8688, %v7031
  %v8690 = vpop.permute.xlu0 %8689
  %8693 = vset.pattern.permute.xlu0 0
  %8694 = vperm.xlu0 %8693, %v7032
  %v8695 = vpop.permute.xlu0 %8694
  %8698 = vset.pattern.permute.xlu0 0
  %8699 = vperm.xlu0 %8698, %v7033
  %v8700 = vpop.permute.xlu0 %8699
  %8703 = vset.pattern.permute.xlu0 0
  %8704 = vperm.xlu0 %8703, %v7034
  %v8705 = vpop.permute.xlu0 %8704
  %8708 = vset.pattern.permute.xlu0 0
  %8709 = vperm.xlu0 %8708, %v7035
  %v8710 = vpop.permute.xlu0 %8709
  %8713 = vset.pattern.permute.xlu0 0
  %8714 = vperm.xlu0 %8713, %v7036
  %v8715 = vpop.permute.xlu0 %8714
  %8718 = vset.pattern.permute.xlu0 0
  %8719 = vperm.xlu0 %8718, %v7037
  %v8720 = vpop.permute.xlu0 %8719
  %8723 = vset.pattern.permute.xlu0 0
  %8724 = vperm.xlu0 %8723, %v7038
  %v8725 = vpop.permute.xlu0 %8724
  %8728 = vset.pattern.permute.xlu0 0
  %8729 = vperm.xlu0 %8728, %v7039
  %v8730 = vpop.permute.xlu0 %8729
  %8733 = vset.pattern.permute.xlu0 0
  %8734 = vperm.xlu0 %8733, %v7040
  %v8735 = vpop.permute.xlu0 %8734
  %8738 = vset.pattern.permute.xlu0 0
  %8739 = vperm.xlu0 %8738, %v7041
  %v8740 = vpop.permute.xlu0 %8739
  %8743 = vset.pattern.permute.xlu0 0
  %8744 = vperm.xlu0 %8743, %v7042
  %v8745 = vpop.permute.xlu0 %8744
  %8748 = vset.pattern.permute.xlu0 0
  %8749 = vperm.xlu0 %8748, %v7043
  %v8750 = vpop.permute.xlu0 %8749
  %8753 = vset.pattern.permute.xlu0 0
  %8754 = vperm.xlu0 %8753, %v7044
  %v8755 = vpop.permute.xlu0 %8754
  %8758 = vset.pattern.permute.xlu0 0
  %8759 = vperm.xlu0 %8758, %v7045
  %v8760 = vpop.permute.xlu0 %8759
  %8763 = vset.pattern.permute.xlu0 0
  %8764 = vperm.xlu0 %8763, %v7046
  %v8765 = vpop.permute.xlu0 %8764
  %8768 = vset.pattern.permute.xlu0 0
  %8769 = vperm.xlu0 %8768, %v7047
  %v8770 = vpop.permute.xlu0 %8769
  %8773 = vset.pattern.permute.xlu0 0
  %8774 = vperm.xlu0 %8773, %v7048
  %v8775 = vpop.permute.xlu0 %8774
  %8778 = vset.pattern.permute.xlu0 0
  %8779 = vperm.xlu0 %8778, %v7049
  %v8780 = vpop.permute.xlu0 %8779
  %8783 = vset.pattern.permute.xlu0 0
  %8784 = vperm.xlu0 %8783, %v7050
  %v8785 = vpop.permute.xlu0 %8784
  %8788 = vset.pattern.permute.xlu0 0
  %8789 = vperm.xlu0 %8788, %v7051
  %v8790 = vpop.permute.xlu0 %8789
  %8793 = vset.pattern.permute.xlu0 0
  %8794 = vperm.xlu0 %8793, %v7052
  %v8795 = vpop.permute.xlu0 %8794
  %8798 = vset.pattern.permute.xlu0 0
  %8799 = vperm.xlu0 %8798, %v7053
  %v8800 = vpop.permute.xlu0 %8799
  %8803 = vset.pattern.permute.xlu0 0
  %8804 = vperm.xlu0 %8803, %v7054
  %v8805 = vpop.permute.xlu0 %8804
  %8808 = vset.pattern.permute.xlu0 0
  %8809 = vperm.xlu0 %8808, %v7055
  %v8810 = vpop.permute.xlu0 %8809
  %8813 = vset.pattern.permute.xlu0 0
  %8814 = vperm.xlu0 %8813, %v7056
  %v8815 = vpop.permute.xlu0 %8814
  %8818 = vset.pattern.permute.xlu0 0
  %8819 = vperm.xlu0 %8818, %v7057
  %v8820 = vpop.permute.xlu0 %8819
  %8823 = vset.pattern.permute.xlu0 0
  %8824 = vperm.xlu0 %8823, %v7058
  %v8825 = vpop.permute.xlu0 %8824
  %8828 = vset.pattern.permute.xlu0 0
  %8829 = vperm.xlu0 %8828, %v7059
  %v8830 = vpop.permute.xlu0 %8829
  %8833 = vset.pattern.permute.xlu0 0
  %8834 = vperm.xlu0 %8833, %v7060
  %v8835 = vpop.permute.xlu0 %8834
  %8838 = vset.pattern.permute.xlu0 0
  %8839 = vperm.xlu0 %8838, %v7061
  %v8840 = vpop.permute.xlu0 %8839
  %8843 = vset.pattern.permute.xlu0 0
  %8844 = vperm.xlu0 %8843, %v7062
  %v8845 = vpop.permute.xlu0 %8844
  %8848 = vset.pattern.permute.xlu0 0
  %8849 = vperm.xlu0 %8848, %v7063
  %v8850 = vpop.permute.xlu0 %8849
  %8853 = vset.pattern.permute.xlu0 0
  %8854 = vperm.xlu0 %8853, %v7064
  %v8855 = vpop.permute.xlu0 %8854
  %8858 = vset.pattern.permute.xlu0 0
  %8859 = vperm.xlu0 %8858, %v7065
  %v8860 = vpop.permute.xlu0 %8859
  %8863 = vset.pattern.permute.xlu0 0
  %8864 = vperm.xlu0 %8863, %v7066
  %v8865 = vpop.permute.xlu0 %8864
  %v8867 = vadd.f32 %v7817, %v8120
  %v8868 = vadd.f32 %v7818, %v8120
  %v8869 = vadd.f32 %v7819, %v8125
  %v8870 = vadd.f32 %v7820, %v8125
  %v8871 = vadd.f32 %v7821, %v8130
  %v8872 = vadd.f32 %v7822, %v8130
  %v8873 = vadd.f32 %v7823, %v8135
  %v8874 = vadd.f32 %v7824, %v8135
  %v8875 = vadd.f32 %v7825, %v8140
  %v8876 = vadd.f32 %v7826, %v8140
  %v8877 = vadd.f32 %v7827, %v8145
  %v8878 = vadd.f32 %v7828, %v8145
  %v8879 = vadd.f32 %v7829, %v8150
  %v8880 = vadd.f32 %v7830, %v8150
  %v8881 = vadd.f32 %v7831, %v8155
  %v8882 = vadd.f32 %v7832, %v8155
  %v8883 = vadd.f32 %v7833, %v8160
  %v8884 = vadd.f32 %v7834, %v8160
  %v8885 = vadd.f32 %v7835, %v8165
  %v8886 = vadd.f32 %v7836, %v8165
  %v8887 = vadd.f32 %v7837, %v8170
  %v8888 = vadd.f32 %v7838, %v8170
  %v8889 = vadd.f32 %v7839, %v8175
  %v8890 = vadd.f32 %v7840, %v8175
  %v8891 = vadd.f32 %v7841, %v8180
  %v8892 = vadd.f32 %v7842, %v8180
  %v8893 = vadd.f32 %v7843, %v8185
  %v8894 = vadd.f32 %v7844, %v8185
  %v8895 = vadd.f32 %v7845, %v8190
  %v8896 = vadd.f32 %v7846, %v8190
  %v8897 = vadd.f32 %v7847, %v8195
  %v8898 = vadd.f32 %v7848, %v8195
  %v8899 = vadd.f32 %v7849, %v8200
  %v8900 = vadd.f32 %v7850, %v8200
  %v8901 = vadd.f32 %v7851, %v8205
  %v8902 = vadd.f32 %v7852, %v8205
  %v8903 = vadd.f32 %v7853, %v8210
  %v8904 = vadd.f32 %v7854, %v8210
  %v8905 = vadd.f32 %v7855, %v8215
  %v8906 = vadd.f32 %v7856, %v8215
  %v8907 = vadd.f32 %v7857, %v8220
  %v8908 = vadd.f32 %v7858, %v8220
  %v8909 = vadd.f32 %v7859, %v8225
  %v8910 = vadd.f32 %v7860, %v8225
  %v8911 = vadd.f32 %v7861, %v8230
  %v8912 = vadd.f32 %v7862, %v8230
  %v8913 = vadd.f32 %v7863, %v8235
  %v8914 = vadd.f32 %v7864, %v8235
  %v8915 = vadd.f32 %v7865, %v8240
  %v8916 = vadd.f32 %v7866, %v8240
  %v8917 = vadd.f32 %v7867, %v8245
  %v8918 = vadd.f32 %v7868, %v8245
  %v8919 = vadd.f32 %v7869, %v8250
  %v8920 = vadd.f32 %v7870, %v8250
  %v8921 = vadd.f32 %v7871, %v8255
  %v8922 = vadd.f32 %v7872, %v8255
  %v8923 = vadd.f32 %v7873, %v8260
  %v8924 = vadd.f32 %v7874, %v8260
  %v8925 = vadd.f32 %v7875, %v8265
  %v8926 = vadd.f32 %v7876, %v8265
  %v8927 = vadd.f32 %v7877, %v8270
  %v8928 = vadd.f32 %v7878, %v8270
  %v8929 = vadd.f32 %v7879, %v8275
  %v8930 = vadd.f32 %v7880, %v8275
  %v8931 = vadd.f32 %v7881, %v8280
  %v8932 = vadd.f32 %v7882, %v8280
  %v8933 = vadd.f32 %v7883, %v8285
  %v8934 = vadd.f32 %v7884, %v8285
  %v8935 = vadd.f32 %v7885, %v8290
  %v8936 = vadd.f32 %v7886, %v8290
  %v8937 = vadd.f32 %v7887, %v8295
  %v8938 = vadd.f32 %v7888, %v8295
  %v8939 = vadd.f32 %v7889, %v8300
  %v8940 = vadd.f32 %v7890, %v8300
  %v8941 = vadd.f32 %v7891, %v8305
  %v8942 = vadd.f32 %v7892, %v8305
  %v8943 = vadd.f32 %v7893, %v8310
  %v8944 = vadd.f32 %v7894, %v8310
  %v8945 = vadd.f32 %v7895, %v8315
  %v8946 = vadd.f32 %v7896, %v8315
  %v8947 = vadd.f32 %v7897, %v8320
  %v8948 = vadd.f32 %v7898, %v8320
  %v8949 = vadd.f32 %v7899, %v8325
  %v8950 = vadd.f32 %v7900, %v8325
  %v8951 = vadd.f32 %v7901, %v8330
  %v8952 = vadd.f32 %v7902, %v8330
  %v8953 = vadd.f32 %v7903, %v8335
  %v8954 = vadd.f32 %v7904, %v8335
  %v8955 = vadd.f32 %v7905, %v8340
  %v8956 = vadd.f32 %v7906, %v8340
  %v8957 = vadd.f32 %v7907, %v8345
  %v8958 = vadd.f32 %v7908, %v8345
  %v8959 = vadd.f32 %v7909, %v8350
  %v8960 = vadd.f32 %v7910, %v8350
  %v8961 = vadd.f32 %v7911, %v8355
  %v8962 = vadd.f32 %v7912, %v8355
  %v8963 = vadd.f32 %v7913, %v8360
  %v8964 = vadd.f32 %v7914, %v8360
  %v8965 = vadd.f32 %v7915, %v8365
  %v8966 = vadd.f32 %v7916, %v8365
  %v8967 = vadd.f32 %v7917, %v8370
  %v8968 = vadd.f32 %v7918, %v8370
  %v8969 = vadd.f32 %v7919, %v8375
  %v8970 = vadd.f32 %v7920, %v8375
  %v8971 = vadd.f32 %v7921, %v8380
  %v8972 = vadd.f32 %v7922, %v8380
  %v8973 = vadd.f32 %v7923, %v8385
  %v8974 = vadd.f32 %v7924, %v8385
  %v8975 = vadd.f32 %v7925, %v8390
  %v8976 = vadd.f32 %v7926, %v8390
  %v8977 = vadd.f32 %v7927, %v8395
  %v8978 = vadd.f32 %v7928, %v8395
  %v8979 = vadd.f32 %v7929, %v8400
  %v8980 = vadd.f32 %v7930, %v8400
  %v8981 = vadd.f32 %v7931, %v8405
  %v8982 = vadd.f32 %v7932, %v8405
  %v8983 = vadd.f32 %v7933, %v8410
  %v8984 = vadd.f32 %v7934, %v8410
  %v8985 = vadd.f32 %v7935, %v8415
  %v8986 = vadd.f32 %v7936, %v8415
  %v8987 = vadd.f32 %v7937, %v8420
  %v8988 = vadd.f32 %v7938, %v8420
  %v8989 = vadd.f32 %v7939, %v8425
  %v8990 = vadd.f32 %v7940, %v8425
  %v8991 = vadd.f32 %v7941, %v8430
  %v8992 = vadd.f32 %v7942, %v8430
  %v8993 = vadd.f32 %v7943, %v8435
  %v8994 = vadd.f32 %v7944, %v8435
  %v8995 = vadd.f32 %v7945, %v8440
  %v8996 = vadd.f32 %v7946, %v8440
  %v8997 = vadd.f32 %v7947, %v8445
  %v8998 = vadd.f32 %v7948, %v8445
  %v8999 = vadd.f32 %v7949, %v8450
  %v9000 = vadd.f32 %v7950, %v8450
  %v9001 = vadd.f32 %v7951, %v8455
  %v9002 = vadd.f32 %v7952, %v8455
  %v9003 = vadd.f32 %v7953, %v8460
  %v9004 = vadd.f32 %v7954, %v8460
  %v9005 = vadd.f32 %v7955, %v8465
  %v9006 = vadd.f32 %v7956, %v8465
  %v9007 = vadd.f32 %v7957, %v8470
  %v9008 = vadd.f32 %v7958, %v8470
  %v9009 = vadd.f32 %v7959, %v8475
  %v9010 = vadd.f32 %v7960, %v8475
  %v9011 = vadd.f32 %v7961, %v8480
  %v9012 = vadd.f32 %v7962, %v8480
  %v9013 = vadd.f32 %v7963, %v8485
  %v9014 = vadd.f32 %v7964, %v8485
  %v9015 = vadd.f32 %v7965, %v8490
  %v9016 = vadd.f32 %v7966, %v8490
  %v9017 = vadd.f32 %v7967, %v8495
  %v9018 = vadd.f32 %v7968, %v8495
  %v9019 = vadd.f32 %v7969, %v8500
  %v9020 = vadd.f32 %v7970, %v8500
  %v9021 = vadd.f32 %v7971, %v8505
  %v9022 = vadd.f32 %v7972, %v8505
  %v9023 = vadd.f32 %v7973, %v8510
  %v9024 = vadd.f32 %v7974, %v8510
  %v9025 = vadd.f32 %v7975, %v8515
  %v9026 = vadd.f32 %v7976, %v8515
  %v9027 = vadd.f32 %v7977, %v8520
  %v9028 = vadd.f32 %v7978, %v8520
  %v9029 = vadd.f32 %v7979, %v8525
  %v9030 = vadd.f32 %v7980, %v8525
  %v9031 = vadd.f32 %v7981, %v8530
  %v9032 = vadd.f32 %v7982, %v8530
  %v9033 = vadd.f32 %v7983, %v8535
  %v9034 = vadd.f32 %v7984, %v8535
  %v9035 = vadd.f32 %v7985, %v8540
  %v9036 = vadd.f32 %v7986, %v8540
  %v9037 = vadd.f32 %v7987, %v8545
  %v9038 = vadd.f32 %v7988, %v8545
  %v9039 = vadd.f32 %v7989, %v8550
  %v9040 = vadd.f32 %v7990, %v8550
  %v9041 = vadd.f32 %v7991, %v8555
  %v9042 = vadd.f32 %v7992, %v8555
  %v9043 = vadd.f32 %v7993, %v8560
  %v9044 = vadd.f32 %v7994, %v8560
  %v9045 = vadd.f32 %v7995, %v8565
  %v9046 = vadd.f32 %v7996, %v8565
  %v9047 = vadd.f32 %v7997, %v8570
  %v9048 = vadd.f32 %v7998, %v8570
  %v9049 = vadd.f32 %v7999, %v8575
  %v9050 = vadd.f32 %v8000, %v8575
  %v9051 = vadd.f32 %v8001, %v8580
  %v9052 = vadd.f32 %v8002, %v8580
  %v9053 = vadd.f32 %v8003, %v8585
  %v9054 = vadd.f32 %v8004, %v8585
  %v9055 = vadd.f32 %v8005, %v8590
  %v9056 = vadd.f32 %v8006, %v8590
  %v9057 = vadd.f32 %v8007, %v8595
  %v9058 = vadd.f32 %v8008, %v8595
  %v9059 = vadd.f32 %v8009, %v8600
  %v9060 = vadd.f32 %v8010, %v8600
  %v9061 = vadd.f32 %v8011, %v8605
  %v9062 = vadd.f32 %v8012, %v8605
  %v9063 = vadd.f32 %v8013, %v8610
  %v9064 = vadd.f32 %v8014, %v8610
  %v9065 = vadd.f32 %v8015, %v8615
  %v9066 = vadd.f32 %v8016, %v8615
  %v9067 = vadd.f32 %v8017, %v8620
  %v9068 = vadd.f32 %v8018, %v8620
  %v9069 = vadd.f32 %v8019, %v8625
  %v9070 = vadd.f32 %v8020, %v8625
  %v9071 = vadd.f32 %v8021, %v8630
  %v9072 = vadd.f32 %v8022, %v8630
  %v9073 = vadd.f32 %v8023, %v8635
  %v9074 = vadd.f32 %v8024, %v8635
  %v9075 = vadd.f32 %v8025, %v8640
  %v9076 = vadd.f32 %v8026, %v8640
  %v9077 = vadd.f32 %v8027, %v8645
  %v9078 = vadd.f32 %v8028, %v8645
  %v9079 = vadd.f32 %v8029, %v8650
  %v9080 = vadd.f32 %v8030, %v8650
  %v9081 = vadd.f32 %v8031, %v8655
  %v9082 = vadd.f32 %v8032, %v8655
  %v9083 = vadd.f32 %v8033, %v8660
  %v9084 = vadd.f32 %v8034, %v8660
  %v9085 = vadd.f32 %v8035, %v8665
  %v9086 = vadd.f32 %v8036, %v8665
  %v9087 = vadd.f32 %v8037, %v8670
  %v9088 = vadd.f32 %v8038, %v8670
  %v9089 = vadd.f32 %v8039, %v8675
  %v9090 = vadd.f32 %v8040, %v8675
  %v9091 = vadd.f32 %v8041, %v8680
  %v9092 = vadd.f32 %v8042, %v8680
  %v9093 = vadd.f32 %v8043, %v8685
  %v9094 = vadd.f32 %v8044, %v8685
  %v9095 = vadd.f32 %v8045, %v8690
  %v9096 = vadd.f32 %v8046, %v8690
  %v9097 = vadd.f32 %v8047, %v8695
  %v9098 = vadd.f32 %v8048, %v8695
  %v9099 = vadd.f32 %v8049, %v8700
  %v9100 = vadd.f32 %v8050, %v8700
  %v9101 = vadd.f32 %v8051, %v8705
  %v9102 = vadd.f32 %v8052, %v8705
  %v9103 = vadd.f32 %v8053, %v8710
  %v9104 = vadd.f32 %v8054, %v8710
  %v9105 = vadd.f32 %v8055, %v8715
  %v9106 = vadd.f32 %v8056, %v8715
  %v9107 = vadd.f32 %v8057, %v8720
  %v9108 = vadd.f32 %v8058, %v8720
  %v9109 = vadd.f32 %v8059, %v8725
  %v9110 = vadd.f32 %v8060, %v8725
  %v9111 = vadd.f32 %v8061, %v8730
  %v9112 = vadd.f32 %v8062, %v8730
  %v9113 = vadd.f32 %v8063, %v8735
  %v9114 = vadd.f32 %v8064, %v8735
  %v9115 = vadd.f32 %v8065, %v8740
  %v9116 = vadd.f32 %v8066, %v8740
  %v9117 = vadd.f32 %v8067, %v8745
  %v9118 = vadd.f32 %v8068, %v8745
  %v9119 = vadd.f32 %v8069, %v8750
  %v9120 = vadd.f32 %v8070, %v8750
  %v9121 = vadd.f32 %v8071, %v8755
  %v9122 = vadd.f32 %v8072, %v8755
  %v9123 = vadd.f32 %v8073, %v8760
  %v9124 = vadd.f32 %v8074, %v8760
  %v9125 = vadd.f32 %v8075, %v8765
  %v9126 = vadd.f32 %v8076, %v8765
  %v9127 = vadd.f32 %v8077, %v8770
  %v9128 = vadd.f32 %v8078, %v8770
  %v9129 = vadd.f32 %v8079, %v8775
  %v9130 = vadd.f32 %v8080, %v8775
  %v9131 = vadd.f32 %v8081, %v8780
  %v9132 = vadd.f32 %v8082, %v8780
  %v9133 = vadd.f32 %v8083, %v8785
  %v9134 = vadd.f32 %v8084, %v8785
  %v9135 = vadd.f32 %v8085, %v8790
  %v9136 = vadd.f32 %v8086, %v8790
  %v9137 = vadd.f32 %v8087, %v8795
  %v9138 = vadd.f32 %v8088, %v8795
  %v9139 = vadd.f32 %v8089, %v8800
  %v9140 = vadd.f32 %v8090, %v8800
  %v9141 = vadd.f32 %v8091, %v8805
  %v9142 = vadd.f32 %v8092, %v8805
  %v9143 = vadd.f32 %v8093, %v8810
  %v9144 = vadd.f32 %v8094, %v8810
  %v9145 = vadd.f32 %v8095, %v8815
  %v9146 = vadd.f32 %v8096, %v8815
  %v9147 = vadd.f32 %v8097, %v8820
  %v9148 = vadd.f32 %v8098, %v8820
  %v9149 = vadd.f32 %v8099, %v8825
  %v9150 = vadd.f32 %v8100, %v8825
  %v9151 = vadd.f32 %v8101, %v8830
  %v9152 = vadd.f32 %v8102, %v8830
  %v9153 = vadd.f32 %v8103, %v8835
  %v9154 = vadd.f32 %v8104, %v8835
  %v9155 = vadd.f32 %v8105, %v8840
  %v9156 = vadd.f32 %v8106, %v8840
  %v9157 = vadd.f32 %v8107, %v8845
  %v9158 = vadd.f32 %v8108, %v8845
  %v9159 = vadd.f32 %v8109, %v8850
  %v9160 = vadd.f32 %v8110, %v8850
  %v9161 = vadd.f32 %v8111, %v8855
  %v9162 = vadd.f32 %v8112, %v8855
  %v9163 = vadd.f32 %v8113, %v8860
  %v9164 = vadd.f32 %v8114, %v8860
  %v9165 = vadd.f32 %v8115, %v8865
  %v9166 = vadd.f32 %v8116, %v8865
  %9167 = vst [vmem:[%s5] sm:$0xff] %v8867
  %9168 = vst.msk [vmem:[%s5 + $0x8] sm:$0xff] %vm2416, %v8868
  %9169 = vst [vmem:[%s5 + $0x10] sm:$0xff] %v8869
  %9170 = vst.msk [vmem:[%s5 + $0x18] sm:$0xff] %vm2416, %v8870
  %9171 = vst [vmem:[%s5 + $0x20] sm:$0xff] %v8871
  %9172 = vst.msk [vmem:[%s5 + $0x28] sm:$0xff] %vm2416, %v8872
  %9173 = vst [vmem:[%s5 + $0x30] sm:$0xff] %v8873
  %9174 = vst.msk [vmem:[%s5 + $0x38] sm:$0xff] %vm2416, %v8874
  %9175 = vst [vmem:[%s5 + $0x40] sm:$0xff] %v8875
  %9176 = vst.msk [vmem:[%s5 + $0x48] sm:$0xff] %vm2416, %v8876
  %9177 = vst [vmem:[%s5 + $0x50] sm:$0xff] %v8877
  %9178 = vst.msk [vmem:[%s5 + $0x58] sm:$0xff] %vm2416, %v8878
  %9179 = vst [vmem:[%s5 + $0x60] sm:$0xff] %v8879
  %9180 = vst.msk [vmem:[%s5 + $0x68] sm:$0xff] %vm2416, %v8880
  %9181 = vst [vmem:[%s5 + $0x70] sm:$0xff] %v8881
  %9182 = vst.msk [vmem:[%s5 + $0x78] sm:$0xff] %vm2416, %v8882
  %9183 = vst [vmem:[%s5 + $0x80] sm:$0xff] %v8883
  %9184 = vst.msk [vmem:[%s5 + $0x88] sm:$0xff] %vm2416, %v8884
  %9185 = vst [vmem:[%s5 + $0x90] sm:$0xff] %v8885
  %9186 = vst.msk [vmem:[%s5 + $0x98] sm:$0xff] %vm2416, %v8886
  %9187 = vst [vmem:[%s5 + $0xa0] sm:$0xff] %v8887
  %9188 = vst.msk [vmem:[%s5 + $0xa8] sm:$0xff] %vm2416, %v8888
  %9189 = vst [vmem:[%s5 + $0xb0] sm:$0xff] %v8889
  %9190 = vst.msk [vmem:[%s5 + $0xb8] sm:$0xff] %vm2416, %v8890
  %9191 = vst [vmem:[%s5 + $0xc0] sm:$0xff] %v8891
  %9192 = vst.msk [vmem:[%s5 + $0xc8] sm:$0xff] %vm2416, %v8892
  %9193 = vst [vmem:[%s5 + $0xd0] sm:$0xff] %v8893
  %9194 = vst.msk [vmem:[%s5 + $0xd8] sm:$0xff] %vm2416, %v8894
  %9195 = vst [vmem:[%s5 + $0xe0] sm:$0xff] %v8895
  %9196 = vst.msk [vmem:[%s5 + $0xe8] sm:$0xff] %vm2416, %v8896
  %9197 = vst [vmem:[%s5 + $0xf0] sm:$0xff] %v8897
  %9198 = vst.msk [vmem:[%s5 + $0xf8] sm:$0xff] %vm2416, %v8898
  %9199 = vst [vmem:[%s5 + $0x100] sm:$0xff] %v8899
  %9200 = vst.msk [vmem:[%s5 + $0x108] sm:$0xff] %vm2416, %v8900
  %9201 = vst [vmem:[%s5 + $0x110] sm:$0xff] %v8901
  %9202 = vst.msk [vmem:[%s5 + $0x118] sm:$0xff] %vm2416, %v8902
  %9203 = vst [vmem:[%s5 + $0x120] sm:$0xff] %v8903
  %9204 = vst.msk [vmem:[%s5 + $0x128] sm:$0xff] %vm2416, %v8904
  %9205 = vst [vmem:[%s5 + $0x130] sm:$0xff] %v8905
  %9206 = vst.msk [vmem:[%s5 + $0x138] sm:$0xff] %vm2416, %v8906
  %9207 = vst [vmem:[%s5 + $0x140] sm:$0xff] %v8907
  %9208 = vst.msk [vmem:[%s5 + $0x148] sm:$0xff] %vm2416, %v8908
  %9209 = vst [vmem:[%s5 + $0x150] sm:$0xff] %v8909
  %9210 = vst.msk [vmem:[%s5 + $0x158] sm:$0xff] %vm2416, %v8910
  %9211 = vst [vmem:[%s5 + $0x160] sm:$0xff] %v8911
  %9212 = vst.msk [vmem:[%s5 + $0x168] sm:$0xff] %vm2416, %v8912
  %9213 = vst [vmem:[%s5 + $0x170] sm:$0xff] %v8913
  %9214 = vst.msk [vmem:[%s5 + $0x178] sm:$0xff] %vm2416, %v8914
  %9215 = vst [vmem:[%s5 + $0x180] sm:$0xff] %v8915
  %9216 = vst.msk [vmem:[%s5 + $0x188] sm:$0xff] %vm2416, %v8916
  %9217 = vst [vmem:[%s5 + $0x190] sm:$0xff] %v8917
  %9218 = vst.msk [vmem:[%s5 + $0x198] sm:$0xff] %vm2416, %v8918
  %9219 = vst [vmem:[%s5 + $0x1a0] sm:$0xff] %v8919
  %9220 = vst.msk [vmem:[%s5 + $0x1a8] sm:$0xff] %vm2416, %v8920
  %9221 = vst [vmem:[%s5 + $0x1b0] sm:$0xff] %v8921
  %9222 = vst.msk [vmem:[%s5 + $0x1b8] sm:$0xff] %vm2416, %v8922
  %9223 = vst [vmem:[%s5 + $0x1c0] sm:$0xff] %v8923
  %9224 = vst.msk [vmem:[%s5 + $0x1c8] sm:$0xff] %vm2416, %v8924
  %9225 = vst [vmem:[%s5 + $0x1d0] sm:$0xff] %v8925
  %9226 = vst.msk [vmem:[%s5 + $0x1d8] sm:$0xff] %vm2416, %v8926
  %9227 = vst [vmem:[%s5 + $0x1e0] sm:$0xff] %v8927
  %9228 = vst.msk [vmem:[%s5 + $0x1e8] sm:$0xff] %vm2416, %v8928
  %9229 = vst [vmem:[%s5 + $0x1f0] sm:$0xff] %v8929
  %9230 = vst.msk [vmem:[%s5 + $0x1f8] sm:$0xff] %vm2416, %v8930
  %9231 = vst [vmem:[%s5 + $0x200] sm:$0xff] %v8931
  %9232 = vst.msk [vmem:[%s5 + $0x208] sm:$0xff] %vm2416, %v8932
  %9233 = vst [vmem:[%s5 + $0x210] sm:$0xff] %v8933
  %9234 = vst.msk [vmem:[%s5 + $0x218] sm:$0xff] %vm2416, %v8934
  %9235 = vst [vmem:[%s5 + $0x220] sm:$0xff] %v8935
  %9236 = vst.msk [vmem:[%s5 + $0x228] sm:$0xff] %vm2416, %v8936
  %9237 = vst [vmem:[%s5 + $0x230] sm:$0xff] %v8937
  %9238 = vst.msk [vmem:[%s5 + $0x238] sm:$0xff] %vm2416, %v8938
  %9239 = vst [vmem:[%s5 + $0x240] sm:$0xff] %v8939
  %9240 = vst.msk [vmem:[%s5 + $0x248] sm:$0xff] %vm2416, %v8940
  %9241 = vst [vmem:[%s5 + $0x250] sm:$0xff] %v8941
  %9242 = vst.msk [vmem:[%s5 + $0x258] sm:$0xff] %vm2416, %v8942
  %9243 = vst [vmem:[%s5 + $0x260] sm:$0xff] %v8943
  %9244 = vst.msk [vmem:[%s5 + $0x268] sm:$0xff] %vm2416, %v8944
  %9245 = vst [vmem:[%s5 + $0x270] sm:$0xff] %v8945
  %9246 = vst.msk [vmem:[%s5 + $0x278] sm:$0xff] %vm2416, %v8946
  %9247 = vst [vmem:[%s5 + $0x280] sm:$0xff] %v8947
  %9248 = vst.msk [vmem:[%s5 + $0x288] sm:$0xff] %vm2416, %v8948
  %9249 = vst [vmem:[%s5 + $0x290] sm:$0xff] %v8949
  %9250 = vst.msk [vmem:[%s5 + $0x298] sm:$0xff] %vm2416, %v8950
  %9251 = vst [vmem:[%s5 + $0x2a0] sm:$0xff] %v8951
  %9252 = vst.msk [vmem:[%s5 + $0x2a8] sm:$0xff] %vm2416, %v8952
  %9253 = vst [vmem:[%s5 + $0x2b0] sm:$0xff] %v8953
  %9254 = vst.msk [vmem:[%s5 + $0x2b8] sm:$0xff] %vm2416, %v8954
  %9255 = vst [vmem:[%s5 + $0x2c0] sm:$0xff] %v8955
  %9256 = vst.msk [vmem:[%s5 + $0x2c8] sm:$0xff] %vm2416, %v8956
  %9257 = vst [vmem:[%s5 + $0x2d0] sm:$0xff] %v8957
  %9258 = vst.msk [vmem:[%s5 + $0x2d8] sm:$0xff] %vm2416, %v8958
  %9259 = vst [vmem:[%s5 + $0x2e0] sm:$0xff] %v8959
  %9260 = vst.msk [vmem:[%s5 + $0x2e8] sm:$0xff] %vm2416, %v8960
  %9261 = vst [vmem:[%s5 + $0x2f0] sm:$0xff] %v8961
  %9262 = vst.msk [vmem:[%s5 + $0x2f8] sm:$0xff] %vm2416, %v8962
  %9263 = vst [vmem:[%s5 + $0x300] sm:$0xff] %v8963
  %9264 = vst.msk [vmem:[%s5 + $0x308] sm:$0xff] %vm2416, %v8964
  %9265 = vst [vmem:[%s5 + $0x310] sm:$0xff] %v8965
  %9266 = vst.msk [vmem:[%s5 + $0x318] sm:$0xff] %vm2416, %v8966
  %9267 = vst [vmem:[%s5 + $0x320] sm:$0xff] %v8967
  %9268 = vst.msk [vmem:[%s5 + $0x328] sm:$0xff] %vm2416, %v8968
  %9269 = vst [vmem:[%s5 + $0x330] sm:$0xff] %v8969
  %9270 = vst.msk [vmem:[%s5 + $0x338] sm:$0xff] %vm2416, %v8970
  %9271 = vst [vmem:[%s5 + $0x340] sm:$0xff] %v8971
  %9272 = vst.msk [vmem:[%s5 + $0x348] sm:$0xff] %vm2416, %v8972
  %9273 = vst [vmem:[%s5 + $0x350] sm:$0xff] %v8973
  %9274 = vst.msk [vmem:[%s5 + $0x358] sm:$0xff] %vm2416, %v8974
  %9275 = vst [vmem:[%s5 + $0x360] sm:$0xff] %v8975
  %9276 = vst.msk [vmem:[%s5 + $0x368] sm:$0xff] %vm2416, %v8976
  %9277 = vst [vmem:[%s5 + $0x370] sm:$0xff] %v8977
  %9278 = vst.msk [vmem:[%s5 + $0x378] sm:$0xff] %vm2416, %v8978
  %9279 = vst [vmem:[%s5 + $0x380] sm:$0xff] %v8979
  %9280 = vst.msk [vmem:[%s5 + $0x388] sm:$0xff] %vm2416, %v8980
  %9281 = vst [vmem:[%s5 + $0x390] sm:$0xff] %v8981
  %9282 = vst.msk [vmem:[%s5 + $0x398] sm:$0xff] %vm2416, %v8982
  %9283 = vst [vmem:[%s5 + $0x3a0] sm:$0xff] %v8983
  %9284 = vst.msk [vmem:[%s5 + $0x3a8] sm:$0xff] %vm2416, %v8984
  %9285 = vst [vmem:[%s5 + $0x3b0] sm:$0xff] %v8985
  %9286 = vst.msk [vmem:[%s5 + $0x3b8] sm:$0xff] %vm2416, %v8986
  %9287 = vst [vmem:[%s5 + $0x3c0] sm:$0xff] %v8987
  %9288 = vst.msk [vmem:[%s5 + $0x3c8] sm:$0xff] %vm2416, %v8988
  %9289 = vst [vmem:[%s5 + $0x3d0] sm:$0xff] %v8989
  %9290 = vst.msk [vmem:[%s5 + $0x3d8] sm:$0xff] %vm2416, %v8990
  %9291 = vst [vmem:[%s5 + $0x3e0] sm:$0xff] %v8991
  %9292 = vst.msk [vmem:[%s5 + $0x3e8] sm:$0xff] %vm2416, %v8992
  %9293 = vst [vmem:[%s5 + $0x3f0] sm:$0xff] %v8993
  %9294 = vst.msk [vmem:[%s5 + $0x3f8] sm:$0xff] %vm2416, %v8994
  %9295 = vst [vmem:[%s5 + $0x400] sm:$0xff] %v8995
  %9296 = vst.msk [vmem:[%s5 + $0x408] sm:$0xff] %vm2416, %v8996
  %9297 = vst [vmem:[%s5 + $0x410] sm:$0xff] %v8997
  %9298 = vst.msk [vmem:[%s5 + $0x418] sm:$0xff] %vm2416, %v8998
  %9299 = vst [vmem:[%s5 + $0x420] sm:$0xff] %v8999
  %9300 = vst.msk [vmem:[%s5 + $0x428] sm:$0xff] %vm2416, %v9000
  %9301 = vst [vmem:[%s5 + $0x430] sm:$0xff] %v9001
  %9302 = vst.msk [vmem:[%s5 + $0x438] sm:$0xff] %vm2416, %v9002
  %9303 = vst [vmem:[%s5 + $0x440] sm:$0xff] %v9003
  %9304 = vst.msk [vmem:[%s5 + $0x448] sm:$0xff] %vm2416, %v9004
  %9305 = vst [vmem:[%s5 + $0x450] sm:$0xff] %v9005
  %9306 = vst.msk [vmem:[%s5 + $0x458] sm:$0xff] %vm2416, %v9006
  %9307 = vst [vmem:[%s5 + $0x460] sm:$0xff] %v9007
  %9308 = vst.msk [vmem:[%s5 + $0x468] sm:$0xff] %vm2416, %v9008
  %9309 = vst [vmem:[%s5 + $0x470] sm:$0xff] %v9009
  %9310 = vst.msk [vmem:[%s5 + $0x478] sm:$0xff] %vm2416, %v9010
  %9311 = vst [vmem:[%s5 + $0x480] sm:$0xff] %v9011
  %9312 = vst.msk [vmem:[%s5 + $0x488] sm:$0xff] %vm2416, %v9012
  %9313 = vst [vmem:[%s5 + $0x490] sm:$0xff] %v9013
  %9314 = vst.msk [vmem:[%s5 + $0x498] sm:$0xff] %vm2416, %v9014
  %9315 = vst [vmem:[%s5 + $0x4a0] sm:$0xff] %v9015
  %9316 = vst.msk [vmem:[%s5 + $0x4a8] sm:$0xff] %vm2416, %v9016
  %9317 = vst [vmem:[%s5 + $0x4b0] sm:$0xff] %v9017
  %9318 = vst.msk [vmem:[%s5 + $0x4b8] sm:$0xff] %vm2416, %v9018
  %9319 = vst [vmem:[%s5 + $0x4c0] sm:$0xff] %v9019
  %9320 = vst.msk [vmem:[%s5 + $0x4c8] sm:$0xff] %vm2416, %v9020
  %9321 = vst [vmem:[%s5 + $0x4d0] sm:$0xff] %v9021
  %9322 = vst.msk [vmem:[%s5 + $0x4d8] sm:$0xff] %vm2416, %v9022
  %9323 = vst [vmem:[%s5 + $0x4e0] sm:$0xff] %v9023
  %9324 = vst.msk [vmem:[%s5 + $0x4e8] sm:$0xff] %vm2416, %v9024
  %9325 = vst [vmem:[%s5 + $0x4f0] sm:$0xff] %v9025
  %9326 = vst.msk [vmem:[%s5 + $0x4f8] sm:$0xff] %vm2416, %v9026
  %9327 = vst [vmem:[%s5 + $0x500] sm:$0xff] %v9027
  %9328 = vst.msk [vmem:[%s5 + $0x508] sm:$0xff] %vm2416, %v9028
  %9329 = vst [vmem:[%s5 + $0x510] sm:$0xff] %v9029
  %9330 = vst.msk [vmem:[%s5 + $0x518] sm:$0xff] %vm2416, %v9030
  %9331 = vst [vmem:[%s5 + $0x520] sm:$0xff] %v9031
  %9332 = vst.msk [vmem:[%s5 + $0x528] sm:$0xff] %vm2416, %v9032
  %9333 = vst [vmem:[%s5 + $0x530] sm:$0xff] %v9033
  %9334 = vst.msk [vmem:[%s5 + $0x538] sm:$0xff] %vm2416, %v9034
  %9335 = vst [vmem:[%s5 + $0x540] sm:$0xff] %v9035
  %9336 = vst.msk [vmem:[%s5 + $0x548] sm:$0xff] %vm2416, %v9036
  %9337 = vst [vmem:[%s5 + $0x550] sm:$0xff] %v9037
  %9338 = vst.msk [vmem:[%s5 + $0x558] sm:$0xff] %vm2416, %v9038
  %9339 = vst [vmem:[%s5 + $0x560] sm:$0xff] %v9039
  %9340 = vst.msk [vmem:[%s5 + $0x568] sm:$0xff] %vm2416, %v9040
  %9341 = vst [vmem:[%s5 + $0x570] sm:$0xff] %v9041
  %9342 = vst.msk [vmem:[%s5 + $0x578] sm:$0xff] %vm2416, %v9042
  %9343 = vst [vmem:[%s5 + $0x580] sm:$0xff] %v9043
  %9344 = vst.msk [vmem:[%s5 + $0x588] sm:$0xff] %vm2416, %v9044
  %9345 = vst [vmem:[%s5 + $0x590] sm:$0xff] %v9045
  %9346 = vst.msk [vmem:[%s5 + $0x598] sm:$0xff] %vm2416, %v9046
  %9347 = vst [vmem:[%s5 + $0x5a0] sm:$0xff] %v9047
  %9348 = vst.msk [vmem:[%s5 + $0x5a8] sm:$0xff] %vm2416, %v9048
  %9349 = vst [vmem:[%s5 + $0x5b0] sm:$0xff] %v9049
  %9350 = vst.msk [vmem:[%s5 + $0x5b8] sm:$0xff] %vm2416, %v9050
  %9351 = vst [vmem:[%s5 + $0x5c0] sm:$0xff] %v9051
  %9352 = vst.msk [vmem:[%s5 + $0x5c8] sm:$0xff] %vm2416, %v9052
  %9353 = vst [vmem:[%s5 + $0x5d0] sm:$0xff] %v9053
  %9354 = vst.msk [vmem:[%s5 + $0x5d8] sm:$0xff] %vm2416, %v9054
  %9355 = vst [vmem:[%s5 + $0x5e0] sm:$0xff] %v9055
  %9356 = vst.msk [vmem:[%s5 + $0x5e8] sm:$0xff] %vm2416, %v9056
  %9357 = vst [vmem:[%s5 + $0x5f0] sm:$0xff] %v9057
  %9358 = vst.msk [vmem:[%s5 + $0x5f8] sm:$0xff] %vm2416, %v9058
  %9359 = vst [vmem:[%s5 + $0x600] sm:$0xff] %v9059
  %9360 = vst.msk [vmem:[%s5 + $0x608] sm:$0xff] %vm2416, %v9060
  %9361 = vst [vmem:[%s5 + $0x610] sm:$0xff] %v9061
  %9362 = vst.msk [vmem:[%s5 + $0x618] sm:$0xff] %vm2416, %v9062
  %9363 = vst [vmem:[%s5 + $0x620] sm:$0xff] %v9063
  %9364 = vst.msk [vmem:[%s5 + $0x628] sm:$0xff] %vm2416, %v9064
  %9365 = vst [vmem:[%s5 + $0x630] sm:$0xff] %v9065
  %9366 = vst.msk [vmem:[%s5 + $0x638] sm:$0xff] %vm2416, %v9066
  %9367 = vst [vmem:[%s5 + $0x640] sm:$0xff] %v9067
  %9368 = vst.msk [vmem:[%s5 + $0x648] sm:$0xff] %vm2416, %v9068
  %9369 = vst [vmem:[%s5 + $0x650] sm:$0xff] %v9069
  %9370 = vst.msk [vmem:[%s5 + $0x658] sm:$0xff] %vm2416, %v9070
  %9371 = vst [vmem:[%s5 + $0x660] sm:$0xff] %v9071
  %9372 = vst.msk [vmem:[%s5 + $0x668] sm:$0xff] %vm2416, %v9072
  %9373 = vst [vmem:[%s5 + $0x670] sm:$0xff] %v9073
  %9374 = vst.msk [vmem:[%s5 + $0x678] sm:$0xff] %vm2416, %v9074
  %9375 = vst [vmem:[%s5 + $0x680] sm:$0xff] %v9075
  %9376 = vst.msk [vmem:[%s5 + $0x688] sm:$0xff] %vm2416, %v9076
  %9377 = vst [vmem:[%s5 + $0x690] sm:$0xff] %v9077
  %9378 = vst.msk [vmem:[%s5 + $0x698] sm:$0xff] %vm2416, %v9078
  %9379 = vst [vmem:[%s5 + $0x6a0] sm:$0xff] %v9079
  %9380 = vst.msk [vmem:[%s5 + $0x6a8] sm:$0xff] %vm2416, %v9080
  %9381 = vst [vmem:[%s5 + $0x6b0] sm:$0xff] %v9081
  %9382 = vst.msk [vmem:[%s5 + $0x6b8] sm:$0xff] %vm2416, %v9082
  %9383 = vst [vmem:[%s5 + $0x6c0] sm:$0xff] %v9083
  %9384 = vst.msk [vmem:[%s5 + $0x6c8] sm:$0xff] %vm2416, %v9084
  %9385 = vst [vmem:[%s5 + $0x6d0] sm:$0xff] %v9085
  %9386 = vst.msk [vmem:[%s5 + $0x6d8] sm:$0xff] %vm2416, %v9086
  %9387 = vst [vmem:[%s5 + $0x6e0] sm:$0xff] %v9087
  %9388 = vst.msk [vmem:[%s5 + $0x6e8] sm:$0xff] %vm2416, %v9088
  %9389 = vst [vmem:[%s5 + $0x6f0] sm:$0xff] %v9089
  %9390 = vst.msk [vmem:[%s5 + $0x6f8] sm:$0xff] %vm2416, %v9090
  %9391 = vst [vmem:[%s5 + $0x700] sm:$0xff] %v9091
  %9392 = vst.msk [vmem:[%s5 + $0x708] sm:$0xff] %vm2416, %v9092
  %9393 = vst [vmem:[%s5 + $0x710] sm:$0xff] %v9093
  %9394 = vst.msk [vmem:[%s5 + $0x718] sm:$0xff] %vm2416, %v9094
  %9395 = vst [vmem:[%s5 + $0x720] sm:$0xff] %v9095
  %9396 = vst.msk [vmem:[%s5 + $0x728] sm:$0xff] %vm2416, %v9096
  %9397 = vst [vmem:[%s5 + $0x730] sm:$0xff] %v9097
  %9398 = vst.msk [vmem:[%s5 + $0x738] sm:$0xff] %vm2416, %v9098
  %9399 = vst [vmem:[%s5 + $0x740] sm:$0xff] %v9099
  %9400 = vst.msk [vmem:[%s5 + $0x748] sm:$0xff] %vm2416, %v9100
  %9401 = vst [vmem:[%s5 + $0x750] sm:$0xff] %v9101
  %9402 = vst.msk [vmem:[%s5 + $0x758] sm:$0xff] %vm2416, %v9102
  %9403 = vst [vmem:[%s5 + $0x760] sm:$0xff] %v9103
  %9404 = vst.msk [vmem:[%s5 + $0x768] sm:$0xff] %vm2416, %v9104
  %9405 = vst [vmem:[%s5 + $0x770] sm:$0xff] %v9105
  %9406 = vst.msk [vmem:[%s5 + $0x778] sm:$0xff] %vm2416, %v9106
  %9407 = vst [vmem:[%s5 + $0x780] sm:$0xff] %v9107
  %9408 = vst.msk [vmem:[%s5 + $0x788] sm:$0xff] %vm2416, %v9108
  %9409 = vst [vmem:[%s5 + $0x790] sm:$0xff] %v9109
  %9410 = vst.msk [vmem:[%s5 + $0x798] sm:$0xff] %vm2416, %v9110
  %9411 = vst [vmem:[%s5 + $0x7a0] sm:$0xff] %v9111
  %9412 = vst.msk [vmem:[%s5 + $0x7a8] sm:$0xff] %vm2416, %v9112
  %9413 = vst [vmem:[%s5 + $0x7b0] sm:$0xff] %v9113
  %9414 = vst.msk [vmem:[%s5 + $0x7b8] sm:$0xff] %vm2416, %v9114
  %9415 = vst [vmem:[%s5 + $0x7c0] sm:$0xff] %v9115
  %9416 = vst.msk [vmem:[%s5 + $0x7c8] sm:$0xff] %vm2416, %v9116
  %9417 = vst [vmem:[%s5 + $0x7d0] sm:$0xff] %v9117
  %9418 = vst.msk [vmem:[%s5 + $0x7d8] sm:$0xff] %vm2416, %v9118
  %9419 = vst [vmem:[%s5 + $0x7e0] sm:$0xff] %v9119
  %9420 = vst.msk [vmem:[%s5 + $0x7e8] sm:$0xff] %vm2416, %v9120
  %9421 = vst [vmem:[%s5 + $0x7f0] sm:$0xff] %v9121
  %9422 = vst.msk [vmem:[%s5 + $0x7f8] sm:$0xff] %vm2416, %v9122
  %9423 = vst [vmem:[%s5 + $0x800] sm:$0xff] %v9123
  %9424 = vst.msk [vmem:[%s5 + $0x808] sm:$0xff] %vm2416, %v9124
  %9425 = vst [vmem:[%s5 + $0x810] sm:$0xff] %v9125
  %9426 = vst.msk [vmem:[%s5 + $0x818] sm:$0xff] %vm2416, %v9126
  %9427 = vst [vmem:[%s5 + $0x820] sm:$0xff] %v9127
  %9428 = vst.msk [vmem:[%s5 + $0x828] sm:$0xff] %vm2416, %v9128
  %9429 = vst [vmem:[%s5 + $0x830] sm:$0xff] %v9129
  %9430 = vst.msk [vmem:[%s5 + $0x838] sm:$0xff] %vm2416, %v9130
  %9431 = vst [vmem:[%s5 + $0x840] sm:$0xff] %v9131
  %9432 = vst.msk [vmem:[%s5 + $0x848] sm:$0xff] %vm2416, %v9132
  %9433 = vst [vmem:[%s5 + $0x850] sm:$0xff] %v9133
  %9434 = vst.msk [vmem:[%s5 + $0x858] sm:$0xff] %vm2416, %v9134
  %9435 = vst [vmem:[%s5 + $0x860] sm:$0xff] %v9135
  %9436 = vst.msk [vmem:[%s5 + $0x868] sm:$0xff] %vm2416, %v9136
  %9437 = vst [vmem:[%s5 + $0x870] sm:$0xff] %v9137
  %9438 = vst.msk [vmem:[%s5 + $0x878] sm:$0xff] %vm2416, %v9138
  %9439 = vst [vmem:[%s5 + $0x880] sm:$0xff] %v9139
  %9440 = vst.msk [vmem:[%s5 + $0x888] sm:$0xff] %vm2416, %v9140
  %9441 = vst [vmem:[%s5 + $0x890] sm:$0xff] %v9141
  %9442 = vst.msk [vmem:[%s5 + $0x898] sm:$0xff] %vm2416, %v9142
  %9443 = vst [vmem:[%s5 + $0x8a0] sm:$0xff] %v9143
  %9444 = vst.msk [vmem:[%s5 + $0x8a8] sm:$0xff] %vm2416, %v9144
  %9445 = vst [vmem:[%s5 + $0x8b0] sm:$0xff] %v9145
  %9446 = vst.msk [vmem:[%s5 + $0x8b8] sm:$0xff] %vm2416, %v9146
  %9447 = vst [vmem:[%s5 + $0x8c0] sm:$0xff] %v9147
  %9448 = vst.msk [vmem:[%s5 + $0x8c8] sm:$0xff] %vm2416, %v9148
  %9449 = vst [vmem:[%s5 + $0x8d0] sm:$0xff] %v9149
  %9450 = vst.msk [vmem:[%s5 + $0x8d8] sm:$0xff] %vm2416, %v9150
  %9451 = vst [vmem:[%s5 + $0x8e0] sm:$0xff] %v9151
  %9452 = vst.msk [vmem:[%s5 + $0x8e8] sm:$0xff] %vm2416, %v9152
  %9453 = vst [vmem:[%s5 + $0x8f0] sm:$0xff] %v9153
  %9454 = vst.msk [vmem:[%s5 + $0x8f8] sm:$0xff] %vm2416, %v9154
  %9455 = vst [vmem:[%s5 + $0x900] sm:$0xff] %v9155
  %9456 = vst.msk [vmem:[%s5 + $0x908] sm:$0xff] %vm2416, %v9156
  %9457 = vst [vmem:[%s5 + $0x910] sm:$0xff] %v9157
  %9458 = vst.msk [vmem:[%s5 + $0x918] sm:$0xff] %vm2416, %v9158
  %9459 = vst [vmem:[%s5 + $0x920] sm:$0xff] %v9159
  %9460 = vst.msk [vmem:[%s5 + $0x928] sm:$0xff] %vm2416, %v9160
  %9461 = vst [vmem:[%s5 + $0x930] sm:$0xff] %v9161
  %9462 = vst.msk [vmem:[%s5 + $0x938] sm:$0xff] %vm2416, %v9162
  %9463 = vst [vmem:[%s5 + $0x940] sm:$0xff] %v9163
  %9464 = vst.msk [vmem:[%s5 + $0x948] sm:$0xff] %vm2416, %v9164
  %9465 = vst [vmem:[%s5 + $0x950] sm:$0xff] %v9165
  %9466 = vst.msk [vmem:[%s5 + $0x958] sm:$0xff] %vm2416, %v9166
  // Predicated region
  $region22: #{tpu_custom_call.1} parent=0 // pred_check
    _
  $region23: #{tpu_custom_call.1} parent=0 // pred_check_branch
    %9468 = sbr.rel (0) target = $region25
  $region24: #{tpu_custom_call.1} parent=0 // pred_region
    _
  $region25: #{tpu_custom_call.1} parent=0 // pred_fallthru
    _
  // Predicated region
  $region26: #{tpu_custom_call.1} parent=0 // pred_check
    _
  $region27: #{tpu_custom_call.1} parent=0 // pred_check_branch
    %9470 = sbr.rel (0) target = $region29
  $region28: #{tpu_custom_call.1} parent=0 // pred_region
    _
  $region29: #{tpu_custom_call.1} parent=0 // pred_fallthru
    _

</llo_original>
